<compile_context>
chip_gen: v6e
topology: v6e:2x2x1
jax: 0.10.0
libtpu: 0.0.40
codegen_flags: <defaults>
</compile_context>

<pallas_src>
import functools

import jax
import jax.numpy as jnp
from jax.experimental import pallas as pl
from jax.experimental.pallas import tpu as pltpu


_LANE = 128  # lane width / channel padding quantum


def _round_up(x, m):
    return (x + m - 1) // m * m


@functools.lru_cache(maxsize=None)
def _vmem_limit_bytes():
    """Generation-aware scoped-VMEM cap (v7x has only 64 MiB per TensorCore)."""
    cap = None
    try:
        cap = int(getattr(pltpu.get_tpu_info(), "vmem_capacity_bytes"))
    except Exception:
        cap = None
    if not cap or cap <= 0:
        cap = 64 * 1024 * 1024  # conservative default = v7x per-TC capacity
    return min((cap * 3) // 4, 96 * 1024 * 1024)


# ------------------------------ fused kernel -------------------------------- #

def _bottleneck_kernel(x_ref, w1_ref, b1_ref, w2_ref, b2_ref, w3_ref, b3_ref,
                       o_ref, h1p_ref, col_ref):
    """One batch image per grid step.

    x_ref : (1, H, W, Cin_p)    bf16   activation (also the residual)
    w1_ref: (Cin_p, Cmid_p)     bf16   1x1 conv, BN1 scale folded
    b1_ref: (1, Cmid_p)         f32
    w2_ref: (9*Cmid_p, Cmid_p)  bf16   3x3 conv taps stacked along K, BN2 folded
    b2_ref: (1, Cmid_p)         f32
    w3_ref: (Cmid_p, Cout_p)    bf16   1x1 conv, BN3 scale folded
    b3_ref: (1, Cout_p)         f32
    o_ref : (1, H, W, Cout_p)   bf16
    h1p_ref: ((H+3)*(W+2), Cmid_p) bf16 VMEM — flattened zero-padded h1 (halo)
    col_ref: (H*(W+2), 9*Cmid_p)   bf16 VMEM — local im2col panel
    """
    _, H, W, Cout = o_ref.shape
    Cin = x_ref.shape[3]
    Cmid = w1_ref.shape[1]
    Wp = W + 2
    HW = H * W
    HWp = H * Wp

    # Zero the padded-h1 scratch: halo rows/cols must be zero every step (the
    # interior is overwritten just below).  Cheap, VMEM-local.
    h1p_ref[...] = jnp.zeros_like(h1p_ref)

    # ---- conv1 (1x1) + bn1 + relu  (bf16 MXU, f32 accumulate) ---------------
    x = x_ref[...].reshape(HW, Cin)                 # bf16; reused as residual
    h1 = jnp.dot(x, w1_ref[...], preferred_element_type=jnp.float32)
    h1 = jnp.maximum(h1 + b1_ref[...], 0.0).astype(jnp.bfloat16)

    # Write h1 into the interior of the flattened padded image:
    # flat(y, x) = (y + 1) * (W + 2) + (x + 1).   (static unroll, VMEM-local)
    for y in range(H):
        h1p_ref[pl.ds((y + 1) * Wp + 1, W), :] = h1[y * W:(y + 1) * W, :]

    # ---- conv2 (3x3, pad=1, stride=1) + bn2 + relu --------------------------
    # im2col in VMEM: tap (dy, dx) is the padded image shifted by
    # dy*(W+2)+dx flat rows; 9 lane-aligned column blocks -> one deep-K matmul.
    for t in range(9):
        off = (t // 3) * Wp + (t % 3)
        col_ref[:, t * Cmid:(t + 1) * Cmid] = h1p_ref[pl.ds(off, HWp), :]

    h2w = jnp.dot(col_ref[...], w2_ref[...], preferred_element_type=jnp.float32)
    h2w = jnp.maximum(h2w + b2_ref[...], 0.0).astype(jnp.bfloat16)
    # Rows whose flat index has (x mod (W+2)) >= W are row-wrap junk — drop
    # them with a single compaction on the small bf16 tensor.
    h2 = h2w.reshape(H, Wp, Cmid)[:, :W, :].reshape(HW, Cmid)

    # ---- conv3 (1x1) + bn3 + identity residual + relu -----------------------
    y3 = jnp.dot(h2, w3_ref[...], preferred_element_type=jnp.float32)
    y3 = y3 + b3_ref[...] + x.astype(jnp.float32)   # padded lanes stay 0
    o_ref[...] = jnp.maximum(y3, 0.0).astype(o_ref.dtype).reshape(1, H, W, Cout)


def bottleneck_block(x_nhwc_p, params):
    """Fused BottleNeck on channel-padded NHWC bf16 input. Returns padded bf16."""
    N, H, W, Cin_p = x_nhwc_p.shape
    Cmid_p = params["w1"].shape[1]
    Cout_p = params["w3"].shape[1]
    Wp = W + 2
    return pl.pallas_call(
        _bottleneck_kernel,
        out_shape=jax.ShapeDtypeStruct((N, H, W, Cout_p), jnp.bfloat16),
        grid=(N,),
        in_specs=[
            pl.BlockSpec((1, H, W, Cin_p), lambda n: (n, 0, 0, 0)),
            pl.BlockSpec((Cin_p, Cmid_p), lambda n: (0, 0)),
            pl.BlockSpec((1, Cmid_p), lambda n: (0, 0)),
            pl.BlockSpec((9 * Cmid_p, Cmid_p), lambda n: (0, 0)),
            pl.BlockSpec((1, Cmid_p), lambda n: (0, 0)),
            pl.BlockSpec((Cmid_p, Cout_p), lambda n: (0, 0)),
            pl.BlockSpec((1, Cout_p), lambda n: (0, 0)),
        ],
        out_specs=pl.BlockSpec((1, H, W, Cout_p), lambda n: (n, 0, 0, 0)),
        scratch_shapes=[
            # Flattened zero-padded h1; a few extra rows so every tap slab read
            # (offset + H*(W+2)) stays in bounds (extra rows feed junk rows only).
            pltpu.VMEM(((H + 3) * Wp, Cmid_p), jnp.bfloat16),
            # VMEM-local im2col panel (never materialized in HBM).
            pltpu.VMEM((H * Wp, 9 * Cmid_p), jnp.bfloat16),
        ],
        compiler_params=pltpu.CompilerParams(
            dimension_semantics=("parallel",),
            vmem_limit_bytes=_vmem_limit_bytes()),
    )(x_nhwc_p, params["w1"], params["b1"], params["w2"], params["b2"],
      params["w3"], params["b3"])


# ------------------------------ parameters ---------------------------------- #

def _fold_bn(gamma, beta, mean, var, eps=1e-5):
    scale = gamma / jnp.sqrt(var + eps)
    bias = beta - mean * scale
    return scale, bias


def init_bottleneck_params(key, in_channels, out_channels, eps=1e-5):
    """Synthetic parameters matching BottleNeck.__init__ shapes.

    Returns (params, ref_params):
      params     — BN-scale-folded, channel-padded bf16 weights (w2 packed as
                   (9*Cmid_p, Cmid_p) for the deep-K conv2 matmul) + f32 biases.
      ref_params — unpadded f32 folded weights/biases for the pure-JAX check.
    """
    exp = 4
    cin, cmid, cout = in_channels, out_channels, exp * out_channels
    cin_p = _round_up(cin, _LANE)
    cmid_p = _round_up(cmid, _LANE)
    cout_p = _round_up(cout, _LANE)

    ks = jax.random.split(key, 9)
    # torch layouts: conv1 (cmid, cin, 1, 1), conv2 (cmid, cmid, 3, 3),
    #                conv3 (cout, cmid, 1, 1)
    w1 = 0.1 * jax.random.normal(ks[0], (cmid, cin), jnp.float32)
    w2 = 0.1 * jax.random.normal(ks[1], (cmid, cmid, 3, 3), jnp.float32)
    w3 = 0.1 * jax.random.normal(ks[2], (cout, cmid), jnp.float32)

    def bn(kg, kb, c):
        gamma = 1.0 + 0.1 * jax.random.normal(kg, (c,), jnp.float32)
        beta = 0.1 * jax.random.normal(kb, (c,), jnp.float32)
        mean = jnp.zeros((c,), jnp.float32)
        var = jnp.ones((c,), jnp.float32)
        return _fold_bn(gamma, beta, mean, var, eps)

    s1, b1 = bn(ks[3], ks[4], cmid)
    s2, b2 = bn(ks[5], ks[6], cmid)
    s3, b3 = bn(ks[7], ks[8], cout)

    # Fold BN scale into the weight output columns.
    w1m = w1.T * s1[None, :]                                      # (cin, cmid)
    w2m = jnp.transpose(w2, (2, 3, 1, 0)).reshape(9, cmid, cmid)  # (9, cin, cout)
    w2m = w2m * s2[None, None, :]
    w3m = w3.T * s3[None, :]                                      # (cmid, cout)

    def pad2(a, r, c):
        return jnp.pad(a, ((0, r - a.shape[0]), (0, c - a.shape[1])))

    def pad_bias(b, c):
        return jnp.pad(b, (0, c - b.shape[0]))[None, :].astype(jnp.float32)

    w2_padded = jnp.pad(w2m, ((0, 0), (0, cmid_p - cmid), (0, cmid_p - cmid)))
    params = {
        "w1": pad2(w1m, cin_p, cmid_p).astype(jnp.bfloat16),
        "b1": pad_bias(b1, cmid_p),
        "w2": w2_padded.reshape(9 * cmid_p, cmid_p).astype(jnp.bfloat16),
        "b2": pad_bias(b2, cmid_p),
        "w3": pad2(w3m, cmid_p, cout_p).astype(jnp.bfloat16),
        "b3": pad_bias(b3, cout_p),
    }
    ref_params = {"w1": w1m, "b1": b1, "w2": w2m, "b2": b2, "w3": w3m, "b3": b3}
    return params, ref_params


# ------------------------------ BottleNeck ----------------------------------- #

@functools.partial(jax.jit, static_argnums=(2,))
def bottleneck_forward(x_nchw, params, stride=1):
    """Forward pass of BottleNeck. x_nchw: (N, C_in, H, W) f32.

    Identity-residual configuration (stride == 1, C_in == 4 * out_channels,
    downsample=None), matching the PyTorch module default path.
    """
    assert stride == 1  # TODO(synk): stride-2 / downsample branch not implemented
    x = jnp.transpose(x_nchw, (0, 2, 3, 1))              # NCHW -> NHWC
    N, H, W, Cin = x.shape
    cin_p = params["w1"].shape[0]
    cout_p = params["w3"].shape[1]
    assert cin_p == cout_p, "identity residual requires C_in == 4*out_channels"

    # Lane-dense channel padding (zeros do not change the math anywhere).
    x_p = jnp.pad(x, ((0, 0), (0, 0), (0, 0), (0, cin_p - Cin))).astype(jnp.bfloat16)

    out = bottleneck_block(x_p, params)                  # (N, H, W, cout_p) bf16

    out = out[..., :Cin].astype(jnp.float32)
    return jnp.transpose(out, (0, 3, 1, 2))              # NHWC -> NCHW


def bottleneck_reference(x_nchw, rp):
    """Pure-JAX f32 reference (same folded-BN math, unpadded weights)."""
    x = jnp.transpose(x_nchw, (0, 2, 3, 1))
    _, H, W, _ = x.shape
    h1 = jnp.maximum(jnp.einsum("nhwc,cm->nhwm", x, rp["w1"]) + rp["b1"], 0.0)
    h1p = jnp.pad(h1, ((0, 0), (1, 1), (1, 1), (0, 0)))
    h2 = jnp.zeros(h1.shape[:3] + (rp["w2"].shape[2],), jnp.float32)
    for dy in range(3):
        for dx in range(3):
            h2 = h2 + jnp.einsum("nhwc,cm->nhwm",
                                 h1p[:, dy:dy + H, dx:dx + W, :],
                                 rp["w2"][dy * 3 + dx])
    h2 = jnp.maximum(h2 + rp["b2"], 0.0)
    out = jnp.einsum("nhwc,cm->nhwm", h2, rp["w3"]) + rp["b3"] + x
    return jnp.transpose(jnp.maximum(out, 0.0), (0, 3, 1, 2))


# --------------------------------- main -------------------------------------- #

if __name__ == "__main__":
    key = jax.random.PRNGKey(0)
    k_x, k_p = jax.random.split(key)

    # in_channels must equal expansion * out_channels so the identity residual
    # is valid (downsample=None), mirroring an inner BottleNeck block.
    # NOTE: this demo shape (16 channels padded to 128) is a correctness smoke
    # test only; benchmark/tune at real ResNet channel counts (>=128).
    batch, out_channels = 2, 4
    in_channels = 4 * out_channels                   # 16
    H = W = 16

    x = jax.random.normal(k_x, (batch, in_channels, H, W), jnp.float32)
    params, ref_params = init_bottleneck_params(k_p, in_channels, out_channels)

    y = bottleneck_forward(x, params, 1)
    y = jax.block_until_ready(y)

    assert y.shape == (batch, in_channels, H, W)
    assert bool(jnp.all(y >= 0.0))                   # final ReLU
    assert bool(jnp.all(jnp.isfinite(y)))

    # Numerical check vs. pure-JAX f32 reference.  bf16 matmul operands and a
    # bf16 block output (lower HBM traffic) -> loose absolute tolerance.
    y_ref = bottleneck_reference(x, ref_params)
    max_err = float(jnp.max(jnp.abs(y - y_ref)))
    assert max_err < 1e-1, f"max abs err vs reference: {max_err}"

    print("KERNEL_OK")
</pallas_src>

<mosaic_0001>
module attributes {stable_mosaic.version = 11 : i64} {
  func.func @_bottleneck_kernel(%arg0: i32, %arg1: memref<1x16x16x128xbf16, #tpu.memory_space<vmem>>, %arg2: memref<128x128xbf16, #tpu.memory_space<vmem>>, %arg3: memref<1x128xf32, #tpu.memory_space<vmem>>, %arg4: memref<1152x128xbf16, #tpu.memory_space<vmem>>, %arg5: memref<1x128xf32, #tpu.memory_space<vmem>>, %arg6: memref<128x128xbf16, #tpu.memory_space<vmem>>, %arg7: memref<1x128xf32, #tpu.memory_space<vmem>>, %arg8: memref<1x16x16x128xbf16, #tpu.memory_space<vmem>>, %arg9: memref<342x128xbf16, #tpu.memory_space<vmem>>, %arg10: memref<288x1152xbf16, #tpu.memory_space<vmem>>) attributes {dimension_semantics = [#tpu.dimension_semantics<parallel>], iteration_bounds = array<i64: 2>, scalar_prefetch = 0 : i64, scratch_operands = 2 : i64, tpu.core_type = #tpu.core_type<tc>, window_params = [{transform_indices = @transform_0, window_bounds = array<i64: 1, 16, 16, 128>}, {pipeline_mode = #tpu.pipeline_mode<synchronous>, transform_indices = @transform_1, window_bounds = array<i64: 128, 128>}, {pipeline_mode = #tpu.pipeline_mode<synchronous>, transform_indices = @transform_2, window_bounds = array<i64: 1, 128>}, {pipeline_mode = #tpu.pipeline_mode<synchronous>, transform_indices = @transform_3, window_bounds = array<i64: 1152, 128>}, {pipeline_mode = #tpu.pipeline_mode<synchronous>, transform_indices = @transform_4, window_bounds = array<i64: 1, 128>}, {pipeline_mode = #tpu.pipeline_mode<synchronous>, transform_indices = @transform_5, window_bounds = array<i64: 128, 128>}, {pipeline_mode = #tpu.pipeline_mode<synchronous>, transform_indices = @transform_6, window_bounds = array<i64: 1, 128>}, {transform_indices = @transform_7, window_bounds = array<i64: 1, 16, 16, 128>}]} {
    %cst = arith.constant 0.000000e+00 : bf16
    %0 = vector.broadcast %cst : bf16 to vector<342x128xbf16>
    %c0 = arith.constant 0 : index
    %c0_0 = arith.constant 0 : index
    %1 = vector.load %arg9[%c0, %c0_0] : memref<342x128xbf16, #tpu.memory_space<vmem>>, vector<342x128xbf16>
    tpu.vector_store %arg9[%c0, %c0_0], %0 {strides = array<i32>} : memref<342x128xbf16, #tpu.memory_space<vmem>>, vector<342x128xbf16>,
    %c0_1 = arith.constant 0 : index
    %c0_2 = arith.constant 0 : index
    %c0_3 = arith.constant 0 : index
    %c0_4 = arith.constant 0 : index
    %2 = vector.load %arg1[%c0_1, %c0_2, %c0_3, %c0_4] : memref<1x16x16x128xbf16, #tpu.memory_space<vmem>>, vector<1x16x16x128xbf16>
    %3 = vector.shape_cast %2 : vector<1x16x16x128xbf16> to vector<256x128xbf16>
    %c0_5 = arith.constant 0 : index
    %c0_6 = arith.constant 0 : index
    %4 = vector.load %arg2[%c0_5, %c0_6] : memref<128x128xbf16, #tpu.memory_space<vmem>>, vector<128x128xbf16>
    %cst_7 = arith.constant dense<0.000000e+00> : vector<256x128xf32>
    %5 = tpu.matmul %3, %4, %cst_7 {dimension_numbers = #tpu.dot_dimension_numbers<[1], [0], [0], [1], [0, 0, 1, 1], [], []>} : vector<256x128xbf16>, vector<128x128xbf16>, vector<256x128xf32> -> vector<256x128xf32>
    %c0_8 = arith.constant 0 : index
    %c0_9 = arith.constant 0 : index
    %6 = vector.load %arg3[%c0_8, %c0_9] : memref<1x128xf32, #tpu.memory_space<vmem>>, vector<1x128xf32>
    %7 = vector.broadcast %6 : vector<1x128xf32> to vector<256x128xf32>
    %8 = arith.addf %5, %7 : vector<256x128xf32>
    %cst_10 = arith.constant 0.000000e+00 : f32
    %9 = vector.broadcast %cst_10 : f32 to vector<256x128xf32>
    %10 = arith.maximumf %8, %9 : vector<256x128xf32>
    %11 = arith.truncf %10 : vector<256x128xf32> to vector<256x128xbf16>
    %12 = vector.extract_strided_slice %11 {offsets = [0, 0], sizes = [16, 128], strides = [1, 1]} : vector<256x128xbf16> to vector<16x128xbf16>
    %c19 = arith.constant 19 : index
    %c0_11 = arith.constant 0 : index
    %13 = vector.load %arg9[%c19, %c0_11] : memref<342x128xbf16, #tpu.memory_space<vmem>>, vector<16x128xbf16>
    tpu.vector_store %arg9[%c19, %c0_11], %12 {strides = array<i32>} : memref<342x128xbf16, #tpu.memory_space<vmem>>, vector<16x128xbf16>,
    %14 = vector.extract_strided_slice %11 {offsets = [16, 0], sizes = [16, 128], strides = [1, 1]} : vector<256x128xbf16> to vector<16x128xbf16>
    %c37 = arith.constant 37 : index
    %c0_12 = arith.constant 0 : index
    %15 = vector.load %arg9[%c37, %c0_12] : memref<342x128xbf16, #tpu.memory_space<vmem>>, vector<16x128xbf16>
    tpu.vector_store %arg9[%c37, %c0_12], %14 {strides = array<i32>} : memref<342x128xbf16, #tpu.memory_space<vmem>>, vector<16x128xbf16>,
    %16 = vector.extract_strided_slice %11 {offsets = [32, 0], sizes = [16, 128], strides = [1, 1]} : vector<256x128xbf16> to vector<16x128xbf16>
    %c55 = arith.constant 55 : index
    %c0_13 = arith.constant 0 : index
    %17 = vector.load %arg9[%c55, %c0_13] : memref<342x128xbf16, #tpu.memory_space<vmem>>, vector<16x128xbf16>
    tpu.vector_store %arg9[%c55, %c0_13], %16 {strides = array<i32>} : memref<342x128xbf16, #tpu.memory_space<vmem>>, vector<16x128xbf16>,
    %18 = vector.extract_strided_slice %11 {offsets = [48, 0], sizes = [16, 128], strides = [1, 1]} : vector<256x128xbf16> to vector<16x128xbf16>
    %c73 = arith.constant 73 : index
    %c0_14 = arith.constant 0 : index
    %19 = vector.load %arg9[%c73, %c0_14] : memref<342x128xbf16, #tpu.memory_space<vmem>>, vector<16x128xbf16>
    tpu.vector_store %arg9[%c73, %c0_14], %18 {strides = array<i32>} : memref<342x128xbf16, #tpu.memory_space<vmem>>, vector<16x128xbf16>,
    %20 = vector.extract_strided_slice %11 {offsets = [64, 0], sizes = [16, 128], strides = [1, 1]} : vector<256x128xbf16> to vector<16x128xbf16>
    %c91 = arith.constant 91 : index
    %c0_15 = arith.constant 0 : index
    %21 = vector.load %arg9[%c91, %c0_15] : memref<342x128xbf16, #tpu.memory_space<vmem>>, vector<16x128xbf16>
    tpu.vector_store %arg9[%c91, %c0_15], %20 {strides = array<i32>} : memref<342x128xbf16, #tpu.memory_space<vmem>>, vector<16x128xbf16>,
    %22 = vector.extract_strided_slice %11 {offsets = [80, 0], sizes = [16, 128], strides = [1, 1]} : vector<256x128xbf16> to vector<16x128xbf16>
    %c109 = arith.constant 109 : index
    %c0_16 = arith.constant 0 : index
    %23 = vector.load %arg9[%c109, %c0_16] : memref<342x128xbf16, #tpu.memory_space<vmem>>, vector<16x128xbf16>
    tpu.vector_store %arg9[%c109, %c0_16], %22 {strides = array<i32>} : memref<342x128xbf16, #tpu.memory_space<vmem>>, vector<16x128xbf16>,
    %24 = vector.extract_strided_slice %11 {offsets = [96, 0], sizes = [16, 128], strides = [1, 1]} : vector<256x128xbf16> to vector<16x128xbf16>
    %c127 = arith.constant 127 : index
    %c0_17 = arith.constant 0 : index
    %25 = vector.load %arg9[%c127, %c0_17] : memref<342x128xbf16, #tpu.memory_space<vmem>>, vector<16x128xbf16>
    tpu.vector_store %arg9[%c127, %c0_17], %24 {strides = array<i32>} : memref<342x128xbf16, #tpu.memory_space<vmem>>, vector<16x128xbf16>,
    %26 = vector.extract_strided_slice %11 {offsets = [112, 0], sizes = [16, 128], strides = [1, 1]} : vector<256x128xbf16> to vector<16x128xbf16>
    %c145 = arith.constant 145 : index
    %c0_18 = arith.constant 0 : index
    %27 = vector.load %arg9[%c145, %c0_18] : memref<342x128xbf16, #tpu.memory_space<vmem>>, vector<16x128xbf16>
    tpu.vector_store %arg9[%c145, %c0_18], %26 {strides = array<i32>} : memref<342x128xbf16, #tpu.memory_space<vmem>>, vector<16x128xbf16>,
    %28 = vector.extract_strided_slice %11 {offsets = [128, 0], sizes = [16, 128], strides = [1, 1]} : vector<256x128xbf16> to vector<16x128xbf16>
    %c163 = arith.constant 163 : index
    %c0_19 = arith.constant 0 : index
    %29 = vector.load %arg9[%c163, %c0_19] : memref<342x128xbf16, #tpu.memory_space<vmem>>, vector<16x128xbf16>
    tpu.vector_store %arg9[%c163, %c0_19], %28 {strides = array<i32>} : memref<342x128xbf16, #tpu.memory_space<vmem>>, vector<16x128xbf16>,
    %30 = vector.extract_strided_slice %11 {offsets = [144, 0], sizes = [16, 128], strides = [1, 1]} : vector<256x128xbf16> to vector<16x128xbf16>
    %c181 = arith.constant 181 : index
    %c0_20 = arith.constant 0 : index
    %31 = vector.load %arg9[%c181, %c0_20] : memref<342x128xbf16, #tpu.memory_space<vmem>>, vector<16x128xbf16>
    tpu.vector_store %arg9[%c181, %c0_20], %30 {strides = array<i32>} : memref<342x128xbf16, #tpu.memory_space<vmem>>, vector<16x128xbf16>,
    %32 = vector.extract_strided_slice %11 {offsets = [160, 0], sizes = [16, 128], strides = [1, 1]} : vector<256x128xbf16> to vector<16x128xbf16>
    %c199 = arith.constant 199 : index
    %c0_21 = arith.constant 0 : index
    %33 = vector.load %arg9[%c199, %c0_21] : memref<342x128xbf16, #tpu.memory_space<vmem>>, vector<16x128xbf16>
    tpu.vector_store %arg9[%c199, %c0_21], %32 {strides = array<i32>} : memref<342x128xbf16, #tpu.memory_space<vmem>>, vector<16x128xbf16>,
    %34 = vector.extract_strided_slice %11 {offsets = [176, 0], sizes = [16, 128], strides = [1, 1]} : vector<256x128xbf16> to vector<16x128xbf16>
    %c217 = arith.constant 217 : index
    %c0_22 = arith.constant 0 : index
    %35 = vector.load %arg9[%c217, %c0_22] : memref<342x128xbf16, #tpu.memory_space<vmem>>, vector<16x128xbf16>
    tpu.vector_store %arg9[%c217, %c0_22], %34 {strides = array<i32>} : memref<342x128xbf16, #tpu.memory_space<vmem>>, vector<16x128xbf16>,
    %36 = vector.extract_strided_slice %11 {offsets = [192, 0], sizes = [16, 128], strides = [1, 1]} : vector<256x128xbf16> to vector<16x128xbf16>
    %c235 = arith.constant 235 : index
    %c0_23 = arith.constant 0 : index
    %37 = vector.load %arg9[%c235, %c0_23] : memref<342x128xbf16, #tpu.memory_space<vmem>>, vector<16x128xbf16>
    tpu.vector_store %arg9[%c235, %c0_23], %36 {strides = array<i32>} : memref<342x128xbf16, #tpu.memory_space<vmem>>, vector<16x128xbf16>,
    %38 = vector.extract_strided_slice %11 {offsets = [208, 0], sizes = [16, 128], strides = [1, 1]} : vector<256x128xbf16> to vector<16x128xbf16>
    %c253 = arith.constant 253 : index
    %c0_24 = arith.constant 0 : index
    %39 = vector.load %arg9[%c253, %c0_24] : memref<342x128xbf16, #tpu.memory_space<vmem>>, vector<16x128xbf16>
    tpu.vector_store %arg9[%c253, %c0_24], %38 {strides = array<i32>} : memref<342x128xbf16, #tpu.memory_space<vmem>>, vector<16x128xbf16>,
    %40 = vector.extract_strided_slice %11 {offsets = [224, 0], sizes = [16, 128], strides = [1, 1]} : vector<256x128xbf16> to vector<16x128xbf16>
    %c271 = arith.constant 271 : index
    %c0_25 = arith.constant 0 : index
    %41 = vector.load %arg9[%c271, %c0_25] : memref<342x128xbf16, #tpu.memory_space<vmem>>, vector<16x128xbf16>
    tpu.vector_store %arg9[%c271, %c0_25], %40 {strides = array<i32>} : memref<342x128xbf16, #tpu.memory_space<vmem>>, vector<16x128xbf16>,
    %42 = vector.extract_strided_slice %11 {offsets = [240, 0], sizes = [16, 128], strides = [1, 1]} : vector<256x128xbf16> to vector<16x128xbf16>
    %c289 = arith.constant 289 : index
    %c0_26 = arith.constant 0 : index
    %43 = vector.load %arg9[%c289, %c0_26] : memref<342x128xbf16, #tpu.memory_space<vmem>>, vector<16x128xbf16>
    tpu.vector_store %arg9[%c289, %c0_26], %42 {strides = array<i32>} : memref<342x128xbf16, #tpu.memory_space<vmem>>, vector<16x128xbf16>,
    %c0_27 = arith.constant 0 : index
    %c0_28 = arith.constant 0 : index
    %44 = vector.load %arg9[%c0_27, %c0_28] : memref<342x128xbf16, #tpu.memory_space<vmem>>, vector<288x128xbf16>
    %c0_29 = arith.constant 0 : index
    %c0_30 = arith.constant 0 : index
    %45 = vector.load %arg10[%c0_29, %c0_30] : memref<288x1152xbf16, #tpu.memory_space<vmem>>, vector<288x128xbf16>
    tpu.vector_store %arg10[%c0_29, %c0_30], %44 {strides = array<i32>} : memref<288x1152xbf16, #tpu.memory_space<vmem>>, vector<288x128xbf16>,
    %c1 = arith.constant 1 : index
    %c0_31 = arith.constant 0 : index
    %46 = vector.load %arg9[%c1, %c0_31] : memref<342x128xbf16, #tpu.memory_space<vmem>>, vector<288x128xbf16>
    %c0_32 = arith.constant 0 : index
    %c128 = arith.constant 128 : index
    %47 = vector.load %arg10[%c0_32, %c128] : memref<288x1152xbf16, #tpu.memory_space<vmem>>, vector<288x128xbf16>
    tpu.vector_store %arg10[%c0_32, %c128], %46 {strides = array<i32>} : memref<288x1152xbf16, #tpu.memory_space<vmem>>, vector<288x128xbf16>,
    %c2 = arith.constant 2 : index
    %c0_33 = arith.constant 0 : index
    %48 = vector.load %arg9[%c2, %c0_33] : memref<342x128xbf16, #tpu.memory_space<vmem>>, vector<288x128xbf16>
    %c0_34 = arith.constant 0 : index
    %c256 = arith.constant 256 : index
    %49 = vector.load %arg10[%c0_34, %c256] : memref<288x1152xbf16, #tpu.memory_space<vmem>>, vector<288x128xbf16>
    tpu.vector_store %arg10[%c0_34, %c256], %48 {strides = array<i32>} : memref<288x1152xbf16, #tpu.memory_space<vmem>>, vector<288x128xbf16>,
    %c18 = arith.constant 18 : index
    %c0_35 = arith.constant 0 : index
    %50 = vector.load %arg9[%c18, %c0_35] : memref<342x128xbf16, #tpu.memory_space<vmem>>, vector<288x128xbf16>
    %c0_36 = arith.constant 0 : index
    %c384 = arith.constant 384 : index
    %51 = vector.load %arg10[%c0_36, %c384] : memref<288x1152xbf16, #tpu.memory_space<vmem>>, vector<288x128xbf16>
    tpu.vector_store %arg10[%c0_36, %c384], %50 {strides = array<i32>} : memref<288x1152xbf16, #tpu.memory_space<vmem>>, vector<288x128xbf16>,
    %c19_37 = arith.constant 19 : index
    %c0_38 = arith.constant 0 : index
    %52 = vector.load %arg9[%c19_37, %c0_38] : memref<342x128xbf16, #tpu.memory_space<vmem>>, vector<288x128xbf16>
    %c0_39 = arith.constant 0 : index
    %c512 = arith.constant 512 : index
    %53 = vector.load %arg10[%c0_39, %c512] : memref<288x1152xbf16, #tpu.memory_space<vmem>>, vector<288x128xbf16>
    tpu.vector_store %arg10[%c0_39, %c512], %52 {strides = array<i32>} : memref<288x1152xbf16, #tpu.memory_space<vmem>>, vector<288x128xbf16>,
    %c20 = arith.constant 20 : index
    %c0_40 = arith.constant 0 : index
    %54 = vector.load %arg9[%c20, %c0_40] : memref<342x128xbf16, #tpu.memory_space<vmem>>, vector<288x128xbf16>
    %c0_41 = arith.constant 0 : index
    %c640 = arith.constant 640 : index
    %55 = vector.load %arg10[%c0_41, %c640] : memref<288x1152xbf16, #tpu.memory_space<vmem>>, vector<288x128xbf16>
    tpu.vector_store %arg10[%c0_41, %c640], %54 {strides = array<i32>} : memref<288x1152xbf16, #tpu.memory_space<vmem>>, vector<288x128xbf16>,
    %c36 = arith.constant 36 : index
    %c0_42 = arith.constant 0 : index
    %56 = vector.load %arg9[%c36, %c0_42] : memref<342x128xbf16, #tpu.memory_space<vmem>>, vector<288x128xbf16>
    %c0_43 = arith.constant 0 : index
    %c768 = arith.constant 768 : index
    %57 = vector.load %arg10[%c0_43, %c768] : memref<288x1152xbf16, #tpu.memory_space<vmem>>, vector<288x128xbf16>
    tpu.vector_store %arg10[%c0_43, %c768], %56 {strides = array<i32>} : memref<288x1152xbf16, #tpu.memory_space<vmem>>, vector<288x128xbf16>,
    %c37_44 = arith.constant 37 : index
    %c0_45 = arith.constant 0 : index
    %58 = vector.load %arg9[%c37_44, %c0_45] : memref<342x128xbf16, #tpu.memory_space<vmem>>, vector<288x128xbf16>
    %c0_46 = arith.constant 0 : index
    %c896 = arith.constant 896 : index
    %59 = vector.load %arg10[%c0_46, %c896] : memref<288x1152xbf16, #tpu.memory_space<vmem>>, vector<288x128xbf16>
    tpu.vector_store %arg10[%c0_46, %c896], %58 {strides = array<i32>} : memref<288x1152xbf16, #tpu.memory_space<vmem>>, vector<288x128xbf16>,
    %c38 = arith.constant 38 : index
    %c0_47 = arith.constant 0 : index
    %60 = vector.load %arg9[%c38, %c0_47] : memref<342x128xbf16, #tpu.memory_space<vmem>>, vector<288x128xbf16>
    %c0_48 = arith.constant 0 : index
    %c1024 = arith.constant 1024 : index
    %61 = vector.load %arg10[%c0_48, %c1024] : memref<288x1152xbf16, #tpu.memory_space<vmem>>, vector<288x128xbf16>
    tpu.vector_store %arg10[%c0_48, %c1024], %60 {strides = array<i32>} : memref<288x1152xbf16, #tpu.memory_space<vmem>>, vector<288x128xbf16>,
    %c0_49 = arith.constant 0 : index
    %c0_50 = arith.constant 0 : index
    %62 = vector.load %arg10[%c0_49, %c0_50] : memref<288x1152xbf16, #tpu.memory_space<vmem>>, vector<288x1152xbf16>
    %c0_51 = arith.constant 0 : index
    %c0_52 = arith.constant 0 : index
    %63 = vector.load %arg4[%c0_51, %c0_52] : memref<1152x128xbf16, #tpu.memory_space<vmem>>, vector<1152x128xbf16>
    %cst_53 = arith.constant dense<0.000000e+00> : vector<288x128xf32>
    %64 = tpu.matmul %62, %63, %cst_53 {dimension_numbers = #tpu.dot_dimension_numbers<[1], [0], [0], [1], [0, 0, 1, 1], [], []>} : vector<288x1152xbf16>, vector<1152x128xbf16>, vector<288x128xf32> -> vector<288x128xf32>
    %c0_54 = arith.constant 0 : index
    %c0_55 = arith.constant 0 : index
    %65 = vector.load %arg5[%c0_54, %c0_55] : memref<1x128xf32, #tpu.memory_space<vmem>>, vector<1x128xf32>
    %66 = vector.broadcast %65 : vector<1x128xf32> to vector<288x128xf32>
    %67 = arith.addf %64, %66 : vector<288x128xf32>
    %cst_56 = arith.constant 0.000000e+00 : f32
    %68 = vector.broadcast %cst_56 : f32 to vector<288x128xf32>
    %69 = arith.maximumf %67, %68 : vector<288x128xf32>
    %70 = arith.truncf %69 : vector<288x128xf32> to vector<288x128xbf16>
    %71 = vector.shape_cast %70 : vector<288x128xbf16> to vector<16x18x128xbf16>
    %72 = vector.extract_strided_slice %71 {offsets = [0, 0, 0], sizes = [16, 16, 128], strides = [1, 1, 1]} : vector<16x18x128xbf16> to vector<16x16x128xbf16>
    %73 = vector.shape_cast %72 : vector<16x16x128xbf16> to vector<256x128xbf16>
    %c0_57 = arith.constant 0 : index
    %c0_58 = arith.constant 0 : index
    %74 = vector.load %arg6[%c0_57, %c0_58] : memref<128x128xbf16, #tpu.memory_space<vmem>>, vector<128x128xbf16>
    %cst_59 = arith.constant dense<0.000000e+00> : vector<256x128xf32>
    %75 = tpu.matmul %73, %74, %cst_59 {dimension_numbers = #tpu.dot_dimension_numbers<[1], [0], [0], [1], [0, 0, 1, 1], [], []>} : vector<256x128xbf16>, vector<128x128xbf16>, vector<256x128xf32> -> vector<256x128xf32>
    %c0_60 = arith.constant 0 : index
    %c0_61 = arith.constant 0 : index
    %76 = vector.load %arg7[%c0_60, %c0_61] : memref<1x128xf32, #tpu.memory_space<vmem>>, vector<1x128xf32>
    %77 = vector.broadcast %76 : vector<1x128xf32> to vector<256x128xf32>
    %78 = arith.addf %75, %77 : vector<256x128xf32>
    %79 = arith.extf %3 : vector<256x128xbf16> to vector<256x128xf32>
    %80 = arith.addf %78, %79 : vector<256x128xf32>
    %cst_62 = arith.constant 0.000000e+00 : f32
    %81 = vector.broadcast %cst_62 : f32 to vector<256x128xf32>
    %82 = arith.maximumf %80, %81 : vector<256x128xf32>
    %83 = arith.truncf %82 : vector<256x128xf32> to vector<256x128xbf16>
    %84 = vector.shape_cast %83 : vector<256x128xbf16> to vector<1x16x16x128xbf16>
    %c0_63 = arith.constant 0 : index
    %c0_64 = arith.constant 0 : index
    %c0_65 = arith.constant 0 : index
    %c0_66 = arith.constant 0 : index
    %85 = vector.load %arg8[%c0_63, %c0_64, %c0_65, %c0_66] : memref<1x16x16x128xbf16, #tpu.memory_space<vmem>>, vector<1x16x16x128xbf16>
    tpu.vector_store %arg8[%c0_63, %c0_64, %c0_65, %c0_66], %84 {strides = array<i32>} : memref<1x16x16x128xbf16, #tpu.memory_space<vmem>>, vector<1x16x16x128xbf16>,
    return
  }
  func.func @transform_0(%arg0: i32) -> (i32, i32, i32, i32) {
    %c0_i32 = arith.constant 0 : i32
    %c0_i32_0 = arith.constant 0 : i32
    %c0_i32_1 = arith.constant 0 : i32
    %c0_i32_2 = arith.constant 0 : i32
    return %arg0, %c0_i32, %c0_i32_0, %c0_i32_1 : i32, i32, i32, i32
  }
  func.func @transform_1(%arg0: i32) -> (i32, i32) {
    %c0_i32 = arith.constant 0 : i32
    %c0_i32_0 = arith.constant 0 : i32
    %c0_i32_1 = arith.constant 0 : i32
    return %c0_i32, %c0_i32_0 : i32, i32
  }
  func.func @transform_2(%arg0: i32) -> (i32, i32) {
    %c0_i32 = arith.constant 0 : i32
    %c0_i32_0 = arith.constant 0 : i32
    %c0_i32_1 = arith.constant 0 : i32
    return %c0_i32, %c0_i32_0 : i32, i32
  }
  func.func @transform_3(%arg0: i32) -> (i32, i32) {
    %c0_i32 = arith.constant 0 : i32
    %c0_i32_0 = arith.constant 0 : i32
    %c0_i32_1 = arith.constant 0 : i32
    return %c0_i32, %c0_i32_0 : i32, i32
  }
  func.func @transform_4(%arg0: i32) -> (i32, i32) {
    %c0_i32 = arith.constant 0 : i32
    %c0_i32_0 = arith.constant 0 : i32
    %c0_i32_1 = arith.constant 0 : i32
    return %c0_i32, %c0_i32_0 : i32, i32
  }
  func.func @transform_5(%arg0: i32) -> (i32, i32) {
    %c0_i32 = arith.constant 0 : i32
    %c0_i32_0 = arith.constant 0 : i32
    %c0_i32_1 = arith.constant 0 : i32
    return %c0_i32, %c0_i32_0 : i32, i32
  }
  func.func @transform_6(%arg0: i32) -> (i32, i32) {
    %c0_i32 = arith.constant 0 : i32
    %c0_i32_0 = arith.constant 0 : i32
    %c0_i32_1 = arith.constant 0 : i32
    return %c0_i32, %c0_i32_0 : i32, i32
  }
  func.func @transform_7(%arg0: i32) -> (i32, i32, i32, i32) {
    %c0_i32 = arith.constant 0 : i32
    %c0_i32_0 = arith.constant 0 : i32
    %c0_i32_1 = arith.constant 0 : i32
    %c0_i32_2 = arith.constant 0 : i32
    return %arg0, %c0_i32, %c0_i32_0, %c0_i32_1 : i32, i32, i32, i32
  }
}

</mosaic_0001>

<llo_original>
// kernel: bottleneck_forward.1
$region0: #{bottleneck_forward.1}
  #allocation0 [shape = 'u32[]', space=smem, size = 0x4, offset = 0x4, fixed_abs, tag = 'smem constant byte address 0x4 - core index']
  #allocation1 [shape = 'u32[144,128]{1,0:T(1,128)}', space=vmem, size = 0x12000, scoped, tag = 'internal scratch']
  #allocation2 [shape = 'bf16[342,128]{1,0:T(8,128)(2,1)}', space=vmem, size = 0x15800, scoped, tag = 'scratch operand']
  #allocation3 [shape = 'bf16[288,1152]{1,0:T(8,128)(2,1)}', space=vmem, size = 0xa2000, scoped, tag = 'scratch operand']
  %s0 = inlined_call_operand.vmem [shape: bf16[2,16,16,128], index: 0, kind: input, shape index: {}]
  %s1 = inlined_call_operand.vmem [shape: bf16[128,128], index: 1, kind: input, shape index: {}]
  %s2 = inlined_call_operand.vmem [shape: f32[1,128], index: 2, kind: input, shape index: {}]
  %s3 = inlined_call_operand.vmem [shape: bf16[1152,128], index: 3, kind: input, shape index: {}]
  %s4 = inlined_call_operand.vmem [shape: f32[1,128], index: 4, kind: input, shape index: {}]
  %s5 = inlined_call_operand.vmem [shape: bf16[128,128], index: 5, kind: input, shape index: {}]
  %s6 = inlined_call_operand.vmem [shape: f32[1,128], index: 6, kind: input, shape index: {}]
  %s7 = inlined_call_operand.vmem [shape: bf16[2,16,16,128], index: 7, kind: output, shape index: {}]
  %s8 = sld [smem:[#allocation0]]
  $region61: #{bottleneck_forward.1} parent=0
    _
  %s10 = ssub.s32 1, %s8
  %s11 = scalar_select 0, %s10, %s8
  loop: start=0, step=1, limit=4
  $region2: #{bottleneck_forward.1} parent=0 // loop_pre_header
    _
  $region3: #{bottleneck_forward.1} parent=0 // loop_header
    %s13 = sphi 0, %s17
    %p14 = scmp.ge.s32.totalorder %s13, 4
    %s23 = sphi 0, %s25
    %s26 = sphi 0, %s23
    %s27 = sphi 0, %s26
    %s43 = sphi 0, %s27
    %s47 = sphi 0, %s47
    %s49 = sphi 0, %s47
    %s50 = sphi 0, %s49
    %s64 = sphi 0, %s50
    %s68 = sphi 0, %s68
    %s70 = sphi 0, %s68
    %s71 = sphi 0, %s70
    %s85 = sphi 0, %s71
    %s89 = sphi 0, %s89
    %s91 = sphi 0, %s89
    %s92 = sphi 0, %s91
    %s106 = sphi 0, %s92
    %s110 = sphi 0, %s110
    %s112 = sphi 0, %s110
    %s113 = sphi 0, %s112
    %s127 = sphi 0, %s113
    %s131 = sphi 0, %s131
    %s133 = sphi 0, %s131
    %s134 = sphi 0, %s133
    %s148 = sphi 0, %s134
    %s152 = sphi 0, %s152
    %s154 = sphi 0, %s152
    %s155 = sphi 0, %s154
    %s169 = sphi 0, %s155
    %s175 = sphi 0, %s177
    %s178 = sphi 0, %s175
    %s179 = sphi 0, %s178
    %s195 = sphi 0, %s179
  $region4: #{bottleneck_forward.1} parent=0 // loop_header_branch
    %16 = sbr.rel (%p14) target = $region8
  $region5: #{bottleneck_forward.1} parent=0 // loop_body
    %s18 = ssub.s32 %s13, 1
    %s19 = ssub.s32 %s13, 2
    %s20 = sadd.s32 %s13, 1
    %s21 = ssub.s32 %s13, %s20
    %p22 = scmp.eq.s32.totalorder %s21, 0
    %s24 = sadd.s32 %s23, 1
    %s25 = scalar_select %p22, %s23, %s24
    %p28 = pneg %p22
    %p29 = scmp.eq.s32.totalorder %s13, 1
    %p30 = por %p28, %p29
    %p31 = scmp.ne.s32.totalorder %s23, %s26
    %p32 = scmp.eq.s32.totalorder %s13, 0
    %p33 = por %p31, %p32
    %p34 = scmp.ne.s32.totalorder %s23, %s26
    %p35 = scmp.eq.s32.totalorder %s18, 1
    %p36 = por %p34, %p35
    %p37 = scmp.ne.s32.totalorder %s26, %s27
    %p38 = scmp.eq.s32.totalorder %s18, 0
    %p39 = por %p37, %p38
    %p40 = scmp.ne.s32.totalorder %s26, %s27
    %p41 = scmp.eq.s32.totalorder %s19, 1
    %p42 = por %p40, %p41
    %p44 = scmp.ne.s32.totalorder %s27, %s43
    %p45 = scmp.eq.s32.totalorder %s19, 0
    %p46 = por %p44, %p45
    %s48 = sadd.s32 %s47, 1
    %p51 = scmp.eq.s32.totalorder %s13, 1
    %p52 = scmp.ne.s32.totalorder %s47, %s49
    %p53 = scmp.eq.s32.totalorder %s13, 0
    %p54 = por %p52, %p53
    %p55 = scmp.ne.s32.totalorder %s47, %s49
    %p56 = scmp.eq.s32.totalorder %s18, 1
    %p57 = por %p55, %p56
    %p58 = scmp.ne.s32.totalorder %s49, %s50
    %p59 = scmp.eq.s32.totalorder %s18, 0
    %p60 = por %p58, %p59
    %p61 = scmp.ne.s32.totalorder %s49, %s50
    %p62 = scmp.eq.s32.totalorder %s19, 1
    %p63 = por %p61, %p62
    %p65 = scmp.ne.s32.totalorder %s50, %s64
    %p66 = scmp.eq.s32.totalorder %s19, 0
    %p67 = por %p65, %p66
    %s69 = sadd.s32 %s68, 1
    %p72 = scmp.eq.s32.totalorder %s13, 1
    %p73 = scmp.ne.s32.totalorder %s68, %s70
    %p74 = scmp.eq.s32.totalorder %s13, 0
    %p75 = por %p73, %p74
    %p76 = scmp.ne.s32.totalorder %s68, %s70
    %p77 = scmp.eq.s32.totalorder %s18, 1
    %p78 = por %p76, %p77
    %p79 = scmp.ne.s32.totalorder %s70, %s71
    %p80 = scmp.eq.s32.totalorder %s18, 0
    %p81 = por %p79, %p80
    %p82 = scmp.ne.s32.totalorder %s70, %s71
    %p83 = scmp.eq.s32.totalorder %s19, 1
    %p84 = por %p82, %p83
    %p86 = scmp.ne.s32.totalorder %s71, %s85
    %p87 = scmp.eq.s32.totalorder %s19, 0
    %p88 = por %p86, %p87
    %s90 = sadd.s32 %s89, 1
    %p93 = scmp.eq.s32.totalorder %s13, 1
    %p94 = scmp.ne.s32.totalorder %s89, %s91
    %p95 = scmp.eq.s32.totalorder %s13, 0
    %p96 = por %p94, %p95
    %p97 = scmp.ne.s32.totalorder %s89, %s91
    %p98 = scmp.eq.s32.totalorder %s18, 1
    %p99 = por %p97, %p98
    %p100 = scmp.ne.s32.totalorder %s91, %s92
    %p101 = scmp.eq.s32.totalorder %s18, 0
    %p102 = por %p100, %p101
    %p103 = scmp.ne.s32.totalorder %s91, %s92
    %p104 = scmp.eq.s32.totalorder %s19, 1
    %p105 = por %p103, %p104
    %p107 = scmp.ne.s32.totalorder %s92, %s106
    %p108 = scmp.eq.s32.totalorder %s19, 0
    %p109 = por %p107, %p108
    %s111 = sadd.s32 %s110, 1
    %p114 = scmp.eq.s32.totalorder %s13, 1
    %p115 = scmp.ne.s32.totalorder %s110, %s112
    %p116 = scmp.eq.s32.totalorder %s13, 0
    %p117 = por %p115, %p116
    %p118 = scmp.ne.s32.totalorder %s110, %s112
    %p119 = scmp.eq.s32.totalorder %s18, 1
    %p120 = por %p118, %p119
    %p121 = scmp.ne.s32.totalorder %s112, %s113
    %p122 = scmp.eq.s32.totalorder %s18, 0
    %p123 = por %p121, %p122
    %p124 = scmp.ne.s32.totalorder %s112, %s113
    %p125 = scmp.eq.s32.totalorder %s19, 1
    %p126 = por %p124, %p125
    %p128 = scmp.ne.s32.totalorder %s113, %s127
    %p129 = scmp.eq.s32.totalorder %s19, 0
    %p130 = por %p128, %p129
    %s132 = sadd.s32 %s131, 1
    %p135 = scmp.eq.s32.totalorder %s13, 1
    %p136 = scmp.ne.s32.totalorder %s131, %s133
    %p137 = scmp.eq.s32.totalorder %s13, 0
    %p138 = por %p136, %p137
    %p139 = scmp.ne.s32.totalorder %s131, %s133
    %p140 = scmp.eq.s32.totalorder %s18, 1
    %p141 = por %p139, %p140
    %p142 = scmp.ne.s32.totalorder %s133, %s134
    %p143 = scmp.eq.s32.totalorder %s18, 0
    %p144 = por %p142, %p143
    %p145 = scmp.ne.s32.totalorder %s133, %s134
    %p146 = scmp.eq.s32.totalorder %s19, 1
    %p147 = por %p145, %p146
    %p149 = scmp.ne.s32.totalorder %s134, %s148
    %p150 = scmp.eq.s32.totalorder %s19, 0
    %p151 = por %p149, %p150
    %s153 = sadd.s32 %s152, 1
    %p156 = scmp.eq.s32.totalorder %s13, 1
    %p157 = scmp.ne.s32.totalorder %s152, %s154
    %p158 = scmp.eq.s32.totalorder %s13, 0
    %p159 = por %p157, %p158
    %p160 = scmp.ne.s32.totalorder %s152, %s154
    %p161 = scmp.eq.s32.totalorder %s18, 1
    %p162 = por %p160, %p161
    %p163 = scmp.ne.s32.totalorder %s154, %s155
    %p164 = scmp.eq.s32.totalorder %s18, 0
    %p165 = por %p163, %p164
    %p166 = scmp.ne.s32.totalorder %s154, %s155
    %p167 = scmp.eq.s32.totalorder %s19, 1
    %p168 = por %p166, %p167
    %p170 = scmp.ne.s32.totalorder %s155, %s169
    %p171 = scmp.eq.s32.totalorder %s19, 0
    %p172 = por %p170, %p171
    %s173 = ssub.s32 %s13, %s20
    %p174 = scmp.eq.s32.totalorder %s173, 0
    %s176 = sadd.s32 %s175, 1
    %s177 = scalar_select %p174, %s175, %s176
    %p180 = pneg %p174
    %p181 = scmp.eq.s32.totalorder %s13, 1
    %p182 = por %p180, %p181
    %p183 = scmp.ne.s32.totalorder %s175, %s178
    %p184 = scmp.eq.s32.totalorder %s13, 0
    %p185 = por %p183, %p184
    %p186 = scmp.ne.s32.totalorder %s175, %s178
    %p187 = scmp.eq.s32.totalorder %s18, 1
    %p188 = por %p186, %p187
    %p189 = scmp.ne.s32.totalorder %s178, %s179
    %p190 = scmp.eq.s32.totalorder %s18, 0
    %p191 = por %p189, %p190
    %p192 = scmp.ne.s32.totalorder %s178, %s179
    %p193 = scmp.eq.s32.totalorder %s19, 1
    %p194 = por %p192, %p193
    %p196 = scmp.ne.s32.totalorder %s179, %s195
    %p197 = scmp.eq.s32.totalorder %s19, 0
    %p198 = por %p196, %p197
    %p199 = scmp.le.s32.totalorder 1, %s13
    %p200 = scmp.lt.s32.totalorder %s13, 3
    %p201 = pnand %p199, %p200
    %p202 = pneg %p201
    // Predicated region
    $region9: #{bottleneck_forward.1} parent=5 // pred_check
      _
    $region10: #{bottleneck_forward.1} parent=5 // pred_check_branch
      %204 = sbr.rel (%p201) target = $region12
    $region11: #{bottleneck_forward.1} parent=5 // pred_region
      %s205 = ssub.s32 %s13, 1
      // Predicated region
      $region13: #{bottleneck_forward.1} parent=11 // pred_check
        %p206 = pneg %p60
      $region14: #{bottleneck_forward.1} parent=11 // pred_check_branch
        %208 = sbr.rel (%p206) target = $region16
      $region15: #{bottleneck_forward.1} parent=11 // pred_region
        _
      $region16: #{bottleneck_forward.1} parent=11 // pred_fallthru
        _
      // Predicated region
      $region17: #{bottleneck_forward.1} parent=11 // pred_check
        %p209 = pneg %p81
      $region18: #{bottleneck_forward.1} parent=11 // pred_check_branch
        %211 = sbr.rel (%p209) target = $region20
      $region19: #{bottleneck_forward.1} parent=11 // pred_region
        _
      $region20: #{bottleneck_forward.1} parent=11 // pred_fallthru
        _
      // Predicated region
      $region21: #{bottleneck_forward.1} parent=11 // pred_check
        %p212 = pneg %p102
      $region22: #{bottleneck_forward.1} parent=11 // pred_check_branch
        %214 = sbr.rel (%p212) target = $region24
      $region23: #{bottleneck_forward.1} parent=11 // pred_region
        _
      $region24: #{bottleneck_forward.1} parent=11 // pred_fallthru
        _
      // Predicated region
      $region25: #{bottleneck_forward.1} parent=11 // pred_check
        %p215 = pneg %p123
      $region26: #{bottleneck_forward.1} parent=11 // pred_check_branch
        %217 = sbr.rel (%p215) target = $region28
      $region27: #{bottleneck_forward.1} parent=11 // pred_region
        _
      $region28: #{bottleneck_forward.1} parent=11 // pred_fallthru
        _
      // Predicated region
      $region29: #{bottleneck_forward.1} parent=11 // pred_check
        %p218 = pneg %p144
      $region30: #{bottleneck_forward.1} parent=11 // pred_check_branch
        %220 = sbr.rel (%p218) target = $region32
      $region31: #{bottleneck_forward.1} parent=11 // pred_region
        _
      $region32: #{bottleneck_forward.1} parent=11 // pred_fallthru
        _
      // Predicated region
      $region33: #{bottleneck_forward.1} parent=11 // pred_check
        %p221 = pneg %p165
      $region34: #{bottleneck_forward.1} parent=11 // pred_check_branch
        %223 = sbr.rel (%p221) target = $region36
      $region35: #{bottleneck_forward.1} parent=11 // pred_region
        _
      $region36: #{bottleneck_forward.1} parent=11 // pred_fallthru
        _
    $region12: #{bottleneck_forward.1} parent=5 // pred_fallthru
      _
    %p224 = scmp.lt.s32.totalorder %s13, 2
    // Predicated region
    $region37: #{bottleneck_forward.1} parent=5 // pred_check
      %p225 = pneg %p224
    $region38: #{bottleneck_forward.1} parent=5 // pred_check_branch
      %227 = sbr.rel (%p225) target = $region40
    $region39: #{bottleneck_forward.1} parent=5 // pred_region
      // Predicated region
      $region41: #{bottleneck_forward.1} parent=39 // pred_check
        %p228 = pneg %p33
      $region42: #{bottleneck_forward.1} parent=39 // pred_check_branch
        %230 = sbr.rel (%p228) target = $region44
      $region43: #{bottleneck_forward.1} parent=39 // pred_region
        %p231 = scmp.lt.s32.totalorder %s13, 1
        %s232 = scalar_select %p231, %s13, 1
        %s233 = smul.addr %s232, 32
        %s234 = smul.addr %s233, 4
        %s235 = scalar_lea.vmem %s0, %s234
      $region44: #{bottleneck_forward.1} parent=39 // pred_fallthru
        _
    $region40: #{bottleneck_forward.1} parent=5 // pred_fallthru
      _
    %p236 = scmp.le.s32.totalorder 1, %s13
    %p237 = scmp.lt.s32.totalorder %s13, 3
    %p238 = pnand %p236, %p237
    %p239 = pneg %p238
    // Predicated region
    $region45: #{bottleneck_forward.1} parent=5 // pred_check
      _
    $region46: #{bottleneck_forward.1} parent=5 // pred_check_branch
      %241 = sbr.rel (%p238) target = $region48
    $region47: #{bottleneck_forward.1} parent=5 // pred_region
      %s242 = ssub.s32 %s13, 1
      %p243 = scmp.lt.s32.totalorder %s18, 1
      %s244 = scalar_select %p243, %s18, 1
      %s245 = smul.addr %s244, 32
      %s246 = smul.addr %s245, 4
      %s247 = scalar_lea.vmem %s0, %s246
      %p248 = pneg %p39
      %p249 = pneg %p36
      %p250 = pneg %p60
      %p251 = pneg %p57
      %p252 = pneg %p81
      %p253 = pneg %p78
      %p254 = pneg %p102
      %p255 = pneg %p99
      %p256 = pneg %p123
      %p257 = pneg %p120
      %p258 = pneg %p144
      %p259 = pneg %p141
      %p260 = pneg %p165
      %p261 = pneg %p162
      %p262 = pneg %p191
      %p263 = pneg %p188
      %p264 = scmp.lt.s32.totalorder %s18, 1
      %s265 = scalar_select %p264, %s18, 1
      %s266 = smul.addr %s265, 32
      %s267 = smul.addr %s266, 4
      %s268 = scalar_lea.vmem %s7, %s267
      %p269 = scmp.lt.s32.totalorder %s18, 1
      %s270 = scalar_select %p269, %s18, 1
      %s271 = smul.addr %s270, 32
      %s272 = smul.addr %s271, 4
      %s273 = scalar_lea.vmem %s0, %s272
      %p274 = scmp.lt.s32.totalorder %s18, 1
      %s275 = scalar_select %p274, %s18, 1
      %s276 = smul.addr %s275, 32
      %s277 = smul.addr %s276, 4
      %s278 = scalar_lea.vmem %s7, %s277
      %280 = vst [vmem:[#allocation2] sm:$0xf] 0
      %281 = vst [vmem:[#allocation2 + $0x4] sm:$0xf] 0
      %282 = vst [vmem:[#allocation2 + $0x8] sm:$0xf] 0
      %283 = vst [vmem:[#allocation2 + $0xc] sm:$0xf] 0
      %284 = vst [vmem:[#allocation2 + $0x10] sm:$0xf] 0
      %285 = vst [vmem:[#allocation2 + $0x14] sm:$0xf] 0
      %286 = vst [vmem:[#allocation2 + $0x18] sm:$0xf] 0
      %287 = vst [vmem:[#allocation2 + $0x1c] sm:$0xf] 0
      %288 = vst [vmem:[#allocation2 + $0x20] sm:$0xf] 0
      %289 = vst [vmem:[#allocation2 + $0x24] sm:$0xf] 0
      %290 = vst [vmem:[#allocation2 + $0x28] sm:$0xf] 0
      %291 = vst [vmem:[#allocation2 + $0x2c] sm:$0xf] 0
      %292 = vst [vmem:[#allocation2 + $0x30] sm:$0xf] 0
      %293 = vst [vmem:[#allocation2 + $0x34] sm:$0xf] 0
      %294 = vst [vmem:[#allocation2 + $0x38] sm:$0xf] 0
      %295 = vst [vmem:[#allocation2 + $0x3c] sm:$0xf] 0
      %296 = vst [vmem:[#allocation2 + $0x40] sm:$0xf] 0
      %297 = vst [vmem:[#allocation2 + $0x44] sm:$0xf] 0
      %298 = vst [vmem:[#allocation2 + $0x48] sm:$0xf] 0
      %299 = vst [vmem:[#allocation2 + $0x4c] sm:$0xf] 0
      %300 = vst [vmem:[#allocation2 + $0x50] sm:$0xf] 0
      %301 = vst [vmem:[#allocation2 + $0x54] sm:$0xf] 0
      %302 = vst [vmem:[#allocation2 + $0x58] sm:$0xf] 0
      %303 = vst [vmem:[#allocation2 + $0x5c] sm:$0xf] 0
      %304 = vst [vmem:[#allocation2 + $0x60] sm:$0xf] 0
      %305 = vst [vmem:[#allocation2 + $0x64] sm:$0xf] 0
      %306 = vst [vmem:[#allocation2 + $0x68] sm:$0xf] 0
      %307 = vst [vmem:[#allocation2 + $0x6c] sm:$0xf] 0
      %308 = vst [vmem:[#allocation2 + $0x70] sm:$0xf] 0
      %309 = vst [vmem:[#allocation2 + $0x74] sm:$0xf] 0
      %310 = vst [vmem:[#allocation2 + $0x78] sm:$0xf] 0
      %311 = vst [vmem:[#allocation2 + $0x7c] sm:$0xf] 0
      %312 = vst [vmem:[#allocation2 + $0x80] sm:$0xf] 0
      %313 = vst [vmem:[#allocation2 + $0x84] sm:$0xf] 0
      %314 = vst [vmem:[#allocation2 + $0x88] sm:$0xf] 0
      %315 = vst [vmem:[#allocation2 + $0x8c] sm:$0xf] 0
      %316 = vst [vmem:[#allocation2 + $0x90] sm:$0xf] 0
      %317 = vst [vmem:[#allocation2 + $0x94] sm:$0xf] 0
      %318 = vst [vmem:[#allocation2 + $0x98] sm:$0xf] 0
      %319 = vst [vmem:[#allocation2 + $0x9c] sm:$0xf] 0
      %320 = vst [vmem:[#allocation2 + $0xa0] sm:$0xf] 0
      %321 = vst [vmem:[#allocation2 + $0xa4] sm:$0xf] 0
      %322 = vst [vmem:[#allocation2 + $0xa8] sm:$0x7] 0
      %v323 = vld [vmem:[%s273] sm:$0xf]
      %v324 = vld [vmem:[%s273 + $0x4] sm:$0xf]
      %v325 = vld [vmem:[%s273 + $0x8] sm:$0xf]
      %v326 = vld [vmem:[%s273 + $0xc] sm:$0xf]
      %v327 = vld [vmem:[%s273 + $0x10] sm:$0xf]
      %v328 = vld [vmem:[%s273 + $0x14] sm:$0xf]
      %v329 = vld [vmem:[%s273 + $0x18] sm:$0xf]
      %v330 = vld [vmem:[%s273 + $0x1c] sm:$0xf]
      %v331 = vld [vmem:[%s273 + $0x20] sm:$0xf]
      %v332 = vld [vmem:[%s273 + $0x24] sm:$0xf]
      %v333 = vld [vmem:[%s273 + $0x28] sm:$0xf]
      %v334 = vld [vmem:[%s273 + $0x2c] sm:$0xf]
      %v335 = vld [vmem:[%s273 + $0x30] sm:$0xf]
      %v336 = vld [vmem:[%s273 + $0x34] sm:$0xf]
      %v337 = vld [vmem:[%s273 + $0x38] sm:$0xf]
      %v338 = vld [vmem:[%s273 + $0x3c] sm:$0xf]
      %v339 = vld [vmem:[%s273 + $0x40] sm:$0xf]
      %v340 = vld [vmem:[%s273 + $0x44] sm:$0xf]
      %v341 = vld [vmem:[%s273 + $0x48] sm:$0xf]
      %v342 = vld [vmem:[%s273 + $0x4c] sm:$0xf]
      %v343 = vld [vmem:[%s273 + $0x50] sm:$0xf]
      %v344 = vld [vmem:[%s273 + $0x54] sm:$0xf]
      %v345 = vld [vmem:[%s273 + $0x58] sm:$0xf]
      %v346 = vld [vmem:[%s273 + $0x5c] sm:$0xf]
      %v347 = vld [vmem:[%s273 + $0x60] sm:$0xf]
      %v348 = vld [vmem:[%s273 + $0x64] sm:$0xf]
      %v349 = vld [vmem:[%s273 + $0x68] sm:$0xf]
      %v350 = vld [vmem:[%s273 + $0x6c] sm:$0xf]
      %v351 = vld [vmem:[%s273 + $0x70] sm:$0xf]
      %v352 = vld [vmem:[%s273 + $0x74] sm:$0xf]
      %v353 = vld [vmem:[%s273 + $0x78] sm:$0xf]
      %v354 = vld [vmem:[%s273 + $0x7c] sm:$0xf]
      %v355 = vld [vmem:[%s1] sm:$0xf]
      %v356 = vld [vmem:[%s1 + $0x4] sm:$0xf]
      %v357 = vld [vmem:[%s1 + $0x8] sm:$0xf]
      %v358 = vld [vmem:[%s1 + $0xc] sm:$0xf]
      %v359 = vld [vmem:[%s1 + $0x10] sm:$0xf]
      %v360 = vld [vmem:[%s1 + $0x14] sm:$0xf]
      %v361 = vld [vmem:[%s1 + $0x18] sm:$0xf]
      %v362 = vld [vmem:[%s1 + $0x1c] sm:$0xf]
      %v363 = vld [vmem:[%s1 + $0x20] sm:$0xf]
      %v364 = vld [vmem:[%s1 + $0x24] sm:$0xf]
      %v365 = vld [vmem:[%s1 + $0x28] sm:$0xf]
      %v366 = vld [vmem:[%s1 + $0x2c] sm:$0xf]
      %v367 = vld [vmem:[%s1 + $0x30] sm:$0xf]
      %v368 = vld [vmem:[%s1 + $0x34] sm:$0xf]
      %v369 = vld [vmem:[%s1 + $0x38] sm:$0xf]
      %v370 = vld [vmem:[%s1 + $0x3c] sm:$0xf]
      %v371 = vld [vmem:[%s2] sm:$0x1]
      %v373 = vlaneseq
      %v374 = vshrl.u32 %v373, 7
      %v375 = vsub.s32 0, %v374
      %v376 = vrot.slane %v371, %v375
      %v410 = vunpack.c.l.b16 %v323
      %v411 = vunpack.c.l.b16 %v324
      %v412 = vunpack.c.l.b16 %v325
      %v413 = vunpack.c.l.b16 %v326
      %v414 = vunpack.c.l.b16 %v327
      %v415 = vunpack.c.l.b16 %v328
      %v416 = vunpack.c.l.b16 %v329
      %v417 = vunpack.c.l.b16 %v330
      %v418 = vunpack.c.l.b16 %v331
      %v419 = vunpack.c.l.b16 %v332
      %v420 = vunpack.c.l.b16 %v333
      %v421 = vunpack.c.l.b16 %v334
      %v422 = vunpack.c.l.b16 %v335
      %v423 = vunpack.c.l.b16 %v336
      %v424 = vunpack.c.l.b16 %v337
      %v425 = vunpack.c.l.b16 %v338
      %v426 = vunpack.c.l.b16 %v339
      %v427 = vunpack.c.l.b16 %v340
      %v428 = vunpack.c.l.b16 %v341
      %v429 = vunpack.c.l.b16 %v342
      %v430 = vunpack.c.l.b16 %v343
      %v431 = vunpack.c.l.b16 %v344
      %v432 = vunpack.c.l.b16 %v345
      %v433 = vunpack.c.l.b16 %v346
      %v434 = vunpack.c.l.b16 %v347
      %v435 = vunpack.c.l.b16 %v348
      %v436 = vunpack.c.l.b16 %v349
      %v437 = vunpack.c.l.b16 %v350
      %v438 = vunpack.c.l.b16 %v351
      %v439 = vunpack.c.l.b16 %v352
      %v440 = vunpack.c.l.b16 %v353
      %v441 = vunpack.c.l.b16 %v354
      %v442 = vpack.c.b16 %v411, %v410
      %v443 = vpack.c.b16 %v413, %v412
      %v444 = vpack.c.b16 %v415, %v414
      %v445 = vpack.c.b16 %v417, %v416
      %v446 = vpack.c.b16 %v419, %v418
      %v447 = vpack.c.b16 %v421, %v420
      %v448 = vpack.c.b16 %v423, %v422
      %v449 = vpack.c.b16 %v425, %v424
      %v450 = vpack.c.b16 %v427, %v426
      %v451 = vpack.c.b16 %v429, %v428
      %v452 = vpack.c.b16 %v431, %v430
      %v453 = vpack.c.b16 %v433, %v432
      %v454 = vpack.c.b16 %v435, %v434
      %v455 = vpack.c.b16 %v437, %v436
      %v456 = vpack.c.b16 %v439, %v438
      %v457 = vpack.c.b16 %v441, %v440
      %v490 = vunpack.c.l.b16 %v355
      %v491 = vunpack.c.l.b16 %v356
      %v492 = vunpack.c.l.b16 %v357
      %v493 = vunpack.c.l.b16 %v358
      %v494 = vunpack.c.l.b16 %v359
      %v495 = vunpack.c.l.b16 %v360
      %v496 = vunpack.c.l.b16 %v361
      %v497 = vunpack.c.l.b16 %v362
      %v498 = vunpack.c.l.b16 %v363
      %v499 = vunpack.c.l.b16 %v364
      %v500 = vunpack.c.l.b16 %v365
      %v501 = vunpack.c.l.b16 %v366
      %v502 = vunpack.c.l.b16 %v367
      %v503 = vunpack.c.l.b16 %v368
      %v504 = vunpack.c.l.b16 %v369
      %v505 = vunpack.c.l.b16 %v370
      %v506 = vpack.c.b16 %v491, %v490
      %v507 = vpack.c.b16 %v493, %v492
      %v508 = vpack.c.b16 %v495, %v494
      %v509 = vpack.c.b16 %v497, %v496
      %v510 = vpack.c.b16 %v499, %v498
      %v511 = vpack.c.b16 %v501, %v500
      %v512 = vpack.c.b16 %v503, %v502
      %v513 = vpack.c.b16 %v505, %v504
      %522 = vmatprep.subr.bf16.mxu0 0
      %523 = vmatpush1.bf16.msra.mxu0 %v513
      %524 = vmatprep.subr.bf16.mxu0 0
      %525 = vmatpush1.bf16.msra.mxu0 %v512
      %526 = vmatprep.subr.bf16.mxu0 0
      %527 = vmatpush1.bf16.msra.mxu0 %v511
      %528 = vmatprep.subr.bf16.mxu0 0
      %529 = vmatpush1.bf16.msra.mxu0 %v510
      %530 = vmatprep.subr.bf16.mxu0 0
      %531 = vmatpush1.bf16.msra.mxu0 %v509
      %532 = vmatprep.subr.bf16.mxu0 0
      %533 = vmatpush1.bf16.msra.mxu0 %v508
      %534 = vmatprep.subr.bf16.mxu0 0
      %535 = vmatpush1.bf16.msra.mxu0 %v507
      %536 = vmatprep.subr.bf16.mxu0 0
      %537 = vmatpush1.bf16.msra.mxu0 %v506
      %538 = vmatprep.subr.bf16.mxu0 0
      %539 = vmatpush2.bf16.msra.mxu0 0
      %540 = vmatprep.subr.bf16.mxu0 0
      %541 = vmatpush2.bf16.msra.mxu0 0
      %542 = vmatprep.subr.bf16.mxu0 0
      %543 = vmatpush2.bf16.msra.mxu0 0
      %544 = vmatprep.subr.bf16.mxu0 0
      %545 = vmatpush2.bf16.msra.mxu0 0
      %546 = vmatprep.subr.bf16.mxu0 0
      %547 = vmatpush2.bf16.msra.mxu0 0
      %548 = vmatprep.subr.bf16.mxu0 0
      %549 = vmatpush2.bf16.msra.mxu0 0
      %550 = vmatprep.subr.bf16.mxu0 0
      %551 = vmatpush2.bf16.msra.mxu0 0
      %552 = vmatprep.subr.bf16.mxu0 0
      %553 = vmatpush2.bf16.msra.mxu0 0
      %554 = vmatprep.mubr.bf16.mxu0 0
      %555 = vmatmul.mubr.bf16.gmra.mxu0 %v442
      %v556 = vpop.f32.mrf.mxu0
      %v557 = vadd.f32 %v376, %v556
      %v558 = vpop.f32.mrf.mxu0
      %v559 = vpop.f32.mrf.mxu0
      %v560 = vadd.f32 %v376, %v559
      %v561 = vpop.f32.mrf.mxu0
      %562 = vmatprep.mubr.bf16.mxu0 0
      %563 = vmatmul.mubr.bf16.gmra.mxu0 %v443
      %v564 = vpop.f32.mrf.mxu0
      %v565 = vadd.f32 %v376, %v564
      %v566 = vpop.f32.mrf.mxu0
      %v567 = vpop.f32.mrf.mxu0
      %v568 = vadd.f32 %v376, %v567
      %v569 = vpop.f32.mrf.mxu0
      %570 = vmatprep.mubr.bf16.mxu0 0
      %571 = vmatmul.mubr.bf16.gmra.mxu0 %v444
      %v572 = vpop.f32.mrf.mxu0
      %v573 = vadd.f32 %v376, %v572
      %v574 = vpop.f32.mrf.mxu0
      %v575 = vpop.f32.mrf.mxu0
      %v576 = vadd.f32 %v376, %v575
      %v577 = vpop.f32.mrf.mxu0
      %578 = vmatprep.mubr.bf16.mxu0 0
      %579 = vmatmul.mubr.bf16.gmra.mxu0 %v445
      %v580 = vpop.f32.mrf.mxu0
      %v581 = vadd.f32 %v376, %v580
      %v582 = vpop.f32.mrf.mxu0
      %v583 = vpop.f32.mrf.mxu0
      %v584 = vadd.f32 %v376, %v583
      %v585 = vpop.f32.mrf.mxu0
      %586 = vmatprep.mubr.bf16.mxu0 0
      %587 = vmatmul.mubr.bf16.gmra.mxu0 %v446
      %v588 = vpop.f32.mrf.mxu0
      %v589 = vadd.f32 %v376, %v588
      %v590 = vpop.f32.mrf.mxu0
      %v591 = vpop.f32.mrf.mxu0
      %v592 = vadd.f32 %v376, %v591
      %v593 = vpop.f32.mrf.mxu0
      %594 = vmatprep.mubr.bf16.mxu0 0
      %595 = vmatmul.mubr.bf16.gmra.mxu0 %v447
      %v596 = vpop.f32.mrf.mxu0
      %v597 = vadd.f32 %v376, %v596
      %v598 = vpop.f32.mrf.mxu0
      %v599 = vpop.f32.mrf.mxu0
      %v600 = vadd.f32 %v376, %v599
      %v601 = vpop.f32.mrf.mxu0
      %602 = vmatprep.mubr.bf16.mxu0 0
      %603 = vmatmul.mubr.bf16.gmra.mxu0 %v448
      %v604 = vpop.f32.mrf.mxu0
      %v605 = vadd.f32 %v376, %v604
      %v606 = vpop.f32.mrf.mxu0
      %v607 = vpop.f32.mrf.mxu0
      %v608 = vadd.f32 %v376, %v607
      %v609 = vpop.f32.mrf.mxu0
      %610 = vmatprep.mubr.bf16.mxu0 0
      %611 = vmatmul.mubr.bf16.gmra.mxu0 %v449
      %v612 = vpop.f32.mrf.mxu0
      %v613 = vadd.f32 %v376, %v612
      %v614 = vpop.f32.mrf.mxu0
      %v615 = vpop.f32.mrf.mxu0
      %v616 = vadd.f32 %v376, %v615
      %v617 = vpop.f32.mrf.mxu0
      %618 = vmatprep.mubr.bf16.mxu0 0
      %619 = vmatmul.mubr.bf16.gmra.mxu0 %v450
      %v620 = vpop.f32.mrf.mxu0
      %v621 = vadd.f32 %v376, %v620
      %v622 = vpop.f32.mrf.mxu0
      %v623 = vpop.f32.mrf.mxu0
      %v624 = vadd.f32 %v376, %v623
      %v625 = vpop.f32.mrf.mxu0
      %626 = vmatprep.mubr.bf16.mxu0 0
      %627 = vmatmul.mubr.bf16.gmra.mxu0 %v451
      %v628 = vpop.f32.mrf.mxu0
      %v629 = vadd.f32 %v376, %v628
      %v630 = vpop.f32.mrf.mxu0
      %v631 = vpop.f32.mrf.mxu0
      %v632 = vadd.f32 %v376, %v631
      %v633 = vpop.f32.mrf.mxu0
      %634 = vmatprep.mubr.bf16.mxu0 0
      %635 = vmatmul.mubr.bf16.gmra.mxu0 %v452
      %v636 = vpop.f32.mrf.mxu0
      %v637 = vadd.f32 %v376, %v636
      %v638 = vpop.f32.mrf.mxu0
      %v639 = vpop.f32.mrf.mxu0
      %v640 = vadd.f32 %v376, %v639
      %v641 = vpop.f32.mrf.mxu0
      %642 = vmatprep.mubr.bf16.mxu0 0
      %643 = vmatmul.mubr.bf16.gmra.mxu0 %v453
      %v644 = vpop.f32.mrf.mxu0
      %v645 = vadd.f32 %v376, %v644
      %v646 = vpop.f32.mrf.mxu0
      %v647 = vpop.f32.mrf.mxu0
      %v648 = vadd.f32 %v376, %v647
      %v649 = vpop.f32.mrf.mxu0
      %650 = vmatprep.mubr.bf16.mxu0 0
      %651 = vmatmul.mubr.bf16.gmra.mxu0 %v454
      %v652 = vpop.f32.mrf.mxu0
      %v653 = vadd.f32 %v376, %v652
      %v654 = vpop.f32.mrf.mxu0
      %v655 = vpop.f32.mrf.mxu0
      %v656 = vadd.f32 %v376, %v655
      %v657 = vpop.f32.mrf.mxu0
      %658 = vmatprep.mubr.bf16.mxu0 0
      %659 = vmatmul.mubr.bf16.gmra.mxu0 %v455
      %v660 = vpop.f32.mrf.mxu0
      %v661 = vadd.f32 %v376, %v660
      %v662 = vpop.f32.mrf.mxu0
      %v663 = vpop.f32.mrf.mxu0
      %v664 = vadd.f32 %v376, %v663
      %v665 = vpop.f32.mrf.mxu0
      %666 = vmatprep.mubr.bf16.mxu0 0
      %667 = vmatmul.mubr.bf16.gmra.mxu0 %v456
      %v668 = vpop.f32.mrf.mxu0
      %v669 = vadd.f32 %v376, %v668
      %v670 = vpop.f32.mrf.mxu0
      %v671 = vpop.f32.mrf.mxu0
      %v672 = vadd.f32 %v376, %v671
      %v673 = vpop.f32.mrf.mxu0
      %674 = vmatprep.mubr.bf16.mxu0 0
      %675 = vmatmul.mubr.bf16.gmra.mxu0 %v457
      %v676 = vpop.f32.mrf.mxu0
      %v677 = vadd.f32 %v376, %v676
      %v678 = vpop.f32.mrf.mxu0
      %v679 = vpop.f32.mrf.mxu0
      %v680 = vadd.f32 %v376, %v679
      %v681 = vpop.f32.mrf.mxu0
      %682 = vdwg.mxu0
      %v683 = vmax.f32 %v557, 0.0
      %v684 = vmax.f32 %v560, 0.0
      %v685 = vmax.f32 %v565, 0.0
      %v686 = vmax.f32 %v568, 0.0
      %v687 = vmax.f32 %v573, 0.0
      %v688 = vmax.f32 %v576, 0.0
      %v689 = vmax.f32 %v581, 0.0
      %v690 = vmax.f32 %v584, 0.0
      %v691 = vmax.f32 %v589, 0.0
      %v692 = vmax.f32 %v592, 0.0
      %v693 = vmax.f32 %v597, 0.0
      %v694 = vmax.f32 %v600, 0.0
      %v695 = vmax.f32 %v605, 0.0
      %v696 = vmax.f32 %v608, 0.0
      %v697 = vmax.f32 %v613, 0.0
      %v698 = vmax.f32 %v616, 0.0
      %v699 = vmax.f32 %v621, 0.0
      %v700 = vmax.f32 %v624, 0.0
      %v701 = vmax.f32 %v629, 0.0
      %v702 = vmax.f32 %v632, 0.0
      %v703 = vmax.f32 %v637, 0.0
      %v704 = vmax.f32 %v640, 0.0
      %v705 = vmax.f32 %v645, 0.0
      %v706 = vmax.f32 %v648, 0.0
      %v707 = vmax.f32 %v653, 0.0
      %v708 = vmax.f32 %v656, 0.0
      %v709 = vmax.f32 %v661, 0.0
      %v710 = vmax.f32 %v664, 0.0
      %v711 = vmax.f32 %v669, 0.0
      %v712 = vmax.f32 %v672, 0.0
      %v713 = vmax.f32 %v677, 0.0
      %v714 = vmax.f32 %v680, 0.0
      %v715 = vpack.c.bf16 %v684, %v683
      %v716 = vpack.c.bf16 %v686, %v685
      %v717 = vpack.c.bf16 %v688, %v687
      %v718 = vpack.c.bf16 %v690, %v689
      %v719 = vpack.c.bf16 %v692, %v691
      %v720 = vpack.c.bf16 %v694, %v693
      %v721 = vpack.c.bf16 %v696, %v695
      %v722 = vpack.c.bf16 %v698, %v697
      %v723 = vpack.c.bf16 %v700, %v699
      %v724 = vpack.c.bf16 %v702, %v701
      %v725 = vpack.c.bf16 %v704, %v703
      %v726 = vpack.c.bf16 %v706, %v705
      %v727 = vpack.c.bf16 %v708, %v707
      %v728 = vpack.c.bf16 %v710, %v709
      %v729 = vpack.c.bf16 %v712, %v711
      %v730 = vpack.c.bf16 %v714, %v713
      %v732 = vunpack.c.l.b16 %v715
      %v733 = vunpack.c.h.b16 %v715
      %v734 = vpack.c.b16 %v732, %v732
      %v735 = vpack.c.b16 %v733, %v733
      %vm736 = vsmask.f32 1280
      %vm737 = vsmask.f32 5392
      %vm738 = vmor %vm736, %vm737
      %v740 = vshrl.u32 %v734, 16
      %v742 = vrot.slane %v740, 6
      %v743 = vshll.u32 %v734, 16
      %v745 = vrot.slane %v743, 7
      %v746 = vor.u32 %v742, %v745
      %v747 = vrot.slane %v746, 4
      %v749 = vshrl.u32 %v735, 16
      %v751 = vrot.slane %v749, 6
      %v752 = vshll.u32 %v735, 16
      %v754 = vrot.slane %v752, 7
      %v755 = vor.u32 %v751, %v754
      %v756 = vsel %vm738, %v747, %v755
      %v757 = vrot.slane %v755, 4
      %vm761 = vcmask 1043457
      %vm762 = vsmask.f32 7942
      %vm763 = vmand %vm761, %vm762
      %v764 = vld [vmem:[#allocation2 + $0x8] sm:$0xe]
      %v765 = vsel %vm763, %v746, %v764
      %766 = vst [vmem:[#allocation2 + $0x8] sm:$0xe] %v765
      %767 = vst [vmem:[#allocation2 + $0xc] sm:$0xf] %v756
      %vm768 = vcmask 1041408
      %vm769 = vmand %vm768, %vm736
      %v770 = vld [vmem:[#allocation2 + $0x10] sm:$0x3]
      %v771 = vsel %vm769, %v757, %v770
      %772 = vst [vmem:[#allocation2 + $0x10] sm:$0x3] %v771
      %v774 = vunpack.c.l.b16 %v716
      %v775 = vunpack.c.h.b16 %v716
      %v776 = vpack.c.b16 %v774, %v774
      %v777 = vpack.c.b16 %v775, %v775
      %vm778 = vsmask.f32 2304
      %vm779 = vsmask.f32 6416
      %vm780 = vmor %vm778, %vm779
      %v782 = vshrl.u32 %v776, 16
      %v784 = vrot.slane %v782, 5
      %v785 = vshll.u32 %v776, 16
      %v787 = vrot.slane %v785, 6
      %v788 = vor.u32 %v784, %v787
      %v789 = vrot.slane %v788, 4
      %v791 = vshrl.u32 %v777, 16
      %v793 = vrot.slane %v791, 5
      %v794 = vshll.u32 %v777, 16
      %v796 = vrot.slane %v794, 6
      %v797 = vor.u32 %v793, %v796
      %v798 = vsel %vm780, %v789, %v797
      %v799 = vrot.slane %v797, 4
      %vm803 = vcmask 1043458
      %vm804 = vsmask.f32 7946
      %vm805 = vmand %vm803, %vm804
      %v806 = vld [vmem:[#allocation2 + $0x10] sm:$0xc]
      %v807 = vsel %vm805, %v788, %v806
      %808 = vst [vmem:[#allocation2 + $0x10] sm:$0xc] %v807
      %809 = vst [vmem:[#allocation2 + $0x14] sm:$0xf] %v798
      %vm810 = vcmask 1042432
      %vm811 = vmand %vm810, %vm778
      %v812 = vld [vmem:[#allocation2 + $0x18] sm:$0x7]
      %v813 = vsel %vm811, %v799, %v812
      %814 = vst [vmem:[#allocation2 + $0x18] sm:$0x7] %v813
      %v816 = vunpack.c.l.b16 %v717
      %v817 = vunpack.c.h.b16 %v717
      %v818 = vpack.c.b16 %v816, %v816
      %v819 = vpack.c.b16 %v817, %v817
      %vm820 = vsmask.f32 3328
      %vm821 = vsmask.f32 7440
      %vm822 = vmor %vm820, %vm821
      %v824 = vshll.u32 %v818, 16
      %v826 = vrot.slane %v824, 5
      %v827 = vshrl.u32 %v818, 16
      %v829 = vrot.slane %v827, 4
      %v830 = vor.u32 %v829, %v826
      %v831 = vrot.slane %v830, 4
      %v833 = vshll.u32 %v819, 16
      %v835 = vrot.slane %v833, 5
      %v836 = vsel %vm822, %v831, %v835
      %v837 = vshrl.u32 %v819, 16
      %v839 = vrot.slane %v837, 4
      %v840 = vor.u32 %v839, %v835
      %v841 = vrot.slane %v840, 4
      %vm845 = vcmask 1043459
      %vm846 = vsmask.f32 7950
      %vm847 = vmand %vm845, %vm846
      %v848 = vld [vmem:[#allocation2 + $0x18] sm:$0x8]
      %v849 = vsel %vm847, %v826, %v848
      %850 = vst [vmem:[#allocation2 + $0x18] sm:$0x8] %v849
      %851 = vst [vmem:[#allocation2 + $0x1c] sm:$0xf] %v836
      %vm852 = vcmask 1043456
      %vm853 = vmand %vm852, %vm820
      %v854 = vld [vmem:[#allocation2 + $0x20] sm:$0xf]
      %v855 = vsel %vm853, %v841, %v854
      %856 = vst [vmem:[#allocation2 + $0x20] sm:$0xf] %v855
      %v858 = vunpack.c.l.b16 %v718
      %v859 = vunpack.c.h.b16 %v718
      %v860 = vpack.c.b16 %v858, %v858
      %v861 = vpack.c.b16 %v859, %v859
      %vm862 = vsmask.f32 256
      %vm863 = vsmask.f32 4368
      %vm864 = vmor %vm862, %vm863
      %v866 = vshrl.u32 %v860, 16
      %v868 = vrot.slane %v866, 7
      %v869 = vshll.u32 %v860, 16
      %v871 = vor.u32 %v868, %v869
      %v872 = vrot.slane %v868, 4
      %v874 = vshrl.u32 %v861, 16
      %v876 = vrot.slane %v874, 7
      %v877 = vshll.u32 %v861, 16
      %v879 = vor.u32 %v876, %v877
      %v880 = vsel %vm864, %v872, %v879
      %v881 = vrot.slane %v876, 4
      %vm885 = vsmask.f32 7938
      %vm886 = vmand %vm852, %vm885
      %v887 = vld [vmem:[#allocation2 + $0x24] sm:$0xf]
      %v888 = vsel %vm886, %v871, %v887
      %889 = vst [vmem:[#allocation2 + $0x24] sm:$0xf] %v888
      %890 = vst [vmem:[#allocation2 + $0x28] sm:$0xf] %v880
      %vm891 = vcmask 1040384
      %vm892 = vmand %vm891, %vm862
      %v893 = vld [vmem:[#allocation2 + $0x2c] sm:$0x1]
      %v894 = vsel %vm892, %v881, %v893
      %895 = vst [vmem:[#allocation2 + $0x2c] sm:$0x1] %v894
      %v897 = vunpack.c.l.b16 %v719
      %v898 = vunpack.c.h.b16 %v719
      %v899 = vpack.c.b16 %v897, %v897
      %v900 = vpack.c.b16 %v898, %v898
      %v902 = vshrl.u32 %v899, 16
      %v904 = vrot.slane %v902, 6
      %v905 = vshll.u32 %v899, 16
      %v907 = vrot.slane %v905, 7
      %v908 = vor.u32 %v904, %v907
      %v909 = vrot.slane %v908, 4
      %v911 = vshrl.u32 %v900, 16
      %v913 = vrot.slane %v911, 6
      %v914 = vshll.u32 %v900, 16
      %v916 = vrot.slane %v914, 7
      %v917 = vor.u32 %v913, %v916
      %v918 = vsel %vm738, %v909, %v917
      %v919 = vrot.slane %v917, 4
      %v923 = vld [vmem:[#allocation2 + $0x2c] sm:$0xe]
      %v924 = vsel %vm763, %v908, %v923
      %925 = vst [vmem:[#allocation2 + $0x2c] sm:$0xe] %v924
      %926 = vst [vmem:[#allocation2 + $0x30] sm:$0xf] %v918
      %v927 = vld [vmem:[#allocation2 + $0x34] sm:$0x3]
      %v928 = vsel %vm769, %v919, %v927
      %929 = vst [vmem:[#allocation2 + $0x34] sm:$0x3] %v928
      %v931 = vunpack.c.l.b16 %v720
      %v932 = vunpack.c.h.b16 %v720
      %v933 = vpack.c.b16 %v931, %v931
      %v934 = vpack.c.b16 %v932, %v932
      %v936 = vshrl.u32 %v933, 16
      %v938 = vrot.slane %v936, 5
      %v939 = vshll.u32 %v933, 16
      %v941 = vrot.slane %v939, 6
      %v942 = vor.u32 %v938, %v941
      %v943 = vrot.slane %v942, 4
      %v945 = vshrl.u32 %v934, 16
      %v947 = vrot.slane %v945, 5
      %v948 = vshll.u32 %v934, 16
      %v950 = vrot.slane %v948, 6
      %v951 = vor.u32 %v947, %v950
      %v952 = vsel %vm780, %v943, %v951
      %v953 = vrot.slane %v951, 4
      %v957 = vld [vmem:[#allocation2 + $0x34] sm:$0xc]
      %v958 = vsel %vm805, %v942, %v957
      %959 = vst [vmem:[#allocation2 + $0x34] sm:$0xc] %v958
      %960 = vst [vmem:[#allocation2 + $0x38] sm:$0xf] %v952
      %v961 = vld [vmem:[#allocation2 + $0x3c] sm:$0x7]
      %v962 = vsel %vm811, %v953, %v961
      %963 = vst [vmem:[#allocation2 + $0x3c] sm:$0x7] %v962
      %v965 = vunpack.c.l.b16 %v721
      %v966 = vunpack.c.h.b16 %v721
      %v967 = vpack.c.b16 %v965, %v965
      %v968 = vpack.c.b16 %v966, %v966
      %v970 = vshll.u32 %v967, 16
      %v972 = vrot.slane %v970, 5
      %v973 = vshrl.u32 %v967, 16
      %v975 = vrot.slane %v973, 4
      %v976 = vor.u32 %v975, %v972
      %v977 = vrot.slane %v976, 4
      %v979 = vshll.u32 %v968, 16
      %v981 = vrot.slane %v979, 5
      %v982 = vsel %vm822, %v977, %v981
      %v983 = vshrl.u32 %v968, 16
      %v985 = vrot.slane %v983, 4
      %v986 = vor.u32 %v985, %v981
      %v987 = vrot.slane %v986, 4
      %v991 = vld [vmem:[#allocation2 + $0x3c] sm:$0x8]
      %v992 = vsel %vm847, %v972, %v991
      %993 = vst [vmem:[#allocation2 + $0x3c] sm:$0x8] %v992
      %994 = vst [vmem:[#allocation2 + $0x40] sm:$0xf] %v982
      %v995 = vld [vmem:[#allocation2 + $0x44] sm:$0xf]
      %v996 = vsel %vm853, %v987, %v995
      %997 = vst [vmem:[#allocation2 + $0x44] sm:$0xf] %v996
      %v999 = vunpack.c.l.b16 %v722
      %v1000 = vunpack.c.h.b16 %v722
      %v1001 = vpack.c.b16 %v999, %v999
      %v1002 = vpack.c.b16 %v1000, %v1000
      %v1004 = vshrl.u32 %v1001, 16
      %v1006 = vrot.slane %v1004, 7
      %v1007 = vshll.u32 %v1001, 16
      %v1009 = vor.u32 %v1006, %v1007
      %v1010 = vrot.slane %v1006, 4
      %v1012 = vshrl.u32 %v1002, 16
      %v1014 = vrot.slane %v1012, 7
      %v1015 = vshll.u32 %v1002, 16
      %v1017 = vor.u32 %v1014, %v1015
      %v1018 = vsel %vm864, %v1010, %v1017
      %v1019 = vrot.slane %v1014, 4
      %v1023 = vld [vmem:[#allocation2 + $0x48] sm:$0xf]
      %v1024 = vsel %vm886, %v1009, %v1023
      %1025 = vst [vmem:[#allocation2 + $0x48] sm:$0xf] %v1024
      %1026 = vst [vmem:[#allocation2 + $0x4c] sm:$0xf] %v1018
      %v1027 = vld [vmem:[#allocation2 + $0x50] sm:$0x1]
      %v1028 = vsel %vm892, %v1019, %v1027
      %1029 = vst [vmem:[#allocation2 + $0x50] sm:$0x1] %v1028
      %v1031 = vunpack.c.l.b16 %v723
      %v1032 = vunpack.c.h.b16 %v723
      %v1033 = vpack.c.b16 %v1031, %v1031
      %v1034 = vpack.c.b16 %v1032, %v1032
      %v1036 = vshrl.u32 %v1033, 16
      %v1038 = vrot.slane %v1036, 6
      %v1039 = vshll.u32 %v1033, 16
      %v1041 = vrot.slane %v1039, 7
      %v1042 = vor.u32 %v1038, %v1041
      %v1043 = vrot.slane %v1042, 4
      %v1045 = vshrl.u32 %v1034, 16
      %v1047 = vrot.slane %v1045, 6
      %v1048 = vshll.u32 %v1034, 16
      %v1050 = vrot.slane %v1048, 7
      %v1051 = vor.u32 %v1047, %v1050
      %v1052 = vsel %vm738, %v1043, %v1051
      %v1053 = vrot.slane %v1051, 4
      %v1057 = vld [vmem:[#allocation2 + $0x50] sm:$0xe]
      %v1058 = vsel %vm763, %v1042, %v1057
      %1059 = vst [vmem:[#allocation2 + $0x50] sm:$0xe] %v1058
      %1060 = vst [vmem:[#allocation2 + $0x54] sm:$0xf] %v1052
      %v1061 = vld [vmem:[#allocation2 + $0x58] sm:$0x3]
      %v1062 = vsel %vm769, %v1053, %v1061
      %1063 = vst [vmem:[#allocation2 + $0x58] sm:$0x3] %v1062
      %v1065 = vunpack.c.l.b16 %v724
      %v1066 = vunpack.c.h.b16 %v724
      %v1067 = vpack.c.b16 %v1065, %v1065
      %v1068 = vpack.c.b16 %v1066, %v1066
      %v1070 = vshrl.u32 %v1067, 16
      %v1072 = vrot.slane %v1070, 5
      %v1073 = vshll.u32 %v1067, 16
      %v1075 = vrot.slane %v1073, 6
      %v1076 = vor.u32 %v1072, %v1075
      %v1077 = vrot.slane %v1076, 4
      %v1079 = vshrl.u32 %v1068, 16
      %v1081 = vrot.slane %v1079, 5
      %v1082 = vshll.u32 %v1068, 16
      %v1084 = vrot.slane %v1082, 6
      %v1085 = vor.u32 %v1081, %v1084
      %v1086 = vsel %vm780, %v1077, %v1085
      %v1087 = vrot.slane %v1085, 4
      %v1091 = vld [vmem:[#allocation2 + $0x58] sm:$0xc]
      %v1092 = vsel %vm805, %v1076, %v1091
      %1093 = vst [vmem:[#allocation2 + $0x58] sm:$0xc] %v1092
      %1094 = vst [vmem:[#allocation2 + $0x5c] sm:$0xf] %v1086
      %v1095 = vld [vmem:[#allocation2 + $0x60] sm:$0x7]
      %v1096 = vsel %vm811, %v1087, %v1095
      %1097 = vst [vmem:[#allocation2 + $0x60] sm:$0x7] %v1096
      %v1099 = vunpack.c.l.b16 %v725
      %v1100 = vunpack.c.h.b16 %v725
      %v1101 = vpack.c.b16 %v1099, %v1099
      %v1102 = vpack.c.b16 %v1100, %v1100
      %v1104 = vshll.u32 %v1101, 16
      %v1106 = vrot.slane %v1104, 5
      %v1107 = vshrl.u32 %v1101, 16
      %v1109 = vrot.slane %v1107, 4
      %v1110 = vor.u32 %v1109, %v1106
      %v1111 = vrot.slane %v1110, 4
      %v1113 = vshll.u32 %v1102, 16
      %v1115 = vrot.slane %v1113, 5
      %v1116 = vsel %vm822, %v1111, %v1115
      %v1117 = vshrl.u32 %v1102, 16
      %v1119 = vrot.slane %v1117, 4
      %v1120 = vor.u32 %v1119, %v1115
      %v1121 = vrot.slane %v1120, 4
      %v1125 = vld [vmem:[#allocation2 + $0x60] sm:$0x8]
      %v1126 = vsel %vm847, %v1106, %v1125
      %1127 = vst [vmem:[#allocation2 + $0x60] sm:$0x8] %v1126
      %1128 = vst [vmem:[#allocation2 + $0x64] sm:$0xf] %v1116
      %v1129 = vld [vmem:[#allocation2 + $0x68] sm:$0xf]
      %v1130 = vsel %vm853, %v1121, %v1129
      %1131 = vst [vmem:[#allocation2 + $0x68] sm:$0xf] %v1130
      %v1133 = vunpack.c.l.b16 %v726
      %v1134 = vunpack.c.h.b16 %v726
      %v1135 = vpack.c.b16 %v1133, %v1133
      %v1136 = vpack.c.b16 %v1134, %v1134
      %v1138 = vshrl.u32 %v1135, 16
      %v1140 = vrot.slane %v1138, 7
      %v1141 = vshll.u32 %v1135, 16
      %v1143 = vor.u32 %v1140, %v1141
      %v1144 = vrot.slane %v1140, 4
      %v1146 = vshrl.u32 %v1136, 16
      %v1148 = vrot.slane %v1146, 7
      %v1149 = vshll.u32 %v1136, 16
      %v1151 = vor.u32 %v1148, %v1149
      %v1152 = vsel %vm864, %v1144, %v1151
      %v1153 = vrot.slane %v1148, 4
      %v1157 = vld [vmem:[#allocation2 + $0x6c] sm:$0xf]
      %v1158 = vsel %vm886, %v1143, %v1157
      %1159 = vst [vmem:[#allocation2 + $0x6c] sm:$0xf] %v1158
      %1160 = vst [vmem:[#allocation2 + $0x70] sm:$0xf] %v1152
      %v1161 = vld [vmem:[#allocation2 + $0x74] sm:$0x1]
      %v1162 = vsel %vm892, %v1153, %v1161
      %1163 = vst [vmem:[#allocation2 + $0x74] sm:$0x1] %v1162
      %v1165 = vunpack.c.l.b16 %v727
      %v1166 = vunpack.c.h.b16 %v727
      %v1167 = vpack.c.b16 %v1165, %v1165
      %v1168 = vpack.c.b16 %v1166, %v1166
      %v1170 = vshrl.u32 %v1167, 16
      %v1172 = vrot.slane %v1170, 6
      %v1173 = vshll.u32 %v1167, 16
      %v1175 = vrot.slane %v1173, 7
      %v1176 = vor.u32 %v1172, %v1175
      %v1177 = vrot.slane %v1176, 4
      %v1179 = vshrl.u32 %v1168, 16
      %v1181 = vrot.slane %v1179, 6
      %v1182 = vshll.u32 %v1168, 16
      %v1184 = vrot.slane %v1182, 7
      %v1185 = vor.u32 %v1181, %v1184
      %v1186 = vsel %vm738, %v1177, %v1185
      %v1187 = vrot.slane %v1185, 4
      %v1191 = vld [vmem:[#allocation2 + $0x74] sm:$0xe]
      %v1192 = vsel %vm763, %v1176, %v1191
      %1193 = vst [vmem:[#allocation2 + $0x74] sm:$0xe] %v1192
      %1194 = vst [vmem:[#allocation2 + $0x78] sm:$0xf] %v1186
      %v1195 = vld [vmem:[#allocation2 + $0x7c] sm:$0x3]
      %v1196 = vsel %vm769, %v1187, %v1195
      %1197 = vst [vmem:[#allocation2 + $0x7c] sm:$0x3] %v1196
      %v1199 = vunpack.c.l.b16 %v728
      %v1200 = vunpack.c.h.b16 %v728
      %v1201 = vpack.c.b16 %v1199, %v1199
      %v1202 = vpack.c.b16 %v1200, %v1200
      %v1204 = vshrl.u32 %v1201, 16
      %v1206 = vrot.slane %v1204, 5
      %v1207 = vshll.u32 %v1201, 16
      %v1209 = vrot.slane %v1207, 6
      %v1210 = vor.u32 %v1206, %v1209
      %v1211 = vrot.slane %v1210, 4
      %v1213 = vshrl.u32 %v1202, 16
      %v1215 = vrot.slane %v1213, 5
      %v1216 = vshll.u32 %v1202, 16
      %v1218 = vrot.slane %v1216, 6
      %v1219 = vor.u32 %v1215, %v1218
      %v1220 = vsel %vm780, %v1211, %v1219
      %v1221 = vrot.slane %v1219, 4
      %v1225 = vld [vmem:[#allocation2 + $0x7c] sm:$0xc]
      %v1226 = vsel %vm805, %v1210, %v1225
      %1227 = vst [vmem:[#allocation2 + $0x7c] sm:$0xc] %v1226
      %1228 = vst [vmem:[#allocation2 + $0x80] sm:$0xf] %v1220
      %v1229 = vld [vmem:[#allocation2 + $0x84] sm:$0x7]
      %v1230 = vsel %vm811, %v1221, %v1229
      %1231 = vst [vmem:[#allocation2 + $0x84] sm:$0x7] %v1230
      %v1233 = vunpack.c.l.b16 %v729
      %v1234 = vunpack.c.h.b16 %v729
      %v1235 = vpack.c.b16 %v1233, %v1233
      %v1236 = vpack.c.b16 %v1234, %v1234
      %v1238 = vshll.u32 %v1235, 16
      %v1240 = vrot.slane %v1238, 5
      %v1241 = vshrl.u32 %v1235, 16
      %v1243 = vrot.slane %v1241, 4
      %v1244 = vor.u32 %v1243, %v1240
      %v1245 = vrot.slane %v1244, 4
      %v1247 = vshll.u32 %v1236, 16
      %v1249 = vrot.slane %v1247, 5
      %v1250 = vsel %vm822, %v1245, %v1249
      %v1251 = vshrl.u32 %v1236, 16
      %v1253 = vrot.slane %v1251, 4
      %v1254 = vor.u32 %v1253, %v1249
      %v1255 = vrot.slane %v1254, 4
      %v1259 = vld [vmem:[#allocation2 + $0x84] sm:$0x8]
      %v1260 = vsel %vm847, %v1240, %v1259
      %1261 = vst [vmem:[#allocation2 + $0x84] sm:$0x8] %v1260
      %1262 = vst [vmem:[#allocation2 + $0x88] sm:$0xf] %v1250
      %v1263 = vld [vmem:[#allocation2 + $0x8c] sm:$0xf]
      %v1264 = vsel %vm853, %v1255, %v1263
      %1265 = vst [vmem:[#allocation2 + $0x8c] sm:$0xf] %v1264
      %v1267 = vunpack.c.l.b16 %v730
      %v1268 = vunpack.c.h.b16 %v730
      %v1269 = vpack.c.b16 %v1267, %v1267
      %v1270 = vpack.c.b16 %v1268, %v1268
      %v1272 = vshrl.u32 %v1269, 16
      %v1274 = vrot.slane %v1272, 7
      %v1275 = vshll.u32 %v1269, 16
      %v1277 = vor.u32 %v1274, %v1275
      %v1278 = vrot.slane %v1274, 4
      %v1280 = vshrl.u32 %v1270, 16
      %v1282 = vrot.slane %v1280, 7
      %v1283 = vshll.u32 %v1270, 16
      %v1285 = vor.u32 %v1282, %v1283
      %v1286 = vsel %vm864, %v1278, %v1285
      %v1287 = vrot.slane %v1282, 4
      %v1291 = vld [vmem:[#allocation2 + $0x90] sm:$0xf]
      %v1292 = vsel %vm886, %v1277, %v1291
      %1293 = vst [vmem:[#allocation2 + $0x90] sm:$0xf] %v1292
      %1294 = vst [vmem:[#allocation2 + $0x94] sm:$0xf] %v1286
      %v1295 = vld [vmem:[#allocation2 + $0x98] sm:$0x1]
      %v1296 = vsel %vm892, %v1287, %v1295
      %1297 = vst [vmem:[#allocation2 + $0x98] sm:$0x1] %v1296
      %v1298 = vld [vmem:[#allocation2] sm:$0xf]
      %v1299 = vld [vmem:[#allocation2 + $0x4] sm:$0xf]
      %v1300 = vld [vmem:[#allocation2 + $0x8] sm:$0xf]
      %v1301 = vld [vmem:[#allocation2 + $0xc] sm:$0xf]
      %v1302 = vld [vmem:[#allocation2 + $0x10] sm:$0xf]
      %v1303 = vld [vmem:[#allocation2 + $0x14] sm:$0xf]
      %v1304 = vld [vmem:[#allocation2 + $0x18] sm:$0xf]
      %v1305 = vld [vmem:[#allocation2 + $0x1c] sm:$0xf]
      %v1306 = vld [vmem:[#allocation2 + $0x20] sm:$0xf]
      %v1307 = vld [vmem:[#allocation2 + $0x24] sm:$0xf]
      %v1308 = vld [vmem:[#allocation2 + $0x28] sm:$0xf]
      %v1309 = vld [vmem:[#allocation2 + $0x2c] sm:$0xf]
      %v1310 = vld [vmem:[#allocation2 + $0x30] sm:$0xf]
      %v1311 = vld [vmem:[#allocation2 + $0x34] sm:$0xf]
      %v1312 = vld [vmem:[#allocation2 + $0x38] sm:$0xf]
      %v1313 = vld [vmem:[#allocation2 + $0x3c] sm:$0xf]
      %v1314 = vld [vmem:[#allocation2 + $0x40] sm:$0xf]
      %v1315 = vld [vmem:[#allocation2 + $0x44] sm:$0xf]
      %v1316 = vld [vmem:[#allocation2 + $0x48] sm:$0xf]
      %v1317 = vld [vmem:[#allocation2 + $0x4c] sm:$0xf]
      %v1318 = vld [vmem:[#allocation2 + $0x50] sm:$0xf]
      %v1319 = vld [vmem:[#allocation2 + $0x54] sm:$0xf]
      %v1320 = vld [vmem:[#allocation2 + $0x58] sm:$0xf]
      %v1321 = vld [vmem:[#allocation2 + $0x5c] sm:$0xf]
      %v1322 = vld [vmem:[#allocation2 + $0x60] sm:$0xf]
      %v1323 = vld [vmem:[#allocation2 + $0x64] sm:$0xf]
      %v1324 = vld [vmem:[#allocation2 + $0x68] sm:$0xf]
      %v1325 = vld [vmem:[#allocation2 + $0x6c] sm:$0xf]
      %v1326 = vld [vmem:[#allocation2 + $0x70] sm:$0xf]
      %v1327 = vld [vmem:[#allocation2 + $0x74] sm:$0xf]
      %v1328 = vld [vmem:[#allocation2 + $0x78] sm:$0xf]
      %v1329 = vld [vmem:[#allocation2 + $0x7c] sm:$0xf]
      %v1330 = vld [vmem:[#allocation2 + $0x80] sm:$0xf]
      %v1331 = vld [vmem:[#allocation2 + $0x84] sm:$0xf]
      %v1332 = vld [vmem:[#allocation2 + $0x88] sm:$0xf]
      %v1333 = vld [vmem:[#allocation2 + $0x8c] sm:$0xf]
      %1334 = vst [vmem:[#allocation3] sm:$0xf] %v1298
      %1335 = vst [vmem:[#allocation3 + $0x24] sm:$0xf] %v1299
      %1336 = vst [vmem:[#allocation3 + $0x48] sm:$0xf] %v1300
      %1337 = vst [vmem:[#allocation3 + $0x6c] sm:$0xf] %v1301
      %1338 = vst [vmem:[#allocation3 + $0x90] sm:$0xf] %v1302
      %1339 = vst [vmem:[#allocation3 + $0xb4] sm:$0xf] %v1303
      %1340 = vst [vmem:[#allocation3 + $0xd8] sm:$0xf] %v1304
      %1341 = vst [vmem:[#allocation3 + $0xfc] sm:$0xf] %v1305
      %1342 = vst [vmem:[#allocation3 + $0x120] sm:$0xf] %v1306
      %1343 = vst [vmem:[#allocation3 + $0x144] sm:$0xf] %v1307
      %1344 = vst [vmem:[#allocation3 + $0x168] sm:$0xf] %v1308
      %1345 = vst [vmem:[#allocation3 + $0x18c] sm:$0xf] %v1309
      %1346 = vst [vmem:[#allocation3 + $0x1b0] sm:$0xf] %v1310
      %1347 = vst [vmem:[#allocation3 + $0x1d4] sm:$0xf] %v1311
      %1348 = vst [vmem:[#allocation3 + $0x1f8] sm:$0xf] %v1312
      %1349 = vst [vmem:[#allocation3 + $0x21c] sm:$0xf] %v1313
      %1350 = vst [vmem:[#allocation3 + $0x240] sm:$0xf] %v1314
      %1351 = vst [vmem:[#allocation3 + $0x264] sm:$0xf] %v1315
      %1352 = vst [vmem:[#allocation3 + $0x288] sm:$0xf] %v1316
      %1353 = vst [vmem:[#allocation3 + $0x2ac] sm:$0xf] %v1317
      %1354 = vst [vmem:[#allocation3 + $0x2d0] sm:$0xf] %v1318
      %1355 = vst [vmem:[#allocation3 + $0x2f4] sm:$0xf] %v1319
      %1356 = vst [vmem:[#allocation3 + $0x318] sm:$0xf] %v1320
      %1357 = vst [vmem:[#allocation3 + $0x33c] sm:$0xf] %v1321
      %1358 = vst [vmem:[#allocation3 + $0x360] sm:$0xf] %v1322
      %1359 = vst [vmem:[#allocation3 + $0x384] sm:$0xf] %v1323
      %1360 = vst [vmem:[#allocation3 + $0x3a8] sm:$0xf] %v1324
      %1361 = vst [vmem:[#allocation3 + $0x3cc] sm:$0xf] %v1325
      %1362 = vst [vmem:[#allocation3 + $0x3f0] sm:$0xf] %v1326
      %1363 = vst [vmem:[#allocation3 + $0x414] sm:$0xf] %v1327
      %1364 = vst [vmem:[#allocation3 + $0x438] sm:$0xf] %v1328
      %1365 = vst [vmem:[#allocation3 + $0x45c] sm:$0xf] %v1329
      %1366 = vst [vmem:[#allocation3 + $0x480] sm:$0xf] %v1330
      %1367 = vst [vmem:[#allocation3 + $0x4a4] sm:$0xf] %v1331
      %1368 = vst [vmem:[#allocation3 + $0x4c8] sm:$0xf] %v1332
      %1369 = vst [vmem:[#allocation3 + $0x4ec] sm:$0xf] %v1333
      %v1370 = vld [vmem:[#allocation2] sm:$0xf]
      %v1371 = vld [vmem:[#allocation2 + $0x4] sm:$0xf]
      %v1372 = vld [vmem:[#allocation2 + $0x8] sm:$0xf]
      %v1373 = vld [vmem:[#allocation2 + $0xc] sm:$0xf]
      %v1374 = vld [vmem:[#allocation2 + $0x10] sm:$0xf]
      %v1375 = vld [vmem:[#allocation2 + $0x14] sm:$0xf]
      %v1376 = vld [vmem:[#allocation2 + $0x18] sm:$0xf]
      %v1377 = vld [vmem:[#allocation2 + $0x1c] sm:$0xf]
      %v1378 = vld [vmem:[#allocation2 + $0x20] sm:$0xf]
      %v1379 = vld [vmem:[#allocation2 + $0x24] sm:$0xf]
      %v1380 = vld [vmem:[#allocation2 + $0x28] sm:$0xf]
      %v1381 = vld [vmem:[#allocation2 + $0x2c] sm:$0xf]
      %v1382 = vld [vmem:[#allocation2 + $0x30] sm:$0xf]
      %v1383 = vld [vmem:[#allocation2 + $0x34] sm:$0xf]
      %v1384 = vld [vmem:[#allocation2 + $0x38] sm:$0xf]
      %v1385 = vld [vmem:[#allocation2 + $0x3c] sm:$0xf]
      %v1386 = vld [vmem:[#allocation2 + $0x40] sm:$0xf]
      %v1387 = vld [vmem:[#allocation2 + $0x44] sm:$0xf]
      %v1388 = vld [vmem:[#allocation2 + $0x48] sm:$0xf]
      %v1389 = vld [vmem:[#allocation2 + $0x4c] sm:$0xf]
      %v1390 = vld [vmem:[#allocation2 + $0x50] sm:$0xf]
      %v1391 = vld [vmem:[#allocation2 + $0x54] sm:$0xf]
      %v1392 = vld [vmem:[#allocation2 + $0x58] sm:$0xf]
      %v1393 = vld [vmem:[#allocation2 + $0x5c] sm:$0xf]
      %v1394 = vld [vmem:[#allocation2 + $0x60] sm:$0xf]
      %v1395 = vld [vmem:[#allocation2 + $0x64] sm:$0xf]
      %v1396 = vld [vmem:[#allocation2 + $0x68] sm:$0xf]
      %v1397 = vld [vmem:[#allocation2 + $0x6c] sm:$0xf]
      %v1398 = vld [vmem:[#allocation2 + $0x70] sm:$0xf]
      %v1399 = vld [vmem:[#allocation2 + $0x74] sm:$0xf]
      %v1400 = vld [vmem:[#allocation2 + $0x78] sm:$0xf]
      %v1401 = vld [vmem:[#allocation2 + $0x7c] sm:$0xf]
      %v1402 = vld [vmem:[#allocation2 + $0x80] sm:$0xf]
      %v1403 = vld [vmem:[#allocation2 + $0x84] sm:$0xf]
      %v1404 = vld [vmem:[#allocation2 + $0x88] sm:$0xf]
      %v1405 = vld [vmem:[#allocation2 + $0x8c] sm:$0xf]
      %v1406 = vld [vmem:[#allocation2 + $0x90] sm:$0x1]
      %v1408 = vshrl.u32 %v1370, 16
      %v1410 = vrot.slane %v1408, 4
      %v1411 = vshll.u32 %v1370, 16
      %v1413 = vrot.slane %v1411, 5
      %v1414 = vor.u32 %v1410, %v1413
      %v1415 = vrot.slane %v1414, 4
      %v1417 = vshll.u32 %v1371, 16
      %v1419 = vrot.slane %v1417, 5
      %v1420 = vsel %vm822, %v1415, %v1419
      %v1421 = vshrl.u32 %v1371, 16
      %v1423 = vrot.slane %v1421, 4
      %v1424 = vor.u32 %v1423, %v1419
      %v1425 = vrot.slane %v1424, 4
      %v1427 = vshll.u32 %v1372, 16
      %v1429 = vrot.slane %v1427, 5
      %v1430 = vsel %vm822, %v1425, %v1429
      %v1431 = vshrl.u32 %v1372, 16
      %v1433 = vrot.slane %v1431, 4
      %v1434 = vor.u32 %v1433, %v1429
      %v1435 = vrot.slane %v1434, 4
      %v1437 = vshll.u32 %v1373, 16
      %v1439 = vrot.slane %v1437, 5
      %v1440 = vsel %vm822, %v1435, %v1439
      %v1441 = vshrl.u32 %v1373, 16
      %v1443 = vrot.slane %v1441, 4
      %v1444 = vor.u32 %v1443, %v1439
      %v1445 = vrot.slane %v1444, 4
      %v1447 = vshll.u32 %v1374, 16
      %v1449 = vrot.slane %v1447, 5
      %v1450 = vsel %vm822, %v1445, %v1449
      %v1451 = vshrl.u32 %v1374, 16
      %v1453 = vrot.slane %v1451, 4
      %v1454 = vor.u32 %v1453, %v1449
      %v1455 = vrot.slane %v1454, 4
      %v1457 = vshll.u32 %v1375, 16
      %v1459 = vrot.slane %v1457, 5
      %v1460 = vsel %vm822, %v1455, %v1459
      %v1461 = vshrl.u32 %v1375, 16
      %v1463 = vrot.slane %v1461, 4
      %v1464 = vor.u32 %v1463, %v1459
      %v1465 = vrot.slane %v1464, 4
      %v1467 = vshll.u32 %v1376, 16
      %v1469 = vrot.slane %v1467, 5
      %v1470 = vsel %vm822, %v1465, %v1469
      %v1471 = vshrl.u32 %v1376, 16
      %v1473 = vrot.slane %v1471, 4
      %v1474 = vor.u32 %v1473, %v1469
      %v1475 = vrot.slane %v1474, 4
      %v1477 = vshll.u32 %v1377, 16
      %v1479 = vrot.slane %v1477, 5
      %v1480 = vsel %vm822, %v1475, %v1479
      %v1481 = vshrl.u32 %v1377, 16
      %v1483 = vrot.slane %v1481, 4
      %v1484 = vor.u32 %v1483, %v1479
      %v1485 = vrot.slane %v1484, 4
      %v1487 = vshll.u32 %v1378, 16
      %v1489 = vrot.slane %v1487, 5
      %v1490 = vsel %vm822, %v1485, %v1489
      %v1491 = vshrl.u32 %v1378, 16
      %v1493 = vrot.slane %v1491, 4
      %v1494 = vor.u32 %v1493, %v1489
      %v1495 = vrot.slane %v1494, 4
      %v1497 = vshll.u32 %v1379, 16
      %v1499 = vrot.slane %v1497, 5
      %v1500 = vsel %vm822, %v1495, %v1499
      %v1501 = vshrl.u32 %v1379, 16
      %v1503 = vrot.slane %v1501, 4
      %v1504 = vor.u32 %v1503, %v1499
      %v1505 = vrot.slane %v1504, 4
      %v1507 = vshll.u32 %v1380, 16
      %v1509 = vrot.slane %v1507, 5
      %v1510 = vsel %vm822, %v1505, %v1509
      %v1511 = vshrl.u32 %v1380, 16
      %v1513 = vrot.slane %v1511, 4
      %v1514 = vor.u32 %v1513, %v1509
      %v1515 = vrot.slane %v1514, 4
      %v1517 = vshll.u32 %v1381, 16
      %v1519 = vrot.slane %v1517, 5
      %v1520 = vsel %vm822, %v1515, %v1519
      %v1521 = vshrl.u32 %v1381, 16
      %v1523 = vrot.slane %v1521, 4
      %v1524 = vor.u32 %v1523, %v1519
      %v1525 = vrot.slane %v1524, 4
      %v1527 = vshll.u32 %v1382, 16
      %v1529 = vrot.slane %v1527, 5
      %v1530 = vsel %vm822, %v1525, %v1529
      %v1531 = vshrl.u32 %v1382, 16
      %v1533 = vrot.slane %v1531, 4
      %v1534 = vor.u32 %v1533, %v1529
      %v1535 = vrot.slane %v1534, 4
      %v1537 = vshll.u32 %v1383, 16
      %v1539 = vrot.slane %v1537, 5
      %v1540 = vsel %vm822, %v1535, %v1539
      %v1541 = vshrl.u32 %v1383, 16
      %v1543 = vrot.slane %v1541, 4
      %v1544 = vor.u32 %v1543, %v1539
      %v1545 = vrot.slane %v1544, 4
      %v1547 = vshll.u32 %v1384, 16
      %v1549 = vrot.slane %v1547, 5
      %v1550 = vsel %vm822, %v1545, %v1549
      %v1551 = vshrl.u32 %v1384, 16
      %v1553 = vrot.slane %v1551, 4
      %v1554 = vor.u32 %v1553, %v1549
      %v1555 = vrot.slane %v1554, 4
      %v1557 = vshll.u32 %v1385, 16
      %v1559 = vrot.slane %v1557, 5
      %v1560 = vsel %vm822, %v1555, %v1559
      %v1561 = vshrl.u32 %v1385, 16
      %v1563 = vrot.slane %v1561, 4
      %v1564 = vor.u32 %v1563, %v1559
      %v1565 = vrot.slane %v1564, 4
      %v1567 = vshll.u32 %v1386, 16
      %v1569 = vrot.slane %v1567, 5
      %v1570 = vsel %vm822, %v1565, %v1569
      %v1571 = vshrl.u32 %v1386, 16
      %v1573 = vrot.slane %v1571, 4
      %v1574 = vor.u32 %v1573, %v1569
      %v1575 = vrot.slane %v1574, 4
      %v1577 = vshll.u32 %v1387, 16
      %v1579 = vrot.slane %v1577, 5
      %v1580 = vsel %vm822, %v1575, %v1579
      %v1581 = vshrl.u32 %v1387, 16
      %v1583 = vrot.slane %v1581, 4
      %v1584 = vor.u32 %v1583, %v1579
      %v1585 = vrot.slane %v1584, 4
      %v1587 = vshll.u32 %v1388, 16
      %v1589 = vrot.slane %v1587, 5
      %v1590 = vsel %vm822, %v1585, %v1589
      %v1591 = vshrl.u32 %v1388, 16
      %v1593 = vrot.slane %v1591, 4
      %v1594 = vor.u32 %v1593, %v1589
      %v1595 = vrot.slane %v1594, 4
      %v1597 = vshll.u32 %v1389, 16
      %v1599 = vrot.slane %v1597, 5
      %v1600 = vsel %vm822, %v1595, %v1599
      %v1601 = vshrl.u32 %v1389, 16
      %v1603 = vrot.slane %v1601, 4
      %v1604 = vor.u32 %v1603, %v1599
      %v1605 = vrot.slane %v1604, 4
      %v1607 = vshll.u32 %v1390, 16
      %v1609 = vrot.slane %v1607, 5
      %v1610 = vsel %vm822, %v1605, %v1609
      %v1611 = vshrl.u32 %v1390, 16
      %v1613 = vrot.slane %v1611, 4
      %v1614 = vor.u32 %v1613, %v1609
      %v1615 = vrot.slane %v1614, 4
      %v1617 = vshll.u32 %v1391, 16
      %v1619 = vrot.slane %v1617, 5
      %v1620 = vsel %vm822, %v1615, %v1619
      %v1621 = vshrl.u32 %v1391, 16
      %v1623 = vrot.slane %v1621, 4
      %v1624 = vor.u32 %v1623, %v1619
      %v1625 = vrot.slane %v1624, 4
      %v1627 = vshll.u32 %v1392, 16
      %v1629 = vrot.slane %v1627, 5
      %v1630 = vsel %vm822, %v1625, %v1629
      %v1631 = vshrl.u32 %v1392, 16
      %v1633 = vrot.slane %v1631, 4
      %v1634 = vor.u32 %v1633, %v1629
      %v1635 = vrot.slane %v1634, 4
      %v1637 = vshll.u32 %v1393, 16
      %v1639 = vrot.slane %v1637, 5
      %v1640 = vsel %vm822, %v1635, %v1639
      %v1641 = vshrl.u32 %v1393, 16
      %v1643 = vrot.slane %v1641, 4
      %v1644 = vor.u32 %v1643, %v1639
      %v1645 = vrot.slane %v1644, 4
      %v1647 = vshll.u32 %v1394, 16
      %v1649 = vrot.slane %v1647, 5
      %v1650 = vsel %vm822, %v1645, %v1649
      %v1651 = vshrl.u32 %v1394, 16
      %v1653 = vrot.slane %v1651, 4
      %v1654 = vor.u32 %v1653, %v1649
      %v1655 = vrot.slane %v1654, 4
      %v1657 = vshll.u32 %v1395, 16
      %v1659 = vrot.slane %v1657, 5
      %v1660 = vsel %vm822, %v1655, %v1659
      %v1661 = vshrl.u32 %v1395, 16
      %v1663 = vrot.slane %v1661, 4
      %v1664 = vor.u32 %v1663, %v1659
      %v1665 = vrot.slane %v1664, 4
      %v1667 = vshll.u32 %v1396, 16
      %v1669 = vrot.slane %v1667, 5
      %v1670 = vsel %vm822, %v1665, %v1669
      %v1671 = vshrl.u32 %v1396, 16
      %v1673 = vrot.slane %v1671, 4
      %v1674 = vor.u32 %v1673, %v1669
      %v1675 = vrot.slane %v1674, 4
      %v1677 = vshll.u32 %v1397, 16
      %v1679 = vrot.slane %v1677, 5
      %v1680 = vsel %vm822, %v1675, %v1679
      %v1681 = vshrl.u32 %v1397, 16
      %v1683 = vrot.slane %v1681, 4
      %v1684 = vor.u32 %v1683, %v1679
      %v1685 = vrot.slane %v1684, 4
      %v1687 = vshll.u32 %v1398, 16
      %v1689 = vrot.slane %v1687, 5
      %v1690 = vsel %vm822, %v1685, %v1689
      %v1691 = vshrl.u32 %v1398, 16
      %v1693 = vrot.slane %v1691, 4
      %v1694 = vor.u32 %v1693, %v1689
      %v1695 = vrot.slane %v1694, 4
      %v1697 = vshll.u32 %v1399, 16
      %v1699 = vrot.slane %v1697, 5
      %v1700 = vsel %vm822, %v1695, %v1699
      %v1701 = vshrl.u32 %v1399, 16
      %v1703 = vrot.slane %v1701, 4
      %v1704 = vor.u32 %v1703, %v1699
      %v1705 = vrot.slane %v1704, 4
      %v1707 = vshll.u32 %v1400, 16
      %v1709 = vrot.slane %v1707, 5
      %v1710 = vsel %vm822, %v1705, %v1709
      %v1711 = vshrl.u32 %v1400, 16
      %v1713 = vrot.slane %v1711, 4
      %v1714 = vor.u32 %v1713, %v1709
      %v1715 = vrot.slane %v1714, 4
      %v1717 = vshll.u32 %v1401, 16
      %v1719 = vrot.slane %v1717, 5
      %v1720 = vsel %vm822, %v1715, %v1719
      %v1721 = vshrl.u32 %v1401, 16
      %v1723 = vrot.slane %v1721, 4
      %v1724 = vor.u32 %v1723, %v1719
      %v1725 = vrot.slane %v1724, 4
      %v1727 = vshll.u32 %v1402, 16
      %v1729 = vrot.slane %v1727, 5
      %v1730 = vsel %vm822, %v1725, %v1729
      %v1731 = vshrl.u32 %v1402, 16
      %v1733 = vrot.slane %v1731, 4
      %v1734 = vor.u32 %v1733, %v1729
      %v1735 = vrot.slane %v1734, 4
      %v1737 = vshll.u32 %v1403, 16
      %v1739 = vrot.slane %v1737, 5
      %v1740 = vsel %vm822, %v1735, %v1739
      %v1741 = vshrl.u32 %v1403, 16
      %v1743 = vrot.slane %v1741, 4
      %v1744 = vor.u32 %v1743, %v1739
      %v1745 = vrot.slane %v1744, 4
      %v1747 = vshll.u32 %v1404, 16
      %v1749 = vrot.slane %v1747, 5
      %v1750 = vsel %vm822, %v1745, %v1749
      %v1751 = vshrl.u32 %v1404, 16
      %v1753 = vrot.slane %v1751, 4
      %v1754 = vor.u32 %v1753, %v1749
      %v1755 = vrot.slane %v1754, 4
      %v1757 = vshll.u32 %v1405, 16
      %v1759 = vrot.slane %v1757, 5
      %v1760 = vsel %vm822, %v1755, %v1759
      %v1761 = vshrl.u32 %v1405, 16
      %v1763 = vrot.slane %v1761, 4
      %v1764 = vor.u32 %v1763, %v1759
      %v1765 = vrot.slane %v1764, 4
      %v1767 = vshll.u32 %v1406, 16
      %v1769 = vrot.slane %v1767, 5
      %v1770 = vsel %vm822, %v1765, %v1769
      %1807 = vst [vmem:[#allocation3 + $0x4] sm:$0xf] %v1420
      %1808 = vst [vmem:[#allocation3 + $0x28] sm:$0xf] %v1430
      %1809 = vst [vmem:[#allocation3 + $0x4c] sm:$0xf] %v1440
      %1810 = vst [vmem:[#allocation3 + $0x70] sm:$0xf] %v1450
      %1811 = vst [vmem:[#allocation3 + $0x94] sm:$0xf] %v1460
      %1812 = vst [vmem:[#allocation3 + $0xb8] sm:$0xf] %v1470
      %1813 = vst [vmem:[#allocation3 + $0xdc] sm:$0xf] %v1480
      %1814 = vst [vmem:[#allocation3 + $0x100] sm:$0xf] %v1490
      %1815 = vst [vmem:[#allocation3 + $0x124] sm:$0xf] %v1500
      %1816 = vst [vmem:[#allocation3 + $0x148] sm:$0xf] %v1510
      %1817 = vst [vmem:[#allocation3 + $0x16c] sm:$0xf] %v1520
      %1818 = vst [vmem:[#allocation3 + $0x190] sm:$0xf] %v1530
      %1819 = vst [vmem:[#allocation3 + $0x1b4] sm:$0xf] %v1540
      %1820 = vst [vmem:[#allocation3 + $0x1d8] sm:$0xf] %v1550
      %1821 = vst [vmem:[#allocation3 + $0x1fc] sm:$0xf] %v1560
      %1822 = vst [vmem:[#allocation3 + $0x220] sm:$0xf] %v1570
      %1823 = vst [vmem:[#allocation3 + $0x244] sm:$0xf] %v1580
      %1824 = vst [vmem:[#allocation3 + $0x268] sm:$0xf] %v1590
      %1825 = vst [vmem:[#allocation3 + $0x28c] sm:$0xf] %v1600
      %1826 = vst [vmem:[#allocation3 + $0x2b0] sm:$0xf] %v1610
      %1827 = vst [vmem:[#allocation3 + $0x2d4] sm:$0xf] %v1620
      %1828 = vst [vmem:[#allocation3 + $0x2f8] sm:$0xf] %v1630
      %1829 = vst [vmem:[#allocation3 + $0x31c] sm:$0xf] %v1640
      %1830 = vst [vmem:[#allocation3 + $0x340] sm:$0xf] %v1650
      %1831 = vst [vmem:[#allocation3 + $0x364] sm:$0xf] %v1660
      %1832 = vst [vmem:[#allocation3 + $0x388] sm:$0xf] %v1670
      %1833 = vst [vmem:[#allocation3 + $0x3ac] sm:$0xf] %v1680
      %1834 = vst [vmem:[#allocation3 + $0x3d0] sm:$0xf] %v1690
      %1835 = vst [vmem:[#allocation3 + $0x3f4] sm:$0xf] %v1700
      %1836 = vst [vmem:[#allocation3 + $0x418] sm:$0xf] %v1710
      %1837 = vst [vmem:[#allocation3 + $0x43c] sm:$0xf] %v1720
      %1838 = vst [vmem:[#allocation3 + $0x460] sm:$0xf] %v1730
      %1839 = vst [vmem:[#allocation3 + $0x484] sm:$0xf] %v1740
      %1840 = vst [vmem:[#allocation3 + $0x4a8] sm:$0xf] %v1750
      %1841 = vst [vmem:[#allocation3 + $0x4cc] sm:$0xf] %v1760
      %1842 = vst [vmem:[#allocation3 + $0x4f0] sm:$0xf] %v1770
      %v1843 = vld [vmem:[#allocation2] sm:$0xe]
      %v1844 = vld [vmem:[#allocation2 + $0x4] sm:$0xf]
      %v1845 = vld [vmem:[#allocation2 + $0x8] sm:$0xf]
      %v1846 = vld [vmem:[#allocation2 + $0xc] sm:$0xf]
      %v1847 = vld [vmem:[#allocation2 + $0x10] sm:$0xf]
      %v1848 = vld [vmem:[#allocation2 + $0x14] sm:$0xf]
      %v1849 = vld [vmem:[#allocation2 + $0x18] sm:$0xf]
      %v1850 = vld [vmem:[#allocation2 + $0x1c] sm:$0xf]
      %v1851 = vld [vmem:[#allocation2 + $0x20] sm:$0xf]
      %v1852 = vld [vmem:[#allocation2 + $0x24] sm:$0xf]
      %v1853 = vld [vmem:[#allocation2 + $0x28] sm:$0xf]
      %v1854 = vld [vmem:[#allocation2 + $0x2c] sm:$0xf]
      %v1855 = vld [vmem:[#allocation2 + $0x30] sm:$0xf]
      %v1856 = vld [vmem:[#allocation2 + $0x34] sm:$0xf]
      %v1857 = vld [vmem:[#allocation2 + $0x38] sm:$0xf]
      %v1858 = vld [vmem:[#allocation2 + $0x3c] sm:$0xf]
      %v1859 = vld [vmem:[#allocation2 + $0x40] sm:$0xf]
      %v1860 = vld [vmem:[#allocation2 + $0x44] sm:$0xf]
      %v1861 = vld [vmem:[#allocation2 + $0x48] sm:$0xf]
      %v1862 = vld [vmem:[#allocation2 + $0x4c] sm:$0xf]
      %v1863 = vld [vmem:[#allocation2 + $0x50] sm:$0xf]
      %v1864 = vld [vmem:[#allocation2 + $0x54] sm:$0xf]
      %v1865 = vld [vmem:[#allocation2 + $0x58] sm:$0xf]
      %v1866 = vld [vmem:[#allocation2 + $0x5c] sm:$0xf]
      %v1867 = vld [vmem:[#allocation2 + $0x60] sm:$0xf]
      %v1868 = vld [vmem:[#allocation2 + $0x64] sm:$0xf]
      %v1869 = vld [vmem:[#allocation2 + $0x68] sm:$0xf]
      %v1870 = vld [vmem:[#allocation2 + $0x6c] sm:$0xf]
      %v1871 = vld [vmem:[#allocation2 + $0x70] sm:$0xf]
      %v1872 = vld [vmem:[#allocation2 + $0x74] sm:$0xf]
      %v1873 = vld [vmem:[#allocation2 + $0x78] sm:$0xf]
      %v1874 = vld [vmem:[#allocation2 + $0x7c] sm:$0xf]
      %v1875 = vld [vmem:[#allocation2 + $0x80] sm:$0xf]
      %v1876 = vld [vmem:[#allocation2 + $0x84] sm:$0xf]
      %v1877 = vld [vmem:[#allocation2 + $0x88] sm:$0xf]
      %v1878 = vld [vmem:[#allocation2 + $0x8c] sm:$0xf]
      %v1879 = vld [vmem:[#allocation2 + $0x90] sm:$0x1]
      %vm1917 = vcmask 1046532
      %vm1918 = vmor %vm810, %vm1917
      %v1919 = vrot.slane %v1843, 5
      %v1920 = vrot.slane %v1919, 4
      %v1921 = vrot.slane %v1844, 5
      %v1922 = vsel %vm1918, %v1920, %v1921
      %v1923 = vrot.slane %v1921, 4
      %v1924 = vrot.slane %v1845, 5
      %v1925 = vsel %vm1918, %v1923, %v1924
      %v1926 = vrot.slane %v1924, 4
      %v1927 = vrot.slane %v1846, 5
      %v1928 = vsel %vm1918, %v1926, %v1927
      %v1929 = vrot.slane %v1927, 4
      %v1930 = vrot.slane %v1847, 5
      %v1931 = vsel %vm1918, %v1929, %v1930
      %v1932 = vrot.slane %v1930, 4
      %v1933 = vrot.slane %v1848, 5
      %v1934 = vsel %vm1918, %v1932, %v1933
      %v1935 = vrot.slane %v1933, 4
      %v1936 = vrot.slane %v1849, 5
      %v1937 = vsel %vm1918, %v1935, %v1936
      %v1938 = vrot.slane %v1936, 4
      %v1939 = vrot.slane %v1850, 5
      %v1940 = vsel %vm1918, %v1938, %v1939
      %v1941 = vrot.slane %v1939, 4
      %v1942 = vrot.slane %v1851, 5
      %v1943 = vsel %vm1918, %v1941, %v1942
      %v1944 = vrot.slane %v1942, 4
      %v1945 = vrot.slane %v1852, 5
      %v1946 = vsel %vm1918, %v1944, %v1945
      %v1947 = vrot.slane %v1945, 4
      %v1948 = vrot.slane %v1853, 5
      %v1949 = vsel %vm1918, %v1947, %v1948
      %v1950 = vrot.slane %v1948, 4
      %v1951 = vrot.slane %v1854, 5
      %v1952 = vsel %vm1918, %v1950, %v1951
      %v1953 = vrot.slane %v1951, 4
      %v1954 = vrot.slane %v1855, 5
      %v1955 = vsel %vm1918, %v1953, %v1954
      %v1956 = vrot.slane %v1954, 4
      %v1957 = vrot.slane %v1856, 5
      %v1958 = vsel %vm1918, %v1956, %v1957
      %v1959 = vrot.slane %v1957, 4
      %v1960 = vrot.slane %v1857, 5
      %v1961 = vsel %vm1918, %v1959, %v1960
      %v1962 = vrot.slane %v1960, 4
      %v1963 = vrot.slane %v1858, 5
      %v1964 = vsel %vm1918, %v1962, %v1963
      %v1965 = vrot.slane %v1963, 4
      %v1966 = vrot.slane %v1859, 5
      %v1967 = vsel %vm1918, %v1965, %v1966
      %v1968 = vrot.slane %v1966, 4
      %v1969 = vrot.slane %v1860, 5
      %v1970 = vsel %vm1918, %v1968, %v1969
      %v1971 = vrot.slane %v1969, 4
      %v1972 = vrot.slane %v1861, 5
      %v1973 = vsel %vm1918, %v1971, %v1972
      %v1974 = vrot.slane %v1972, 4
      %v1975 = vrot.slane %v1862, 5
      %v1976 = vsel %vm1918, %v1974, %v1975
      %v1977 = vrot.slane %v1975, 4
      %v1978 = vrot.slane %v1863, 5
      %v1979 = vsel %vm1918, %v1977, %v1978
      %v1980 = vrot.slane %v1978, 4
      %v1981 = vrot.slane %v1864, 5
      %v1982 = vsel %vm1918, %v1980, %v1981
      %v1983 = vrot.slane %v1981, 4
      %v1984 = vrot.slane %v1865, 5
      %v1985 = vsel %vm1918, %v1983, %v1984
      %v1986 = vrot.slane %v1984, 4
      %v1987 = vrot.slane %v1866, 5
      %v1988 = vsel %vm1918, %v1986, %v1987
      %v1989 = vrot.slane %v1987, 4
      %v1990 = vrot.slane %v1867, 5
      %v1991 = vsel %vm1918, %v1989, %v1990
      %v1992 = vrot.slane %v1990, 4
      %v1993 = vrot.slane %v1868, 5
      %v1994 = vsel %vm1918, %v1992, %v1993
      %v1995 = vrot.slane %v1993, 4
      %v1996 = vrot.slane %v1869, 5
      %v1997 = vsel %vm1918, %v1995, %v1996
      %v1998 = vrot.slane %v1996, 4
      %v1999 = vrot.slane %v1870, 5
      %v2000 = vsel %vm1918, %v1998, %v1999
      %v2001 = vrot.slane %v1999, 4
      %v2002 = vrot.slane %v1871, 5
      %v2003 = vsel %vm1918, %v2001, %v2002
      %v2004 = vrot.slane %v2002, 4
      %v2005 = vrot.slane %v1872, 5
      %v2006 = vsel %vm1918, %v2004, %v2005
      %v2007 = vrot.slane %v2005, 4
      %v2008 = vrot.slane %v1873, 5
      %v2009 = vsel %vm1918, %v2007, %v2008
      %v2010 = vrot.slane %v2008, 4
      %v2011 = vrot.slane %v1874, 5
      %v2012 = vsel %vm1918, %v2010, %v2011
      %v2013 = vrot.slane %v2011, 4
      %v2014 = vrot.slane %v1875, 5
      %v2015 = vsel %vm1918, %v2013, %v2014
      %v2016 = vrot.slane %v2014, 4
      %v2017 = vrot.slane %v1876, 5
      %v2018 = vsel %vm1918, %v2016, %v2017
      %v2019 = vrot.slane %v2017, 4
      %v2020 = vrot.slane %v1877, 5
      %v2021 = vsel %vm1918, %v2019, %v2020
      %v2022 = vrot.slane %v2020, 4
      %v2023 = vrot.slane %v1878, 5
      %v2024 = vsel %vm1918, %v2022, %v2023
      %v2025 = vrot.slane %v2023, 4
      %v2026 = vrot.slane %v1879, 5
      %v2027 = vsel %vm1918, %v2025, %v2026
      %2064 = vst [vmem:[#allocation3 + $0x8] sm:$0xf] %v1922
      %2065 = vst [vmem:[#allocation3 + $0x2c] sm:$0xf] %v1925
      %2066 = vst [vmem:[#allocation3 + $0x50] sm:$0xf] %v1928
      %2067 = vst [vmem:[#allocation3 + $0x74] sm:$0xf] %v1931
      %2068 = vst [vmem:[#allocation3 + $0x98] sm:$0xf] %v1934
      %2069 = vst [vmem:[#allocation3 + $0xbc] sm:$0xf] %v1937
      %2070 = vst [vmem:[#allocation3 + $0xe0] sm:$0xf] %v1940
      %2071 = vst [vmem:[#allocation3 + $0x104] sm:$0xf] %v1943
      %2072 = vst [vmem:[#allocation3 + $0x128] sm:$0xf] %v1946
      %2073 = vst [vmem:[#allocation3 + $0x14c] sm:$0xf] %v1949
      %2074 = vst [vmem:[#allocation3 + $0x170] sm:$0xf] %v1952
      %2075 = vst [vmem:[#allocation3 + $0x194] sm:$0xf] %v1955
      %2076 = vst [vmem:[#allocation3 + $0x1b8] sm:$0xf] %v1958
      %2077 = vst [vmem:[#allocation3 + $0x1dc] sm:$0xf] %v1961
      %2078 = vst [vmem:[#allocation3 + $0x200] sm:$0xf] %v1964
      %2079 = vst [vmem:[#allocation3 + $0x224] sm:$0xf] %v1967
      %2080 = vst [vmem:[#allocation3 + $0x248] sm:$0xf] %v1970
      %2081 = vst [vmem:[#allocation3 + $0x26c] sm:$0xf] %v1973
      %2082 = vst [vmem:[#allocation3 + $0x290] sm:$0xf] %v1976
      %2083 = vst [vmem:[#allocation3 + $0x2b4] sm:$0xf] %v1979
      %2084 = vst [vmem:[#allocation3 + $0x2d8] sm:$0xf] %v1982
      %2085 = vst [vmem:[#allocation3 + $0x2fc] sm:$0xf] %v1985
      %2086 = vst [vmem:[#allocation3 + $0x320] sm:$0xf] %v1988
      %2087 = vst [vmem:[#allocation3 + $0x344] sm:$0xf] %v1991
      %2088 = vst [vmem:[#allocation3 + $0x368] sm:$0xf] %v1994
      %2089 = vst [vmem:[#allocation3 + $0x38c] sm:$0xf] %v1997
      %2090 = vst [vmem:[#allocation3 + $0x3b0] sm:$0xf] %v2000
      %2091 = vst [vmem:[#allocation3 + $0x3d4] sm:$0xf] %v2003
      %2092 = vst [vmem:[#allocation3 + $0x3f8] sm:$0xf] %v2006
      %2093 = vst [vmem:[#allocation3 + $0x41c] sm:$0xf] %v2009
      %2094 = vst [vmem:[#allocation3 + $0x440] sm:$0xf] %v2012
      %2095 = vst [vmem:[#allocation3 + $0x464] sm:$0xf] %v2015
      %2096 = vst [vmem:[#allocation3 + $0x488] sm:$0xf] %v2018
      %2097 = vst [vmem:[#allocation3 + $0x4ac] sm:$0xf] %v2021
      %2098 = vst [vmem:[#allocation3 + $0x4d0] sm:$0xf] %v2024
      %2099 = vst [vmem:[#allocation3 + $0x4f4] sm:$0xf] %v2027
      %v2100 = vld [vmem:[#allocation2 + $0x8] sm:$0xe]
      %v2101 = vld [vmem:[#allocation2 + $0xc] sm:$0xf]
      %v2102 = vld [vmem:[#allocation2 + $0x10] sm:$0xf]
      %v2103 = vld [vmem:[#allocation2 + $0x14] sm:$0xf]
      %v2104 = vld [vmem:[#allocation2 + $0x18] sm:$0xf]
      %v2105 = vld [vmem:[#allocation2 + $0x1c] sm:$0xf]
      %v2106 = vld [vmem:[#allocation2 + $0x20] sm:$0xf]
      %v2107 = vld [vmem:[#allocation2 + $0x24] sm:$0xf]
      %v2108 = vld [vmem:[#allocation2 + $0x28] sm:$0xf]
      %v2109 = vld [vmem:[#allocation2 + $0x2c] sm:$0xf]
      %v2110 = vld [vmem:[#allocation2 + $0x30] sm:$0xf]
      %v2111 = vld [vmem:[#allocation2 + $0x34] sm:$0xf]
      %v2112 = vld [vmem:[#allocation2 + $0x38] sm:$0xf]
      %v2113 = vld [vmem:[#allocation2 + $0x3c] sm:$0xf]
      %v2114 = vld [vmem:[#allocation2 + $0x40] sm:$0xf]
      %v2115 = vld [vmem:[#allocation2 + $0x44] sm:$0xf]
      %v2116 = vld [vmem:[#allocation2 + $0x48] sm:$0xf]
      %v2117 = vld [vmem:[#allocation2 + $0x4c] sm:$0xf]
      %v2118 = vld [vmem:[#allocation2 + $0x50] sm:$0xf]
      %v2119 = vld [vmem:[#allocation2 + $0x54] sm:$0xf]
      %v2120 = vld [vmem:[#allocation2 + $0x58] sm:$0xf]
      %v2121 = vld [vmem:[#allocation2 + $0x5c] sm:$0xf]
      %v2122 = vld [vmem:[#allocation2 + $0x60] sm:$0xf]
      %v2123 = vld [vmem:[#allocation2 + $0x64] sm:$0xf]
      %v2124 = vld [vmem:[#allocation2 + $0x68] sm:$0xf]
      %v2125 = vld [vmem:[#allocation2 + $0x6c] sm:$0xf]
      %v2126 = vld [vmem:[#allocation2 + $0x70] sm:$0xf]
      %v2127 = vld [vmem:[#allocation2 + $0x74] sm:$0xf]
      %v2128 = vld [vmem:[#allocation2 + $0x78] sm:$0xf]
      %v2129 = vld [vmem:[#allocation2 + $0x7c] sm:$0xf]
      %v2130 = vld [vmem:[#allocation2 + $0x80] sm:$0xf]
      %v2131 = vld [vmem:[#allocation2 + $0x84] sm:$0xf]
      %v2132 = vld [vmem:[#allocation2 + $0x88] sm:$0xf]
      %v2133 = vld [vmem:[#allocation2 + $0x8c] sm:$0xf]
      %v2134 = vld [vmem:[#allocation2 + $0x90] sm:$0xf]
      %v2135 = vld [vmem:[#allocation2 + $0x94] sm:$0xf]
      %v2136 = vld [vmem:[#allocation2 + $0x98] sm:$0x1]
      %v2174 = vrot.slane %v2100, 5
      %v2175 = vrot.slane %v2174, 4
      %v2176 = vrot.slane %v2101, 5
      %v2177 = vsel %vm1918, %v2175, %v2176
      %v2178 = vrot.slane %v2176, 4
      %v2179 = vrot.slane %v2102, 5
      %v2180 = vsel %vm1918, %v2178, %v2179
      %v2181 = vrot.slane %v2179, 4
      %v2182 = vrot.slane %v2103, 5
      %v2183 = vsel %vm1918, %v2181, %v2182
      %v2184 = vrot.slane %v2182, 4
      %v2185 = vrot.slane %v2104, 5
      %v2186 = vsel %vm1918, %v2184, %v2185
      %v2187 = vrot.slane %v2185, 4
      %v2188 = vrot.slane %v2105, 5
      %v2189 = vsel %vm1918, %v2187, %v2188
      %v2190 = vrot.slane %v2188, 4
      %v2191 = vrot.slane %v2106, 5
      %v2192 = vsel %vm1918, %v2190, %v2191
      %v2193 = vrot.slane %v2191, 4
      %v2194 = vrot.slane %v2107, 5
      %v2195 = vsel %vm1918, %v2193, %v2194
      %v2196 = vrot.slane %v2194, 4
      %v2197 = vrot.slane %v2108, 5
      %v2198 = vsel %vm1918, %v2196, %v2197
      %v2199 = vrot.slane %v2197, 4
      %v2200 = vrot.slane %v2109, 5
      %v2201 = vsel %vm1918, %v2199, %v2200
      %v2202 = vrot.slane %v2200, 4
      %v2203 = vrot.slane %v2110, 5
      %v2204 = vsel %vm1918, %v2202, %v2203
      %v2205 = vrot.slane %v2203, 4
      %v2206 = vrot.slane %v2111, 5
      %v2207 = vsel %vm1918, %v2205, %v2206
      %v2208 = vrot.slane %v2206, 4
      %v2209 = vrot.slane %v2112, 5
      %v2210 = vsel %vm1918, %v2208, %v2209
      %v2211 = vrot.slane %v2209, 4
      %v2212 = vrot.slane %v2113, 5
      %v2213 = vsel %vm1918, %v2211, %v2212
      %v2214 = vrot.slane %v2212, 4
      %v2215 = vrot.slane %v2114, 5
      %v2216 = vsel %vm1918, %v2214, %v2215
      %v2217 = vrot.slane %v2215, 4
      %v2218 = vrot.slane %v2115, 5
      %v2219 = vsel %vm1918, %v2217, %v2218
      %v2220 = vrot.slane %v2218, 4
      %v2221 = vrot.slane %v2116, 5
      %v2222 = vsel %vm1918, %v2220, %v2221
      %v2223 = vrot.slane %v2221, 4
      %v2224 = vrot.slane %v2117, 5
      %v2225 = vsel %vm1918, %v2223, %v2224
      %v2226 = vrot.slane %v2224, 4
      %v2227 = vrot.slane %v2118, 5
      %v2228 = vsel %vm1918, %v2226, %v2227
      %v2229 = vrot.slane %v2227, 4
      %v2230 = vrot.slane %v2119, 5
      %v2231 = vsel %vm1918, %v2229, %v2230
      %v2232 = vrot.slane %v2230, 4
      %v2233 = vrot.slane %v2120, 5
      %v2234 = vsel %vm1918, %v2232, %v2233
      %v2235 = vrot.slane %v2233, 4
      %v2236 = vrot.slane %v2121, 5
      %v2237 = vsel %vm1918, %v2235, %v2236
      %v2238 = vrot.slane %v2236, 4
      %v2239 = vrot.slane %v2122, 5
      %v2240 = vsel %vm1918, %v2238, %v2239
      %v2241 = vrot.slane %v2239, 4
      %v2242 = vrot.slane %v2123, 5
      %v2243 = vsel %vm1918, %v2241, %v2242
      %v2244 = vrot.slane %v2242, 4
      %v2245 = vrot.slane %v2124, 5
      %v2246 = vsel %vm1918, %v2244, %v2245
      %v2247 = vrot.slane %v2245, 4
      %v2248 = vrot.slane %v2125, 5
      %v2249 = vsel %vm1918, %v2247, %v2248
      %v2250 = vrot.slane %v2248, 4
      %v2251 = vrot.slane %v2126, 5
      %v2252 = vsel %vm1918, %v2250, %v2251
      %v2253 = vrot.slane %v2251, 4
      %v2254 = vrot.slane %v2127, 5
      %v2255 = vsel %vm1918, %v2253, %v2254
      %v2256 = vrot.slane %v2254, 4
      %v2257 = vrot.slane %v2128, 5
      %v2258 = vsel %vm1918, %v2256, %v2257
      %v2259 = vrot.slane %v2257, 4
      %v2260 = vrot.slane %v2129, 5
      %v2261 = vsel %vm1918, %v2259, %v2260
      %v2262 = vrot.slane %v2260, 4
      %v2263 = vrot.slane %v2130, 5
      %v2264 = vsel %vm1918, %v2262, %v2263
      %v2265 = vrot.slane %v2263, 4
      %v2266 = vrot.slane %v2131, 5
      %v2267 = vsel %vm1918, %v2265, %v2266
      %v2268 = vrot.slane %v2266, 4
      %v2269 = vrot.slane %v2132, 5
      %v2270 = vsel %vm1918, %v2268, %v2269
      %v2271 = vrot.slane %v2269, 4
      %v2272 = vrot.slane %v2133, 5
      %v2273 = vsel %vm1918, %v2271, %v2272
      %v2274 = vrot.slane %v2272, 4
      %v2275 = vrot.slane %v2134, 5
      %v2276 = vsel %vm1918, %v2274, %v2275
      %v2277 = vrot.slane %v2275, 4
      %v2278 = vrot.slane %v2135, 5
      %v2279 = vsel %vm1918, %v2277, %v2278
      %v2280 = vrot.slane %v2278, 4
      %v2281 = vrot.slane %v2136, 5
      %v2282 = vsel %vm1918, %v2280, %v2281
      %2319 = vst [vmem:[#allocation3 + $0xc] sm:$0xf] %v2177
      %2320 = vst [vmem:[#allocation3 + $0x30] sm:$0xf] %v2180
      %2321 = vst [vmem:[#allocation3 + $0x54] sm:$0xf] %v2183
      %2322 = vst [vmem:[#allocation3 + $0x78] sm:$0xf] %v2186
      %2323 = vst [vmem:[#allocation3 + $0x9c] sm:$0xf] %v2189
      %2324 = vst [vmem:[#allocation3 + $0xc0] sm:$0xf] %v2192
      %2325 = vst [vmem:[#allocation3 + $0xe4] sm:$0xf] %v2195
      %2326 = vst [vmem:[#allocation3 + $0x108] sm:$0xf] %v2198
      %2327 = vst [vmem:[#allocation3 + $0x12c] sm:$0xf] %v2201
      %2328 = vst [vmem:[#allocation3 + $0x150] sm:$0xf] %v2204
      %2329 = vst [vmem:[#allocation3 + $0x174] sm:$0xf] %v2207
      %2330 = vst [vmem:[#allocation3 + $0x198] sm:$0xf] %v2210
      %2331 = vst [vmem:[#allocation3 + $0x1bc] sm:$0xf] %v2213
      %2332 = vst [vmem:[#allocation3 + $0x1e0] sm:$0xf] %v2216
      %2333 = vst [vmem:[#allocation3 + $0x204] sm:$0xf] %v2219
      %2334 = vst [vmem:[#allocation3 + $0x228] sm:$0xf] %v2222
      %2335 = vst [vmem:[#allocation3 + $0x24c] sm:$0xf] %v2225
      %2336 = vst [vmem:[#allocation3 + $0x270] sm:$0xf] %v2228
      %2337 = vst [vmem:[#allocation3 + $0x294] sm:$0xf] %v2231
      %2338 = vst [vmem:[#allocation3 + $0x2b8] sm:$0xf] %v2234
      %2339 = vst [vmem:[#allocation3 + $0x2dc] sm:$0xf] %v2237
      %2340 = vst [vmem:[#allocation3 + $0x300] sm:$0xf] %v2240
      %2341 = vst [vmem:[#allocation3 + $0x324] sm:$0xf] %v2243
      %2342 = vst [vmem:[#allocation3 + $0x348] sm:$0xf] %v2246
      %2343 = vst [vmem:[#allocation3 + $0x36c] sm:$0xf] %v2249
      %2344 = vst [vmem:[#allocation3 + $0x390] sm:$0xf] %v2252
      %2345 = vst [vmem:[#allocation3 + $0x3b4] sm:$0xf] %v2255
      %2346 = vst [vmem:[#allocation3 + $0x3d8] sm:$0xf] %v2258
      %2347 = vst [vmem:[#allocation3 + $0x3fc] sm:$0xf] %v2261
      %2348 = vst [vmem:[#allocation3 + $0x420] sm:$0xf] %v2264
      %2349 = vst [vmem:[#allocation3 + $0x444] sm:$0xf] %v2267
      %2350 = vst [vmem:[#allocation3 + $0x468] sm:$0xf] %v2270
      %2351 = vst [vmem:[#allocation3 + $0x48c] sm:$0xf] %v2273
      %2352 = vst [vmem:[#allocation3 + $0x4b0] sm:$0xf] %v2276
      %2353 = vst [vmem:[#allocation3 + $0x4d4] sm:$0xf] %v2279
      %2354 = vst [vmem:[#allocation3 + $0x4f8] sm:$0xf] %v2282
      %v2355 = vld [vmem:[#allocation2 + $0x8] sm:$0xe]
      %v2356 = vld [vmem:[#allocation2 + $0xc] sm:$0xf]
      %v2357 = vld [vmem:[#allocation2 + $0x10] sm:$0xf]
      %v2358 = vld [vmem:[#allocation2 + $0x14] sm:$0xf]
      %v2359 = vld [vmem:[#allocation2 + $0x18] sm:$0xf]
      %v2360 = vld [vmem:[#allocation2 + $0x1c] sm:$0xf]
      %v2361 = vld [vmem:[#allocation2 + $0x20] sm:$0xf]
      %v2362 = vld [vmem:[#allocation2 + $0x24] sm:$0xf]
      %v2363 = vld [vmem:[#allocation2 + $0x28] sm:$0xf]
      %v2364 = vld [vmem:[#allocation2 + $0x2c] sm:$0xf]
      %v2365 = vld [vmem:[#allocation2 + $0x30] sm:$0xf]
      %v2366 = vld [vmem:[#allocation2 + $0x34] sm:$0xf]
      %v2367 = vld [vmem:[#allocation2 + $0x38] sm:$0xf]
      %v2368 = vld [vmem:[#allocation2 + $0x3c] sm:$0xf]
      %v2369 = vld [vmem:[#allocation2 + $0x40] sm:$0xf]
      %v2370 = vld [vmem:[#allocation2 + $0x44] sm:$0xf]
      %v2371 = vld [vmem:[#allocation2 + $0x48] sm:$0xf]
      %v2372 = vld [vmem:[#allocation2 + $0x4c] sm:$0xf]
      %v2373 = vld [vmem:[#allocation2 + $0x50] sm:$0xf]
      %v2374 = vld [vmem:[#allocation2 + $0x54] sm:$0xf]
      %v2375 = vld [vmem:[#allocation2 + $0x58] sm:$0xf]
      %v2376 = vld [vmem:[#allocation2 + $0x5c] sm:$0xf]
      %v2377 = vld [vmem:[#allocation2 + $0x60] sm:$0xf]
      %v2378 = vld [vmem:[#allocation2 + $0x64] sm:$0xf]
      %v2379 = vld [vmem:[#allocation2 + $0x68] sm:$0xf]
      %v2380 = vld [vmem:[#allocation2 + $0x6c] sm:$0xf]
      %v2381 = vld [vmem:[#allocation2 + $0x70] sm:$0xf]
      %v2382 = vld [vmem:[#allocation2 + $0x74] sm:$0xf]
      %v2383 = vld [vmem:[#allocation2 + $0x78] sm:$0xf]
      %v2384 = vld [vmem:[#allocation2 + $0x7c] sm:$0xf]
      %v2385 = vld [vmem:[#allocation2 + $0x80] sm:$0xf]
      %v2386 = vld [vmem:[#allocation2 + $0x84] sm:$0xf]
      %v2387 = vld [vmem:[#allocation2 + $0x88] sm:$0xf]
      %v2388 = vld [vmem:[#allocation2 + $0x8c] sm:$0xf]
      %v2389 = vld [vmem:[#allocation2 + $0x90] sm:$0xf]
      %v2390 = vld [vmem:[#allocation2 + $0x94] sm:$0xf]
      %v2391 = vld [vmem:[#allocation2 + $0x98] sm:$0x3]
      %v2393 = vshrl.u32 %v2355, 16
      %v2395 = vrot.slane %v2393, 5
      %v2396 = vshll.u32 %v2355, 16
      %v2398 = vrot.slane %v2396, 6
      %v2399 = vor.u32 %v2395, %v2398
      %v2400 = vrot.slane %v2399, 4
      %v2402 = vshrl.u32 %v2356, 16
      %v2404 = vrot.slane %v2402, 5
      %v2405 = vshll.u32 %v2356, 16
      %v2407 = vrot.slane %v2405, 6
      %v2408 = vor.u32 %v2404, %v2407
      %v2409 = vsel %vm780, %v2400, %v2408
      %v2410 = vrot.slane %v2408, 4
      %v2412 = vshrl.u32 %v2357, 16
      %v2414 = vrot.slane %v2412, 5
      %v2415 = vshll.u32 %v2357, 16
      %v2417 = vrot.slane %v2415, 6
      %v2418 = vor.u32 %v2414, %v2417
      %v2419 = vsel %vm780, %v2410, %v2418
      %v2420 = vrot.slane %v2418, 4
      %v2422 = vshrl.u32 %v2358, 16
      %v2424 = vrot.slane %v2422, 5
      %v2425 = vshll.u32 %v2358, 16
      %v2427 = vrot.slane %v2425, 6
      %v2428 = vor.u32 %v2424, %v2427
      %v2429 = vsel %vm780, %v2420, %v2428
      %v2430 = vrot.slane %v2428, 4
      %v2432 = vshrl.u32 %v2359, 16
      %v2434 = vrot.slane %v2432, 5
      %v2435 = vshll.u32 %v2359, 16
      %v2437 = vrot.slane %v2435, 6
      %v2438 = vor.u32 %v2434, %v2437
      %v2439 = vsel %vm780, %v2430, %v2438
      %v2440 = vrot.slane %v2438, 4
      %v2442 = vshrl.u32 %v2360, 16
      %v2444 = vrot.slane %v2442, 5
      %v2445 = vshll.u32 %v2360, 16
      %v2447 = vrot.slane %v2445, 6
      %v2448 = vor.u32 %v2444, %v2447
      %v2449 = vsel %vm780, %v2440, %v2448
      %v2450 = vrot.slane %v2448, 4
      %v2452 = vshrl.u32 %v2361, 16
      %v2454 = vrot.slane %v2452, 5
      %v2455 = vshll.u32 %v2361, 16
      %v2457 = vrot.slane %v2455, 6
      %v2458 = vor.u32 %v2454, %v2457
      %v2459 = vsel %vm780, %v2450, %v2458
      %v2460 = vrot.slane %v2458, 4
      %v2462 = vshrl.u32 %v2362, 16
      %v2464 = vrot.slane %v2462, 5
      %v2465 = vshll.u32 %v2362, 16
      %v2467 = vrot.slane %v2465, 6
      %v2468 = vor.u32 %v2464, %v2467
      %v2469 = vsel %vm780, %v2460, %v2468
      %v2470 = vrot.slane %v2468, 4
      %v2472 = vshrl.u32 %v2363, 16
      %v2474 = vrot.slane %v2472, 5
      %v2475 = vshll.u32 %v2363, 16
      %v2477 = vrot.slane %v2475, 6
      %v2478 = vor.u32 %v2474, %v2477
      %v2479 = vsel %vm780, %v2470, %v2478
      %v2480 = vrot.slane %v2478, 4
      %v2482 = vshrl.u32 %v2364, 16
      %v2484 = vrot.slane %v2482, 5
      %v2485 = vshll.u32 %v2364, 16
      %v2487 = vrot.slane %v2485, 6
      %v2488 = vor.u32 %v2484, %v2487
      %v2489 = vsel %vm780, %v2480, %v2488
      %v2490 = vrot.slane %v2488, 4
      %v2492 = vshrl.u32 %v2365, 16
      %v2494 = vrot.slane %v2492, 5
      %v2495 = vshll.u32 %v2365, 16
      %v2497 = vrot.slane %v2495, 6
      %v2498 = vor.u32 %v2494, %v2497
      %v2499 = vsel %vm780, %v2490, %v2498
      %v2500 = vrot.slane %v2498, 4
      %v2502 = vshrl.u32 %v2366, 16
      %v2504 = vrot.slane %v2502, 5
      %v2505 = vshll.u32 %v2366, 16
      %v2507 = vrot.slane %v2505, 6
      %v2508 = vor.u32 %v2504, %v2507
      %v2509 = vsel %vm780, %v2500, %v2508
      %v2510 = vrot.slane %v2508, 4
      %v2512 = vshrl.u32 %v2367, 16
      %v2514 = vrot.slane %v2512, 5
      %v2515 = vshll.u32 %v2367, 16
      %v2517 = vrot.slane %v2515, 6
      %v2518 = vor.u32 %v2514, %v2517
      %v2519 = vsel %vm780, %v2510, %v2518
      %v2520 = vrot.slane %v2518, 4
      %v2522 = vshrl.u32 %v2368, 16
      %v2524 = vrot.slane %v2522, 5
      %v2525 = vshll.u32 %v2368, 16
      %v2527 = vrot.slane %v2525, 6
      %v2528 = vor.u32 %v2524, %v2527
      %v2529 = vsel %vm780, %v2520, %v2528
      %v2530 = vrot.slane %v2528, 4
      %v2532 = vshrl.u32 %v2369, 16
      %v2534 = vrot.slane %v2532, 5
      %v2535 = vshll.u32 %v2369, 16
      %v2537 = vrot.slane %v2535, 6
      %v2538 = vor.u32 %v2534, %v2537
      %v2539 = vsel %vm780, %v2530, %v2538
      %v2540 = vrot.slane %v2538, 4
      %v2542 = vshrl.u32 %v2370, 16
      %v2544 = vrot.slane %v2542, 5
      %v2545 = vshll.u32 %v2370, 16
      %v2547 = vrot.slane %v2545, 6
      %v2548 = vor.u32 %v2544, %v2547
      %v2549 = vsel %vm780, %v2540, %v2548
      %v2550 = vrot.slane %v2548, 4
      %v2552 = vshrl.u32 %v2371, 16
      %v2554 = vrot.slane %v2552, 5
      %v2555 = vshll.u32 %v2371, 16
      %v2557 = vrot.slane %v2555, 6
      %v2558 = vor.u32 %v2554, %v2557
      %v2559 = vsel %vm780, %v2550, %v2558
      %v2560 = vrot.slane %v2558, 4
      %v2562 = vshrl.u32 %v2372, 16
      %v2564 = vrot.slane %v2562, 5
      %v2565 = vshll.u32 %v2372, 16
      %v2567 = vrot.slane %v2565, 6
      %v2568 = vor.u32 %v2564, %v2567
      %v2569 = vsel %vm780, %v2560, %v2568
      %v2570 = vrot.slane %v2568, 4
      %v2572 = vshrl.u32 %v2373, 16
      %v2574 = vrot.slane %v2572, 5
      %v2575 = vshll.u32 %v2373, 16
      %v2577 = vrot.slane %v2575, 6
      %v2578 = vor.u32 %v2574, %v2577
      %v2579 = vsel %vm780, %v2570, %v2578
      %v2580 = vrot.slane %v2578, 4
      %v2582 = vshrl.u32 %v2374, 16
      %v2584 = vrot.slane %v2582, 5
      %v2585 = vshll.u32 %v2374, 16
      %v2587 = vrot.slane %v2585, 6
      %v2588 = vor.u32 %v2584, %v2587
      %v2589 = vsel %vm780, %v2580, %v2588
      %v2590 = vrot.slane %v2588, 4
      %v2592 = vshrl.u32 %v2375, 16
      %v2594 = vrot.slane %v2592, 5
      %v2595 = vshll.u32 %v2375, 16
      %v2597 = vrot.slane %v2595, 6
      %v2598 = vor.u32 %v2594, %v2597
      %v2599 = vsel %vm780, %v2590, %v2598
      %v2600 = vrot.slane %v2598, 4
      %v2602 = vshrl.u32 %v2376, 16
      %v2604 = vrot.slane %v2602, 5
      %v2605 = vshll.u32 %v2376, 16
      %v2607 = vrot.slane %v2605, 6
      %v2608 = vor.u32 %v2604, %v2607
      %v2609 = vsel %vm780, %v2600, %v2608
      %v2610 = vrot.slane %v2608, 4
      %v2612 = vshrl.u32 %v2377, 16
      %v2614 = vrot.slane %v2612, 5
      %v2615 = vshll.u32 %v2377, 16
      %v2617 = vrot.slane %v2615, 6
      %v2618 = vor.u32 %v2614, %v2617
      %v2619 = vsel %vm780, %v2610, %v2618
      %v2620 = vrot.slane %v2618, 4
      %v2622 = vshrl.u32 %v2378, 16
      %v2624 = vrot.slane %v2622, 5
      %v2625 = vshll.u32 %v2378, 16
      %v2627 = vrot.slane %v2625, 6
      %v2628 = vor.u32 %v2624, %v2627
      %v2629 = vsel %vm780, %v2620, %v2628
      %v2630 = vrot.slane %v2628, 4
      %v2632 = vshrl.u32 %v2379, 16
      %v2634 = vrot.slane %v2632, 5
      %v2635 = vshll.u32 %v2379, 16
      %v2637 = vrot.slane %v2635, 6
      %v2638 = vor.u32 %v2634, %v2637
      %v2639 = vsel %vm780, %v2630, %v2638
      %v2640 = vrot.slane %v2638, 4
      %v2642 = vshrl.u32 %v2380, 16
      %v2644 = vrot.slane %v2642, 5
      %v2645 = vshll.u32 %v2380, 16
      %v2647 = vrot.slane %v2645, 6
      %v2648 = vor.u32 %v2644, %v2647
      %v2649 = vsel %vm780, %v2640, %v2648
      %v2650 = vrot.slane %v2648, 4
      %v2652 = vshrl.u32 %v2381, 16
      %v2654 = vrot.slane %v2652, 5
      %v2655 = vshll.u32 %v2381, 16
      %v2657 = vrot.slane %v2655, 6
      %v2658 = vor.u32 %v2654, %v2657
      %v2659 = vsel %vm780, %v2650, %v2658
      %v2660 = vrot.slane %v2658, 4
      %v2662 = vshrl.u32 %v2382, 16
      %v2664 = vrot.slane %v2662, 5
      %v2665 = vshll.u32 %v2382, 16
      %v2667 = vrot.slane %v2665, 6
      %v2668 = vor.u32 %v2664, %v2667
      %v2669 = vsel %vm780, %v2660, %v2668
      %v2670 = vrot.slane %v2668, 4
      %v2672 = vshrl.u32 %v2383, 16
      %v2674 = vrot.slane %v2672, 5
      %v2675 = vshll.u32 %v2383, 16
      %v2677 = vrot.slane %v2675, 6
      %v2678 = vor.u32 %v2674, %v2677
      %v2679 = vsel %vm780, %v2670, %v2678
      %v2680 = vrot.slane %v2678, 4
      %v2682 = vshrl.u32 %v2384, 16
      %v2684 = vrot.slane %v2682, 5
      %v2685 = vshll.u32 %v2384, 16
      %v2687 = vrot.slane %v2685, 6
      %v2688 = vor.u32 %v2684, %v2687
      %v2689 = vsel %vm780, %v2680, %v2688
      %v2690 = vrot.slane %v2688, 4
      %v2692 = vshrl.u32 %v2385, 16
      %v2694 = vrot.slane %v2692, 5
      %v2695 = vshll.u32 %v2385, 16
      %v2697 = vrot.slane %v2695, 6
      %v2698 = vor.u32 %v2694, %v2697
      %v2699 = vsel %vm780, %v2690, %v2698
      %v2700 = vrot.slane %v2698, 4
      %v2702 = vshrl.u32 %v2386, 16
      %v2704 = vrot.slane %v2702, 5
      %v2705 = vshll.u32 %v2386, 16
      %v2707 = vrot.slane %v2705, 6
      %v2708 = vor.u32 %v2704, %v2707
      %v2709 = vsel %vm780, %v2700, %v2708
      %v2710 = vrot.slane %v2708, 4
      %v2712 = vshrl.u32 %v2387, 16
      %v2714 = vrot.slane %v2712, 5
      %v2715 = vshll.u32 %v2387, 16
      %v2717 = vrot.slane %v2715, 6
      %v2718 = vor.u32 %v2714, %v2717
      %v2719 = vsel %vm780, %v2710, %v2718
      %v2720 = vrot.slane %v2718, 4
      %v2722 = vshrl.u32 %v2388, 16
      %v2724 = vrot.slane %v2722, 5
      %v2725 = vshll.u32 %v2388, 16
      %v2727 = vrot.slane %v2725, 6
      %v2728 = vor.u32 %v2724, %v2727
      %v2729 = vsel %vm780, %v2720, %v2728
      %v2730 = vrot.slane %v2728, 4
      %v2732 = vshrl.u32 %v2389, 16
      %v2734 = vrot.slane %v2732, 5
      %v2735 = vshll.u32 %v2389, 16
      %v2737 = vrot.slane %v2735, 6
      %v2738 = vor.u32 %v2734, %v2737
      %v2739 = vsel %vm780, %v2730, %v2738
      %v2740 = vrot.slane %v2738, 4
      %v2742 = vshrl.u32 %v2390, 16
      %v2744 = vrot.slane %v2742, 5
      %v2745 = vshll.u32 %v2390, 16
      %v2747 = vrot.slane %v2745, 6
      %v2748 = vor.u32 %v2744, %v2747
      %v2749 = vsel %vm780, %v2740, %v2748
      %v2750 = vrot.slane %v2748, 4
      %v2752 = vshrl.u32 %v2391, 16
      %v2754 = vrot.slane %v2752, 5
      %v2755 = vshll.u32 %v2391, 16
      %v2757 = vrot.slane %v2755, 6
      %v2758 = vor.u32 %v2754, %v2757
      %v2759 = vsel %vm780, %v2750, %v2758
      %2796 = vst [vmem:[#allocation3 + $0x10] sm:$0xf] %v2409
      %2797 = vst [vmem:[#allocation3 + $0x34] sm:$0xf] %v2419
      %2798 = vst [vmem:[#allocation3 + $0x58] sm:$0xf] %v2429
      %2799 = vst [vmem:[#allocation3 + $0x7c] sm:$0xf] %v2439
      %2800 = vst [vmem:[#allocation3 + $0xa0] sm:$0xf] %v2449
      %2801 = vst [vmem:[#allocation3 + $0xc4] sm:$0xf] %v2459
      %2802 = vst [vmem:[#allocation3 + $0xe8] sm:$0xf] %v2469
      %2803 = vst [vmem:[#allocation3 + $0x10c] sm:$0xf] %v2479
      %2804 = vst [vmem:[#allocation3 + $0x130] sm:$0xf] %v2489
      %2805 = vst [vmem:[#allocation3 + $0x154] sm:$0xf] %v2499
      %2806 = vst [vmem:[#allocation3 + $0x178] sm:$0xf] %v2509
      %2807 = vst [vmem:[#allocation3 + $0x19c] sm:$0xf] %v2519
      %2808 = vst [vmem:[#allocation3 + $0x1c0] sm:$0xf] %v2529
      %2809 = vst [vmem:[#allocation3 + $0x1e4] sm:$0xf] %v2539
      %2810 = vst [vmem:[#allocation3 + $0x208] sm:$0xf] %v2549
      %2811 = vst [vmem:[#allocation3 + $0x22c] sm:$0xf] %v2559
      %2812 = vst [vmem:[#allocation3 + $0x250] sm:$0xf] %v2569
      %2813 = vst [vmem:[#allocation3 + $0x274] sm:$0xf] %v2579
      %2814 = vst [vmem:[#allocation3 + $0x298] sm:$0xf] %v2589
      %2815 = vst [vmem:[#allocation3 + $0x2bc] sm:$0xf] %v2599
      %2816 = vst [vmem:[#allocation3 + $0x2e0] sm:$0xf] %v2609
      %2817 = vst [vmem:[#allocation3 + $0x304] sm:$0xf] %v2619
      %2818 = vst [vmem:[#allocation3 + $0x328] sm:$0xf] %v2629
      %2819 = vst [vmem:[#allocation3 + $0x34c] sm:$0xf] %v2639
      %2820 = vst [vmem:[#allocation3 + $0x370] sm:$0xf] %v2649
      %2821 = vst [vmem:[#allocation3 + $0x394] sm:$0xf] %v2659
      %2822 = vst [vmem:[#allocation3 + $0x3b8] sm:$0xf] %v2669
      %2823 = vst [vmem:[#allocation3 + $0x3dc] sm:$0xf] %v2679
      %2824 = vst [vmem:[#allocation3 + $0x400] sm:$0xf] %v2689
      %2825 = vst [vmem:[#allocation3 + $0x424] sm:$0xf] %v2699
      %2826 = vst [vmem:[#allocation3 + $0x448] sm:$0xf] %v2709
      %2827 = vst [vmem:[#allocation3 + $0x46c] sm:$0xf] %v2719
      %2828 = vst [vmem:[#allocation3 + $0x490] sm:$0xf] %v2729
      %2829 = vst [vmem:[#allocation3 + $0x4b4] sm:$0xf] %v2739
      %2830 = vst [vmem:[#allocation3 + $0x4d8] sm:$0xf] %v2749
      %2831 = vst [vmem:[#allocation3 + $0x4fc] sm:$0xf] %v2759
      %v2832 = vld [vmem:[#allocation2 + $0x8] sm:$0xc]
      %v2833 = vld [vmem:[#allocation2 + $0xc] sm:$0xf]
      %v2834 = vld [vmem:[#allocation2 + $0x10] sm:$0xf]
      %v2835 = vld [vmem:[#allocation2 + $0x14] sm:$0xf]
      %v2836 = vld [vmem:[#allocation2 + $0x18] sm:$0xf]
      %v2837 = vld [vmem:[#allocation2 + $0x1c] sm:$0xf]
      %v2838 = vld [vmem:[#allocation2 + $0x20] sm:$0xf]
      %v2839 = vld [vmem:[#allocation2 + $0x24] sm:$0xf]
      %v2840 = vld [vmem:[#allocation2 + $0x28] sm:$0xf]
      %v2841 = vld [vmem:[#allocation2 + $0x2c] sm:$0xf]
      %v2842 = vld [vmem:[#allocation2 + $0x30] sm:$0xf]
      %v2843 = vld [vmem:[#allocation2 + $0x34] sm:$0xf]
      %v2844 = vld [vmem:[#allocation2 + $0x38] sm:$0xf]
      %v2845 = vld [vmem:[#allocation2 + $0x3c] sm:$0xf]
      %v2846 = vld [vmem:[#allocation2 + $0x40] sm:$0xf]
      %v2847 = vld [vmem:[#allocation2 + $0x44] sm:$0xf]
      %v2848 = vld [vmem:[#allocation2 + $0x48] sm:$0xf]
      %v2849 = vld [vmem:[#allocation2 + $0x4c] sm:$0xf]
      %v2850 = vld [vmem:[#allocation2 + $0x50] sm:$0xf]
      %v2851 = vld [vmem:[#allocation2 + $0x54] sm:$0xf]
      %v2852 = vld [vmem:[#allocation2 + $0x58] sm:$0xf]
      %v2853 = vld [vmem:[#allocation2 + $0x5c] sm:$0xf]
      %v2854 = vld [vmem:[#allocation2 + $0x60] sm:$0xf]
      %v2855 = vld [vmem:[#allocation2 + $0x64] sm:$0xf]
      %v2856 = vld [vmem:[#allocation2 + $0x68] sm:$0xf]
      %v2857 = vld [vmem:[#allocation2 + $0x6c] sm:$0xf]
      %v2858 = vld [vmem:[#allocation2 + $0x70] sm:$0xf]
      %v2859 = vld [vmem:[#allocation2 + $0x74] sm:$0xf]
      %v2860 = vld [vmem:[#allocation2 + $0x78] sm:$0xf]
      %v2861 = vld [vmem:[#allocation2 + $0x7c] sm:$0xf]
      %v2862 = vld [vmem:[#allocation2 + $0x80] sm:$0xf]
      %v2863 = vld [vmem:[#allocation2 + $0x84] sm:$0xf]
      %v2864 = vld [vmem:[#allocation2 + $0x88] sm:$0xf]
      %v2865 = vld [vmem:[#allocation2 + $0x8c] sm:$0xf]
      %v2866 = vld [vmem:[#allocation2 + $0x90] sm:$0xf]
      %v2867 = vld [vmem:[#allocation2 + $0x94] sm:$0xf]
      %v2868 = vld [vmem:[#allocation2 + $0x98] sm:$0x3]
      %vm2906 = vcmask 1045508
      %vm2907 = vmor %vm768, %vm2906
      %v2908 = vrot.slane %v2832, 6
      %v2909 = vrot.slane %v2908, 4
      %v2910 = vrot.slane %v2833, 6
      %v2911 = vsel %vm2907, %v2909, %v2910
      %v2912 = vrot.slane %v2910, 4
      %v2913 = vrot.slane %v2834, 6
      %v2914 = vsel %vm2907, %v2912, %v2913
      %v2915 = vrot.slane %v2913, 4
      %v2916 = vrot.slane %v2835, 6
      %v2917 = vsel %vm2907, %v2915, %v2916
      %v2918 = vrot.slane %v2916, 4
      %v2919 = vrot.slane %v2836, 6
      %v2920 = vsel %vm2907, %v2918, %v2919
      %v2921 = vrot.slane %v2919, 4
      %v2922 = vrot.slane %v2837, 6
      %v2923 = vsel %vm2907, %v2921, %v2922
      %v2924 = vrot.slane %v2922, 4
      %v2925 = vrot.slane %v2838, 6
      %v2926 = vsel %vm2907, %v2924, %v2925
      %v2927 = vrot.slane %v2925, 4
      %v2928 = vrot.slane %v2839, 6
      %v2929 = vsel %vm2907, %v2927, %v2928
      %v2930 = vrot.slane %v2928, 4
      %v2931 = vrot.slane %v2840, 6
      %v2932 = vsel %vm2907, %v2930, %v2931
      %v2933 = vrot.slane %v2931, 4
      %v2934 = vrot.slane %v2841, 6
      %v2935 = vsel %vm2907, %v2933, %v2934
      %v2936 = vrot.slane %v2934, 4
      %v2937 = vrot.slane %v2842, 6
      %v2938 = vsel %vm2907, %v2936, %v2937
      %v2939 = vrot.slane %v2937, 4
      %v2940 = vrot.slane %v2843, 6
      %v2941 = vsel %vm2907, %v2939, %v2940
      %v2942 = vrot.slane %v2940, 4
      %v2943 = vrot.slane %v2844, 6
      %v2944 = vsel %vm2907, %v2942, %v2943
      %v2945 = vrot.slane %v2943, 4
      %v2946 = vrot.slane %v2845, 6
      %v2947 = vsel %vm2907, %v2945, %v2946
      %v2948 = vrot.slane %v2946, 4
      %v2949 = vrot.slane %v2846, 6
      %v2950 = vsel %vm2907, %v2948, %v2949
      %v2951 = vrot.slane %v2949, 4
      %v2952 = vrot.slane %v2847, 6
      %v2953 = vsel %vm2907, %v2951, %v2952
      %v2954 = vrot.slane %v2952, 4
      %v2955 = vrot.slane %v2848, 6
      %v2956 = vsel %vm2907, %v2954, %v2955
      %v2957 = vrot.slane %v2955, 4
      %v2958 = vrot.slane %v2849, 6
      %v2959 = vsel %vm2907, %v2957, %v2958
      %v2960 = vrot.slane %v2958, 4
      %v2961 = vrot.slane %v2850, 6
      %v2962 = vsel %vm2907, %v2960, %v2961
      %v2963 = vrot.slane %v2961, 4
      %v2964 = vrot.slane %v2851, 6
      %v2965 = vsel %vm2907, %v2963, %v2964
      %v2966 = vrot.slane %v2964, 4
      %v2967 = vrot.slane %v2852, 6
      %v2968 = vsel %vm2907, %v2966, %v2967
      %v2969 = vrot.slane %v2967, 4
      %v2970 = vrot.slane %v2853, 6
      %v2971 = vsel %vm2907, %v2969, %v2970
      %v2972 = vrot.slane %v2970, 4
      %v2973 = vrot.slane %v2854, 6
      %v2974 = vsel %vm2907, %v2972, %v2973
      %v2975 = vrot.slane %v2973, 4
      %v2976 = vrot.slane %v2855, 6
      %v2977 = vsel %vm2907, %v2975, %v2976
      %v2978 = vrot.slane %v2976, 4
      %v2979 = vrot.slane %v2856, 6
      %v2980 = vsel %vm2907, %v2978, %v2979
      %v2981 = vrot.slane %v2979, 4
      %v2982 = vrot.slane %v2857, 6
      %v2983 = vsel %vm2907, %v2981, %v2982
      %v2984 = vrot.slane %v2982, 4
      %v2985 = vrot.slane %v2858, 6
      %v2986 = vsel %vm2907, %v2984, %v2985
      %v2987 = vrot.slane %v2985, 4
      %v2988 = vrot.slane %v2859, 6
      %v2989 = vsel %vm2907, %v2987, %v2988
      %v2990 = vrot.slane %v2988, 4
      %v2991 = vrot.slane %v2860, 6
      %v2992 = vsel %vm2907, %v2990, %v2991
      %v2993 = vrot.slane %v2991, 4
      %v2994 = vrot.slane %v2861, 6
      %v2995 = vsel %vm2907, %v2993, %v2994
      %v2996 = vrot.slane %v2994, 4
      %v2997 = vrot.slane %v2862, 6
      %v2998 = vsel %vm2907, %v2996, %v2997
      %v2999 = vrot.slane %v2997, 4
      %v3000 = vrot.slane %v2863, 6
      %v3001 = vsel %vm2907, %v2999, %v3000
      %v3002 = vrot.slane %v3000, 4
      %v3003 = vrot.slane %v2864, 6
      %v3004 = vsel %vm2907, %v3002, %v3003
      %v3005 = vrot.slane %v3003, 4
      %v3006 = vrot.slane %v2865, 6
      %v3007 = vsel %vm2907, %v3005, %v3006
      %v3008 = vrot.slane %v3006, 4
      %v3009 = vrot.slane %v2866, 6
      %v3010 = vsel %vm2907, %v3008, %v3009
      %v3011 = vrot.slane %v3009, 4
      %v3012 = vrot.slane %v2867, 6
      %v3013 = vsel %vm2907, %v3011, %v3012
      %v3014 = vrot.slane %v3012, 4
      %v3015 = vrot.slane %v2868, 6
      %v3016 = vsel %vm2907, %v3014, %v3015
      %3053 = vst [vmem:[#allocation3 + $0x14] sm:$0xf] %v2911
      %3054 = vst [vmem:[#allocation3 + $0x38] sm:$0xf] %v2914
      %3055 = vst [vmem:[#allocation3 + $0x5c] sm:$0xf] %v2917
      %3056 = vst [vmem:[#allocation3 + $0x80] sm:$0xf] %v2920
      %3057 = vst [vmem:[#allocation3 + $0xa4] sm:$0xf] %v2923
      %3058 = vst [vmem:[#allocation3 + $0xc8] sm:$0xf] %v2926
      %3059 = vst [vmem:[#allocation3 + $0xec] sm:$0xf] %v2929
      %3060 = vst [vmem:[#allocation3 + $0x110] sm:$0xf] %v2932
      %3061 = vst [vmem:[#allocation3 + $0x134] sm:$0xf] %v2935
      %3062 = vst [vmem:[#allocation3 + $0x158] sm:$0xf] %v2938
      %3063 = vst [vmem:[#allocation3 + $0x17c] sm:$0xf] %v2941
      %3064 = vst [vmem:[#allocation3 + $0x1a0] sm:$0xf] %v2944
      %3065 = vst [vmem:[#allocation3 + $0x1c4] sm:$0xf] %v2947
      %3066 = vst [vmem:[#allocation3 + $0x1e8] sm:$0xf] %v2950
      %3067 = vst [vmem:[#allocation3 + $0x20c] sm:$0xf] %v2953
      %3068 = vst [vmem:[#allocation3 + $0x230] sm:$0xf] %v2956
      %3069 = vst [vmem:[#allocation3 + $0x254] sm:$0xf] %v2959
      %3070 = vst [vmem:[#allocation3 + $0x278] sm:$0xf] %v2962
      %3071 = vst [vmem:[#allocation3 + $0x29c] sm:$0xf] %v2965
      %3072 = vst [vmem:[#allocation3 + $0x2c0] sm:$0xf] %v2968
      %3073 = vst [vmem:[#allocation3 + $0x2e4] sm:$0xf] %v2971
      %3074 = vst [vmem:[#allocation3 + $0x308] sm:$0xf] %v2974
      %3075 = vst [vmem:[#allocation3 + $0x32c] sm:$0xf] %v2977
      %3076 = vst [vmem:[#allocation3 + $0x350] sm:$0xf] %v2980
      %3077 = vst [vmem:[#allocation3 + $0x374] sm:$0xf] %v2983
      %3078 = vst [vmem:[#allocation3 + $0x398] sm:$0xf] %v2986
      %3079 = vst [vmem:[#allocation3 + $0x3bc] sm:$0xf] %v2989
      %3080 = vst [vmem:[#allocation3 + $0x3e0] sm:$0xf] %v2992
      %3081 = vst [vmem:[#allocation3 + $0x404] sm:$0xf] %v2995
      %3082 = vst [vmem:[#allocation3 + $0x428] sm:$0xf] %v2998
      %3083 = vst [vmem:[#allocation3 + $0x44c] sm:$0xf] %v3001
      %3084 = vst [vmem:[#allocation3 + $0x470] sm:$0xf] %v3004
      %3085 = vst [vmem:[#allocation3 + $0x494] sm:$0xf] %v3007
      %3086 = vst [vmem:[#allocation3 + $0x4b8] sm:$0xf] %v3010
      %3087 = vst [vmem:[#allocation3 + $0x4dc] sm:$0xf] %v3013
      %3088 = vst [vmem:[#allocation3 + $0x500] sm:$0xf] %v3016
      %v3089 = vld [vmem:[#allocation2 + $0x10] sm:$0xc]
      %v3090 = vld [vmem:[#allocation2 + $0x14] sm:$0xf]
      %v3091 = vld [vmem:[#allocation2 + $0x18] sm:$0xf]
      %v3092 = vld [vmem:[#allocation2 + $0x1c] sm:$0xf]
      %v3093 = vld [vmem:[#allocation2 + $0x20] sm:$0xf]
      %v3094 = vld [vmem:[#allocation2 + $0x24] sm:$0xf]
      %v3095 = vld [vmem:[#allocation2 + $0x28] sm:$0xf]
      %v3096 = vld [vmem:[#allocation2 + $0x2c] sm:$0xf]
      %v3097 = vld [vmem:[#allocation2 + $0x30] sm:$0xf]
      %v3098 = vld [vmem:[#allocation2 + $0x34] sm:$0xf]
      %v3099 = vld [vmem:[#allocation2 + $0x38] sm:$0xf]
      %v3100 = vld [vmem:[#allocation2 + $0x3c] sm:$0xf]
      %v3101 = vld [vmem:[#allocation2 + $0x40] sm:$0xf]
      %v3102 = vld [vmem:[#allocation2 + $0x44] sm:$0xf]
      %v3103 = vld [vmem:[#allocation2 + $0x48] sm:$0xf]
      %v3104 = vld [vmem:[#allocation2 + $0x4c] sm:$0xf]
      %v3105 = vld [vmem:[#allocation2 + $0x50] sm:$0xf]
      %v3106 = vld [vmem:[#allocation2 + $0x54] sm:$0xf]
      %v3107 = vld [vmem:[#allocation2 + $0x58] sm:$0xf]
      %v3108 = vld [vmem:[#allocation2 + $0x5c] sm:$0xf]
      %v3109 = vld [vmem:[#allocation2 + $0x60] sm:$0xf]
      %v3110 = vld [vmem:[#allocation2 + $0x64] sm:$0xf]
      %v3111 = vld [vmem:[#allocation2 + $0x68] sm:$0xf]
      %v3112 = vld [vmem:[#allocation2 + $0x6c] sm:$0xf]
      %v3113 = vld [vmem:[#allocation2 + $0x70] sm:$0xf]
      %v3114 = vld [vmem:[#allocation2 + $0x74] sm:$0xf]
      %v3115 = vld [vmem:[#allocation2 + $0x78] sm:$0xf]
      %v3116 = vld [vmem:[#allocation2 + $0x7c] sm:$0xf]
      %v3117 = vld [vmem:[#allocation2 + $0x80] sm:$0xf]
      %v3118 = vld [vmem:[#allocation2 + $0x84] sm:$0xf]
      %v3119 = vld [vmem:[#allocation2 + $0x88] sm:$0xf]
      %v3120 = vld [vmem:[#allocation2 + $0x8c] sm:$0xf]
      %v3121 = vld [vmem:[#allocation2 + $0x90] sm:$0xf]
      %v3122 = vld [vmem:[#allocation2 + $0x94] sm:$0xf]
      %v3123 = vld [vmem:[#allocation2 + $0x98] sm:$0xf]
      %v3124 = vld [vmem:[#allocation2 + $0x9c] sm:$0xf]
      %v3125 = vld [vmem:[#allocation2 + $0xa0] sm:$0x3]
      %v3163 = vrot.slane %v3089, 6
      %v3164 = vrot.slane %v3163, 4
      %v3165 = vrot.slane %v3090, 6
      %v3166 = vsel %vm2907, %v3164, %v3165
      %v3167 = vrot.slane %v3165, 4
      %v3168 = vrot.slane %v3091, 6
      %v3169 = vsel %vm2907, %v3167, %v3168
      %v3170 = vrot.slane %v3168, 4
      %v3171 = vrot.slane %v3092, 6
      %v3172 = vsel %vm2907, %v3170, %v3171
      %v3173 = vrot.slane %v3171, 4
      %v3174 = vrot.slane %v3093, 6
      %v3175 = vsel %vm2907, %v3173, %v3174
      %v3176 = vrot.slane %v3174, 4
      %v3177 = vrot.slane %v3094, 6
      %v3178 = vsel %vm2907, %v3176, %v3177
      %v3179 = vrot.slane %v3177, 4
      %v3180 = vrot.slane %v3095, 6
      %v3181 = vsel %vm2907, %v3179, %v3180
      %v3182 = vrot.slane %v3180, 4
      %v3183 = vrot.slane %v3096, 6
      %v3184 = vsel %vm2907, %v3182, %v3183
      %v3185 = vrot.slane %v3183, 4
      %v3186 = vrot.slane %v3097, 6
      %v3187 = vsel %vm2907, %v3185, %v3186
      %v3188 = vrot.slane %v3186, 4
      %v3189 = vrot.slane %v3098, 6
      %v3190 = vsel %vm2907, %v3188, %v3189
      %v3191 = vrot.slane %v3189, 4
      %v3192 = vrot.slane %v3099, 6
      %v3193 = vsel %vm2907, %v3191, %v3192
      %v3194 = vrot.slane %v3192, 4
      %v3195 = vrot.slane %v3100, 6
      %v3196 = vsel %vm2907, %v3194, %v3195
      %v3197 = vrot.slane %v3195, 4
      %v3198 = vrot.slane %v3101, 6
      %v3199 = vsel %vm2907, %v3197, %v3198
      %v3200 = vrot.slane %v3198, 4
      %v3201 = vrot.slane %v3102, 6
      %v3202 = vsel %vm2907, %v3200, %v3201
      %v3203 = vrot.slane %v3201, 4
      %v3204 = vrot.slane %v3103, 6
      %v3205 = vsel %vm2907, %v3203, %v3204
      %v3206 = vrot.slane %v3204, 4
      %v3207 = vrot.slane %v3104, 6
      %v3208 = vsel %vm2907, %v3206, %v3207
      %v3209 = vrot.slane %v3207, 4
      %v3210 = vrot.slane %v3105, 6
      %v3211 = vsel %vm2907, %v3209, %v3210
      %v3212 = vrot.slane %v3210, 4
      %v3213 = vrot.slane %v3106, 6
      %v3214 = vsel %vm2907, %v3212, %v3213
      %v3215 = vrot.slane %v3213, 4
      %v3216 = vrot.slane %v3107, 6
      %v3217 = vsel %vm2907, %v3215, %v3216
      %v3218 = vrot.slane %v3216, 4
      %v3219 = vrot.slane %v3108, 6
      %v3220 = vsel %vm2907, %v3218, %v3219
      %v3221 = vrot.slane %v3219, 4
      %v3222 = vrot.slane %v3109, 6
      %v3223 = vsel %vm2907, %v3221, %v3222
      %v3224 = vrot.slane %v3222, 4
      %v3225 = vrot.slane %v3110, 6
      %v3226 = vsel %vm2907, %v3224, %v3225
      %v3227 = vrot.slane %v3225, 4
      %v3228 = vrot.slane %v3111, 6
      %v3229 = vsel %vm2907, %v3227, %v3228
      %v3230 = vrot.slane %v3228, 4
      %v3231 = vrot.slane %v3112, 6
      %v3232 = vsel %vm2907, %v3230, %v3231
      %v3233 = vrot.slane %v3231, 4
      %v3234 = vrot.slane %v3113, 6
      %v3235 = vsel %vm2907, %v3233, %v3234
      %v3236 = vrot.slane %v3234, 4
      %v3237 = vrot.slane %v3114, 6
      %v3238 = vsel %vm2907, %v3236, %v3237
      %v3239 = vrot.slane %v3237, 4
      %v3240 = vrot.slane %v3115, 6
      %v3241 = vsel %vm2907, %v3239, %v3240
      %v3242 = vrot.slane %v3240, 4
      %v3243 = vrot.slane %v3116, 6
      %v3244 = vsel %vm2907, %v3242, %v3243
      %v3245 = vrot.slane %v3243, 4
      %v3246 = vrot.slane %v3117, 6
      %v3247 = vsel %vm2907, %v3245, %v3246
      %v3248 = vrot.slane %v3246, 4
      %v3249 = vrot.slane %v3118, 6
      %v3250 = vsel %vm2907, %v3248, %v3249
      %v3251 = vrot.slane %v3249, 4
      %v3252 = vrot.slane %v3119, 6
      %v3253 = vsel %vm2907, %v3251, %v3252
      %v3254 = vrot.slane %v3252, 4
      %v3255 = vrot.slane %v3120, 6
      %v3256 = vsel %vm2907, %v3254, %v3255
      %v3257 = vrot.slane %v3255, 4
      %v3258 = vrot.slane %v3121, 6
      %v3259 = vsel %vm2907, %v3257, %v3258
      %v3260 = vrot.slane %v3258, 4
      %v3261 = vrot.slane %v3122, 6
      %v3262 = vsel %vm2907, %v3260, %v3261
      %v3263 = vrot.slane %v3261, 4
      %v3264 = vrot.slane %v3123, 6
      %v3265 = vsel %vm2907, %v3263, %v3264
      %v3266 = vrot.slane %v3264, 4
      %v3267 = vrot.slane %v3124, 6
      %v3268 = vsel %vm2907, %v3266, %v3267
      %v3269 = vrot.slane %v3267, 4
      %v3270 = vrot.slane %v3125, 6
      %v3271 = vsel %vm2907, %v3269, %v3270
      %3308 = vst [vmem:[#allocation3 + $0x18] sm:$0xf] %v3166
      %3309 = vst [vmem:[#allocation3 + $0x3c] sm:$0xf] %v3169
      %3310 = vst [vmem:[#allocation3 + $0x60] sm:$0xf] %v3172
      %3311 = vst [vmem:[#allocation3 + $0x84] sm:$0xf] %v3175
      %3312 = vst [vmem:[#allocation3 + $0xa8] sm:$0xf] %v3178
      %3313 = vst [vmem:[#allocation3 + $0xcc] sm:$0xf] %v3181
      %3314 = vst [vmem:[#allocation3 + $0xf0] sm:$0xf] %v3184
      %3315 = vst [vmem:[#allocation3 + $0x114] sm:$0xf] %v3187
      %3316 = vst [vmem:[#allocation3 + $0x138] sm:$0xf] %v3190
      %3317 = vst [vmem:[#allocation3 + $0x15c] sm:$0xf] %v3193
      %3318 = vst [vmem:[#allocation3 + $0x180] sm:$0xf] %v3196
      %3319 = vst [vmem:[#allocation3 + $0x1a4] sm:$0xf] %v3199
      %3320 = vst [vmem:[#allocation3 + $0x1c8] sm:$0xf] %v3202
      %3321 = vst [vmem:[#allocation3 + $0x1ec] sm:$0xf] %v3205
      %3322 = vst [vmem:[#allocation3 + $0x210] sm:$0xf] %v3208
      %3323 = vst [vmem:[#allocation3 + $0x234] sm:$0xf] %v3211
      %3324 = vst [vmem:[#allocation3 + $0x258] sm:$0xf] %v3214
      %3325 = vst [vmem:[#allocation3 + $0x27c] sm:$0xf] %v3217
      %3326 = vst [vmem:[#allocation3 + $0x2a0] sm:$0xf] %v3220
      %3327 = vst [vmem:[#allocation3 + $0x2c4] sm:$0xf] %v3223
      %3328 = vst [vmem:[#allocation3 + $0x2e8] sm:$0xf] %v3226
      %3329 = vst [vmem:[#allocation3 + $0x30c] sm:$0xf] %v3229
      %3330 = vst [vmem:[#allocation3 + $0x330] sm:$0xf] %v3232
      %3331 = vst [vmem:[#allocation3 + $0x354] sm:$0xf] %v3235
      %3332 = vst [vmem:[#allocation3 + $0x378] sm:$0xf] %v3238
      %3333 = vst [vmem:[#allocation3 + $0x39c] sm:$0xf] %v3241
      %3334 = vst [vmem:[#allocation3 + $0x3c0] sm:$0xf] %v3244
      %3335 = vst [vmem:[#allocation3 + $0x3e4] sm:$0xf] %v3247
      %3336 = vst [vmem:[#allocation3 + $0x408] sm:$0xf] %v3250
      %3337 = vst [vmem:[#allocation3 + $0x42c] sm:$0xf] %v3253
      %3338 = vst [vmem:[#allocation3 + $0x450] sm:$0xf] %v3256
      %3339 = vst [vmem:[#allocation3 + $0x474] sm:$0xf] %v3259
      %3340 = vst [vmem:[#allocation3 + $0x498] sm:$0xf] %v3262
      %3341 = vst [vmem:[#allocation3 + $0x4bc] sm:$0xf] %v3265
      %3342 = vst [vmem:[#allocation3 + $0x4e0] sm:$0xf] %v3268
      %3343 = vst [vmem:[#allocation3 + $0x504] sm:$0xf] %v3271
      %v3344 = vld [vmem:[#allocation2 + $0x10] sm:$0xc]
      %v3345 = vld [vmem:[#allocation2 + $0x14] sm:$0xf]
      %v3346 = vld [vmem:[#allocation2 + $0x18] sm:$0xf]
      %v3347 = vld [vmem:[#allocation2 + $0x1c] sm:$0xf]
      %v3348 = vld [vmem:[#allocation2 + $0x20] sm:$0xf]
      %v3349 = vld [vmem:[#allocation2 + $0x24] sm:$0xf]
      %v3350 = vld [vmem:[#allocation2 + $0x28] sm:$0xf]
      %v3351 = vld [vmem:[#allocation2 + $0x2c] sm:$0xf]
      %v3352 = vld [vmem:[#allocation2 + $0x30] sm:$0xf]
      %v3353 = vld [vmem:[#allocation2 + $0x34] sm:$0xf]
      %v3354 = vld [vmem:[#allocation2 + $0x38] sm:$0xf]
      %v3355 = vld [vmem:[#allocation2 + $0x3c] sm:$0xf]
      %v3356 = vld [vmem:[#allocation2 + $0x40] sm:$0xf]
      %v3357 = vld [vmem:[#allocation2 + $0x44] sm:$0xf]
      %v3358 = vld [vmem:[#allocation2 + $0x48] sm:$0xf]
      %v3359 = vld [vmem:[#allocation2 + $0x4c] sm:$0xf]
      %v3360 = vld [vmem:[#allocation2 + $0x50] sm:$0xf]
      %v3361 = vld [vmem:[#allocation2 + $0x54] sm:$0xf]
      %v3362 = vld [vmem:[#allocation2 + $0x58] sm:$0xf]
      %v3363 = vld [vmem:[#allocation2 + $0x5c] sm:$0xf]
      %v3364 = vld [vmem:[#allocation2 + $0x60] sm:$0xf]
      %v3365 = vld [vmem:[#allocation2 + $0x64] sm:$0xf]
      %v3366 = vld [vmem:[#allocation2 + $0x68] sm:$0xf]
      %v3367 = vld [vmem:[#allocation2 + $0x6c] sm:$0xf]
      %v3368 = vld [vmem:[#allocation2 + $0x70] sm:$0xf]
      %v3369 = vld [vmem:[#allocation2 + $0x74] sm:$0xf]
      %v3370 = vld [vmem:[#allocation2 + $0x78] sm:$0xf]
      %v3371 = vld [vmem:[#allocation2 + $0x7c] sm:$0xf]
      %v3372 = vld [vmem:[#allocation2 + $0x80] sm:$0xf]
      %v3373 = vld [vmem:[#allocation2 + $0x84] sm:$0xf]
      %v3374 = vld [vmem:[#allocation2 + $0x88] sm:$0xf]
      %v3375 = vld [vmem:[#allocation2 + $0x8c] sm:$0xf]
      %v3376 = vld [vmem:[#allocation2 + $0x90] sm:$0xf]
      %v3377 = vld [vmem:[#allocation2 + $0x94] sm:$0xf]
      %v3378 = vld [vmem:[#allocation2 + $0x98] sm:$0xf]
      %v3379 = vld [vmem:[#allocation2 + $0x9c] sm:$0xf]
      %v3380 = vld [vmem:[#allocation2 + $0xa0] sm:$0x7]
      %v3382 = vshrl.u32 %v3344, 16
      %v3384 = vrot.slane %v3382, 6
      %v3385 = vshll.u32 %v3344, 16
      %v3387 = vrot.slane %v3385, 7
      %v3388 = vor.u32 %v3384, %v3387
      %v3389 = vrot.slane %v3388, 4
      %v3391 = vshrl.u32 %v3345, 16
      %v3393 = vrot.slane %v3391, 6
      %v3394 = vshll.u32 %v3345, 16
      %v3396 = vrot.slane %v3394, 7
      %v3397 = vor.u32 %v3393, %v3396
      %v3398 = vsel %vm738, %v3389, %v3397
      %v3399 = vrot.slane %v3397, 4
      %v3401 = vshrl.u32 %v3346, 16
      %v3403 = vrot.slane %v3401, 6
      %v3404 = vshll.u32 %v3346, 16
      %v3406 = vrot.slane %v3404, 7
      %v3407 = vor.u32 %v3403, %v3406
      %v3408 = vsel %vm738, %v3399, %v3407
      %v3409 = vrot.slane %v3407, 4
      %v3411 = vshrl.u32 %v3347, 16
      %v3413 = vrot.slane %v3411, 6
      %v3414 = vshll.u32 %v3347, 16
      %v3416 = vrot.slane %v3414, 7
      %v3417 = vor.u32 %v3413, %v3416
      %v3418 = vsel %vm738, %v3409, %v3417
      %v3419 = vrot.slane %v3417, 4
      %v3421 = vshrl.u32 %v3348, 16
      %v3423 = vrot.slane %v3421, 6
      %v3424 = vshll.u32 %v3348, 16
      %v3426 = vrot.slane %v3424, 7
      %v3427 = vor.u32 %v3423, %v3426
      %v3428 = vsel %vm738, %v3419, %v3427
      %v3429 = vrot.slane %v3427, 4
      %v3431 = vshrl.u32 %v3349, 16
      %v3433 = vrot.slane %v3431, 6
      %v3434 = vshll.u32 %v3349, 16
      %v3436 = vrot.slane %v3434, 7
      %v3437 = vor.u32 %v3433, %v3436
      %v3438 = vsel %vm738, %v3429, %v3437
      %v3439 = vrot.slane %v3437, 4
      %v3441 = vshrl.u32 %v3350, 16
      %v3443 = vrot.slane %v3441, 6
      %v3444 = vshll.u32 %v3350, 16
      %v3446 = vrot.slane %v3444, 7
      %v3447 = vor.u32 %v3443, %v3446
      %v3448 = vsel %vm738, %v3439, %v3447
      %v3449 = vrot.slane %v3447, 4
      %v3451 = vshrl.u32 %v3351, 16
      %v3453 = vrot.slane %v3451, 6
      %v3454 = vshll.u32 %v3351, 16
      %v3456 = vrot.slane %v3454, 7
      %v3457 = vor.u32 %v3453, %v3456
      %v3458 = vsel %vm738, %v3449, %v3457
      %v3459 = vrot.slane %v3457, 4
      %v3461 = vshrl.u32 %v3352, 16
      %v3463 = vrot.slane %v3461, 6
      %v3464 = vshll.u32 %v3352, 16
      %v3466 = vrot.slane %v3464, 7
      %v3467 = vor.u32 %v3463, %v3466
      %v3468 = vsel %vm738, %v3459, %v3467
      %v3469 = vrot.slane %v3467, 4
      %v3471 = vshrl.u32 %v3353, 16
      %v3473 = vrot.slane %v3471, 6
      %v3474 = vshll.u32 %v3353, 16
      %v3476 = vrot.slane %v3474, 7
      %v3477 = vor.u32 %v3473, %v3476
      %v3478 = vsel %vm738, %v3469, %v3477
      %v3479 = vrot.slane %v3477, 4
      %v3481 = vshrl.u32 %v3354, 16
      %v3483 = vrot.slane %v3481, 6
      %v3484 = vshll.u32 %v3354, 16
      %v3486 = vrot.slane %v3484, 7
      %v3487 = vor.u32 %v3483, %v3486
      %v3488 = vsel %vm738, %v3479, %v3487
      %v3489 = vrot.slane %v3487, 4
      %v3491 = vshrl.u32 %v3355, 16
      %v3493 = vrot.slane %v3491, 6
      %v3494 = vshll.u32 %v3355, 16
      %v3496 = vrot.slane %v3494, 7
      %v3497 = vor.u32 %v3493, %v3496
      %v3498 = vsel %vm738, %v3489, %v3497
      %v3499 = vrot.slane %v3497, 4
      %v3501 = vshrl.u32 %v3356, 16
      %v3503 = vrot.slane %v3501, 6
      %v3504 = vshll.u32 %v3356, 16
      %v3506 = vrot.slane %v3504, 7
      %v3507 = vor.u32 %v3503, %v3506
      %v3508 = vsel %vm738, %v3499, %v3507
      %v3509 = vrot.slane %v3507, 4
      %v3511 = vshrl.u32 %v3357, 16
      %v3513 = vrot.slane %v3511, 6
      %v3514 = vshll.u32 %v3357, 16
      %v3516 = vrot.slane %v3514, 7
      %v3517 = vor.u32 %v3513, %v3516
      %v3518 = vsel %vm738, %v3509, %v3517
      %v3519 = vrot.slane %v3517, 4
      %v3521 = vshrl.u32 %v3358, 16
      %v3523 = vrot.slane %v3521, 6
      %v3524 = vshll.u32 %v3358, 16
      %v3526 = vrot.slane %v3524, 7
      %v3527 = vor.u32 %v3523, %v3526
      %v3528 = vsel %vm738, %v3519, %v3527
      %v3529 = vrot.slane %v3527, 4
      %v3531 = vshrl.u32 %v3359, 16
      %v3533 = vrot.slane %v3531, 6
      %v3534 = vshll.u32 %v3359, 16
      %v3536 = vrot.slane %v3534, 7
      %v3537 = vor.u32 %v3533, %v3536
      %v3538 = vsel %vm738, %v3529, %v3537
      %v3539 = vrot.slane %v3537, 4
      %v3541 = vshrl.u32 %v3360, 16
      %v3543 = vrot.slane %v3541, 6
      %v3544 = vshll.u32 %v3360, 16
      %v3546 = vrot.slane %v3544, 7
      %v3547 = vor.u32 %v3543, %v3546
      %v3548 = vsel %vm738, %v3539, %v3547
      %v3549 = vrot.slane %v3547, 4
      %v3551 = vshrl.u32 %v3361, 16
      %v3553 = vrot.slane %v3551, 6
      %v3554 = vshll.u32 %v3361, 16
      %v3556 = vrot.slane %v3554, 7
      %v3557 = vor.u32 %v3553, %v3556
      %v3558 = vsel %vm738, %v3549, %v3557
      %v3559 = vrot.slane %v3557, 4
      %v3561 = vshrl.u32 %v3362, 16
      %v3563 = vrot.slane %v3561, 6
      %v3564 = vshll.u32 %v3362, 16
      %v3566 = vrot.slane %v3564, 7
      %v3567 = vor.u32 %v3563, %v3566
      %v3568 = vsel %vm738, %v3559, %v3567
      %v3569 = vrot.slane %v3567, 4
      %v3571 = vshrl.u32 %v3363, 16
      %v3573 = vrot.slane %v3571, 6
      %v3574 = vshll.u32 %v3363, 16
      %v3576 = vrot.slane %v3574, 7
      %v3577 = vor.u32 %v3573, %v3576
      %v3578 = vsel %vm738, %v3569, %v3577
      %v3579 = vrot.slane %v3577, 4
      %v3581 = vshrl.u32 %v3364, 16
      %v3583 = vrot.slane %v3581, 6
      %v3584 = vshll.u32 %v3364, 16
      %v3586 = vrot.slane %v3584, 7
      %v3587 = vor.u32 %v3583, %v3586
      %v3588 = vsel %vm738, %v3579, %v3587
      %v3589 = vrot.slane %v3587, 4
      %v3591 = vshrl.u32 %v3365, 16
      %v3593 = vrot.slane %v3591, 6
      %v3594 = vshll.u32 %v3365, 16
      %v3596 = vrot.slane %v3594, 7
      %v3597 = vor.u32 %v3593, %v3596
      %v3598 = vsel %vm738, %v3589, %v3597
      %v3599 = vrot.slane %v3597, 4
      %v3601 = vshrl.u32 %v3366, 16
      %v3603 = vrot.slane %v3601, 6
      %v3604 = vshll.u32 %v3366, 16
      %v3606 = vrot.slane %v3604, 7
      %v3607 = vor.u32 %v3603, %v3606
      %v3608 = vsel %vm738, %v3599, %v3607
      %v3609 = vrot.slane %v3607, 4
      %v3611 = vshrl.u32 %v3367, 16
      %v3613 = vrot.slane %v3611, 6
      %v3614 = vshll.u32 %v3367, 16
      %v3616 = vrot.slane %v3614, 7
      %v3617 = vor.u32 %v3613, %v3616
      %v3618 = vsel %vm738, %v3609, %v3617
      %v3619 = vrot.slane %v3617, 4
      %v3621 = vshrl.u32 %v3368, 16
      %v3623 = vrot.slane %v3621, 6
      %v3624 = vshll.u32 %v3368, 16
      %v3626 = vrot.slane %v3624, 7
      %v3627 = vor.u32 %v3623, %v3626
      %v3628 = vsel %vm738, %v3619, %v3627
      %v3629 = vrot.slane %v3627, 4
      %v3631 = vshrl.u32 %v3369, 16
      %v3633 = vrot.slane %v3631, 6
      %v3634 = vshll.u32 %v3369, 16
      %v3636 = vrot.slane %v3634, 7
      %v3637 = vor.u32 %v3633, %v3636
      %v3638 = vsel %vm738, %v3629, %v3637
      %v3639 = vrot.slane %v3637, 4
      %v3641 = vshrl.u32 %v3370, 16
      %v3643 = vrot.slane %v3641, 6
      %v3644 = vshll.u32 %v3370, 16
      %v3646 = vrot.slane %v3644, 7
      %v3647 = vor.u32 %v3643, %v3646
      %v3648 = vsel %vm738, %v3639, %v3647
      %v3649 = vrot.slane %v3647, 4
      %v3651 = vshrl.u32 %v3371, 16
      %v3653 = vrot.slane %v3651, 6
      %v3654 = vshll.u32 %v3371, 16
      %v3656 = vrot.slane %v3654, 7
      %v3657 = vor.u32 %v3653, %v3656
      %v3658 = vsel %vm738, %v3649, %v3657
      %v3659 = vrot.slane %v3657, 4
      %v3661 = vshrl.u32 %v3372, 16
      %v3663 = vrot.slane %v3661, 6
      %v3664 = vshll.u32 %v3372, 16
      %v3666 = vrot.slane %v3664, 7
      %v3667 = vor.u32 %v3663, %v3666
      %v3668 = vsel %vm738, %v3659, %v3667
      %v3669 = vrot.slane %v3667, 4
      %v3671 = vshrl.u32 %v3373, 16
      %v3673 = vrot.slane %v3671, 6
      %v3674 = vshll.u32 %v3373, 16
      %v3676 = vrot.slane %v3674, 7
      %v3677 = vor.u32 %v3673, %v3676
      %v3678 = vsel %vm738, %v3669, %v3677
      %v3679 = vrot.slane %v3677, 4
      %v3681 = vshrl.u32 %v3374, 16
      %v3683 = vrot.slane %v3681, 6
      %v3684 = vshll.u32 %v3374, 16
      %v3686 = vrot.slane %v3684, 7
      %v3687 = vor.u32 %v3683, %v3686
      %v3688 = vsel %vm738, %v3679, %v3687
      %v3689 = vrot.slane %v3687, 4
      %v3691 = vshrl.u32 %v3375, 16
      %v3693 = vrot.slane %v3691, 6
      %v3694 = vshll.u32 %v3375, 16
      %v3696 = vrot.slane %v3694, 7
      %v3697 = vor.u32 %v3693, %v3696
      %v3698 = vsel %vm738, %v3689, %v3697
      %v3699 = vrot.slane %v3697, 4
      %v3701 = vshrl.u32 %v3376, 16
      %v3703 = vrot.slane %v3701, 6
      %v3704 = vshll.u32 %v3376, 16
      %v3706 = vrot.slane %v3704, 7
      %v3707 = vor.u32 %v3703, %v3706
      %v3708 = vsel %vm738, %v3699, %v3707
      %v3709 = vrot.slane %v3707, 4
      %v3711 = vshrl.u32 %v3377, 16
      %v3713 = vrot.slane %v3711, 6
      %v3714 = vshll.u32 %v3377, 16
      %v3716 = vrot.slane %v3714, 7
      %v3717 = vor.u32 %v3713, %v3716
      %v3718 = vsel %vm738, %v3709, %v3717
      %v3719 = vrot.slane %v3717, 4
      %v3721 = vshrl.u32 %v3378, 16
      %v3723 = vrot.slane %v3721, 6
      %v3724 = vshll.u32 %v3378, 16
      %v3726 = vrot.slane %v3724, 7
      %v3727 = vor.u32 %v3723, %v3726
      %v3728 = vsel %vm738, %v3719, %v3727
      %v3729 = vrot.slane %v3727, 4
      %v3731 = vshrl.u32 %v3379, 16
      %v3733 = vrot.slane %v3731, 6
      %v3734 = vshll.u32 %v3379, 16
      %v3736 = vrot.slane %v3734, 7
      %v3737 = vor.u32 %v3733, %v3736
      %v3738 = vsel %vm738, %v3729, %v3737
      %v3739 = vrot.slane %v3737, 4
      %v3741 = vshrl.u32 %v3380, 16
      %v3743 = vrot.slane %v3741, 6
      %v3744 = vshll.u32 %v3380, 16
      %v3746 = vrot.slane %v3744, 7
      %v3747 = vor.u32 %v3743, %v3746
      %v3748 = vsel %vm738, %v3739, %v3747
      %3785 = vst [vmem:[#allocation3 + $0x1c] sm:$0xf] %v3398
      %3786 = vst [vmem:[#allocation3 + $0x40] sm:$0xf] %v3408
      %3787 = vst [vmem:[#allocation3 + $0x64] sm:$0xf] %v3418
      %3788 = vst [vmem:[#allocation3 + $0x88] sm:$0xf] %v3428
      %3789 = vst [vmem:[#allocation3 + $0xac] sm:$0xf] %v3438
      %3790 = vst [vmem:[#allocation3 + $0xd0] sm:$0xf] %v3448
      %3791 = vst [vmem:[#allocation3 + $0xf4] sm:$0xf] %v3458
      %3792 = vst [vmem:[#allocation3 + $0x118] sm:$0xf] %v3468
      %3793 = vst [vmem:[#allocation3 + $0x13c] sm:$0xf] %v3478
      %3794 = vst [vmem:[#allocation3 + $0x160] sm:$0xf] %v3488
      %3795 = vst [vmem:[#allocation3 + $0x184] sm:$0xf] %v3498
      %3796 = vst [vmem:[#allocation3 + $0x1a8] sm:$0xf] %v3508
      %3797 = vst [vmem:[#allocation3 + $0x1cc] sm:$0xf] %v3518
      %3798 = vst [vmem:[#allocation3 + $0x1f0] sm:$0xf] %v3528
      %3799 = vst [vmem:[#allocation3 + $0x214] sm:$0xf] %v3538
      %3800 = vst [vmem:[#allocation3 + $0x238] sm:$0xf] %v3548
      %3801 = vst [vmem:[#allocation3 + $0x25c] sm:$0xf] %v3558
      %3802 = vst [vmem:[#allocation3 + $0x280] sm:$0xf] %v3568
      %3803 = vst [vmem:[#allocation3 + $0x2a4] sm:$0xf] %v3578
      %3804 = vst [vmem:[#allocation3 + $0x2c8] sm:$0xf] %v3588
      %3805 = vst [vmem:[#allocation3 + $0x2ec] sm:$0xf] %v3598
      %3806 = vst [vmem:[#allocation3 + $0x310] sm:$0xf] %v3608
      %3807 = vst [vmem:[#allocation3 + $0x334] sm:$0xf] %v3618
      %3808 = vst [vmem:[#allocation3 + $0x358] sm:$0xf] %v3628
      %3809 = vst [vmem:[#allocation3 + $0x37c] sm:$0xf] %v3638
      %3810 = vst [vmem:[#allocation3 + $0x3a0] sm:$0xf] %v3648
      %3811 = vst [vmem:[#allocation3 + $0x3c4] sm:$0xf] %v3658
      %3812 = vst [vmem:[#allocation3 + $0x3e8] sm:$0xf] %v3668
      %3813 = vst [vmem:[#allocation3 + $0x40c] sm:$0xf] %v3678
      %3814 = vst [vmem:[#allocation3 + $0x430] sm:$0xf] %v3688
      %3815 = vst [vmem:[#allocation3 + $0x454] sm:$0xf] %v3698
      %3816 = vst [vmem:[#allocation3 + $0x478] sm:$0xf] %v3708
      %3817 = vst [vmem:[#allocation3 + $0x49c] sm:$0xf] %v3718
      %3818 = vst [vmem:[#allocation3 + $0x4c0] sm:$0xf] %v3728
      %3819 = vst [vmem:[#allocation3 + $0x4e4] sm:$0xf] %v3738
      %3820 = vst [vmem:[#allocation3 + $0x508] sm:$0xf] %v3748
      %v3821 = vld [vmem:[#allocation2 + $0x10] sm:$0x8]
      %v3822 = vld [vmem:[#allocation2 + $0x14] sm:$0xf]
      %v3823 = vld [vmem:[#allocation2 + $0x18] sm:$0xf]
      %v3824 = vld [vmem:[#allocation2 + $0x1c] sm:$0xf]
      %v3825 = vld [vmem:[#allocation2 + $0x20] sm:$0xf]
      %v3826 = vld [vmem:[#allocation2 + $0x24] sm:$0xf]
      %v3827 = vld [vmem:[#allocation2 + $0x28] sm:$0xf]
      %v3828 = vld [vmem:[#allocation2 + $0x2c] sm:$0xf]
      %v3829 = vld [vmem:[#allocation2 + $0x30] sm:$0xf]
      %v3830 = vld [vmem:[#allocation2 + $0x34] sm:$0xf]
      %v3831 = vld [vmem:[#allocation2 + $0x38] sm:$0xf]
      %v3832 = vld [vmem:[#allocation2 + $0x3c] sm:$0xf]
      %v3833 = vld [vmem:[#allocation2 + $0x40] sm:$0xf]
      %v3834 = vld [vmem:[#allocation2 + $0x44] sm:$0xf]
      %v3835 = vld [vmem:[#allocation2 + $0x48] sm:$0xf]
      %v3836 = vld [vmem:[#allocation2 + $0x4c] sm:$0xf]
      %v3837 = vld [vmem:[#allocation2 + $0x50] sm:$0xf]
      %v3838 = vld [vmem:[#allocation2 + $0x54] sm:$0xf]
      %v3839 = vld [vmem:[#allocation2 + $0x58] sm:$0xf]
      %v3840 = vld [vmem:[#allocation2 + $0x5c] sm:$0xf]
      %v3841 = vld [vmem:[#allocation2 + $0x60] sm:$0xf]
      %v3842 = vld [vmem:[#allocation2 + $0x64] sm:$0xf]
      %v3843 = vld [vmem:[#allocation2 + $0x68] sm:$0xf]
      %v3844 = vld [vmem:[#allocation2 + $0x6c] sm:$0xf]
      %v3845 = vld [vmem:[#allocation2 + $0x70] sm:$0xf]
      %v3846 = vld [vmem:[#allocation2 + $0x74] sm:$0xf]
      %v3847 = vld [vmem:[#allocation2 + $0x78] sm:$0xf]
      %v3848 = vld [vmem:[#allocation2 + $0x7c] sm:$0xf]
      %v3849 = vld [vmem:[#allocation2 + $0x80] sm:$0xf]
      %v3850 = vld [vmem:[#allocation2 + $0x84] sm:$0xf]
      %v3851 = vld [vmem:[#allocation2 + $0x88] sm:$0xf]
      %v3852 = vld [vmem:[#allocation2 + $0x8c] sm:$0xf]
      %v3853 = vld [vmem:[#allocation2 + $0x90] sm:$0xf]
      %v3854 = vld [vmem:[#allocation2 + $0x94] sm:$0xf]
      %v3855 = vld [vmem:[#allocation2 + $0x98] sm:$0xf]
      %v3856 = vld [vmem:[#allocation2 + $0x9c] sm:$0xf]
      %v3857 = vld [vmem:[#allocation2 + $0xa0] sm:$0x7]
      %vm3895 = vcmask 1044484
      %vm3896 = vmor %vm891, %vm3895
      %v3897 = vrot.slane %v3821, 7
      %v3898 = vrot.slane %v3897, 4
      %v3899 = vrot.slane %v3822, 7
      %v3900 = vsel %vm3896, %v3898, %v3899
      %v3901 = vrot.slane %v3899, 4
      %v3902 = vrot.slane %v3823, 7
      %v3903 = vsel %vm3896, %v3901, %v3902
      %v3904 = vrot.slane %v3902, 4
      %v3905 = vrot.slane %v3824, 7
      %v3906 = vsel %vm3896, %v3904, %v3905
      %v3907 = vrot.slane %v3905, 4
      %v3908 = vrot.slane %v3825, 7
      %v3909 = vsel %vm3896, %v3907, %v3908
      %v3910 = vrot.slane %v3908, 4
      %v3911 = vrot.slane %v3826, 7
      %v3912 = vsel %vm3896, %v3910, %v3911
      %v3913 = vrot.slane %v3911, 4
      %v3914 = vrot.slane %v3827, 7
      %v3915 = vsel %vm3896, %v3913, %v3914
      %v3916 = vrot.slane %v3914, 4
      %v3917 = vrot.slane %v3828, 7
      %v3918 = vsel %vm3896, %v3916, %v3917
      %v3919 = vrot.slane %v3917, 4
      %v3920 = vrot.slane %v3829, 7
      %v3921 = vsel %vm3896, %v3919, %v3920
      %v3922 = vrot.slane %v3920, 4
      %v3923 = vrot.slane %v3830, 7
      %v3924 = vsel %vm3896, %v3922, %v3923
      %v3925 = vrot.slane %v3923, 4
      %v3926 = vrot.slane %v3831, 7
      %v3927 = vsel %vm3896, %v3925, %v3926
      %v3928 = vrot.slane %v3926, 4
      %v3929 = vrot.slane %v3832, 7
      %v3930 = vsel %vm3896, %v3928, %v3929
      %v3931 = vrot.slane %v3929, 4
      %v3932 = vrot.slane %v3833, 7
      %v3933 = vsel %vm3896, %v3931, %v3932
      %v3934 = vrot.slane %v3932, 4
      %v3935 = vrot.slane %v3834, 7
      %v3936 = vsel %vm3896, %v3934, %v3935
      %v3937 = vrot.slane %v3935, 4
      %v3938 = vrot.slane %v3835, 7
      %v3939 = vsel %vm3896, %v3937, %v3938
      %v3940 = vrot.slane %v3938, 4
      %v3941 = vrot.slane %v3836, 7
      %v3942 = vsel %vm3896, %v3940, %v3941
      %v3943 = vrot.slane %v3941, 4
      %v3944 = vrot.slane %v3837, 7
      %v3945 = vsel %vm3896, %v3943, %v3944
      %v3946 = vrot.slane %v3944, 4
      %v3947 = vrot.slane %v3838, 7
      %v3948 = vsel %vm3896, %v3946, %v3947
      %v3949 = vrot.slane %v3947, 4
      %v3950 = vrot.slane %v3839, 7
      %v3951 = vsel %vm3896, %v3949, %v3950
      %v3952 = vrot.slane %v3950, 4
      %v3953 = vrot.slane %v3840, 7
      %v3954 = vsel %vm3896, %v3952, %v3953
      %v3955 = vrot.slane %v3953, 4
      %v3956 = vrot.slane %v3841, 7
      %v3957 = vsel %vm3896, %v3955, %v3956
      %v3958 = vrot.slane %v3956, 4
      %v3959 = vrot.slane %v3842, 7
      %v3960 = vsel %vm3896, %v3958, %v3959
      %v3961 = vrot.slane %v3959, 4
      %v3962 = vrot.slane %v3843, 7
      %v3963 = vsel %vm3896, %v3961, %v3962
      %v3964 = vrot.slane %v3962, 4
      %v3965 = vrot.slane %v3844, 7
      %v3966 = vsel %vm3896, %v3964, %v3965
      %v3967 = vrot.slane %v3965, 4
      %v3968 = vrot.slane %v3845, 7
      %v3969 = vsel %vm3896, %v3967, %v3968
      %v3970 = vrot.slane %v3968, 4
      %v3971 = vrot.slane %v3846, 7
      %v3972 = vsel %vm3896, %v3970, %v3971
      %v3973 = vrot.slane %v3971, 4
      %v3974 = vrot.slane %v3847, 7
      %v3975 = vsel %vm3896, %v3973, %v3974
      %v3976 = vrot.slane %v3974, 4
      %v3977 = vrot.slane %v3848, 7
      %v3978 = vsel %vm3896, %v3976, %v3977
      %v3979 = vrot.slane %v3977, 4
      %v3980 = vrot.slane %v3849, 7
      %v3981 = vsel %vm3896, %v3979, %v3980
      %v3982 = vrot.slane %v3980, 4
      %v3983 = vrot.slane %v3850, 7
      %v3984 = vsel %vm3896, %v3982, %v3983
      %v3985 = vrot.slane %v3983, 4
      %v3986 = vrot.slane %v3851, 7
      %v3987 = vsel %vm3896, %v3985, %v3986
      %v3988 = vrot.slane %v3986, 4
      %v3989 = vrot.slane %v3852, 7
      %v3990 = vsel %vm3896, %v3988, %v3989
      %v3991 = vrot.slane %v3989, 4
      %v3992 = vrot.slane %v3853, 7
      %v3993 = vsel %vm3896, %v3991, %v3992
      %v3994 = vrot.slane %v3992, 4
      %v3995 = vrot.slane %v3854, 7
      %v3996 = vsel %vm3896, %v3994, %v3995
      %v3997 = vrot.slane %v3995, 4
      %v3998 = vrot.slane %v3855, 7
      %v3999 = vsel %vm3896, %v3997, %v3998
      %v4000 = vrot.slane %v3998, 4
      %v4001 = vrot.slane %v3856, 7
      %v4002 = vsel %vm3896, %v4000, %v4001
      %v4003 = vrot.slane %v4001, 4
      %v4004 = vrot.slane %v3857, 7
      %v4005 = vsel %vm3896, %v4003, %v4004
      %4042 = vst [vmem:[#allocation3 + $0x20] sm:$0xf] %v3900
      %4043 = vst [vmem:[#allocation3 + $0x44] sm:$0xf] %v3903
      %4044 = vst [vmem:[#allocation3 + $0x68] sm:$0xf] %v3906
      %4045 = vst [vmem:[#allocation3 + $0x8c] sm:$0xf] %v3909
      %4046 = vst [vmem:[#allocation3 + $0xb0] sm:$0xf] %v3912
      %4047 = vst [vmem:[#allocation3 + $0xd4] sm:$0xf] %v3915
      %4048 = vst [vmem:[#allocation3 + $0xf8] sm:$0xf] %v3918
      %4049 = vst [vmem:[#allocation3 + $0x11c] sm:$0xf] %v3921
      %4050 = vst [vmem:[#allocation3 + $0x140] sm:$0xf] %v3924
      %4051 = vst [vmem:[#allocation3 + $0x164] sm:$0xf] %v3927
      %4052 = vst [vmem:[#allocation3 + $0x188] sm:$0xf] %v3930
      %4053 = vst [vmem:[#allocation3 + $0x1ac] sm:$0xf] %v3933
      %4054 = vst [vmem:[#allocation3 + $0x1d0] sm:$0xf] %v3936
      %4055 = vst [vmem:[#allocation3 + $0x1f4] sm:$0xf] %v3939
      %4056 = vst [vmem:[#allocation3 + $0x218] sm:$0xf] %v3942
      %4057 = vst [vmem:[#allocation3 + $0x23c] sm:$0xf] %v3945
      %4058 = vst [vmem:[#allocation3 + $0x260] sm:$0xf] %v3948
      %4059 = vst [vmem:[#allocation3 + $0x284] sm:$0xf] %v3951
      %4060 = vst [vmem:[#allocation3 + $0x2a8] sm:$0xf] %v3954
      %4061 = vst [vmem:[#allocation3 + $0x2cc] sm:$0xf] %v3957
      %4062 = vst [vmem:[#allocation3 + $0x2f0] sm:$0xf] %v3960
      %4063 = vst [vmem:[#allocation3 + $0x314] sm:$0xf] %v3963
      %4064 = vst [vmem:[#allocation3 + $0x338] sm:$0xf] %v3966
      %4065 = vst [vmem:[#allocation3 + $0x35c] sm:$0xf] %v3969
      %4066 = vst [vmem:[#allocation3 + $0x380] sm:$0xf] %v3972
      %4067 = vst [vmem:[#allocation3 + $0x3a4] sm:$0xf] %v3975
      %4068 = vst [vmem:[#allocation3 + $0x3c8] sm:$0xf] %v3978
      %4069 = vst [vmem:[#allocation3 + $0x3ec] sm:$0xf] %v3981
      %4070 = vst [vmem:[#allocation3 + $0x410] sm:$0xf] %v3984
      %4071 = vst [vmem:[#allocation3 + $0x434] sm:$0xf] %v3987
      %4072 = vst [vmem:[#allocation3 + $0x458] sm:$0xf] %v3990
      %4073 = vst [vmem:[#allocation3 + $0x47c] sm:$0xf] %v3993
      %4074 = vst [vmem:[#allocation3 + $0x4a0] sm:$0xf] %v3996
      %4075 = vst [vmem:[#allocation3 + $0x4c4] sm:$0xf] %v3999
      %4076 = vst [vmem:[#allocation3 + $0x4e8] sm:$0xf] %v4002
      %4077 = vst [vmem:[#allocation3 + $0x50c] sm:$0xf] %v4005
      %v4078 = vld [vmem:[#allocation3] sm:$0xff]
      %v4079 = vld [vmem:[#allocation3 + $0x8] sm:$0xff]
      %v4080 = vld [vmem:[#allocation3 + $0x10] sm:$0xff]
      %v4081 = vld [vmem:[#allocation3 + $0x18] sm:$0xff]
      %v4082 = vld [vmem:[#allocation3 + $0x20] sm:$0xf]
      %v4083 = vld [vmem:[#allocation3 + $0x24] sm:$0xff]
      %v4084 = vld [vmem:[#allocation3 + $0x2c] sm:$0xff]
      %v4085 = vld [vmem:[#allocation3 + $0x34] sm:$0xff]
      %v4086 = vld [vmem:[#allocation3 + $0x3c] sm:$0xff]
      %v4087 = vld [vmem:[#allocation3 + $0x44] sm:$0xf]
      %v4088 = vld [vmem:[#allocation3 + $0x48] sm:$0xff]
      %v4089 = vld [vmem:[#allocation3 + $0x50] sm:$0xff]
      %v4090 = vld [vmem:[#allocation3 + $0x58] sm:$0xff]
      %v4091 = vld [vmem:[#allocation3 + $0x60] sm:$0xff]
      %v4092 = vld [vmem:[#allocation3 + $0x68] sm:$0xf]
      %v4093 = vld [vmem:[#allocation3 + $0x6c] sm:$0xff]
      %v4094 = vld [vmem:[#allocation3 + $0x74] sm:$0xff]
      %v4095 = vld [vmem:[#allocation3 + $0x7c] sm:$0xff]
      %v4096 = vld [vmem:[#allocation3 + $0x84] sm:$0xff]
      %v4097 = vld [vmem:[#allocation3 + $0x8c] sm:$0xf]
      %v4098 = vld [vmem:[#allocation3 + $0x90] sm:$0xff]
      %v4099 = vld [vmem:[#allocation3 + $0x98] sm:$0xff]
      %v4100 = vld [vmem:[#allocation3 + $0xa0] sm:$0xff]
      %v4101 = vld [vmem:[#allocation3 + $0xa8] sm:$0xff]
      %v4102 = vld [vmem:[#allocation3 + $0xb0] sm:$0xf]
      %v4103 = vld [vmem:[#allocation3 + $0xb4] sm:$0xff]
      %v4104 = vld [vmem:[#allocation3 + $0xbc] sm:$0xff]
      %v4105 = vld [vmem:[#allocation3 + $0xc4] sm:$0xff]
      %v4106 = vld [vmem:[#allocation3 + $0xcc] sm:$0xff]
      %v4107 = vld [vmem:[#allocation3 + $0xd4] sm:$0xf]
      %v4108 = vld [vmem:[#allocation3 + $0xd8] sm:$0xff]
      %v4109 = vld [vmem:[#allocation3 + $0xe0] sm:$0xff]
      %v4110 = vld [vmem:[#allocation3 + $0xe8] sm:$0xff]
      %v4111 = vld [vmem:[#allocation3 + $0xf0] sm:$0xff]
      %v4112 = vld [vmem:[#allocation3 + $0xf8] sm:$0xf]
      %v4113 = vld [vmem:[#allocation3 + $0xfc] sm:$0xff]
      %v4114 = vld [vmem:[#allocation3 + $0x104] sm:$0xff]
      %v4115 = vld [vmem:[#allocation3 + $0x10c] sm:$0xff]
      %v4116 = vld [vmem:[#allocation3 + $0x114] sm:$0xff]
      %v4117 = vld [vmem:[#allocation3 + $0x11c] sm:$0xf]
      %v4118 = vld [vmem:[#allocation3 + $0x120] sm:$0xff]
      %v4119 = vld [vmem:[#allocation3 + $0x128] sm:$0xff]
      %v4120 = vld [vmem:[#allocation3 + $0x130] sm:$0xff]
      %v4121 = vld [vmem:[#allocation3 + $0x138] sm:$0xff]
      %v4122 = vld [vmem:[#allocation3 + $0x140] sm:$0xf]
      %v4123 = vld [vmem:[#allocation3 + $0x144] sm:$0xff]
      %v4124 = vld [vmem:[#allocation3 + $0x14c] sm:$0xff]
      %v4125 = vld [vmem:[#allocation3 + $0x154] sm:$0xff]
      %v4126 = vld [vmem:[#allocation3 + $0x15c] sm:$0xff]
      %v4127 = vld [vmem:[#allocation3 + $0x164] sm:$0xf]
      %v4128 = vld [vmem:[#allocation3 + $0x168] sm:$0xff]
      %v4129 = vld [vmem:[#allocation3 + $0x170] sm:$0xff]
      %v4130 = vld [vmem:[#allocation3 + $0x178] sm:$0xff]
      %v4131 = vld [vmem:[#allocation3 + $0x180] sm:$0xff]
      %v4132 = vld [vmem:[#allocation3 + $0x188] sm:$0xf]
      %v4133 = vld [vmem:[#allocation3 + $0x18c] sm:$0xff]
      %v4134 = vld [vmem:[#allocation3 + $0x194] sm:$0xff]
      %v4135 = vld [vmem:[#allocation3 + $0x19c] sm:$0xff]
      %v4136 = vld [vmem:[#allocation3 + $0x1a4] sm:$0xff]
      %v4137 = vld [vmem:[#allocation3 + $0x1ac] sm:$0xf]
      %v4138 = vld [vmem:[#allocation3 + $0x1b0] sm:$0xff]
      %v4139 = vld [vmem:[#allocation3 + $0x1b8] sm:$0xff]
      %v4140 = vld [vmem:[#allocation3 + $0x1c0] sm:$0xff]
      %v4141 = vld [vmem:[#allocation3 + $0x1c8] sm:$0xff]
      %v4142 = vld [vmem:[#allocation3 + $0x1d0] sm:$0xf]
      %v4143 = vld [vmem:[#allocation3 + $0x1d4] sm:$0xff]
      %v4144 = vld [vmem:[#allocation3 + $0x1dc] sm:$0xff]
      %v4145 = vld [vmem:[#allocation3 + $0x1e4] sm:$0xff]
      %v4146 = vld [vmem:[#allocation3 + $0x1ec] sm:$0xff]
      %v4147 = vld [vmem:[#allocation3 + $0x1f4] sm:$0xf]
      %v4148 = vld [vmem:[#allocation3 + $0x1f8] sm:$0xff]
      %v4149 = vld [vmem:[#allocation3 + $0x200] sm:$0xff]
      %v4150 = vld [vmem:[#allocation3 + $0x208] sm:$0xff]
      %v4151 = vld [vmem:[#allocation3 + $0x210] sm:$0xff]
      %v4152 = vld [vmem:[#allocation3 + $0x218] sm:$0xf]
      %v4153 = vld [vmem:[#allocation3 + $0x21c] sm:$0xff]
      %v4154 = vld [vmem:[#allocation3 + $0x224] sm:$0xff]
      %v4155 = vld [vmem:[#allocation3 + $0x22c] sm:$0xff]
      %v4156 = vld [vmem:[#allocation3 + $0x234] sm:$0xff]
      %v4157 = vld [vmem:[#allocation3 + $0x23c] sm:$0xf]
      %v4158 = vld [vmem:[#allocation3 + $0x240] sm:$0xff]
      %v4159 = vld [vmem:[#allocation3 + $0x248] sm:$0xff]
      %v4160 = vld [vmem:[#allocation3 + $0x250] sm:$0xff]
      %v4161 = vld [vmem:[#allocation3 + $0x258] sm:$0xff]
      %v4162 = vld [vmem:[#allocation3 + $0x260] sm:$0xf]
      %v4163 = vld [vmem:[#allocation3 + $0x264] sm:$0xff]
      %v4164 = vld [vmem:[#allocation3 + $0x26c] sm:$0xff]
      %v4165 = vld [vmem:[#allocation3 + $0x274] sm:$0xff]
      %v4166 = vld [vmem:[#allocation3 + $0x27c] sm:$0xff]
      %v4167 = vld [vmem:[#allocation3 + $0x284] sm:$0xf]
      %v4168 = vld [vmem:[#allocation3 + $0x288] sm:$0xff]
      %v4169 = vld [vmem:[#allocation3 + $0x290] sm:$0xff]
      %v4170 = vld [vmem:[#allocation3 + $0x298] sm:$0xff]
      %v4171 = vld [vmem:[#allocation3 + $0x2a0] sm:$0xff]
      %v4172 = vld [vmem:[#allocation3 + $0x2a8] sm:$0xf]
      %v4173 = vld [vmem:[#allocation3 + $0x2ac] sm:$0xff]
      %v4174 = vld [vmem:[#allocation3 + $0x2b4] sm:$0xff]
      %v4175 = vld [vmem:[#allocation3 + $0x2bc] sm:$0xff]
      %v4176 = vld [vmem:[#allocation3 + $0x2c4] sm:$0xff]
      %v4177 = vld [vmem:[#allocation3 + $0x2cc] sm:$0xf]
      %v4178 = vld [vmem:[#allocation3 + $0x2d0] sm:$0xff]
      %v4179 = vld [vmem:[#allocation3 + $0x2d8] sm:$0xff]
      %v4180 = vld [vmem:[#allocation3 + $0x2e0] sm:$0xff]
      %v4181 = vld [vmem:[#allocation3 + $0x2e8] sm:$0xff]
      %v4182 = vld [vmem:[#allocation3 + $0x2f0] sm:$0xf]
      %v4183 = vld [vmem:[#allocation3 + $0x2f4] sm:$0xff]
      %v4184 = vld [vmem:[#allocation3 + $0x2fc] sm:$0xff]
      %v4185 = vld [vmem:[#allocation3 + $0x304] sm:$0xff]
      %v4186 = vld [vmem:[#allocation3 + $0x30c] sm:$0xff]
      %v4187 = vld [vmem:[#allocation3 + $0x314] sm:$0xf]
      %v4188 = vld [vmem:[#allocation3 + $0x318] sm:$0xff]
      %v4189 = vld [vmem:[#allocation3 + $0x320] sm:$0xff]
      %v4190 = vld [vmem:[#allocation3 + $0x328] sm:$0xff]
      %v4191 = vld [vmem:[#allocation3 + $0x330] sm:$0xff]
      %v4192 = vld [vmem:[#allocation3 + $0x338] sm:$0xf]
      %v4193 = vld [vmem:[#allocation3 + $0x33c] sm:$0xff]
      %v4194 = vld [vmem:[#allocation3 + $0x344] sm:$0xff]
      %v4195 = vld [vmem:[#allocation3 + $0x34c] sm:$0xff]
      %v4196 = vld [vmem:[#allocation3 + $0x354] sm:$0xff]
      %v4197 = vld [vmem:[#allocation3 + $0x35c] sm:$0xf]
      %v4198 = vld [vmem:[#allocation3 + $0x360] sm:$0xff]
      %v4199 = vld [vmem:[#allocation3 + $0x368] sm:$0xff]
      %v4200 = vld [vmem:[#allocation3 + $0x370] sm:$0xff]
      %v4201 = vld [vmem:[#allocation3 + $0x378] sm:$0xff]
      %v4202 = vld [vmem:[#allocation3 + $0x380] sm:$0xf]
      %v4203 = vld [vmem:[#allocation3 + $0x384] sm:$0xff]
      %v4204 = vld [vmem:[#allocation3 + $0x38c] sm:$0xff]
      %v4205 = vld [vmem:[#allocation3 + $0x394] sm:$0xff]
      %v4206 = vld [vmem:[#allocation3 + $0x39c] sm:$0xff]
      %v4207 = vld [vmem:[#allocation3 + $0x3a4] sm:$0xf]
      %v4208 = vld [vmem:[#allocation3 + $0x3a8] sm:$0xff]
      %v4209 = vld [vmem:[#allocation3 + $0x3b0] sm:$0xff]
      %v4210 = vld [vmem:[#allocation3 + $0x3b8] sm:$0xff]
      %v4211 = vld [vmem:[#allocation3 + $0x3c0] sm:$0xff]
      %v4212 = vld [vmem:[#allocation3 + $0x3c8] sm:$0xf]
      %v4213 = vld [vmem:[#allocation3 + $0x3cc] sm:$0xff]
      %v4214 = vld [vmem:[#allocation3 + $0x3d4] sm:$0xff]
      %v4215 = vld [vmem:[#allocation3 + $0x3dc] sm:$0xff]
      %v4216 = vld [vmem:[#allocation3 + $0x3e4] sm:$0xff]
      %v4217 = vld [vmem:[#allocation3 + $0x3ec] sm:$0xf]
      %v4218 = vld [vmem:[#allocation3 + $0x3f0] sm:$0xff]
      %v4219 = vld [vmem:[#allocation3 + $0x3f8] sm:$0xff]
      %v4220 = vld [vmem:[#allocation3 + $0x400] sm:$0xff]
      %v4221 = vld [vmem:[#allocation3 + $0x408] sm:$0xff]
      %v4222 = vld [vmem:[#allocation3 + $0x410] sm:$0xf]
      %v4223 = vld [vmem:[#allocation3 + $0x414] sm:$0xff]
      %v4224 = vld [vmem:[#allocation3 + $0x41c] sm:$0xff]
      %v4225 = vld [vmem:[#allocation3 + $0x424] sm:$0xff]
      %v4226 = vld [vmem:[#allocation3 + $0x42c] sm:$0xff]
      %v4227 = vld [vmem:[#allocation3 + $0x434] sm:$0xf]
      %v4228 = vld [vmem:[#allocation3 + $0x438] sm:$0xff]
      %v4229 = vld [vmem:[#allocation3 + $0x440] sm:$0xff]
      %v4230 = vld [vmem:[#allocation3 + $0x448] sm:$0xff]
      %v4231 = vld [vmem:[#allocation3 + $0x450] sm:$0xff]
      %v4232 = vld [vmem:[#allocation3 + $0x458] sm:$0xf]
      %v4233 = vld [vmem:[#allocation3 + $0x45c] sm:$0xff]
      %v4234 = vld [vmem:[#allocation3 + $0x464] sm:$0xff]
      %v4235 = vld [vmem:[#allocation3 + $0x46c] sm:$0xff]
      %v4236 = vld [vmem:[#allocation3 + $0x474] sm:$0xff]
      %v4237 = vld [vmem:[#allocation3 + $0x47c] sm:$0xf]
      %v4238 = vld [vmem:[#allocation3 + $0x480] sm:$0xff]
      %v4239 = vld [vmem:[#allocation3 + $0x488] sm:$0xff]
      %v4240 = vld [vmem:[#allocation3 + $0x490] sm:$0xff]
      %v4241 = vld [vmem:[#allocation3 + $0x498] sm:$0xff]
      %v4242 = vld [vmem:[#allocation3 + $0x4a0] sm:$0xf]
      %v4243 = vld [vmem:[#allocation3 + $0x4a4] sm:$0xff]
      %v4244 = vld [vmem:[#allocation3 + $0x4ac] sm:$0xff]
      %v4245 = vld [vmem:[#allocation3 + $0x4b4] sm:$0xff]
      %v4246 = vld [vmem:[#allocation3 + $0x4bc] sm:$0xff]
      %v4247 = vld [vmem:[#allocation3 + $0x4c4] sm:$0xf]
      %v4248 = vld [vmem:[#allocation3 + $0x4c8] sm:$0xff]
      %v4249 = vld [vmem:[#allocation3 + $0x4d0] sm:$0xff]
      %v4250 = vld [vmem:[#allocation3 + $0x4d8] sm:$0xff]
      %v4251 = vld [vmem:[#allocation3 + $0x4e0] sm:$0xff]
      %v4252 = vld [vmem:[#allocation3 + $0x4e8] sm:$0xf]
      %v4253 = vld [vmem:[#allocation3 + $0x4ec] sm:$0xff]
      %v4254 = vld [vmem:[#allocation3 + $0x4f4] sm:$0xff]
      %v4255 = vld [vmem:[#allocation3 + $0x4fc] sm:$0xff]
      %v4256 = vld [vmem:[#allocation3 + $0x504] sm:$0xff]
      %v4257 = vld [vmem:[#allocation3 + $0x50c] sm:$0xf]
      %v4258 = vld [vmem:[%s3] sm:$0xf]
      %v4259 = vld [vmem:[%s3 + $0x4] sm:$0xf]
      %v4260 = vld [vmem:[%s3 + $0x8] sm:$0xf]
      %v4261 = vld [vmem:[%s3 + $0xc] sm:$0xf]
      %v4262 = vld [vmem:[%s3 + $0x10] sm:$0xf]
      %v4263 = vld [vmem:[%s3 + $0x14] sm:$0xf]
      %v4264 = vld [vmem:[%s3 + $0x18] sm:$0xf]
      %v4265 = vld [vmem:[%s3 + $0x1c] sm:$0xf]
      %v4266 = vld [vmem:[%s3 + $0x20] sm:$0xf]
      %v4267 = vld [vmem:[%s3 + $0x24] sm:$0xf]
      %v4268 = vld [vmem:[%s3 + $0x28] sm:$0xf]
      %v4269 = vld [vmem:[%s3 + $0x2c] sm:$0xf]
      %v4270 = vld [vmem:[%s3 + $0x30] sm:$0xf]
      %v4271 = vld [vmem:[%s3 + $0x34] sm:$0xf]
      %v4272 = vld [vmem:[%s3 + $0x38] sm:$0xf]
      %v4273 = vld [vmem:[%s3 + $0x3c] sm:$0xf]
      %v4274 = vld [vmem:[%s3 + $0x40] sm:$0xf]
      %v4275 = vld [vmem:[%s3 + $0x44] sm:$0xf]
      %v4276 = vld [vmem:[%s3 + $0x48] sm:$0xf]
      %v4277 = vld [vmem:[%s3 + $0x4c] sm:$0xf]
      %v4278 = vld [vmem:[%s3 + $0x50] sm:$0xf]
      %v4279 = vld [vmem:[%s3 + $0x54] sm:$0xf]
      %v4280 = vld [vmem:[%s3 + $0x58] sm:$0xf]
      %v4281 = vld [vmem:[%s3 + $0x5c] sm:$0xf]
      %v4282 = vld [vmem:[%s3 + $0x60] sm:$0xf]
      %v4283 = vld [vmem:[%s3 + $0x64] sm:$0xf]
      %v4284 = vld [vmem:[%s3 + $0x68] sm:$0xf]
      %v4285 = vld [vmem:[%s3 + $0x6c] sm:$0xf]
      %v4286 = vld [vmem:[%s3 + $0x70] sm:$0xf]
      %v4287 = vld [vmem:[%s3 + $0x74] sm:$0xf]
      %v4288 = vld [vmem:[%s3 + $0x78] sm:$0xf]
      %v4289 = vld [vmem:[%s3 + $0x7c] sm:$0xf]
      %v4290 = vld [vmem:[%s3 + $0x80] sm:$0xf]
      %v4291 = vld [vmem:[%s3 + $0x84] sm:$0xf]
      %v4292 = vld [vmem:[%s3 + $0x88] sm:$0xf]
      %v4293 = vld [vmem:[%s3 + $0x8c] sm:$0xf]
      %v4294 = vld [vmem:[%s3 + $0x90] sm:$0xf]
      %v4295 = vld [vmem:[%s3 + $0x94] sm:$0xf]
      %v4296 = vld [vmem:[%s3 + $0x98] sm:$0xf]
      %v4297 = vld [vmem:[%s3 + $0x9c] sm:$0xf]
      %v4298 = vld [vmem:[%s3 + $0xa0] sm:$0xf]
      %v4299 = vld [vmem:[%s3 + $0xa4] sm:$0xf]
      %v4300 = vld [vmem:[%s3 + $0xa8] sm:$0xf]
      %v4301 = vld [vmem:[%s3 + $0xac] sm:$0xf]
      %v4302 = vld [vmem:[%s3 + $0xb0] sm:$0xf]
      %v4303 = vld [vmem:[%s3 + $0xb4] sm:$0xf]
      %v4304 = vld [vmem:[%s3 + $0xb8] sm:$0xf]
      %v4305 = vld [vmem:[%s3 + $0xbc] sm:$0xf]
      %v4306 = vld [vmem:[%s3 + $0xc0] sm:$0xf]
      %v4307 = vld [vmem:[%s3 + $0xc4] sm:$0xf]
      %v4308 = vld [vmem:[%s3 + $0xc8] sm:$0xf]
      %v4309 = vld [vmem:[%s3 + $0xcc] sm:$0xf]
      %v4310 = vld [vmem:[%s3 + $0xd0] sm:$0xf]
      %v4311 = vld [vmem:[%s3 + $0xd4] sm:$0xf]
      %v4312 = vld [vmem:[%s3 + $0xd8] sm:$0xf]
      %v4313 = vld [vmem:[%s3 + $0xdc] sm:$0xf]
      %v4314 = vld [vmem:[%s3 + $0xe0] sm:$0xf]
      %v4315 = vld [vmem:[%s3 + $0xe4] sm:$0xf]
      %v4316 = vld [vmem:[%s3 + $0xe8] sm:$0xf]
      %v4317 = vld [vmem:[%s3 + $0xec] sm:$0xf]
      %v4318 = vld [vmem:[%s3 + $0xf0] sm:$0xf]
      %v4319 = vld [vmem:[%s3 + $0xf4] sm:$0xf]
      %v4320 = vld [vmem:[%s3 + $0xf8] sm:$0xf]
      %v4321 = vld [vmem:[%s3 + $0xfc] sm:$0xf]
      %v4322 = vld [vmem:[%s3 + $0x100] sm:$0xf]
      %v4323 = vld [vmem:[%s3 + $0x104] sm:$0xf]
      %v4324 = vld [vmem:[%s3 + $0x108] sm:$0xf]
      %v4325 = vld [vmem:[%s3 + $0x10c] sm:$0xf]
      %v4326 = vld [vmem:[%s3 + $0x110] sm:$0xf]
      %v4327 = vld [vmem:[%s3 + $0x114] sm:$0xf]
      %v4328 = vld [vmem:[%s3 + $0x118] sm:$0xf]
      %v4329 = vld [vmem:[%s3 + $0x11c] sm:$0xf]
      %v4330 = vld [vmem:[%s3 + $0x120] sm:$0xf]
      %v4331 = vld [vmem:[%s3 + $0x124] sm:$0xf]
      %v4332 = vld [vmem:[%s3 + $0x128] sm:$0xf]
      %v4333 = vld [vmem:[%s3 + $0x12c] sm:$0xf]
      %v4334 = vld [vmem:[%s3 + $0x130] sm:$0xf]
      %v4335 = vld [vmem:[%s3 + $0x134] sm:$0xf]
      %v4336 = vld [vmem:[%s3 + $0x138] sm:$0xf]
      %v4337 = vld [vmem:[%s3 + $0x13c] sm:$0xf]
      %v4338 = vld [vmem:[%s3 + $0x140] sm:$0xf]
      %v4339 = vld [vmem:[%s3 + $0x144] sm:$0xf]
      %v4340 = vld [vmem:[%s3 + $0x148] sm:$0xf]
      %v4341 = vld [vmem:[%s3 + $0x14c] sm:$0xf]
      %v4342 = vld [vmem:[%s3 + $0x150] sm:$0xf]
      %v4343 = vld [vmem:[%s3 + $0x154] sm:$0xf]
      %v4344 = vld [vmem:[%s3 + $0x158] sm:$0xf]
      %v4345 = vld [vmem:[%s3 + $0x15c] sm:$0xf]
      %v4346 = vld [vmem:[%s3 + $0x160] sm:$0xf]
      %v4347 = vld [vmem:[%s3 + $0x164] sm:$0xf]
      %v4348 = vld [vmem:[%s3 + $0x168] sm:$0xf]
      %v4349 = vld [vmem:[%s3 + $0x16c] sm:$0xf]
      %v4350 = vld [vmem:[%s3 + $0x170] sm:$0xf]
      %v4351 = vld [vmem:[%s3 + $0x174] sm:$0xf]
      %v4352 = vld [vmem:[%s3 + $0x178] sm:$0xf]
      %v4353 = vld [vmem:[%s3 + $0x17c] sm:$0xf]
      %v4354 = vld [vmem:[%s3 + $0x180] sm:$0xf]
      %v4355 = vld [vmem:[%s3 + $0x184] sm:$0xf]
      %v4356 = vld [vmem:[%s3 + $0x188] sm:$0xf]
      %v4357 = vld [vmem:[%s3 + $0x18c] sm:$0xf]
      %v4358 = vld [vmem:[%s3 + $0x190] sm:$0xf]
      %v4359 = vld [vmem:[%s3 + $0x194] sm:$0xf]
      %v4360 = vld [vmem:[%s3 + $0x198] sm:$0xf]
      %v4361 = vld [vmem:[%s3 + $0x19c] sm:$0xf]
      %v4362 = vld [vmem:[%s3 + $0x1a0] sm:$0xf]
      %v4363 = vld [vmem:[%s3 + $0x1a4] sm:$0xf]
      %v4364 = vld [vmem:[%s3 + $0x1a8] sm:$0xf]
      %v4365 = vld [vmem:[%s3 + $0x1ac] sm:$0xf]
      %v4366 = vld [vmem:[%s3 + $0x1b0] sm:$0xf]
      %v4367 = vld [vmem:[%s3 + $0x1b4] sm:$0xf]
      %v4368 = vld [vmem:[%s3 + $0x1b8] sm:$0xf]
      %v4369 = vld [vmem:[%s3 + $0x1bc] sm:$0xf]
      %v4370 = vld [vmem:[%s3 + $0x1c0] sm:$0xf]
      %v4371 = vld [vmem:[%s3 + $0x1c4] sm:$0xf]
      %v4372 = vld [vmem:[%s3 + $0x1c8] sm:$0xf]
      %v4373 = vld [vmem:[%s3 + $0x1cc] sm:$0xf]
      %v4374 = vld [vmem:[%s3 + $0x1d0] sm:$0xf]
      %v4375 = vld [vmem:[%s3 + $0x1d4] sm:$0xf]
      %v4376 = vld [vmem:[%s3 + $0x1d8] sm:$0xf]
      %v4377 = vld [vmem:[%s3 + $0x1dc] sm:$0xf]
      %v4378 = vld [vmem:[%s3 + $0x1e0] sm:$0xf]
      %v4379 = vld [vmem:[%s3 + $0x1e4] sm:$0xf]
      %v4380 = vld [vmem:[%s3 + $0x1e8] sm:$0xf]
      %v4381 = vld [vmem:[%s3 + $0x1ec] sm:$0xf]
      %v4382 = vld [vmem:[%s3 + $0x1f0] sm:$0xf]
      %v4383 = vld [vmem:[%s3 + $0x1f4] sm:$0xf]
      %v4384 = vld [vmem:[%s3 + $0x1f8] sm:$0xf]
      %v4385 = vld [vmem:[%s3 + $0x1fc] sm:$0xf]
      %v4386 = vld [vmem:[%s3 + $0x200] sm:$0xf]
      %v4387 = vld [vmem:[%s3 + $0x204] sm:$0xf]
      %v4388 = vld [vmem:[%s3 + $0x208] sm:$0xf]
      %v4389 = vld [vmem:[%s3 + $0x20c] sm:$0xf]
      %v4390 = vld [vmem:[%s3 + $0x210] sm:$0xf]
      %v4391 = vld [vmem:[%s3 + $0x214] sm:$0xf]
      %v4392 = vld [vmem:[%s3 + $0x218] sm:$0xf]
      %v4393 = vld [vmem:[%s3 + $0x21c] sm:$0xf]
      %v4394 = vld [vmem:[%s3 + $0x220] sm:$0xf]
      %v4395 = vld [vmem:[%s3 + $0x224] sm:$0xf]
      %v4396 = vld [vmem:[%s3 + $0x228] sm:$0xf]
      %v4397 = vld [vmem:[%s3 + $0x22c] sm:$0xf]
      %v4398 = vld [vmem:[%s3 + $0x230] sm:$0xf]
      %v4399 = vld [vmem:[%s3 + $0x234] sm:$0xf]
      %v4400 = vld [vmem:[%s3 + $0x238] sm:$0xf]
      %v4401 = vld [vmem:[%s3 + $0x23c] sm:$0xf]
      %v4402 = vld [vmem:[%s4] sm:$0x1]
      %v4404 = vlaneseq
      %v4405 = vshrl.u32 %v4404, 7
      %v4406 = vsub.s32 0, %v4405
      %v4407 = vrot.slane %v4402, %v4406
      %v4589 = vunpack.c.l.b16 %v4078
      %v4590 = vunpack.c.h.b16 %v4078
      %v4591 = vunpack.c.l.b16 %v4079
      %v4592 = vunpack.c.h.b16 %v4079
      %v4593 = vunpack.c.l.b16 %v4080
      %v4594 = vunpack.c.h.b16 %v4080
      %v4595 = vunpack.c.l.b16 %v4081
      %v4596 = vunpack.c.h.b16 %v4081
      %v4597 = vunpack.c.l.b16 %v4082
      %v4598 = vunpack.c.l.b16 %v4083
      %v4599 = vunpack.c.h.b16 %v4083
      %v4600 = vunpack.c.l.b16 %v4084
      %v4601 = vunpack.c.h.b16 %v4084
      %v4602 = vunpack.c.l.b16 %v4085
      %v4603 = vunpack.c.h.b16 %v4085
      %v4604 = vunpack.c.l.b16 %v4086
      %v4605 = vunpack.c.h.b16 %v4086
      %v4606 = vunpack.c.l.b16 %v4087
      %v4607 = vunpack.c.l.b16 %v4088
      %v4608 = vunpack.c.h.b16 %v4088
      %v4609 = vunpack.c.l.b16 %v4089
      %v4610 = vunpack.c.h.b16 %v4089
      %v4611 = vunpack.c.l.b16 %v4090
      %v4612 = vunpack.c.h.b16 %v4090
      %v4613 = vunpack.c.l.b16 %v4091
      %v4614 = vunpack.c.h.b16 %v4091
      %v4615 = vunpack.c.l.b16 %v4092
      %v4616 = vunpack.c.l.b16 %v4093
      %v4617 = vunpack.c.h.b16 %v4093
      %v4618 = vunpack.c.l.b16 %v4094
      %v4619 = vunpack.c.h.b16 %v4094
      %v4620 = vunpack.c.l.b16 %v4095
      %v4621 = vunpack.c.h.b16 %v4095
      %v4622 = vunpack.c.l.b16 %v4096
      %v4623 = vunpack.c.h.b16 %v4096
      %v4624 = vunpack.c.l.b16 %v4097
      %v4625 = vunpack.c.l.b16 %v4098
      %v4626 = vunpack.c.h.b16 %v4098
      %v4627 = vunpack.c.l.b16 %v4099
      %v4628 = vunpack.c.h.b16 %v4099
      %v4629 = vunpack.c.l.b16 %v4100
      %v4630 = vunpack.c.h.b16 %v4100
      %v4631 = vunpack.c.l.b16 %v4101
      %v4632 = vunpack.c.h.b16 %v4101
      %v4633 = vunpack.c.l.b16 %v4102
      %v4634 = vunpack.c.l.b16 %v4103
      %v4635 = vunpack.c.h.b16 %v4103
      %v4636 = vunpack.c.l.b16 %v4104
      %v4637 = vunpack.c.h.b16 %v4104
      %v4638 = vunpack.c.l.b16 %v4105
      %v4639 = vunpack.c.h.b16 %v4105
      %v4640 = vunpack.c.l.b16 %v4106
      %v4641 = vunpack.c.h.b16 %v4106
      %v4642 = vunpack.c.l.b16 %v4107
      %v4643 = vunpack.c.l.b16 %v4108
      %v4644 = vunpack.c.h.b16 %v4108
      %v4645 = vunpack.c.l.b16 %v4109
      %v4646 = vunpack.c.h.b16 %v4109
      %v4647 = vunpack.c.l.b16 %v4110
      %v4648 = vunpack.c.h.b16 %v4110
      %v4649 = vunpack.c.l.b16 %v4111
      %v4650 = vunpack.c.h.b16 %v4111
      %v4651 = vunpack.c.l.b16 %v4112
      %v4652 = vunpack.c.l.b16 %v4113
      %v4653 = vunpack.c.h.b16 %v4113
      %v4654 = vunpack.c.l.b16 %v4114
      %v4655 = vunpack.c.h.b16 %v4114
      %v4656 = vunpack.c.l.b16 %v4115
      %v4657 = vunpack.c.h.b16 %v4115
      %v4658 = vunpack.c.l.b16 %v4116
      %v4659 = vunpack.c.h.b16 %v4116
      %v4660 = vunpack.c.l.b16 %v4117
      %v4661 = vunpack.c.l.b16 %v4118
      %v4662 = vunpack.c.h.b16 %v4118
      %v4663 = vunpack.c.l.b16 %v4119
      %v4664 = vunpack.c.h.b16 %v4119
      %v4665 = vunpack.c.l.b16 %v4120
      %v4666 = vunpack.c.h.b16 %v4120
      %v4667 = vunpack.c.l.b16 %v4121
      %v4668 = vunpack.c.h.b16 %v4121
      %v4669 = vunpack.c.l.b16 %v4122
      %v4670 = vunpack.c.l.b16 %v4123
      %v4671 = vunpack.c.h.b16 %v4123
      %v4672 = vunpack.c.l.b16 %v4124
      %v4673 = vunpack.c.h.b16 %v4124
      %v4674 = vunpack.c.l.b16 %v4125
      %v4675 = vunpack.c.h.b16 %v4125
      %v4676 = vunpack.c.l.b16 %v4126
      %v4677 = vunpack.c.h.b16 %v4126
      %v4678 = vunpack.c.l.b16 %v4127
      %v4679 = vunpack.c.l.b16 %v4128
      %v4680 = vunpack.c.h.b16 %v4128
      %v4681 = vunpack.c.l.b16 %v4129
      %v4682 = vunpack.c.h.b16 %v4129
      %v4683 = vunpack.c.l.b16 %v4130
      %v4684 = vunpack.c.h.b16 %v4130
      %v4685 = vunpack.c.l.b16 %v4131
      %v4686 = vunpack.c.h.b16 %v4131
      %v4687 = vunpack.c.l.b16 %v4132
      %v4688 = vunpack.c.l.b16 %v4133
      %v4689 = vunpack.c.h.b16 %v4133
      %v4690 = vunpack.c.l.b16 %v4134
      %v4691 = vunpack.c.h.b16 %v4134
      %v4692 = vunpack.c.l.b16 %v4135
      %v4693 = vunpack.c.h.b16 %v4135
      %v4694 = vunpack.c.l.b16 %v4136
      %v4695 = vunpack.c.h.b16 %v4136
      %v4696 = vunpack.c.l.b16 %v4137
      %v4697 = vunpack.c.l.b16 %v4138
      %v4698 = vunpack.c.h.b16 %v4138
      %v4699 = vunpack.c.l.b16 %v4139
      %v4700 = vunpack.c.h.b16 %v4139
      %v4701 = vunpack.c.l.b16 %v4140
      %v4702 = vunpack.c.h.b16 %v4140
      %v4703 = vunpack.c.l.b16 %v4141
      %v4704 = vunpack.c.h.b16 %v4141
      %v4705 = vunpack.c.l.b16 %v4142
      %v4706 = vunpack.c.l.b16 %v4143
      %v4707 = vunpack.c.h.b16 %v4143
      %v4708 = vunpack.c.l.b16 %v4144
      %v4709 = vunpack.c.h.b16 %v4144
      %v4710 = vunpack.c.l.b16 %v4145
      %v4711 = vunpack.c.h.b16 %v4145
      %v4712 = vunpack.c.l.b16 %v4146
      %v4713 = vunpack.c.h.b16 %v4146
      %v4714 = vunpack.c.l.b16 %v4147
      %v4715 = vunpack.c.l.b16 %v4148
      %v4716 = vunpack.c.h.b16 %v4148
      %v4717 = vunpack.c.l.b16 %v4149
      %v4718 = vunpack.c.h.b16 %v4149
      %v4719 = vunpack.c.l.b16 %v4150
      %v4720 = vunpack.c.h.b16 %v4150
      %v4721 = vunpack.c.l.b16 %v4151
      %v4722 = vunpack.c.h.b16 %v4151
      %v4723 = vunpack.c.l.b16 %v4152
      %v4724 = vunpack.c.l.b16 %v4153
      %v4725 = vunpack.c.h.b16 %v4153
      %v4726 = vunpack.c.l.b16 %v4154
      %v4727 = vunpack.c.h.b16 %v4154
      %v4728 = vunpack.c.l.b16 %v4155
      %v4729 = vunpack.c.h.b16 %v4155
      %v4730 = vunpack.c.l.b16 %v4156
      %v4731 = vunpack.c.h.b16 %v4156
      %v4732 = vunpack.c.l.b16 %v4157
      %v4733 = vunpack.c.l.b16 %v4158
      %v4734 = vunpack.c.h.b16 %v4158
      %v4735 = vunpack.c.l.b16 %v4159
      %v4736 = vunpack.c.h.b16 %v4159
      %v4737 = vunpack.c.l.b16 %v4160
      %v4738 = vunpack.c.h.b16 %v4160
      %v4739 = vunpack.c.l.b16 %v4161
      %v4740 = vunpack.c.h.b16 %v4161
      %v4741 = vunpack.c.l.b16 %v4162
      %v4742 = vunpack.c.l.b16 %v4163
      %v4743 = vunpack.c.h.b16 %v4163
      %v4744 = vunpack.c.l.b16 %v4164
      %v4745 = vunpack.c.h.b16 %v4164
      %v4746 = vunpack.c.l.b16 %v4165
      %v4747 = vunpack.c.h.b16 %v4165
      %v4748 = vunpack.c.l.b16 %v4166
      %v4749 = vunpack.c.h.b16 %v4166
      %v4750 = vunpack.c.l.b16 %v4167
      %v4751 = vunpack.c.l.b16 %v4168
      %v4752 = vunpack.c.h.b16 %v4168
      %v4753 = vunpack.c.l.b16 %v4169
      %v4754 = vunpack.c.h.b16 %v4169
      %v4755 = vunpack.c.l.b16 %v4170
      %v4756 = vunpack.c.h.b16 %v4170
      %v4757 = vunpack.c.l.b16 %v4171
      %v4758 = vunpack.c.h.b16 %v4171
      %v4759 = vunpack.c.l.b16 %v4172
      %v4760 = vunpack.c.l.b16 %v4173
      %v4761 = vunpack.c.h.b16 %v4173
      %v4762 = vunpack.c.l.b16 %v4174
      %v4763 = vunpack.c.h.b16 %v4174
      %v4764 = vunpack.c.l.b16 %v4175
      %v4765 = vunpack.c.h.b16 %v4175
      %v4766 = vunpack.c.l.b16 %v4176
      %v4767 = vunpack.c.h.b16 %v4176
      %v4768 = vunpack.c.l.b16 %v4177
      %v4769 = vunpack.c.l.b16 %v4178
      %v4770 = vunpack.c.h.b16 %v4178
      %v4771 = vunpack.c.l.b16 %v4179
      %v4772 = vunpack.c.h.b16 %v4179
      %v4773 = vunpack.c.l.b16 %v4180
      %v4774 = vunpack.c.h.b16 %v4180
      %v4775 = vunpack.c.l.b16 %v4181
      %v4776 = vunpack.c.h.b16 %v4181
      %v4777 = vunpack.c.l.b16 %v4182
      %v4778 = vunpack.c.l.b16 %v4183
      %v4779 = vunpack.c.h.b16 %v4183
      %v4780 = vunpack.c.l.b16 %v4184
      %v4781 = vunpack.c.h.b16 %v4184
      %v4782 = vunpack.c.l.b16 %v4185
      %v4783 = vunpack.c.h.b16 %v4185
      %v4784 = vunpack.c.l.b16 %v4186
      %v4785 = vunpack.c.h.b16 %v4186
      %v4786 = vunpack.c.l.b16 %v4187
      %v4787 = vunpack.c.l.b16 %v4188
      %v4788 = vunpack.c.h.b16 %v4188
      %v4789 = vunpack.c.l.b16 %v4189
      %v4790 = vunpack.c.h.b16 %v4189
      %v4791 = vunpack.c.l.b16 %v4190
      %v4792 = vunpack.c.h.b16 %v4190
      %v4793 = vunpack.c.l.b16 %v4191
      %v4794 = vunpack.c.h.b16 %v4191
      %v4795 = vunpack.c.l.b16 %v4192
      %v4796 = vunpack.c.l.b16 %v4193
      %v4797 = vunpack.c.h.b16 %v4193
      %v4798 = vunpack.c.l.b16 %v4194
      %v4799 = vunpack.c.h.b16 %v4194
      %v4800 = vunpack.c.l.b16 %v4195
      %v4801 = vunpack.c.h.b16 %v4195
      %v4802 = vunpack.c.l.b16 %v4196
      %v4803 = vunpack.c.h.b16 %v4196
      %v4804 = vunpack.c.l.b16 %v4197
      %v4805 = vunpack.c.l.b16 %v4198
      %v4806 = vunpack.c.h.b16 %v4198
      %v4807 = vunpack.c.l.b16 %v4199
      %v4808 = vunpack.c.h.b16 %v4199
      %v4809 = vunpack.c.l.b16 %v4200
      %v4810 = vunpack.c.h.b16 %v4200
      %v4811 = vunpack.c.l.b16 %v4201
      %v4812 = vunpack.c.h.b16 %v4201
      %v4813 = vunpack.c.l.b16 %v4202
      %v4814 = vunpack.c.l.b16 %v4203
      %v4815 = vunpack.c.h.b16 %v4203
      %v4816 = vunpack.c.l.b16 %v4204
      %v4817 = vunpack.c.h.b16 %v4204
      %v4818 = vunpack.c.l.b16 %v4205
      %v4819 = vunpack.c.h.b16 %v4205
      %v4820 = vunpack.c.l.b16 %v4206
      %v4821 = vunpack.c.h.b16 %v4206
      %v4822 = vunpack.c.l.b16 %v4207
      %v4823 = vunpack.c.l.b16 %v4208
      %v4824 = vunpack.c.h.b16 %v4208
      %v4825 = vunpack.c.l.b16 %v4209
      %v4826 = vunpack.c.h.b16 %v4209
      %v4827 = vunpack.c.l.b16 %v4210
      %v4828 = vunpack.c.h.b16 %v4210
      %v4829 = vunpack.c.l.b16 %v4211
      %v4830 = vunpack.c.h.b16 %v4211
      %v4831 = vunpack.c.l.b16 %v4212
      %v4832 = vunpack.c.l.b16 %v4213
      %v4833 = vunpack.c.h.b16 %v4213
      %v4834 = vunpack.c.l.b16 %v4214
      %v4835 = vunpack.c.h.b16 %v4214
      %v4836 = vunpack.c.l.b16 %v4215
      %v4837 = vunpack.c.h.b16 %v4215
      %v4838 = vunpack.c.l.b16 %v4216
      %v4839 = vunpack.c.h.b16 %v4216
      %v4840 = vunpack.c.l.b16 %v4217
      %v4841 = vunpack.c.l.b16 %v4218
      %v4842 = vunpack.c.h.b16 %v4218
      %v4843 = vunpack.c.l.b16 %v4219
      %v4844 = vunpack.c.h.b16 %v4219
      %v4845 = vunpack.c.l.b16 %v4220
      %v4846 = vunpack.c.h.b16 %v4220
      %v4847 = vunpack.c.l.b16 %v4221
      %v4848 = vunpack.c.h.b16 %v4221
      %v4849 = vunpack.c.l.b16 %v4222
      %v4850 = vunpack.c.l.b16 %v4223
      %v4851 = vunpack.c.h.b16 %v4223
      %v4852 = vunpack.c.l.b16 %v4224
      %v4853 = vunpack.c.h.b16 %v4224
      %v4854 = vunpack.c.l.b16 %v4225
      %v4855 = vunpack.c.h.b16 %v4225
      %v4856 = vunpack.c.l.b16 %v4226
      %v4857 = vunpack.c.h.b16 %v4226
      %v4858 = vunpack.c.l.b16 %v4227
      %v4859 = vunpack.c.l.b16 %v4228
      %v4860 = vunpack.c.h.b16 %v4228
      %v4861 = vunpack.c.l.b16 %v4229
      %v4862 = vunpack.c.h.b16 %v4229
      %v4863 = vunpack.c.l.b16 %v4230
      %v4864 = vunpack.c.h.b16 %v4230
      %v4865 = vunpack.c.l.b16 %v4231
      %v4866 = vunpack.c.h.b16 %v4231
      %v4867 = vunpack.c.l.b16 %v4232
      %v4868 = vunpack.c.l.b16 %v4233
      %v4869 = vunpack.c.h.b16 %v4233
      %v4870 = vunpack.c.l.b16 %v4234
      %v4871 = vunpack.c.h.b16 %v4234
      %v4872 = vunpack.c.l.b16 %v4235
      %v4873 = vunpack.c.h.b16 %v4235
      %v4874 = vunpack.c.l.b16 %v4236
      %v4875 = vunpack.c.h.b16 %v4236
      %v4876 = vunpack.c.l.b16 %v4237
      %v4877 = vunpack.c.l.b16 %v4238
      %v4878 = vunpack.c.h.b16 %v4238
      %v4879 = vunpack.c.l.b16 %v4239
      %v4880 = vunpack.c.h.b16 %v4239
      %v4881 = vunpack.c.l.b16 %v4240
      %v4882 = vunpack.c.h.b16 %v4240
      %v4883 = vunpack.c.l.b16 %v4241
      %v4884 = vunpack.c.h.b16 %v4241
      %v4885 = vunpack.c.l.b16 %v4242
      %v4886 = vunpack.c.l.b16 %v4243
      %v4887 = vunpack.c.h.b16 %v4243
      %v4888 = vunpack.c.l.b16 %v4244
      %v4889 = vunpack.c.h.b16 %v4244
      %v4890 = vunpack.c.l.b16 %v4245
      %v4891 = vunpack.c.h.b16 %v4245
      %v4892 = vunpack.c.l.b16 %v4246
      %v4893 = vunpack.c.h.b16 %v4246
      %v4894 = vunpack.c.l.b16 %v4247
      %v4895 = vunpack.c.l.b16 %v4248
      %v4896 = vunpack.c.h.b16 %v4248
      %v4897 = vunpack.c.l.b16 %v4249
      %v4898 = vunpack.c.h.b16 %v4249
      %v4899 = vunpack.c.l.b16 %v4250
      %v4900 = vunpack.c.h.b16 %v4250
      %v4901 = vunpack.c.l.b16 %v4251
      %v4902 = vunpack.c.h.b16 %v4251
      %v4903 = vunpack.c.l.b16 %v4252
      %v4904 = vunpack.c.l.b16 %v4253
      %v4905 = vunpack.c.h.b16 %v4253
      %v4906 = vunpack.c.l.b16 %v4254
      %v4907 = vunpack.c.h.b16 %v4254
      %v4908 = vunpack.c.l.b16 %v4255
      %v4909 = vunpack.c.h.b16 %v4255
      %v4910 = vunpack.c.l.b16 %v4256
      %v4911 = vunpack.c.h.b16 %v4256
      %v4912 = vunpack.c.l.b16 %v4257
      %v4913 = vpack.c.b16 %v4598, %v4589
      %v4914 = vpack.c.b16 %v4599, %v4590
      %v4915 = vpack.c.b16 %v4600, %v4591
      %v4916 = vpack.c.b16 %v4601, %v4592
      %v4917 = vpack.c.b16 %v4602, %v4593
      %v4918 = vpack.c.b16 %v4603, %v4594
      %v4919 = vpack.c.b16 %v4604, %v4595
      %v4920 = vpack.c.b16 %v4605, %v4596
      %v4921 = vpack.c.b16 %v4606, %v4597
      %v4922 = vpack.c.b16 %v4616, %v4607
      %v4923 = vpack.c.b16 %v4617, %v4608
      %v4924 = vpack.c.b16 %v4618, %v4609
      %v4925 = vpack.c.b16 %v4619, %v4610
      %v4926 = vpack.c.b16 %v4620, %v4611
      %v4927 = vpack.c.b16 %v4621, %v4612
      %v4928 = vpack.c.b16 %v4622, %v4613
      %v4929 = vpack.c.b16 %v4623, %v4614
      %v4930 = vpack.c.b16 %v4624, %v4615
      %v4931 = vpack.c.b16 %v4634, %v4625
      %v4932 = vpack.c.b16 %v4635, %v4626
      %v4933 = vpack.c.b16 %v4636, %v4627
      %v4934 = vpack.c.b16 %v4637, %v4628
      %v4935 = vpack.c.b16 %v4638, %v4629
      %v4936 = vpack.c.b16 %v4639, %v4630
      %v4937 = vpack.c.b16 %v4640, %v4631
      %v4938 = vpack.c.b16 %v4641, %v4632
      %v4939 = vpack.c.b16 %v4642, %v4633
      %v4940 = vpack.c.b16 %v4652, %v4643
      %v4941 = vpack.c.b16 %v4653, %v4644
      %v4942 = vpack.c.b16 %v4654, %v4645
      %v4943 = vpack.c.b16 %v4655, %v4646
      %v4944 = vpack.c.b16 %v4656, %v4647
      %v4945 = vpack.c.b16 %v4657, %v4648
      %v4946 = vpack.c.b16 %v4658, %v4649
      %v4947 = vpack.c.b16 %v4659, %v4650
      %v4948 = vpack.c.b16 %v4660, %v4651
      %v4949 = vpack.c.b16 %v4670, %v4661
      %v4950 = vpack.c.b16 %v4671, %v4662
      %v4951 = vpack.c.b16 %v4672, %v4663
      %v4952 = vpack.c.b16 %v4673, %v4664
      %v4953 = vpack.c.b16 %v4674, %v4665
      %v4954 = vpack.c.b16 %v4675, %v4666
      %v4955 = vpack.c.b16 %v4676, %v4667
      %v4956 = vpack.c.b16 %v4677, %v4668
      %v4957 = vpack.c.b16 %v4678, %v4669
      %v4958 = vpack.c.b16 %v4688, %v4679
      %v4959 = vpack.c.b16 %v4689, %v4680
      %v4960 = vpack.c.b16 %v4690, %v4681
      %v4961 = vpack.c.b16 %v4691, %v4682
      %v4962 = vpack.c.b16 %v4692, %v4683
      %v4963 = vpack.c.b16 %v4693, %v4684
      %v4964 = vpack.c.b16 %v4694, %v4685
      %v4965 = vpack.c.b16 %v4695, %v4686
      %v4966 = vpack.c.b16 %v4696, %v4687
      %v4967 = vpack.c.b16 %v4706, %v4697
      %v4968 = vpack.c.b16 %v4707, %v4698
      %v4969 = vpack.c.b16 %v4708, %v4699
      %v4970 = vpack.c.b16 %v4709, %v4700
      %v4971 = vpack.c.b16 %v4710, %v4701
      %v4972 = vpack.c.b16 %v4711, %v4702
      %v4973 = vpack.c.b16 %v4712, %v4703
      %v4974 = vpack.c.b16 %v4713, %v4704
      %v4975 = vpack.c.b16 %v4714, %v4705
      %v4976 = vpack.c.b16 %v4724, %v4715
      %v4977 = vpack.c.b16 %v4725, %v4716
      %v4978 = vpack.c.b16 %v4726, %v4717
      %v4979 = vpack.c.b16 %v4727, %v4718
      %v4980 = vpack.c.b16 %v4728, %v4719
      %v4981 = vpack.c.b16 %v4729, %v4720
      %v4982 = vpack.c.b16 %v4730, %v4721
      %v4983 = vpack.c.b16 %v4731, %v4722
      %v4984 = vpack.c.b16 %v4732, %v4723
      %v4985 = vpack.c.b16 %v4742, %v4733
      %v4986 = vpack.c.b16 %v4743, %v4734
      %v4987 = vpack.c.b16 %v4744, %v4735
      %v4988 = vpack.c.b16 %v4745, %v4736
      %v4989 = vpack.c.b16 %v4746, %v4737
      %v4990 = vpack.c.b16 %v4747, %v4738
      %v4991 = vpack.c.b16 %v4748, %v4739
      %v4992 = vpack.c.b16 %v4749, %v4740
      %v4993 = vpack.c.b16 %v4750, %v4741
      %v4994 = vpack.c.b16 %v4760, %v4751
      %v4995 = vpack.c.b16 %v4761, %v4752
      %v4996 = vpack.c.b16 %v4762, %v4753
      %v4997 = vpack.c.b16 %v4763, %v4754
      %v4998 = vpack.c.b16 %v4764, %v4755
      %v4999 = vpack.c.b16 %v4765, %v4756
      %v5000 = vpack.c.b16 %v4766, %v4757
      %v5001 = vpack.c.b16 %v4767, %v4758
      %v5002 = vpack.c.b16 %v4768, %v4759
      %v5003 = vpack.c.b16 %v4778, %v4769
      %v5004 = vpack.c.b16 %v4779, %v4770
      %v5005 = vpack.c.b16 %v4780, %v4771
      %v5006 = vpack.c.b16 %v4781, %v4772
      %v5007 = vpack.c.b16 %v4782, %v4773
      %v5008 = vpack.c.b16 %v4783, %v4774
      %v5009 = vpack.c.b16 %v4784, %v4775
      %v5010 = vpack.c.b16 %v4785, %v4776
      %v5011 = vpack.c.b16 %v4786, %v4777
      %v5012 = vpack.c.b16 %v4796, %v4787
      %v5013 = vpack.c.b16 %v4797, %v4788
      %v5014 = vpack.c.b16 %v4798, %v4789
      %v5015 = vpack.c.b16 %v4799, %v4790
      %v5016 = vpack.c.b16 %v4800, %v4791
      %v5017 = vpack.c.b16 %v4801, %v4792
      %v5018 = vpack.c.b16 %v4802, %v4793
      %v5019 = vpack.c.b16 %v4803, %v4794
      %v5020 = vpack.c.b16 %v4804, %v4795
      %v5021 = vpack.c.b16 %v4814, %v4805
      %v5022 = vpack.c.b16 %v4815, %v4806
      %v5023 = vpack.c.b16 %v4816, %v4807
      %v5024 = vpack.c.b16 %v4817, %v4808
      %v5025 = vpack.c.b16 %v4818, %v4809
      %v5026 = vpack.c.b16 %v4819, %v4810
      %v5027 = vpack.c.b16 %v4820, %v4811
      %v5028 = vpack.c.b16 %v4821, %v4812
      %v5029 = vpack.c.b16 %v4822, %v4813
      %v5030 = vpack.c.b16 %v4832, %v4823
      %v5031 = vpack.c.b16 %v4833, %v4824
      %v5032 = vpack.c.b16 %v4834, %v4825
      %v5033 = vpack.c.b16 %v4835, %v4826
      %v5034 = vpack.c.b16 %v4836, %v4827
      %v5035 = vpack.c.b16 %v4837, %v4828
      %v5036 = vpack.c.b16 %v4838, %v4829
      %v5037 = vpack.c.b16 %v4839, %v4830
      %v5038 = vpack.c.b16 %v4840, %v4831
      %v5039 = vpack.c.b16 %v4850, %v4841
      %v5040 = vpack.c.b16 %v4851, %v4842
      %v5041 = vpack.c.b16 %v4852, %v4843
      %v5042 = vpack.c.b16 %v4853, %v4844
      %v5043 = vpack.c.b16 %v4854, %v4845
      %v5044 = vpack.c.b16 %v4855, %v4846
      %v5045 = vpack.c.b16 %v4856, %v4847
      %v5046 = vpack.c.b16 %v4857, %v4848
      %v5047 = vpack.c.b16 %v4858, %v4849
      %v5048 = vpack.c.b16 %v4868, %v4859
      %v5049 = vpack.c.b16 %v4869, %v4860
      %v5050 = vpack.c.b16 %v4870, %v4861
      %v5051 = vpack.c.b16 %v4871, %v4862
      %v5052 = vpack.c.b16 %v4872, %v4863
      %v5053 = vpack.c.b16 %v4873, %v4864
      %v5054 = vpack.c.b16 %v4874, %v4865
      %v5055 = vpack.c.b16 %v4875, %v4866
      %v5056 = vpack.c.b16 %v4876, %v4867
      %v5057 = vpack.c.b16 %v4886, %v4877
      %v5058 = vpack.c.b16 %v4887, %v4878
      %v5059 = vpack.c.b16 %v4888, %v4879
      %v5060 = vpack.c.b16 %v4889, %v4880
      %v5061 = vpack.c.b16 %v4890, %v4881
      %v5062 = vpack.c.b16 %v4891, %v4882
      %v5063 = vpack.c.b16 %v4892, %v4883
      %v5064 = vpack.c.b16 %v4893, %v4884
      %v5065 = vpack.c.b16 %v4894, %v4885
      %v5066 = vpack.c.b16 %v4904, %v4895
      %v5067 = vpack.c.b16 %v4905, %v4896
      %v5068 = vpack.c.b16 %v4906, %v4897
      %v5069 = vpack.c.b16 %v4907, %v4898
      %v5070 = vpack.c.b16 %v4908, %v4899
      %v5071 = vpack.c.b16 %v4909, %v4900
      %v5072 = vpack.c.b16 %v4910, %v4901
      %v5073 = vpack.c.b16 %v4911, %v4902
      %v5074 = vpack.c.b16 %v4912, %v4903
      %v5381 = vunpack.c.l.b16 %v4258
      %v5382 = vunpack.c.l.b16 %v4259
      %v5383 = vunpack.c.l.b16 %v4260
      %v5384 = vunpack.c.l.b16 %v4261
      %v5385 = vunpack.c.l.b16 %v4262
      %v5386 = vunpack.c.l.b16 %v4263
      %v5387 = vunpack.c.l.b16 %v4264
      %v5388 = vunpack.c.l.b16 %v4265
      %v5389 = vunpack.c.l.b16 %v4266
      %v5390 = vunpack.c.l.b16 %v4267
      %v5391 = vunpack.c.l.b16 %v4268
      %v5392 = vunpack.c.l.b16 %v4269
      %v5393 = vunpack.c.l.b16 %v4270
      %v5394 = vunpack.c.l.b16 %v4271
      %v5395 = vunpack.c.l.b16 %v4272
      %v5396 = vunpack.c.l.b16 %v4273
      %v5397 = vunpack.c.l.b16 %v4274
      %v5398 = vunpack.c.l.b16 %v4275
      %v5399 = vunpack.c.l.b16 %v4276
      %v5400 = vunpack.c.l.b16 %v4277
      %v5401 = vunpack.c.l.b16 %v4278
      %v5402 = vunpack.c.l.b16 %v4279
      %v5403 = vunpack.c.l.b16 %v4280
      %v5404 = vunpack.c.l.b16 %v4281
      %v5405 = vunpack.c.l.b16 %v4282
      %v5406 = vunpack.c.l.b16 %v4283
      %v5407 = vunpack.c.l.b16 %v4284
      %v5408 = vunpack.c.l.b16 %v4285
      %v5409 = vunpack.c.l.b16 %v4286
      %v5410 = vunpack.c.l.b16 %v4287
      %v5411 = vunpack.c.l.b16 %v4288
      %v5412 = vunpack.c.l.b16 %v4289
      %v5413 = vunpack.c.l.b16 %v4290
      %v5414 = vunpack.c.l.b16 %v4291
      %v5415 = vunpack.c.l.b16 %v4292
      %v5416 = vunpack.c.l.b16 %v4293
      %v5417 = vunpack.c.l.b16 %v4294
      %v5418 = vunpack.c.l.b16 %v4295
      %v5419 = vunpack.c.l.b16 %v4296
      %v5420 = vunpack.c.l.b16 %v4297
      %v5421 = vunpack.c.l.b16 %v4298
      %v5422 = vunpack.c.l.b16 %v4299
      %v5423 = vunpack.c.l.b16 %v4300
      %v5424 = vunpack.c.l.b16 %v4301
      %v5425 = vunpack.c.l.b16 %v4302
      %v5426 = vunpack.c.l.b16 %v4303
      %v5427 = vunpack.c.l.b16 %v4304
      %v5428 = vunpack.c.l.b16 %v4305
      %v5429 = vunpack.c.l.b16 %v4306
      %v5430 = vunpack.c.l.b16 %v4307
      %v5431 = vunpack.c.l.b16 %v4308
      %v5432 = vunpack.c.l.b16 %v4309
      %v5433 = vunpack.c.l.b16 %v4310
      %v5434 = vunpack.c.l.b16 %v4311
      %v5435 = vunpack.c.l.b16 %v4312
      %v5436 = vunpack.c.l.b16 %v4313
      %v5437 = vunpack.c.l.b16 %v4314
      %v5438 = vunpack.c.l.b16 %v4315
      %v5439 = vunpack.c.l.b16 %v4316
      %v5440 = vunpack.c.l.b16 %v4317
      %v5441 = vunpack.c.l.b16 %v4318
      %v5442 = vunpack.c.l.b16 %v4319
      %v5443 = vunpack.c.l.b16 %v4320
      %v5444 = vunpack.c.l.b16 %v4321
      %v5445 = vunpack.c.l.b16 %v4322
      %v5446 = vunpack.c.l.b16 %v4323
      %v5447 = vunpack.c.l.b16 %v4324
      %v5448 = vunpack.c.l.b16 %v4325
      %v5449 = vunpack.c.l.b16 %v4326
      %v5450 = vunpack.c.l.b16 %v4327
      %v5451 = vunpack.c.l.b16 %v4328
      %v5452 = vunpack.c.l.b16 %v4329
      %v5453 = vunpack.c.l.b16 %v4330
      %v5454 = vunpack.c.l.b16 %v4331
      %v5455 = vunpack.c.l.b16 %v4332
      %v5456 = vunpack.c.l.b16 %v4333
      %v5457 = vunpack.c.l.b16 %v4334
      %v5458 = vunpack.c.l.b16 %v4335
      %v5459 = vunpack.c.l.b16 %v4336
      %v5460 = vunpack.c.l.b16 %v4337
      %v5461 = vunpack.c.l.b16 %v4338
      %v5462 = vunpack.c.l.b16 %v4339
      %v5463 = vunpack.c.l.b16 %v4340
      %v5464 = vunpack.c.l.b16 %v4341
      %v5465 = vunpack.c.l.b16 %v4342
      %v5466 = vunpack.c.l.b16 %v4343
      %v5467 = vunpack.c.l.b16 %v4344
      %v5468 = vunpack.c.l.b16 %v4345
      %v5469 = vunpack.c.l.b16 %v4346
      %v5470 = vunpack.c.l.b16 %v4347
      %v5471 = vunpack.c.l.b16 %v4348
      %v5472 = vunpack.c.l.b16 %v4349
      %v5473 = vunpack.c.l.b16 %v4350
      %v5474 = vunpack.c.l.b16 %v4351
      %v5475 = vunpack.c.l.b16 %v4352
      %v5476 = vunpack.c.l.b16 %v4353
      %v5477 = vunpack.c.l.b16 %v4354
      %v5478 = vunpack.c.l.b16 %v4355
      %v5479 = vunpack.c.l.b16 %v4356
      %v5480 = vunpack.c.l.b16 %v4357
      %v5481 = vunpack.c.l.b16 %v4358
      %v5482 = vunpack.c.l.b16 %v4359
      %v5483 = vunpack.c.l.b16 %v4360
      %v5484 = vunpack.c.l.b16 %v4361
      %v5485 = vunpack.c.l.b16 %v4362
      %v5486 = vunpack.c.l.b16 %v4363
      %v5487 = vunpack.c.l.b16 %v4364
      %v5488 = vunpack.c.l.b16 %v4365
      %v5489 = vunpack.c.l.b16 %v4366
      %v5490 = vunpack.c.l.b16 %v4367
      %v5491 = vunpack.c.l.b16 %v4368
      %v5492 = vunpack.c.l.b16 %v4369
      %v5493 = vunpack.c.l.b16 %v4370
      %v5494 = vunpack.c.l.b16 %v4371
      %v5495 = vunpack.c.l.b16 %v4372
      %v5496 = vunpack.c.l.b16 %v4373
      %v5497 = vunpack.c.l.b16 %v4374
      %v5498 = vunpack.c.l.b16 %v4375
      %v5499 = vunpack.c.l.b16 %v4376
      %v5500 = vunpack.c.l.b16 %v4377
      %v5501 = vunpack.c.l.b16 %v4378
      %v5502 = vunpack.c.l.b16 %v4379
      %v5503 = vunpack.c.l.b16 %v4380
      %v5504 = vunpack.c.l.b16 %v4381
      %v5505 = vunpack.c.l.b16 %v4382
      %v5506 = vunpack.c.l.b16 %v4383
      %v5507 = vunpack.c.l.b16 %v4384
      %v5508 = vunpack.c.l.b16 %v4385
      %v5509 = vunpack.c.l.b16 %v4386
      %v5510 = vunpack.c.l.b16 %v4387
      %v5511 = vunpack.c.l.b16 %v4388
      %v5512 = vunpack.c.l.b16 %v4389
      %v5513 = vunpack.c.l.b16 %v4390
      %v5514 = vunpack.c.l.b16 %v4391
      %v5515 = vunpack.c.l.b16 %v4392
      %v5516 = vunpack.c.l.b16 %v4393
      %v5517 = vunpack.c.l.b16 %v4394
      %v5518 = vunpack.c.l.b16 %v4395
      %v5519 = vunpack.c.l.b16 %v4396
      %v5520 = vunpack.c.l.b16 %v4397
      %v5521 = vunpack.c.l.b16 %v4398
      %v5522 = vunpack.c.l.b16 %v4399
      %v5523 = vunpack.c.l.b16 %v4400
      %v5524 = vunpack.c.l.b16 %v4401
      %v5525 = vpack.c.b16 %v5382, %v5381
      %v5526 = vpack.c.b16 %v5384, %v5383
      %v5527 = vpack.c.b16 %v5386, %v5385
      %v5528 = vpack.c.b16 %v5388, %v5387
      %v5529 = vpack.c.b16 %v5390, %v5389
      %v5530 = vpack.c.b16 %v5392, %v5391
      %v5531 = vpack.c.b16 %v5394, %v5393
      %v5532 = vpack.c.b16 %v5396, %v5395
      %v5533 = vpack.c.b16 %v5398, %v5397
      %v5534 = vpack.c.b16 %v5400, %v5399
      %v5535 = vpack.c.b16 %v5402, %v5401
      %v5536 = vpack.c.b16 %v5404, %v5403
      %v5537 = vpack.c.b16 %v5406, %v5405
      %v5538 = vpack.c.b16 %v5408, %v5407
      %v5539 = vpack.c.b16 %v5410, %v5409
      %v5540 = vpack.c.b16 %v5412, %v5411
      %v5541 = vpack.c.b16 %v5414, %v5413
      %v5542 = vpack.c.b16 %v5416, %v5415
      %v5543 = vpack.c.b16 %v5418, %v5417
      %v5544 = vpack.c.b16 %v5420, %v5419
      %v5545 = vpack.c.b16 %v5422, %v5421
      %v5546 = vpack.c.b16 %v5424, %v5423
      %v5547 = vpack.c.b16 %v5426, %v5425
      %v5548 = vpack.c.b16 %v5428, %v5427
      %v5549 = vpack.c.b16 %v5430, %v5429
      %v5550 = vpack.c.b16 %v5432, %v5431
      %v5551 = vpack.c.b16 %v5434, %v5433
      %v5552 = vpack.c.b16 %v5436, %v5435
      %v5553 = vpack.c.b16 %v5438, %v5437
      %v5554 = vpack.c.b16 %v5440, %v5439
      %v5555 = vpack.c.b16 %v5442, %v5441
      %v5556 = vpack.c.b16 %v5444, %v5443
      %v5557 = vpack.c.b16 %v5446, %v5445
      %v5558 = vpack.c.b16 %v5448, %v5447
      %v5559 = vpack.c.b16 %v5450, %v5449
      %v5560 = vpack.c.b16 %v5452, %v5451
      %v5561 = vpack.c.b16 %v5454, %v5453
      %v5562 = vpack.c.b16 %v5456, %v5455
      %v5563 = vpack.c.b16 %v5458, %v5457
      %v5564 = vpack.c.b16 %v5460, %v5459
      %v5565 = vpack.c.b16 %v5462, %v5461
      %v5566 = vpack.c.b16 %v5464, %v5463
      %v5567 = vpack.c.b16 %v5466, %v5465
      %v5568 = vpack.c.b16 %v5468, %v5467
      %v5569 = vpack.c.b16 %v5470, %v5469
      %v5570 = vpack.c.b16 %v5472, %v5471
      %v5571 = vpack.c.b16 %v5474, %v5473
      %v5572 = vpack.c.b16 %v5476, %v5475
      %v5573 = vpack.c.b16 %v5478, %v5477
      %v5574 = vpack.c.b16 %v5480, %v5479
      %v5575 = vpack.c.b16 %v5482, %v5481
      %v5576 = vpack.c.b16 %v5484, %v5483
      %v5577 = vpack.c.b16 %v5486, %v5485
      %v5578 = vpack.c.b16 %v5488, %v5487
      %v5579 = vpack.c.b16 %v5490, %v5489
      %v5580 = vpack.c.b16 %v5492, %v5491
      %v5581 = vpack.c.b16 %v5494, %v5493
      %v5582 = vpack.c.b16 %v5496, %v5495
      %v5583 = vpack.c.b16 %v5498, %v5497
      %v5584 = vpack.c.b16 %v5500, %v5499
      %v5585 = vpack.c.b16 %v5502, %v5501
      %v5586 = vpack.c.b16 %v5504, %v5503
      %v5587 = vpack.c.b16 %v5506, %v5505
      %v5588 = vpack.c.b16 %v5508, %v5507
      %v5589 = vpack.c.b16 %v5510, %v5509
      %v5590 = vpack.c.b16 %v5512, %v5511
      %v5591 = vpack.c.b16 %v5514, %v5513
      %v5592 = vpack.c.b16 %v5516, %v5515
      %v5593 = vpack.c.b16 %v5518, %v5517
      %v5594 = vpack.c.b16 %v5520, %v5519
      %v5595 = vpack.c.b16 %v5522, %v5521
      %v5596 = vpack.c.b16 %v5524, %v5523
      %5669 = vmatprep.subr.bf16.mxu0 0
      %5670 = vmatpush1.bf16.msra.mxu0 %v5532
      %5671 = vmatprep.subr.bf16.mxu0 0
      %5672 = vmatpush1.bf16.msra.mxu0 %v5531
      %5673 = vmatprep.subr.bf16.mxu0 0
      %5674 = vmatpush1.bf16.msra.mxu0 %v5530
      %5675 = vmatprep.subr.bf16.mxu0 0
      %5676 = vmatpush1.bf16.msra.mxu0 %v5529
      %5677 = vmatprep.subr.bf16.mxu0 0
      %5678 = vmatpush1.bf16.msra.mxu0 %v5528
      %5679 = vmatprep.subr.bf16.mxu0 0
      %5680 = vmatpush1.bf16.msra.mxu0 %v5527
      %5681 = vmatprep.subr.bf16.mxu0 0
      %5682 = vmatpush1.bf16.msra.mxu0 %v5526
      %5683 = vmatprep.subr.bf16.mxu0 0
      %5684 = vmatpush1.bf16.msra.mxu0 %v5525
      %5685 = vmatprep.subr.bf16.mxu0 0
      %5686 = vmatpush2.bf16.msra.mxu0 %v5540
      %5687 = vmatprep.subr.bf16.mxu0 0
      %5688 = vmatpush2.bf16.msra.mxu0 %v5539
      %5689 = vmatprep.subr.bf16.mxu0 0
      %5690 = vmatpush2.bf16.msra.mxu0 %v5538
      %5691 = vmatprep.subr.bf16.mxu0 0
      %5692 = vmatpush2.bf16.msra.mxu0 %v5537
      %5693 = vmatprep.subr.bf16.mxu0 0
      %5694 = vmatpush2.bf16.msra.mxu0 %v5536
      %5695 = vmatprep.subr.bf16.mxu0 0
      %5696 = vmatpush2.bf16.msra.mxu0 %v5535
      %5697 = vmatprep.subr.bf16.mxu0 0
      %5698 = vmatpush2.bf16.msra.mxu0 %v5534
      %5699 = vmatprep.subr.bf16.mxu0 0
      %5700 = vmatpush2.bf16.msra.mxu0 %v5533
      %5701 = vmatprep.mubr.bf16.mxu0 %v4914
      %5702 = vmatmul.mubr.bf16.gmra.mxu0 %v4913
      %v5703 = vpop.f32.mrf.mxu0
      %v5704 = vadd.f32 %v4407, %v5703
      %v5705 = vpop.f32.mrf.mxu0
      %v5706 = vpop.f32.mrf.mxu0
      %v5707 = vadd.f32 %v4407, %v5706
      %v5708 = vpop.f32.mrf.mxu0
      %5709 = vmatprep.mubr.bf16.mxu0 %v4923
      %5710 = vmatmul.mubr.bf16.gmra.mxu0 %v4922
      %v5711 = vpop.f32.mrf.mxu0
      %v5712 = vadd.f32 %v4407, %v5711
      %v5713 = vpop.f32.mrf.mxu0
      %v5714 = vpop.f32.mrf.mxu0
      %v5715 = vadd.f32 %v4407, %v5714
      %v5716 = vpop.f32.mrf.mxu0
      %5717 = vmatprep.mubr.bf16.mxu0 %v4932
      %5718 = vmatmul.mubr.bf16.gmra.mxu0 %v4931
      %v5719 = vpop.f32.mrf.mxu0
      %v5720 = vadd.f32 %v4407, %v5719
      %v5721 = vpop.f32.mrf.mxu0
      %v5722 = vpop.f32.mrf.mxu0
      %v5723 = vadd.f32 %v4407, %v5722
      %v5724 = vpop.f32.mrf.mxu0
      %5725 = vmatprep.mubr.bf16.mxu0 %v4941
      %5726 = vmatmul.mubr.bf16.gmra.mxu0 %v4940
      %v5727 = vpop.f32.mrf.mxu0
      %v5728 = vadd.f32 %v4407, %v5727
      %v5729 = vpop.f32.mrf.mxu0
      %v5730 = vpop.f32.mrf.mxu0
      %v5731 = vadd.f32 %v4407, %v5730
      %v5732 = vpop.f32.mrf.mxu0
      %5733 = vmatprep.mubr.bf16.mxu0 %v4950
      %5734 = vmatmul.mubr.bf16.gmra.mxu0 %v4949
      %v5735 = vpop.f32.mrf.mxu0
      %v5736 = vadd.f32 %v4407, %v5735
      %v5737 = vpop.f32.mrf.mxu0
      %v5738 = vpop.f32.mrf.mxu0
      %v5739 = vadd.f32 %v4407, %v5738
      %v5740 = vpop.f32.mrf.mxu0
      %5741 = vmatprep.mubr.bf16.mxu0 %v4959
      %5742 = vmatmul.mubr.bf16.gmra.mxu0 %v4958
      %v5743 = vpop.f32.mrf.mxu0
      %v5744 = vadd.f32 %v4407, %v5743
      %v5745 = vpop.f32.mrf.mxu0
      %v5746 = vpop.f32.mrf.mxu0
      %v5747 = vadd.f32 %v4407, %v5746
      %v5748 = vpop.f32.mrf.mxu0
      %5749 = vmatprep.mubr.bf16.mxu0 %v4968
      %5750 = vmatmul.mubr.bf16.gmra.mxu0 %v4967
      %v5751 = vpop.f32.mrf.mxu0
      %v5752 = vadd.f32 %v4407, %v5751
      %v5753 = vpop.f32.mrf.mxu0
      %v5754 = vpop.f32.mrf.mxu0
      %v5755 = vadd.f32 %v4407, %v5754
      %v5756 = vpop.f32.mrf.mxu0
      %5757 = vmatprep.mubr.bf16.mxu0 %v4977
      %5758 = vmatmul.mubr.bf16.gmra.mxu0 %v4976
      %v5759 = vpop.f32.mrf.mxu0
      %v5760 = vadd.f32 %v4407, %v5759
      %v5761 = vpop.f32.mrf.mxu0
      %v5762 = vpop.f32.mrf.mxu0
      %v5763 = vadd.f32 %v4407, %v5762
      %v5764 = vpop.f32.mrf.mxu0
      %5765 = vmatprep.mubr.bf16.mxu0 %v4986
      %5766 = vmatmul.mubr.bf16.gmra.mxu0 %v4985
      %v5767 = vpop.f32.mrf.mxu0
      %v5768 = vadd.f32 %v4407, %v5767
      %v5769 = vpop.f32.mrf.mxu0
      %v5770 = vpop.f32.mrf.mxu0
      %v5771 = vadd.f32 %v4407, %v5770
      %v5772 = vpop.f32.mrf.mxu0
      %5773 = vmatprep.mubr.bf16.mxu0 %v4995
      %5774 = vmatmul.mubr.bf16.gmra.mxu0 %v4994
      %v5775 = vpop.f32.mrf.mxu0
      %v5776 = vadd.f32 %v4407, %v5775
      %v5777 = vpop.f32.mrf.mxu0
      %v5778 = vpop.f32.mrf.mxu0
      %v5779 = vadd.f32 %v4407, %v5778
      %v5780 = vpop.f32.mrf.mxu0
      %5781 = vmatprep.mubr.bf16.mxu0 %v5004
      %5782 = vmatmul.mubr.bf16.gmra.mxu0 %v5003
      %v5783 = vpop.f32.mrf.mxu0
      %v5784 = vadd.f32 %v4407, %v5783
      %v5785 = vpop.f32.mrf.mxu0
      %v5786 = vpop.f32.mrf.mxu0
      %v5787 = vadd.f32 %v4407, %v5786
      %v5788 = vpop.f32.mrf.mxu0
      %5789 = vmatprep.mubr.bf16.mxu0 %v5013
      %5790 = vmatmul.mubr.bf16.gmra.mxu0 %v5012
      %v5791 = vpop.f32.mrf.mxu0
      %v5792 = vadd.f32 %v4407, %v5791
      %v5793 = vpop.f32.mrf.mxu0
      %v5794 = vpop.f32.mrf.mxu0
      %v5795 = vadd.f32 %v4407, %v5794
      %v5796 = vpop.f32.mrf.mxu0
      %5797 = vmatprep.mubr.bf16.mxu0 %v5022
      %5798 = vmatmul.mubr.bf16.gmra.mxu0 %v5021
      %v5799 = vpop.f32.mrf.mxu0
      %v5800 = vadd.f32 %v4407, %v5799
      %v5801 = vpop.f32.mrf.mxu0
      %v5802 = vpop.f32.mrf.mxu0
      %v5803 = vadd.f32 %v4407, %v5802
      %v5804 = vpop.f32.mrf.mxu0
      %5805 = vmatprep.mubr.bf16.mxu0 %v5031
      %5806 = vmatmul.mubr.bf16.gmra.mxu0 %v5030
      %v5807 = vpop.f32.mrf.mxu0
      %v5808 = vadd.f32 %v4407, %v5807
      %v5809 = vpop.f32.mrf.mxu0
      %v5810 = vpop.f32.mrf.mxu0
      %v5811 = vadd.f32 %v4407, %v5810
      %v5812 = vpop.f32.mrf.mxu0
      %5813 = vmatprep.mubr.bf16.mxu0 %v5040
      %5814 = vmatmul.mubr.bf16.gmra.mxu0 %v5039
      %v5815 = vpop.f32.mrf.mxu0
      %v5816 = vadd.f32 %v4407, %v5815
      %v5817 = vpop.f32.mrf.mxu0
      %v5818 = vpop.f32.mrf.mxu0
      %v5819 = vadd.f32 %v4407, %v5818
      %v5820 = vpop.f32.mrf.mxu0
      %5821 = vmatprep.mubr.bf16.mxu0 %v5049
      %5822 = vmatmul.mubr.bf16.gmra.mxu0 %v5048
      %v5823 = vpop.f32.mrf.mxu0
      %v5824 = vadd.f32 %v4407, %v5823
      %v5825 = vpop.f32.mrf.mxu0
      %v5826 = vpop.f32.mrf.mxu0
      %v5827 = vadd.f32 %v4407, %v5826
      %v5828 = vpop.f32.mrf.mxu0
      %5829 = vmatprep.mubr.bf16.mxu0 %v5058
      %5830 = vmatmul.mubr.bf16.gmra.mxu0 %v5057
      %v5831 = vpop.f32.mrf.mxu0
      %v5832 = vadd.f32 %v4407, %v5831
      %v5833 = vpop.f32.mrf.mxu0
      %v5834 = vpop.f32.mrf.mxu0
      %v5835 = vadd.f32 %v4407, %v5834
      %v5836 = vpop.f32.mrf.mxu0
      %5837 = vmatprep.mubr.bf16.mxu0 %v5067
      %5838 = vmatmul.mubr.bf16.gmra.mxu0 %v5066
      %v5839 = vpop.f32.mrf.mxu0
      %v5840 = vadd.f32 %v4407, %v5839
      %v5841 = vpop.f32.mrf.mxu0
      %v5842 = vpop.f32.mrf.mxu0
      %v5843 = vadd.f32 %v4407, %v5842
      %v5844 = vpop.f32.mrf.mxu0
      %5845 = vdwg.mxu0
      %5846 = vmatprep.subr.bf16.mxu0 0
      %5847 = vmatpush1.bf16.msra.mxu0 %v5548
      %5848 = vmatprep.subr.bf16.mxu0 0
      %5849 = vmatpush1.bf16.msra.mxu0 %v5547
      %5850 = vmatprep.subr.bf16.mxu0 0
      %5851 = vmatpush1.bf16.msra.mxu0 %v5546
      %5852 = vmatprep.subr.bf16.mxu0 0
      %5853 = vmatpush1.bf16.msra.mxu0 %v5545
      %5854 = vmatprep.subr.bf16.mxu0 0
      %5855 = vmatpush1.bf16.msra.mxu0 %v5544
      %5856 = vmatprep.subr.bf16.mxu0 0
      %5857 = vmatpush1.bf16.msra.mxu0 %v5543
      %5858 = vmatprep.subr.bf16.mxu0 0
      %5859 = vmatpush1.bf16.msra.mxu0 %v5542
      %5860 = vmatprep.subr.bf16.mxu0 0
      %5861 = vmatpush1.bf16.msra.mxu0 %v5541
      %5862 = vmatprep.subr.bf16.mxu0 0
      %5863 = vmatpush2.bf16.msra.mxu0 %v5556
      %5864 = vmatprep.subr.bf16.mxu0 0
      %5865 = vmatpush2.bf16.msra.mxu0 %v5555
      %5866 = vmatprep.subr.bf16.mxu0 0
      %5867 = vmatpush2.bf16.msra.mxu0 %v5554
      %5868 = vmatprep.subr.bf16.mxu0 0
      %5869 = vmatpush2.bf16.msra.mxu0 %v5553
      %5870 = vmatprep.subr.bf16.mxu0 0
      %5871 = vmatpush2.bf16.msra.mxu0 %v5552
      %5872 = vmatprep.subr.bf16.mxu0 0
      %5873 = vmatpush2.bf16.msra.mxu0 %v5551
      %5874 = vmatprep.subr.bf16.mxu0 0
      %5875 = vmatpush2.bf16.msra.mxu0 %v5550
      %5876 = vmatprep.subr.bf16.mxu0 0
      %5877 = vmatpush2.bf16.msra.mxu0 %v5549
      %5878 = vmatprep.mubr.bf16.mxu0 %v4916
      %5879 = vmatmul.mubr.bf16.gmra.mxu0 %v4915
      %v5880 = vpop.f32.mrf.mxu0
      %v5881 = vadd.f32 %v5704, %v5880
      %v5882 = vpop.f32.mrf.mxu0
      %v5883 = vpop.f32.mrf.mxu0
      %v5884 = vadd.f32 %v5707, %v5883
      %v5885 = vpop.f32.mrf.mxu0
      %5886 = vmatprep.mubr.bf16.mxu0 %v4925
      %5887 = vmatmul.mubr.bf16.gmra.mxu0 %v4924
      %v5888 = vpop.f32.mrf.mxu0
      %v5889 = vadd.f32 %v5712, %v5888
      %v5890 = vpop.f32.mrf.mxu0
      %v5891 = vpop.f32.mrf.mxu0
      %v5892 = vadd.f32 %v5715, %v5891
      %v5893 = vpop.f32.mrf.mxu0
      %5894 = vmatprep.mubr.bf16.mxu0 %v4934
      %5895 = vmatmul.mubr.bf16.gmra.mxu0 %v4933
      %v5896 = vpop.f32.mrf.mxu0
      %v5897 = vadd.f32 %v5720, %v5896
      %v5898 = vpop.f32.mrf.mxu0
      %v5899 = vpop.f32.mrf.mxu0
      %v5900 = vadd.f32 %v5723, %v5899
      %v5901 = vpop.f32.mrf.mxu0
      %5902 = vmatprep.mubr.bf16.mxu0 %v4943
      %5903 = vmatmul.mubr.bf16.gmra.mxu0 %v4942
      %v5904 = vpop.f32.mrf.mxu0
      %v5905 = vadd.f32 %v5728, %v5904
      %v5906 = vpop.f32.mrf.mxu0
      %v5907 = vpop.f32.mrf.mxu0
      %v5908 = vadd.f32 %v5731, %v5907
      %v5909 = vpop.f32.mrf.mxu0
      %5910 = vmatprep.mubr.bf16.mxu0 %v4952
      %5911 = vmatmul.mubr.bf16.gmra.mxu0 %v4951
      %v5912 = vpop.f32.mrf.mxu0
      %v5913 = vadd.f32 %v5736, %v5912
      %v5914 = vpop.f32.mrf.mxu0
      %v5915 = vpop.f32.mrf.mxu0
      %v5916 = vadd.f32 %v5739, %v5915
      %v5917 = vpop.f32.mrf.mxu0
      %5918 = vmatprep.mubr.bf16.mxu0 %v4961
      %5919 = vmatmul.mubr.bf16.gmra.mxu0 %v4960
      %v5920 = vpop.f32.mrf.mxu0
      %v5921 = vadd.f32 %v5744, %v5920
      %v5922 = vpop.f32.mrf.mxu0
      %v5923 = vpop.f32.mrf.mxu0
      %v5924 = vadd.f32 %v5747, %v5923
      %v5925 = vpop.f32.mrf.mxu0
      %5926 = vmatprep.mubr.bf16.mxu0 %v4970
      %5927 = vmatmul.mubr.bf16.gmra.mxu0 %v4969
      %v5928 = vpop.f32.mrf.mxu0
      %v5929 = vadd.f32 %v5752, %v5928
      %v5930 = vpop.f32.mrf.mxu0
      %v5931 = vpop.f32.mrf.mxu0
      %v5932 = vadd.f32 %v5755, %v5931
      %v5933 = vpop.f32.mrf.mxu0
      %5934 = vmatprep.mubr.bf16.mxu0 %v4979
      %5935 = vmatmul.mubr.bf16.gmra.mxu0 %v4978
      %v5936 = vpop.f32.mrf.mxu0
      %v5937 = vadd.f32 %v5760, %v5936
      %v5938 = vpop.f32.mrf.mxu0
      %v5939 = vpop.f32.mrf.mxu0
      %v5940 = vadd.f32 %v5763, %v5939
      %v5941 = vpop.f32.mrf.mxu0
      %5942 = vmatprep.mubr.bf16.mxu0 %v4988
      %5943 = vmatmul.mubr.bf16.gmra.mxu0 %v4987
      %v5944 = vpop.f32.mrf.mxu0
      %v5945 = vadd.f32 %v5768, %v5944
      %v5946 = vpop.f32.mrf.mxu0
      %v5947 = vpop.f32.mrf.mxu0
      %v5948 = vadd.f32 %v5771, %v5947
      %v5949 = vpop.f32.mrf.mxu0
      %5950 = vmatprep.mubr.bf16.mxu0 %v4997
      %5951 = vmatmul.mubr.bf16.gmra.mxu0 %v4996
      %v5952 = vpop.f32.mrf.mxu0
      %v5953 = vadd.f32 %v5776, %v5952
      %v5954 = vpop.f32.mrf.mxu0
      %v5955 = vpop.f32.mrf.mxu0
      %v5956 = vadd.f32 %v5779, %v5955
      %v5957 = vpop.f32.mrf.mxu0
      %5958 = vmatprep.mubr.bf16.mxu0 %v5006
      %5959 = vmatmul.mubr.bf16.gmra.mxu0 %v5005
      %v5960 = vpop.f32.mrf.mxu0
      %v5961 = vadd.f32 %v5784, %v5960
      %v5962 = vpop.f32.mrf.mxu0
      %v5963 = vpop.f32.mrf.mxu0
      %v5964 = vadd.f32 %v5787, %v5963
      %v5965 = vpop.f32.mrf.mxu0
      %5966 = vmatprep.mubr.bf16.mxu0 %v5015
      %5967 = vmatmul.mubr.bf16.gmra.mxu0 %v5014
      %v5968 = vpop.f32.mrf.mxu0
      %v5969 = vadd.f32 %v5792, %v5968
      %v5970 = vpop.f32.mrf.mxu0
      %v5971 = vpop.f32.mrf.mxu0
      %v5972 = vadd.f32 %v5795, %v5971
      %v5973 = vpop.f32.mrf.mxu0
      %5974 = vmatprep.mubr.bf16.mxu0 %v5024
      %5975 = vmatmul.mubr.bf16.gmra.mxu0 %v5023
      %v5976 = vpop.f32.mrf.mxu0
      %v5977 = vadd.f32 %v5800, %v5976
      %v5978 = vpop.f32.mrf.mxu0
      %v5979 = vpop.f32.mrf.mxu0
      %v5980 = vadd.f32 %v5803, %v5979
      %v5981 = vpop.f32.mrf.mxu0
      %5982 = vmatprep.mubr.bf16.mxu0 %v5033
      %5983 = vmatmul.mubr.bf16.gmra.mxu0 %v5032
      %v5984 = vpop.f32.mrf.mxu0
      %v5985 = vadd.f32 %v5808, %v5984
      %v5986 = vpop.f32.mrf.mxu0
      %v5987 = vpop.f32.mrf.mxu0
      %v5988 = vadd.f32 %v5811, %v5987
      %v5989 = vpop.f32.mrf.mxu0
      %5990 = vmatprep.mubr.bf16.mxu0 %v5042
      %5991 = vmatmul.mubr.bf16.gmra.mxu0 %v5041
      %v5992 = vpop.f32.mrf.mxu0
      %v5993 = vadd.f32 %v5816, %v5992
      %v5994 = vpop.f32.mrf.mxu0
      %v5995 = vpop.f32.mrf.mxu0
      %v5996 = vadd.f32 %v5819, %v5995
      %v5997 = vpop.f32.mrf.mxu0
      %5998 = vmatprep.mubr.bf16.mxu0 %v5051
      %5999 = vmatmul.mubr.bf16.gmra.mxu0 %v5050
      %v6000 = vpop.f32.mrf.mxu0
      %v6001 = vadd.f32 %v5824, %v6000
      %v6002 = vpop.f32.mrf.mxu0
      %v6003 = vpop.f32.mrf.mxu0
      %v6004 = vadd.f32 %v5827, %v6003
      %v6005 = vpop.f32.mrf.mxu0
      %6006 = vmatprep.mubr.bf16.mxu0 %v5060
      %6007 = vmatmul.mubr.bf16.gmra.mxu0 %v5059
      %v6008 = vpop.f32.mrf.mxu0
      %v6009 = vadd.f32 %v5832, %v6008
      %v6010 = vpop.f32.mrf.mxu0
      %v6011 = vpop.f32.mrf.mxu0
      %v6012 = vadd.f32 %v5835, %v6011
      %v6013 = vpop.f32.mrf.mxu0
      %6014 = vmatprep.mubr.bf16.mxu0 %v5069
      %6015 = vmatmul.mubr.bf16.gmra.mxu0 %v5068
      %v6016 = vpop.f32.mrf.mxu0
      %v6017 = vadd.f32 %v5840, %v6016
      %v6018 = vpop.f32.mrf.mxu0
      %v6019 = vpop.f32.mrf.mxu0
      %v6020 = vadd.f32 %v5843, %v6019
      %v6021 = vpop.f32.mrf.mxu0
      %6022 = vdwg.mxu0
      %6023 = vmatprep.subr.bf16.mxu0 0
      %6024 = vmatpush1.bf16.msra.mxu0 %v5564
      %6025 = vmatprep.subr.bf16.mxu0 0
      %6026 = vmatpush1.bf16.msra.mxu0 %v5563
      %6027 = vmatprep.subr.bf16.mxu0 0
      %6028 = vmatpush1.bf16.msra.mxu0 %v5562
      %6029 = vmatprep.subr.bf16.mxu0 0
      %6030 = vmatpush1.bf16.msra.mxu0 %v5561
      %6031 = vmatprep.subr.bf16.mxu0 0
      %6032 = vmatpush1.bf16.msra.mxu0 %v5560
      %6033 = vmatprep.subr.bf16.mxu0 0
      %6034 = vmatpush1.bf16.msra.mxu0 %v5559
      %6035 = vmatprep.subr.bf16.mxu0 0
      %6036 = vmatpush1.bf16.msra.mxu0 %v5558
      %6037 = vmatprep.subr.bf16.mxu0 0
      %6038 = vmatpush1.bf16.msra.mxu0 %v5557
      %6039 = vmatprep.subr.bf16.mxu0 0
      %6040 = vmatpush2.bf16.msra.mxu0 %v5572
      %6041 = vmatprep.subr.bf16.mxu0 0
      %6042 = vmatpush2.bf16.msra.mxu0 %v5571
      %6043 = vmatprep.subr.bf16.mxu0 0
      %6044 = vmatpush2.bf16.msra.mxu0 %v5570
      %6045 = vmatprep.subr.bf16.mxu0 0
      %6046 = vmatpush2.bf16.msra.mxu0 %v5569
      %6047 = vmatprep.subr.bf16.mxu0 0
      %6048 = vmatpush2.bf16.msra.mxu0 %v5568
      %6049 = vmatprep.subr.bf16.mxu0 0
      %6050 = vmatpush2.bf16.msra.mxu0 %v5567
      %6051 = vmatprep.subr.bf16.mxu0 0
      %6052 = vmatpush2.bf16.msra.mxu0 %v5566
      %6053 = vmatprep.subr.bf16.mxu0 0
      %6054 = vmatpush2.bf16.msra.mxu0 %v5565
      %6055 = vmatprep.mubr.bf16.mxu0 %v4918
      %6056 = vmatmul.mubr.bf16.gmra.mxu0 %v4917
      %v6057 = vpop.f32.mrf.mxu0
      %v6058 = vadd.f32 %v5881, %v6057
      %v6059 = vpop.f32.mrf.mxu0
      %v6060 = vpop.f32.mrf.mxu0
      %v6061 = vadd.f32 %v5884, %v6060
      %v6062 = vpop.f32.mrf.mxu0
      %6063 = vmatprep.mubr.bf16.mxu0 %v4927
      %6064 = vmatmul.mubr.bf16.gmra.mxu0 %v4926
      %v6065 = vpop.f32.mrf.mxu0
      %v6066 = vadd.f32 %v5889, %v6065
      %v6067 = vpop.f32.mrf.mxu0
      %v6068 = vpop.f32.mrf.mxu0
      %v6069 = vadd.f32 %v5892, %v6068
      %v6070 = vpop.f32.mrf.mxu0
      %6071 = vmatprep.mubr.bf16.mxu0 %v4936
      %6072 = vmatmul.mubr.bf16.gmra.mxu0 %v4935
      %v6073 = vpop.f32.mrf.mxu0
      %v6074 = vadd.f32 %v5897, %v6073
      %v6075 = vpop.f32.mrf.mxu0
      %v6076 = vpop.f32.mrf.mxu0
      %v6077 = vadd.f32 %v5900, %v6076
      %v6078 = vpop.f32.mrf.mxu0
      %6079 = vmatprep.mubr.bf16.mxu0 %v4945
      %6080 = vmatmul.mubr.bf16.gmra.mxu0 %v4944
      %v6081 = vpop.f32.mrf.mxu0
      %v6082 = vadd.f32 %v5905, %v6081
      %v6083 = vpop.f32.mrf.mxu0
      %v6084 = vpop.f32.mrf.mxu0
      %v6085 = vadd.f32 %v5908, %v6084
      %v6086 = vpop.f32.mrf.mxu0
      %6087 = vmatprep.mubr.bf16.mxu0 %v4954
      %6088 = vmatmul.mubr.bf16.gmra.mxu0 %v4953
      %v6089 = vpop.f32.mrf.mxu0
      %v6090 = vadd.f32 %v5913, %v6089
      %v6091 = vpop.f32.mrf.mxu0
      %v6092 = vpop.f32.mrf.mxu0
      %v6093 = vadd.f32 %v5916, %v6092
      %v6094 = vpop.f32.mrf.mxu0
      %6095 = vmatprep.mubr.bf16.mxu0 %v4963
      %6096 = vmatmul.mubr.bf16.gmra.mxu0 %v4962
      %v6097 = vpop.f32.mrf.mxu0
      %v6098 = vadd.f32 %v5921, %v6097
      %v6099 = vpop.f32.mrf.mxu0
      %v6100 = vpop.f32.mrf.mxu0
      %v6101 = vadd.f32 %v5924, %v6100
      %v6102 = vpop.f32.mrf.mxu0
      %6103 = vmatprep.mubr.bf16.mxu0 %v4972
      %6104 = vmatmul.mubr.bf16.gmra.mxu0 %v4971
      %v6105 = vpop.f32.mrf.mxu0
      %v6106 = vadd.f32 %v5929, %v6105
      %v6107 = vpop.f32.mrf.mxu0
      %v6108 = vpop.f32.mrf.mxu0
      %v6109 = vadd.f32 %v5932, %v6108
      %v6110 = vpop.f32.mrf.mxu0
      %6111 = vmatprep.mubr.bf16.mxu0 %v4981
      %6112 = vmatmul.mubr.bf16.gmra.mxu0 %v4980
      %v6113 = vpop.f32.mrf.mxu0
      %v6114 = vadd.f32 %v5937, %v6113
      %v6115 = vpop.f32.mrf.mxu0
      %v6116 = vpop.f32.mrf.mxu0
      %v6117 = vadd.f32 %v5940, %v6116
      %v6118 = vpop.f32.mrf.mxu0
      %6119 = vmatprep.mubr.bf16.mxu0 %v4990
      %6120 = vmatmul.mubr.bf16.gmra.mxu0 %v4989
      %v6121 = vpop.f32.mrf.mxu0
      %v6122 = vadd.f32 %v5945, %v6121
      %v6123 = vpop.f32.mrf.mxu0
      %v6124 = vpop.f32.mrf.mxu0
      %v6125 = vadd.f32 %v5948, %v6124
      %v6126 = vpop.f32.mrf.mxu0
      %6127 = vmatprep.mubr.bf16.mxu0 %v4999
      %6128 = vmatmul.mubr.bf16.gmra.mxu0 %v4998
      %v6129 = vpop.f32.mrf.mxu0
      %v6130 = vadd.f32 %v5953, %v6129
      %v6131 = vpop.f32.mrf.mxu0
      %v6132 = vpop.f32.mrf.mxu0
      %v6133 = vadd.f32 %v5956, %v6132
      %v6134 = vpop.f32.mrf.mxu0
      %6135 = vmatprep.mubr.bf16.mxu0 %v5008
      %6136 = vmatmul.mubr.bf16.gmra.mxu0 %v5007
      %v6137 = vpop.f32.mrf.mxu0
      %v6138 = vadd.f32 %v5961, %v6137
      %v6139 = vpop.f32.mrf.mxu0
      %v6140 = vpop.f32.mrf.mxu0
      %v6141 = vadd.f32 %v5964, %v6140
      %v6142 = vpop.f32.mrf.mxu0
      %6143 = vmatprep.mubr.bf16.mxu0 %v5017
      %6144 = vmatmul.mubr.bf16.gmra.mxu0 %v5016
      %v6145 = vpop.f32.mrf.mxu0
      %v6146 = vadd.f32 %v5969, %v6145
      %v6147 = vpop.f32.mrf.mxu0
      %v6148 = vpop.f32.mrf.mxu0
      %v6149 = vadd.f32 %v5972, %v6148
      %v6150 = vpop.f32.mrf.mxu0
      %6151 = vmatprep.mubr.bf16.mxu0 %v5026
      %6152 = vmatmul.mubr.bf16.gmra.mxu0 %v5025
      %v6153 = vpop.f32.mrf.mxu0
      %v6154 = vadd.f32 %v5977, %v6153
      %v6155 = vpop.f32.mrf.mxu0
      %v6156 = vpop.f32.mrf.mxu0
      %v6157 = vadd.f32 %v5980, %v6156
      %v6158 = vpop.f32.mrf.mxu0
      %6159 = vmatprep.mubr.bf16.mxu0 %v5035
      %6160 = vmatmul.mubr.bf16.gmra.mxu0 %v5034
      %v6161 = vpop.f32.mrf.mxu0
      %v6162 = vadd.f32 %v5985, %v6161
      %v6163 = vpop.f32.mrf.mxu0
      %v6164 = vpop.f32.mrf.mxu0
      %v6165 = vadd.f32 %v5988, %v6164
      %v6166 = vpop.f32.mrf.mxu0
      %6167 = vmatprep.mubr.bf16.mxu0 %v5044
      %6168 = vmatmul.mubr.bf16.gmra.mxu0 %v5043
      %v6169 = vpop.f32.mrf.mxu0
      %v6170 = vadd.f32 %v5993, %v6169
      %v6171 = vpop.f32.mrf.mxu0
      %v6172 = vpop.f32.mrf.mxu0
      %v6173 = vadd.f32 %v5996, %v6172
      %v6174 = vpop.f32.mrf.mxu0
      %6175 = vmatprep.mubr.bf16.mxu0 %v5053
      %6176 = vmatmul.mubr.bf16.gmra.mxu0 %v5052
      %v6177 = vpop.f32.mrf.mxu0
      %v6178 = vadd.f32 %v6001, %v6177
      %v6179 = vpop.f32.mrf.mxu0
      %v6180 = vpop.f32.mrf.mxu0
      %v6181 = vadd.f32 %v6004, %v6180
      %v6182 = vpop.f32.mrf.mxu0
      %6183 = vmatprep.mubr.bf16.mxu0 %v5062
      %6184 = vmatmul.mubr.bf16.gmra.mxu0 %v5061
      %v6185 = vpop.f32.mrf.mxu0
      %v6186 = vadd.f32 %v6009, %v6185
      %v6187 = vpop.f32.mrf.mxu0
      %v6188 = vpop.f32.mrf.mxu0
      %v6189 = vadd.f32 %v6012, %v6188
      %v6190 = vpop.f32.mrf.mxu0
      %6191 = vmatprep.mubr.bf16.mxu0 %v5071
      %6192 = vmatmul.mubr.bf16.gmra.mxu0 %v5070
      %v6193 = vpop.f32.mrf.mxu0
      %v6194 = vadd.f32 %v6017, %v6193
      %v6195 = vpop.f32.mrf.mxu0
      %v6196 = vpop.f32.mrf.mxu0
      %v6197 = vadd.f32 %v6020, %v6196
      %v6198 = vpop.f32.mrf.mxu0
      %6199 = vdwg.mxu0
      %6200 = vmatprep.subr.bf16.mxu0 0
      %6201 = vmatpush1.bf16.msra.mxu0 %v5580
      %6202 = vmatprep.subr.bf16.mxu0 0
      %6203 = vmatpush1.bf16.msra.mxu0 %v5579
      %6204 = vmatprep.subr.bf16.mxu0 0
      %6205 = vmatpush1.bf16.msra.mxu0 %v5578
      %6206 = vmatprep.subr.bf16.mxu0 0
      %6207 = vmatpush1.bf16.msra.mxu0 %v5577
      %6208 = vmatprep.subr.bf16.mxu0 0
      %6209 = vmatpush1.bf16.msra.mxu0 %v5576
      %6210 = vmatprep.subr.bf16.mxu0 0
      %6211 = vmatpush1.bf16.msra.mxu0 %v5575
      %6212 = vmatprep.subr.bf16.mxu0 0
      %6213 = vmatpush1.bf16.msra.mxu0 %v5574
      %6214 = vmatprep.subr.bf16.mxu0 0
      %6215 = vmatpush1.bf16.msra.mxu0 %v5573
      %6216 = vmatprep.subr.bf16.mxu0 0
      %6217 = vmatpush2.bf16.msra.mxu0 %v5588
      %6218 = vmatprep.subr.bf16.mxu0 0
      %6219 = vmatpush2.bf16.msra.mxu0 %v5587
      %6220 = vmatprep.subr.bf16.mxu0 0
      %6221 = vmatpush2.bf16.msra.mxu0 %v5586
      %6222 = vmatprep.subr.bf16.mxu0 0
      %6223 = vmatpush2.bf16.msra.mxu0 %v5585
      %6224 = vmatprep.subr.bf16.mxu0 0
      %6225 = vmatpush2.bf16.msra.mxu0 %v5584
      %6226 = vmatprep.subr.bf16.mxu0 0
      %6227 = vmatpush2.bf16.msra.mxu0 %v5583
      %6228 = vmatprep.subr.bf16.mxu0 0
      %6229 = vmatpush2.bf16.msra.mxu0 %v5582
      %6230 = vmatprep.subr.bf16.mxu0 0
      %6231 = vmatpush2.bf16.msra.mxu0 %v5581
      %6232 = vmatprep.mubr.bf16.mxu0 %v4920
      %6233 = vmatmul.mubr.bf16.gmra.mxu0 %v4919
      %v6234 = vpop.f32.mrf.mxu0
      %v6235 = vadd.f32 %v6058, %v6234
      %v6236 = vpop.f32.mrf.mxu0
      %v6237 = vpop.f32.mrf.mxu0
      %v6238 = vadd.f32 %v6061, %v6237
      %v6239 = vpop.f32.mrf.mxu0
      %6240 = vmatprep.mubr.bf16.mxu0 %v4929
      %6241 = vmatmul.mubr.bf16.gmra.mxu0 %v4928
      %v6242 = vpop.f32.mrf.mxu0
      %v6243 = vadd.f32 %v6066, %v6242
      %v6244 = vpop.f32.mrf.mxu0
      %v6245 = vpop.f32.mrf.mxu0
      %v6246 = vadd.f32 %v6069, %v6245
      %v6247 = vpop.f32.mrf.mxu0
      %6248 = vmatprep.mubr.bf16.mxu0 %v4938
      %6249 = vmatmul.mubr.bf16.gmra.mxu0 %v4937
      %v6250 = vpop.f32.mrf.mxu0
      %v6251 = vadd.f32 %v6074, %v6250
      %v6252 = vpop.f32.mrf.mxu0
      %v6253 = vpop.f32.mrf.mxu0
      %v6254 = vadd.f32 %v6077, %v6253
      %v6255 = vpop.f32.mrf.mxu0
      %6256 = vmatprep.mubr.bf16.mxu0 %v4947
      %6257 = vmatmul.mubr.bf16.gmra.mxu0 %v4946
      %v6258 = vpop.f32.mrf.mxu0
      %v6259 = vadd.f32 %v6082, %v6258
      %v6260 = vpop.f32.mrf.mxu0
      %v6261 = vpop.f32.mrf.mxu0
      %v6262 = vadd.f32 %v6085, %v6261
      %v6263 = vpop.f32.mrf.mxu0
      %6264 = vmatprep.mubr.bf16.mxu0 %v4956
      %6265 = vmatmul.mubr.bf16.gmra.mxu0 %v4955
      %v6266 = vpop.f32.mrf.mxu0
      %v6267 = vadd.f32 %v6090, %v6266
      %v6268 = vpop.f32.mrf.mxu0
      %v6269 = vpop.f32.mrf.mxu0
      %v6270 = vadd.f32 %v6093, %v6269
      %v6271 = vpop.f32.mrf.mxu0
      %6272 = vmatprep.mubr.bf16.mxu0 %v4965
      %6273 = vmatmul.mubr.bf16.gmra.mxu0 %v4964
      %v6274 = vpop.f32.mrf.mxu0
      %v6275 = vadd.f32 %v6098, %v6274
      %v6276 = vpop.f32.mrf.mxu0
      %v6277 = vpop.f32.mrf.mxu0
      %v6278 = vadd.f32 %v6101, %v6277
      %v6279 = vpop.f32.mrf.mxu0
      %6280 = vmatprep.mubr.bf16.mxu0 %v4974
      %6281 = vmatmul.mubr.bf16.gmra.mxu0 %v4973
      %v6282 = vpop.f32.mrf.mxu0
      %v6283 = vadd.f32 %v6106, %v6282
      %v6284 = vpop.f32.mrf.mxu0
      %v6285 = vpop.f32.mrf.mxu0
      %v6286 = vadd.f32 %v6109, %v6285
      %v6287 = vpop.f32.mrf.mxu0
      %6288 = vmatprep.mubr.bf16.mxu0 %v4983
      %6289 = vmatmul.mubr.bf16.gmra.mxu0 %v4982
      %v6290 = vpop.f32.mrf.mxu0
      %v6291 = vadd.f32 %v6114, %v6290
      %v6292 = vpop.f32.mrf.mxu0
      %v6293 = vpop.f32.mrf.mxu0
      %v6294 = vadd.f32 %v6117, %v6293
      %v6295 = vpop.f32.mrf.mxu0
      %6296 = vmatprep.mubr.bf16.mxu0 %v4992
      %6297 = vmatmul.mubr.bf16.gmra.mxu0 %v4991
      %v6298 = vpop.f32.mrf.mxu0
      %v6299 = vadd.f32 %v6122, %v6298
      %v6300 = vpop.f32.mrf.mxu0
      %v6301 = vpop.f32.mrf.mxu0
      %v6302 = vadd.f32 %v6125, %v6301
      %v6303 = vpop.f32.mrf.mxu0
      %6304 = vmatprep.mubr.bf16.mxu0 %v5001
      %6305 = vmatmul.mubr.bf16.gmra.mxu0 %v5000
      %v6306 = vpop.f32.mrf.mxu0
      %v6307 = vadd.f32 %v6130, %v6306
      %v6308 = vpop.f32.mrf.mxu0
      %v6309 = vpop.f32.mrf.mxu0
      %v6310 = vadd.f32 %v6133, %v6309
      %v6311 = vpop.f32.mrf.mxu0
      %6312 = vmatprep.mubr.bf16.mxu0 %v5010
      %6313 = vmatmul.mubr.bf16.gmra.mxu0 %v5009
      %v6314 = vpop.f32.mrf.mxu0
      %v6315 = vadd.f32 %v6138, %v6314
      %v6316 = vpop.f32.mrf.mxu0
      %v6317 = vpop.f32.mrf.mxu0
      %v6318 = vadd.f32 %v6141, %v6317
      %v6319 = vpop.f32.mrf.mxu0
      %6320 = vmatprep.mubr.bf16.mxu0 %v5019
      %6321 = vmatmul.mubr.bf16.gmra.mxu0 %v5018
      %v6322 = vpop.f32.mrf.mxu0
      %v6323 = vadd.f32 %v6146, %v6322
      %v6324 = vpop.f32.mrf.mxu0
      %v6325 = vpop.f32.mrf.mxu0
      %v6326 = vadd.f32 %v6149, %v6325
      %v6327 = vpop.f32.mrf.mxu0
      %6328 = vmatprep.mubr.bf16.mxu0 %v5028
      %6329 = vmatmul.mubr.bf16.gmra.mxu0 %v5027
      %v6330 = vpop.f32.mrf.mxu0
      %v6331 = vadd.f32 %v6154, %v6330
      %v6332 = vpop.f32.mrf.mxu0
      %v6333 = vpop.f32.mrf.mxu0
      %v6334 = vadd.f32 %v6157, %v6333
      %v6335 = vpop.f32.mrf.mxu0
      %6336 = vmatprep.mubr.bf16.mxu0 %v5037
      %6337 = vmatmul.mubr.bf16.gmra.mxu0 %v5036
      %v6338 = vpop.f32.mrf.mxu0
      %v6339 = vadd.f32 %v6162, %v6338
      %v6340 = vpop.f32.mrf.mxu0
      %v6341 = vpop.f32.mrf.mxu0
      %v6342 = vadd.f32 %v6165, %v6341
      %v6343 = vpop.f32.mrf.mxu0
      %6344 = vmatprep.mubr.bf16.mxu0 %v5046
      %6345 = vmatmul.mubr.bf16.gmra.mxu0 %v5045
      %v6346 = vpop.f32.mrf.mxu0
      %v6347 = vadd.f32 %v6170, %v6346
      %v6348 = vpop.f32.mrf.mxu0
      %v6349 = vpop.f32.mrf.mxu0
      %v6350 = vadd.f32 %v6173, %v6349
      %v6351 = vpop.f32.mrf.mxu0
      %6352 = vmatprep.mubr.bf16.mxu0 %v5055
      %6353 = vmatmul.mubr.bf16.gmra.mxu0 %v5054
      %v6354 = vpop.f32.mrf.mxu0
      %v6355 = vadd.f32 %v6178, %v6354
      %v6356 = vpop.f32.mrf.mxu0
      %v6357 = vpop.f32.mrf.mxu0
      %v6358 = vadd.f32 %v6181, %v6357
      %v6359 = vpop.f32.mrf.mxu0
      %6360 = vmatprep.mubr.bf16.mxu0 %v5064
      %6361 = vmatmul.mubr.bf16.gmra.mxu0 %v5063
      %v6362 = vpop.f32.mrf.mxu0
      %v6363 = vadd.f32 %v6186, %v6362
      %v6364 = vpop.f32.mrf.mxu0
      %v6365 = vpop.f32.mrf.mxu0
      %v6366 = vadd.f32 %v6189, %v6365
      %v6367 = vpop.f32.mrf.mxu0
      %6368 = vmatprep.mubr.bf16.mxu0 %v5073
      %6369 = vmatmul.mubr.bf16.gmra.mxu0 %v5072
      %v6370 = vpop.f32.mrf.mxu0
      %v6371 = vadd.f32 %v6194, %v6370
      %v6372 = vpop.f32.mrf.mxu0
      %v6373 = vpop.f32.mrf.mxu0
      %v6374 = vadd.f32 %v6197, %v6373
      %v6375 = vpop.f32.mrf.mxu0
      %6376 = vdwg.mxu0
      %6377 = vmatprep.subr.bf16.mxu0 0
      %6378 = vmatpush1.bf16.msra.mxu0 %v5596
      %6379 = vmatprep.subr.bf16.mxu0 0
      %6380 = vmatpush1.bf16.msra.mxu0 %v5595
      %6381 = vmatprep.subr.bf16.mxu0 0
      %6382 = vmatpush1.bf16.msra.mxu0 %v5594
      %6383 = vmatprep.subr.bf16.mxu0 0
      %6384 = vmatpush1.bf16.msra.mxu0 %v5593
      %6385 = vmatprep.subr.bf16.mxu0 0
      %6386 = vmatpush1.bf16.msra.mxu0 %v5592
      %6387 = vmatprep.subr.bf16.mxu0 0
      %6388 = vmatpush1.bf16.msra.mxu0 %v5591
      %6389 = vmatprep.subr.bf16.mxu0 0
      %6390 = vmatpush1.bf16.msra.mxu0 %v5590
      %6391 = vmatprep.subr.bf16.mxu0 0
      %6392 = vmatpush1.bf16.msra.mxu0 %v5589
      %6393 = vmatprep.subr.bf16.mxu0 0
      %6394 = vmatpush2.bf16.msra.mxu0 0
      %6395 = vmatprep.subr.bf16.mxu0 0
      %6396 = vmatpush2.bf16.msra.mxu0 0
      %6397 = vmatprep.subr.bf16.mxu0 0
      %6398 = vmatpush2.bf16.msra.mxu0 0
      %6399 = vmatprep.subr.bf16.mxu0 0
      %6400 = vmatpush2.bf16.msra.mxu0 0
      %6401 = vmatprep.subr.bf16.mxu0 0
      %6402 = vmatpush2.bf16.msra.mxu0 0
      %6403 = vmatprep.subr.bf16.mxu0 0
      %6404 = vmatpush2.bf16.msra.mxu0 0
      %6405 = vmatprep.subr.bf16.mxu0 0
      %6406 = vmatpush2.bf16.msra.mxu0 0
      %6407 = vmatprep.subr.bf16.mxu0 0
      %6408 = vmatpush2.bf16.msra.mxu0 0
      %6409 = vmatprep.mubr.bf16.mxu0 0
      %6410 = vmatmul.mubr.bf16.gmra.mxu0 %v4921
      %v6411 = vpop.f32.mrf.mxu0
      %v6412 = vadd.f32 %v6235, %v6411
      %v6413 = vpop.f32.mrf.mxu0
      %v6414 = vpop.f32.mrf.mxu0
      %v6415 = vadd.f32 %v6238, %v6414
      %v6416 = vpop.f32.mrf.mxu0
      %6417 = vmatprep.mubr.bf16.mxu0 0
      %6418 = vmatmul.mubr.bf16.gmra.mxu0 %v4930
      %v6419 = vpop.f32.mrf.mxu0
      %v6420 = vadd.f32 %v6243, %v6419
      %v6421 = vpop.f32.mrf.mxu0
      %v6422 = vpop.f32.mrf.mxu0
      %v6423 = vadd.f32 %v6246, %v6422
      %v6424 = vpop.f32.mrf.mxu0
      %6425 = vmatprep.mubr.bf16.mxu0 0
      %6426 = vmatmul.mubr.bf16.gmra.mxu0 %v4939
      %v6427 = vpop.f32.mrf.mxu0
      %v6428 = vadd.f32 %v6251, %v6427
      %v6429 = vpop.f32.mrf.mxu0
      %v6430 = vpop.f32.mrf.mxu0
      %v6431 = vadd.f32 %v6254, %v6430
      %v6432 = vpop.f32.mrf.mxu0
      %6433 = vmatprep.mubr.bf16.mxu0 0
      %6434 = vmatmul.mubr.bf16.gmra.mxu0 %v4948
      %v6435 = vpop.f32.mrf.mxu0
      %v6436 = vadd.f32 %v6259, %v6435
      %v6437 = vpop.f32.mrf.mxu0
      %v6438 = vpop.f32.mrf.mxu0
      %v6439 = vadd.f32 %v6262, %v6438
      %v6440 = vpop.f32.mrf.mxu0
      %6441 = vmatprep.mubr.bf16.mxu0 0
      %6442 = vmatmul.mubr.bf16.gmra.mxu0 %v4957
      %v6443 = vpop.f32.mrf.mxu0
      %v6444 = vadd.f32 %v6267, %v6443
      %v6445 = vpop.f32.mrf.mxu0
      %v6446 = vpop.f32.mrf.mxu0
      %v6447 = vadd.f32 %v6270, %v6446
      %v6448 = vpop.f32.mrf.mxu0
      %6449 = vmatprep.mubr.bf16.mxu0 0
      %6450 = vmatmul.mubr.bf16.gmra.mxu0 %v4966
      %v6451 = vpop.f32.mrf.mxu0
      %v6452 = vadd.f32 %v6275, %v6451
      %v6453 = vpop.f32.mrf.mxu0
      %v6454 = vpop.f32.mrf.mxu0
      %v6455 = vadd.f32 %v6278, %v6454
      %v6456 = vpop.f32.mrf.mxu0
      %6457 = vmatprep.mubr.bf16.mxu0 0
      %6458 = vmatmul.mubr.bf16.gmra.mxu0 %v4975
      %v6459 = vpop.f32.mrf.mxu0
      %v6460 = vadd.f32 %v6283, %v6459
      %v6461 = vpop.f32.mrf.mxu0
      %v6462 = vpop.f32.mrf.mxu0
      %v6463 = vadd.f32 %v6286, %v6462
      %v6464 = vpop.f32.mrf.mxu0
      %6465 = vmatprep.mubr.bf16.mxu0 0
      %6466 = vmatmul.mubr.bf16.gmra.mxu0 %v4984
      %v6467 = vpop.f32.mrf.mxu0
      %v6468 = vadd.f32 %v6291, %v6467
      %v6469 = vpop.f32.mrf.mxu0
      %v6470 = vpop.f32.mrf.mxu0
      %v6471 = vadd.f32 %v6294, %v6470
      %v6472 = vpop.f32.mrf.mxu0
      %6473 = vmatprep.mubr.bf16.mxu0 0
      %6474 = vmatmul.mubr.bf16.gmra.mxu0 %v4993
      %v6475 = vpop.f32.mrf.mxu0
      %v6476 = vadd.f32 %v6299, %v6475
      %v6477 = vpop.f32.mrf.mxu0
      %v6478 = vpop.f32.mrf.mxu0
      %v6479 = vadd.f32 %v6302, %v6478
      %v6480 = vpop.f32.mrf.mxu0
      %6481 = vmatprep.mubr.bf16.mxu0 0
      %6482 = vmatmul.mubr.bf16.gmra.mxu0 %v5002
      %v6483 = vpop.f32.mrf.mxu0
      %v6484 = vadd.f32 %v6307, %v6483
      %v6485 = vpop.f32.mrf.mxu0
      %v6486 = vpop.f32.mrf.mxu0
      %v6487 = vadd.f32 %v6310, %v6486
      %v6488 = vpop.f32.mrf.mxu0
      %6489 = vmatprep.mubr.bf16.mxu0 0
      %6490 = vmatmul.mubr.bf16.gmra.mxu0 %v5011
      %v6491 = vpop.f32.mrf.mxu0
      %v6492 = vadd.f32 %v6315, %v6491
      %v6493 = vpop.f32.mrf.mxu0
      %v6494 = vpop.f32.mrf.mxu0
      %v6495 = vadd.f32 %v6318, %v6494
      %v6496 = vpop.f32.mrf.mxu0
      %6497 = vmatprep.mubr.bf16.mxu0 0
      %6498 = vmatmul.mubr.bf16.gmra.mxu0 %v5020
      %v6499 = vpop.f32.mrf.mxu0
      %v6500 = vadd.f32 %v6323, %v6499
      %v6501 = vpop.f32.mrf.mxu0
      %v6502 = vpop.f32.mrf.mxu0
      %v6503 = vadd.f32 %v6326, %v6502
      %v6504 = vpop.f32.mrf.mxu0
      %6505 = vmatprep.mubr.bf16.mxu0 0
      %6506 = vmatmul.mubr.bf16.gmra.mxu0 %v5029
      %v6507 = vpop.f32.mrf.mxu0
      %v6508 = vadd.f32 %v6331, %v6507
      %v6509 = vpop.f32.mrf.mxu0
      %v6510 = vpop.f32.mrf.mxu0
      %v6511 = vadd.f32 %v6334, %v6510
      %v6512 = vpop.f32.mrf.mxu0
      %6513 = vmatprep.mubr.bf16.mxu0 0
      %6514 = vmatmul.mubr.bf16.gmra.mxu0 %v5038
      %v6515 = vpop.f32.mrf.mxu0
      %v6516 = vadd.f32 %v6339, %v6515
      %v6517 = vpop.f32.mrf.mxu0
      %v6518 = vpop.f32.mrf.mxu0
      %v6519 = vadd.f32 %v6342, %v6518
      %v6520 = vpop.f32.mrf.mxu0
      %6521 = vmatprep.mubr.bf16.mxu0 0
      %6522 = vmatmul.mubr.bf16.gmra.mxu0 %v5047
      %v6523 = vpop.f32.mrf.mxu0
      %v6524 = vadd.f32 %v6347, %v6523
      %v6525 = vpop.f32.mrf.mxu0
      %v6526 = vpop.f32.mrf.mxu0
      %v6527 = vadd.f32 %v6350, %v6526
      %v6528 = vpop.f32.mrf.mxu0
      %6529 = vmatprep.mubr.bf16.mxu0 0
      %6530 = vmatmul.mubr.bf16.gmra.mxu0 %v5056
      %v6531 = vpop.f32.mrf.mxu0
      %v6532 = vadd.f32 %v6355, %v6531
      %v6533 = vpop.f32.mrf.mxu0
      %v6534 = vpop.f32.mrf.mxu0
      %v6535 = vadd.f32 %v6358, %v6534
      %v6536 = vpop.f32.mrf.mxu0
      %6537 = vmatprep.mubr.bf16.mxu0 0
      %6538 = vmatmul.mubr.bf16.gmra.mxu0 %v5065
      %v6539 = vpop.f32.mrf.mxu0
      %v6540 = vadd.f32 %v6363, %v6539
      %v6541 = vpop.f32.mrf.mxu0
      %v6542 = vpop.f32.mrf.mxu0
      %v6543 = vadd.f32 %v6366, %v6542
      %v6544 = vpop.f32.mrf.mxu0
      %6545 = vmatprep.mubr.bf16.mxu0 0
      %6546 = vmatmul.mubr.bf16.gmra.mxu0 %v5074
      %v6547 = vpop.f32.mrf.mxu0
      %v6548 = vadd.f32 %v6371, %v6547
      %v6549 = vpop.f32.mrf.mxu0
      %v6550 = vpop.f32.mrf.mxu0
      %v6551 = vadd.f32 %v6374, %v6550
      %v6552 = vpop.f32.mrf.mxu0
      %6553 = vdwg.mxu0
      %v6554 = vmax.f32 %v6412, 0.0
      %v6555 = vmax.f32 %v6415, 0.0
      %v6556 = vmax.f32 %v6420, 0.0
      %v6557 = vmax.f32 %v6423, 0.0
      %v6558 = vmax.f32 %v6428, 0.0
      %v6559 = vmax.f32 %v6431, 0.0
      %v6560 = vmax.f32 %v6436, 0.0
      %v6561 = vmax.f32 %v6439, 0.0
      %v6562 = vmax.f32 %v6444, 0.0
      %v6563 = vmax.f32 %v6447, 0.0
      %v6564 = vmax.f32 %v6452, 0.0
      %v6565 = vmax.f32 %v6455, 0.0
      %v6566 = vmax.f32 %v6460, 0.0
      %v6567 = vmax.f32 %v6463, 0.0
      %v6568 = vmax.f32 %v6468, 0.0
      %v6569 = vmax.f32 %v6471, 0.0
      %v6570 = vmax.f32 %v6476, 0.0
      %v6571 = vmax.f32 %v6479, 0.0
      %v6572 = vmax.f32 %v6484, 0.0
      %v6573 = vmax.f32 %v6487, 0.0
      %v6574 = vmax.f32 %v6492, 0.0
      %v6575 = vmax.f32 %v6495, 0.0
      %v6576 = vmax.f32 %v6500, 0.0
      %v6577 = vmax.f32 %v6503, 0.0
      %v6578 = vmax.f32 %v6508, 0.0
      %v6579 = vmax.f32 %v6511, 0.0
      %v6580 = vmax.f32 %v6516, 0.0
      %v6581 = vmax.f32 %v6519, 0.0
      %v6582 = vmax.f32 %v6524, 0.0
      %v6583 = vmax.f32 %v6527, 0.0
      %v6584 = vmax.f32 %v6532, 0.0
      %v6585 = vmax.f32 %v6535, 0.0
      %v6586 = vmax.f32 %v6540, 0.0
      %v6587 = vmax.f32 %v6543, 0.0
      %v6588 = vmax.f32 %v6548, 0.0
      %v6589 = vmax.f32 %v6551, 0.0
      %v6590 = vpack.c.bf16 %v6555, %v6554
      %v6591 = vpack.c.bf16 %v6557, %v6556
      %v6592 = vpack.c.bf16 %v6559, %v6558
      %v6593 = vpack.c.bf16 %v6561, %v6560
      %v6594 = vpack.c.bf16 %v6563, %v6562
      %v6595 = vpack.c.bf16 %v6565, %v6564
      %v6596 = vpack.c.bf16 %v6567, %v6566
      %v6597 = vpack.c.bf16 %v6569, %v6568
      %v6598 = vpack.c.bf16 %v6571, %v6570
      %v6599 = vpack.c.bf16 %v6573, %v6572
      %v6600 = vpack.c.bf16 %v6575, %v6574
      %v6601 = vpack.c.bf16 %v6577, %v6576
      %v6602 = vpack.c.bf16 %v6579, %v6578
      %v6603 = vpack.c.bf16 %v6581, %v6580
      %v6604 = vpack.c.bf16 %v6583, %v6582
      %v6605 = vpack.c.bf16 %v6585, %v6584
      %v6606 = vpack.c.bf16 %v6587, %v6586
      %v6607 = vpack.c.bf16 %v6589, %v6588
      %v6626 = vcombine.high %v6590, %v6590
      %v6628 = vunpack.c.l.s4 1966171168
      %v6629 = vunpack.c.0.s8 %v6628
      %v6630 = vlaneseq
      %v6631 = vshrl.u32 %v6630, 7
      %v6632 = vsub.s32 %v6629, %v6631
      %v6633 = vrot.slane %v6590, %v6632
      %v6635 = vunpack.c.l.s4 1966171168
      %v6636 = vunpack.c.0.s8 %v6635
      %v6637 = vlaneseq
      %v6638 = vshrl.u32 %v6637, 7
      %v6639 = vsub.s32 %v6636, %v6638
      %v6640 = vrot.slane %v6626, %v6639
      %v6641 = vcombine.high %v6633, %v6633
      %v6642 = vcombine.high %v6640, %v6640
      %v6644 = vunpack.c.l.s4 1966171168
      %v6645 = vunpack.c.0.s8 %v6644
      %v6646 = vlaneseq
      %v6647 = vshrl.u32 %v6646, 7
      %v6648 = vsub.s32 %v6645, %v6647
      %v6649 = vrot.slane %v6633, %v6648
      %v6651 = vunpack.c.l.s4 1966171168
      %v6652 = vunpack.c.0.s8 %v6651
      %v6653 = vlaneseq
      %v6654 = vshrl.u32 %v6653, 7
      %v6655 = vsub.s32 %v6652, %v6654
      %v6656 = vrot.slane %v6640, %v6655
      %v6658 = vunpack.c.l.s4 1966171168
      %v6659 = vunpack.c.0.s8 %v6658
      %v6660 = vlaneseq
      %v6661 = vshrl.u32 %v6660, 7
      %v6662 = vsub.s32 %v6659, %v6661
      %v6663 = vrot.slane %v6641, %v6662
      %v6665 = vunpack.c.l.s4 1966171168
      %v6666 = vunpack.c.0.s8 %v6665
      %v6667 = vlaneseq
      %v6668 = vshrl.u32 %v6667, 7
      %v6669 = vsub.s32 %v6666, %v6668
      %v6670 = vrot.slane %v6642, %v6669
      %v6671 = vcombine.high %v6649, %v6649
      %v6672 = vcombine.high %v6656, %v6656
      %v6673 = vcombine.high %v6663, %v6663
      %v6674 = vcombine.high %v6670, %v6670
      %v6675 = vcombine.high %v6591, %v6591
      %v6677 = vunpack.c.l.s4 1966171168
      %v6678 = vunpack.c.0.s8 %v6677
      %v6679 = vlaneseq
      %v6680 = vshrl.u32 %v6679, 7
      %v6681 = vsub.s32 %v6678, %v6680
      %v6682 = vrot.slane %v6591, %v6681
      %v6684 = vunpack.c.l.s4 1966171168
      %v6685 = vunpack.c.0.s8 %v6684
      %v6686 = vlaneseq
      %v6687 = vshrl.u32 %v6686, 7
      %v6688 = vsub.s32 %v6685, %v6687
      %v6689 = vrot.slane %v6675, %v6688
      %v6690 = vcombine.high %v6682, %v6682
      %v6691 = vcombine.high %v6689, %v6689
      %v6693 = vunpack.c.l.s4 1966171168
      %v6694 = vunpack.c.0.s8 %v6693
      %v6695 = vlaneseq
      %v6696 = vshrl.u32 %v6695, 7
      %v6697 = vsub.s32 %v6694, %v6696
      %v6698 = vrot.slane %v6682, %v6697
      %v6700 = vunpack.c.l.s4 1966171168
      %v6701 = vunpack.c.0.s8 %v6700
      %v6702 = vlaneseq
      %v6703 = vshrl.u32 %v6702, 7
      %v6704 = vsub.s32 %v6701, %v6703
      %v6705 = vrot.slane %v6689, %v6704
      %v6707 = vunpack.c.l.s4 1966171168
      %v6708 = vunpack.c.0.s8 %v6707
      %v6709 = vlaneseq
      %v6710 = vshrl.u32 %v6709, 7
      %v6711 = vsub.s32 %v6708, %v6710
      %v6712 = vrot.slane %v6690, %v6711
      %v6714 = vunpack.c.l.s4 1966171168
      %v6715 = vunpack.c.0.s8 %v6714
      %v6716 = vlaneseq
      %v6717 = vshrl.u32 %v6716, 7
      %v6718 = vsub.s32 %v6715, %v6717
      %v6719 = vrot.slane %v6691, %v6718
      %v6720 = vcombine.high %v6698, %v6698
      %v6721 = vcombine.high %v6705, %v6705
      %v6722 = vcombine.high %v6712, %v6712
      %v6723 = vcombine.high %v6719, %v6719
      %v6724 = vcombine.high %v6592, %v6592
      %v6726 = vunpack.c.l.s4 1966171168
      %v6727 = vunpack.c.0.s8 %v6726
      %v6728 = vlaneseq
      %v6729 = vshrl.u32 %v6728, 7
      %v6730 = vsub.s32 %v6727, %v6729
      %v6731 = vrot.slane %v6592, %v6730
      %v6733 = vunpack.c.l.s4 1966171168
      %v6734 = vunpack.c.0.s8 %v6733
      %v6735 = vlaneseq
      %v6736 = vshrl.u32 %v6735, 7
      %v6737 = vsub.s32 %v6734, %v6736
      %v6738 = vrot.slane %v6724, %v6737
      %v6739 = vcombine.high %v6731, %v6731
      %v6740 = vcombine.high %v6738, %v6738
      %v6742 = vunpack.c.l.s4 1966171168
      %v6743 = vunpack.c.0.s8 %v6742
      %v6744 = vlaneseq
      %v6745 = vshrl.u32 %v6744, 7
      %v6746 = vsub.s32 %v6743, %v6745
      %v6747 = vrot.slane %v6731, %v6746
      %v6749 = vunpack.c.l.s4 1966171168
      %v6750 = vunpack.c.0.s8 %v6749
      %v6751 = vlaneseq
      %v6752 = vshrl.u32 %v6751, 7
      %v6753 = vsub.s32 %v6750, %v6752
      %v6754 = vrot.slane %v6738, %v6753
      %v6756 = vunpack.c.l.s4 1966171168
      %v6757 = vunpack.c.0.s8 %v6756
      %v6758 = vlaneseq
      %v6759 = vshrl.u32 %v6758, 7
      %v6760 = vsub.s32 %v6757, %v6759
      %v6761 = vrot.slane %v6739, %v6760
      %v6763 = vunpack.c.l.s4 1966171168
      %v6764 = vunpack.c.0.s8 %v6763
      %v6765 = vlaneseq
      %v6766 = vshrl.u32 %v6765, 7
      %v6767 = vsub.s32 %v6764, %v6766
      %v6768 = vrot.slane %v6740, %v6767
      %v6769 = vcombine.high %v6747, %v6747
      %v6770 = vcombine.high %v6754, %v6754
      %v6771 = vcombine.high %v6761, %v6761
      %v6772 = vcombine.high %v6768, %v6768
      %v6773 = vcombine.high %v6593, %v6593
      %v6775 = vunpack.c.l.s4 1966171168
      %v6776 = vunpack.c.0.s8 %v6775
      %v6777 = vlaneseq
      %v6778 = vshrl.u32 %v6777, 7
      %v6779 = vsub.s32 %v6776, %v6778
      %v6780 = vrot.slane %v6593, %v6779
      %v6782 = vunpack.c.l.s4 1966171168
      %v6783 = vunpack.c.0.s8 %v6782
      %v6784 = vlaneseq
      %v6785 = vshrl.u32 %v6784, 7
      %v6786 = vsub.s32 %v6783, %v6785
      %v6787 = vrot.slane %v6773, %v6786
      %v6788 = vcombine.high %v6780, %v6780
      %v6789 = vcombine.high %v6787, %v6787
      %v6791 = vunpack.c.l.s4 1966171168
      %v6792 = vunpack.c.0.s8 %v6791
      %v6793 = vlaneseq
      %v6794 = vshrl.u32 %v6793, 7
      %v6795 = vsub.s32 %v6792, %v6794
      %v6796 = vrot.slane %v6780, %v6795
      %v6798 = vunpack.c.l.s4 1966171168
      %v6799 = vunpack.c.0.s8 %v6798
      %v6800 = vlaneseq
      %v6801 = vshrl.u32 %v6800, 7
      %v6802 = vsub.s32 %v6799, %v6801
      %v6803 = vrot.slane %v6787, %v6802
      %v6805 = vunpack.c.l.s4 1966171168
      %v6806 = vunpack.c.0.s8 %v6805
      %v6807 = vlaneseq
      %v6808 = vshrl.u32 %v6807, 7
      %v6809 = vsub.s32 %v6806, %v6808
      %v6810 = vrot.slane %v6788, %v6809
      %v6812 = vunpack.c.l.s4 1966171168
      %v6813 = vunpack.c.0.s8 %v6812
      %v6814 = vlaneseq
      %v6815 = vshrl.u32 %v6814, 7
      %v6816 = vsub.s32 %v6813, %v6815
      %v6817 = vrot.slane %v6789, %v6816
      %v6818 = vcombine.high %v6803, %v6803
      %v6819 = vcombine.high %v6810, %v6810
      %v6820 = vcombine.high %v6817, %v6817
      %v6821 = vcombine.high %v6594, %v6594
      %v6823 = vunpack.c.l.s4 1966171168
      %v6824 = vunpack.c.0.s8 %v6823
      %v6825 = vlaneseq
      %v6826 = vshrl.u32 %v6825, 7
      %v6827 = vsub.s32 %v6824, %v6826
      %v6828 = vrot.slane %v6594, %v6827
      %v6830 = vunpack.c.l.s4 1966171168
      %v6831 = vunpack.c.0.s8 %v6830
      %v6832 = vlaneseq
      %v6833 = vshrl.u32 %v6832, 7
      %v6834 = vsub.s32 %v6831, %v6833
      %v6835 = vrot.slane %v6821, %v6834
      %v6836 = vcombine.high %v6828, %v6828
      %v6837 = vcombine.high %v6835, %v6835
      %v6839 = vunpack.c.l.s4 1966171168
      %v6840 = vunpack.c.0.s8 %v6839
      %v6841 = vlaneseq
      %v6842 = vshrl.u32 %v6841, 7
      %v6843 = vsub.s32 %v6840, %v6842
      %v6844 = vrot.slane %v6828, %v6843
      %v6846 = vunpack.c.l.s4 1966171168
      %v6847 = vunpack.c.0.s8 %v6846
      %v6848 = vlaneseq
      %v6849 = vshrl.u32 %v6848, 7
      %v6850 = vsub.s32 %v6847, %v6849
      %v6851 = vrot.slane %v6835, %v6850
      %v6853 = vunpack.c.l.s4 1966171168
      %v6854 = vunpack.c.0.s8 %v6853
      %v6855 = vlaneseq
      %v6856 = vshrl.u32 %v6855, 7
      %v6857 = vsub.s32 %v6854, %v6856
      %v6858 = vrot.slane %v6836, %v6857
      %v6860 = vunpack.c.l.s4 1966171168
      %v6861 = vunpack.c.0.s8 %v6860
      %v6862 = vlaneseq
      %v6863 = vshrl.u32 %v6862, 7
      %v6864 = vsub.s32 %v6861, %v6863
      %v6865 = vrot.slane %v6837, %v6864
      %v6866 = vcombine.high %v6844, %v6844
      %v6867 = vcombine.high %v6851, %v6851
      %v6868 = vcombine.high %v6865, %v6865
      %v6869 = vcombine.high %v6595, %v6595
      %v6871 = vunpack.c.l.s4 1966171168
      %v6872 = vunpack.c.0.s8 %v6871
      %v6873 = vlaneseq
      %v6874 = vshrl.u32 %v6873, 7
      %v6875 = vsub.s32 %v6872, %v6874
      %v6876 = vrot.slane %v6595, %v6875
      %v6878 = vunpack.c.l.s4 1966171168
      %v6879 = vunpack.c.0.s8 %v6878
      %v6880 = vlaneseq
      %v6881 = vshrl.u32 %v6880, 7
      %v6882 = vsub.s32 %v6879, %v6881
      %v6883 = vrot.slane %v6869, %v6882
      %v6884 = vcombine.high %v6876, %v6876
      %v6885 = vcombine.high %v6883, %v6883
      %v6887 = vunpack.c.l.s4 1966171168
      %v6888 = vunpack.c.0.s8 %v6887
      %v6889 = vlaneseq
      %v6890 = vshrl.u32 %v6889, 7
      %v6891 = vsub.s32 %v6888, %v6890
      %v6892 = vrot.slane %v6876, %v6891
      %v6894 = vunpack.c.l.s4 1966171168
      %v6895 = vunpack.c.0.s8 %v6894
      %v6896 = vlaneseq
      %v6897 = vshrl.u32 %v6896, 7
      %v6898 = vsub.s32 %v6895, %v6897
      %v6899 = vrot.slane %v6883, %v6898
      %v6901 = vunpack.c.l.s4 1966171168
      %v6902 = vunpack.c.0.s8 %v6901
      %v6903 = vlaneseq
      %v6904 = vshrl.u32 %v6903, 7
      %v6905 = vsub.s32 %v6902, %v6904
      %v6906 = vrot.slane %v6884, %v6905
      %v6908 = vunpack.c.l.s4 1966171168
      %v6909 = vunpack.c.0.s8 %v6908
      %v6910 = vlaneseq
      %v6911 = vshrl.u32 %v6910, 7
      %v6912 = vsub.s32 %v6909, %v6911
      %v6913 = vrot.slane %v6885, %v6912
      %v6914 = vcombine.high %v6892, %v6892
      %v6915 = vcombine.high %v6899, %v6899
      %v6916 = vcombine.high %v6906, %v6906
      %v6917 = vcombine.high %v6913, %v6913
      %v6918 = vcombine.high %v6596, %v6596
      %v6920 = vunpack.c.l.s4 1966171168
      %v6921 = vunpack.c.0.s8 %v6920
      %v6922 = vlaneseq
      %v6923 = vshrl.u32 %v6922, 7
      %v6924 = vsub.s32 %v6921, %v6923
      %v6925 = vrot.slane %v6596, %v6924
      %v6927 = vunpack.c.l.s4 1966171168
      %v6928 = vunpack.c.0.s8 %v6927
      %v6929 = vlaneseq
      %v6930 = vshrl.u32 %v6929, 7
      %v6931 = vsub.s32 %v6928, %v6930
      %v6932 = vrot.slane %v6918, %v6931
      %v6933 = vcombine.high %v6925, %v6925
      %v6934 = vcombine.high %v6932, %v6932
      %v6936 = vunpack.c.l.s4 1966171168
      %v6937 = vunpack.c.0.s8 %v6936
      %v6938 = vlaneseq
      %v6939 = vshrl.u32 %v6938, 7
      %v6940 = vsub.s32 %v6937, %v6939
      %v6941 = vrot.slane %v6925, %v6940
      %v6943 = vunpack.c.l.s4 1966171168
      %v6944 = vunpack.c.0.s8 %v6943
      %v6945 = vlaneseq
      %v6946 = vshrl.u32 %v6945, 7
      %v6947 = vsub.s32 %v6944, %v6946
      %v6948 = vrot.slane %v6932, %v6947
      %v6950 = vunpack.c.l.s4 1966171168
      %v6951 = vunpack.c.0.s8 %v6950
      %v6952 = vlaneseq
      %v6953 = vshrl.u32 %v6952, 7
      %v6954 = vsub.s32 %v6951, %v6953
      %v6955 = vrot.slane %v6933, %v6954
      %v6957 = vunpack.c.l.s4 1966171168
      %v6958 = vunpack.c.0.s8 %v6957
      %v6959 = vlaneseq
      %v6960 = vshrl.u32 %v6959, 7
      %v6961 = vsub.s32 %v6958, %v6960
      %v6962 = vrot.slane %v6934, %v6961
      %v6963 = vcombine.high %v6941, %v6941
      %v6964 = vcombine.high %v6948, %v6948
      %v6965 = vcombine.high %v6955, %v6955
      %v6966 = vcombine.high %v6962, %v6962
      %v6967 = vcombine.high %v6597, %v6597
      %v6969 = vunpack.c.l.s4 1966171168
      %v6970 = vunpack.c.0.s8 %v6969
      %v6971 = vlaneseq
      %v6972 = vshrl.u32 %v6971, 7
      %v6973 = vsub.s32 %v6970, %v6972
      %v6974 = vrot.slane %v6597, %v6973
      %v6976 = vunpack.c.l.s4 1966171168
      %v6977 = vunpack.c.0.s8 %v6976
      %v6978 = vlaneseq
      %v6979 = vshrl.u32 %v6978, 7
      %v6980 = vsub.s32 %v6977, %v6979
      %v6981 = vrot.slane %v6967, %v6980
      %v6982 = vcombine.high %v6974, %v6974
      %v6983 = vcombine.high %v6981, %v6981
      %v6985 = vunpack.c.l.s4 1966171168
      %v6986 = vunpack.c.0.s8 %v6985
      %v6987 = vlaneseq
      %v6988 = vshrl.u32 %v6987, 7
      %v6989 = vsub.s32 %v6986, %v6988
      %v6990 = vrot.slane %v6974, %v6989
      %v6992 = vunpack.c.l.s4 1966171168
      %v6993 = vunpack.c.0.s8 %v6992
      %v6994 = vlaneseq
      %v6995 = vshrl.u32 %v6994, 7
      %v6996 = vsub.s32 %v6993, %v6995
      %v6997 = vrot.slane %v6981, %v6996
      %v6999 = vunpack.c.l.s4 1966171168
      %v7000 = vunpack.c.0.s8 %v6999
      %v7001 = vlaneseq
      %v7002 = vshrl.u32 %v7001, 7
      %v7003 = vsub.s32 %v7000, %v7002
      %v7004 = vrot.slane %v6982, %v7003
      %v7006 = vunpack.c.l.s4 1966171168
      %v7007 = vunpack.c.0.s8 %v7006
      %v7008 = vlaneseq
      %v7009 = vshrl.u32 %v7008, 7
      %v7010 = vsub.s32 %v7007, %v7009
      %v7011 = vrot.slane %v6983, %v7010
      %v7012 = vcombine.high %v6990, %v6990
      %v7013 = vcombine.high %v7004, %v7004
      %v7014 = vcombine.high %v7011, %v7011
      %v7015 = vcombine.high %v6598, %v6598
      %v7017 = vunpack.c.l.s4 1966171168
      %v7018 = vunpack.c.0.s8 %v7017
      %v7019 = vlaneseq
      %v7020 = vshrl.u32 %v7019, 7
      %v7021 = vsub.s32 %v7018, %v7020
      %v7022 = vrot.slane %v6598, %v7021
      %v7024 = vunpack.c.l.s4 1966171168
      %v7025 = vunpack.c.0.s8 %v7024
      %v7026 = vlaneseq
      %v7027 = vshrl.u32 %v7026, 7
      %v7028 = vsub.s32 %v7025, %v7027
      %v7029 = vrot.slane %v7015, %v7028
      %v7030 = vcombine.high %v7022, %v7022
      %v7031 = vcombine.high %v7029, %v7029
      %v7033 = vunpack.c.l.s4 1966171168
      %v7034 = vunpack.c.0.s8 %v7033
      %v7035 = vlaneseq
      %v7036 = vshrl.u32 %v7035, 7
      %v7037 = vsub.s32 %v7034, %v7036
      %v7038 = vrot.slane %v7022, %v7037
      %v7040 = vunpack.c.l.s4 1966171168
      %v7041 = vunpack.c.0.s8 %v7040
      %v7042 = vlaneseq
      %v7043 = vshrl.u32 %v7042, 7
      %v7044 = vsub.s32 %v7041, %v7043
      %v7045 = vrot.slane %v7029, %v7044
      %v7047 = vunpack.c.l.s4 1966171168
      %v7048 = vunpack.c.0.s8 %v7047
      %v7049 = vlaneseq
      %v7050 = vshrl.u32 %v7049, 7
      %v7051 = vsub.s32 %v7048, %v7050
      %v7052 = vrot.slane %v7030, %v7051
      %v7054 = vunpack.c.l.s4 1966171168
      %v7055 = vunpack.c.0.s8 %v7054
      %v7056 = vlaneseq
      %v7057 = vshrl.u32 %v7056, 7
      %v7058 = vsub.s32 %v7055, %v7057
      %v7059 = vrot.slane %v7031, %v7058
      %v7060 = vcombine.high %v7038, %v7038
      %v7061 = vcombine.high %v7045, %v7045
      %v7062 = vcombine.high %v7052, %v7052
      %v7063 = vcombine.high %v6599, %v6599
      %v7065 = vunpack.c.l.s4 1966171168
      %v7066 = vunpack.c.0.s8 %v7065
      %v7067 = vlaneseq
      %v7068 = vshrl.u32 %v7067, 7
      %v7069 = vsub.s32 %v7066, %v7068
      %v7070 = vrot.slane %v6599, %v7069
      %v7072 = vunpack.c.l.s4 1966171168
      %v7073 = vunpack.c.0.s8 %v7072
      %v7074 = vlaneseq
      %v7075 = vshrl.u32 %v7074, 7
      %v7076 = vsub.s32 %v7073, %v7075
      %v7077 = vrot.slane %v7063, %v7076
      %v7078 = vcombine.high %v7070, %v7070
      %v7079 = vcombine.high %v7077, %v7077
      %v7081 = vunpack.c.l.s4 1966171168
      %v7082 = vunpack.c.0.s8 %v7081
      %v7083 = vlaneseq
      %v7084 = vshrl.u32 %v7083, 7
      %v7085 = vsub.s32 %v7082, %v7084
      %v7086 = vrot.slane %v7070, %v7085
      %v7088 = vunpack.c.l.s4 1966171168
      %v7089 = vunpack.c.0.s8 %v7088
      %v7090 = vlaneseq
      %v7091 = vshrl.u32 %v7090, 7
      %v7092 = vsub.s32 %v7089, %v7091
      %v7093 = vrot.slane %v7077, %v7092
      %v7095 = vunpack.c.l.s4 1966171168
      %v7096 = vunpack.c.0.s8 %v7095
      %v7097 = vlaneseq
      %v7098 = vshrl.u32 %v7097, 7
      %v7099 = vsub.s32 %v7096, %v7098
      %v7100 = vrot.slane %v7078, %v7099
      %v7102 = vunpack.c.l.s4 1966171168
      %v7103 = vunpack.c.0.s8 %v7102
      %v7104 = vlaneseq
      %v7105 = vshrl.u32 %v7104, 7
      %v7106 = vsub.s32 %v7103, %v7105
      %v7107 = vrot.slane %v7079, %v7106
      %v7108 = vcombine.high %v7086, %v7086
      %v7109 = vcombine.high %v7093, %v7093
      %v7110 = vcombine.high %v7100, %v7100
      %v7111 = vcombine.high %v7107, %v7107
      %v7112 = vcombine.high %v6600, %v6600
      %v7114 = vunpack.c.l.s4 1966171168
      %v7115 = vunpack.c.0.s8 %v7114
      %v7116 = vlaneseq
      %v7117 = vshrl.u32 %v7116, 7
      %v7118 = vsub.s32 %v7115, %v7117
      %v7119 = vrot.slane %v6600, %v7118
      %v7121 = vunpack.c.l.s4 1966171168
      %v7122 = vunpack.c.0.s8 %v7121
      %v7123 = vlaneseq
      %v7124 = vshrl.u32 %v7123, 7
      %v7125 = vsub.s32 %v7122, %v7124
      %v7126 = vrot.slane %v7112, %v7125
      %v7127 = vcombine.high %v7119, %v7119
      %v7128 = vcombine.high %v7126, %v7126
      %v7130 = vunpack.c.l.s4 1966171168
      %v7131 = vunpack.c.0.s8 %v7130
      %v7132 = vlaneseq
      %v7133 = vshrl.u32 %v7132, 7
      %v7134 = vsub.s32 %v7131, %v7133
      %v7135 = vrot.slane %v7119, %v7134
      %v7137 = vunpack.c.l.s4 1966171168
      %v7138 = vunpack.c.0.s8 %v7137
      %v7139 = vlaneseq
      %v7140 = vshrl.u32 %v7139, 7
      %v7141 = vsub.s32 %v7138, %v7140
      %v7142 = vrot.slane %v7126, %v7141
      %v7144 = vunpack.c.l.s4 1966171168
      %v7145 = vunpack.c.0.s8 %v7144
      %v7146 = vlaneseq
      %v7147 = vshrl.u32 %v7146, 7
      %v7148 = vsub.s32 %v7145, %v7147
      %v7149 = vrot.slane %v7127, %v7148
      %v7151 = vunpack.c.l.s4 1966171168
      %v7152 = vunpack.c.0.s8 %v7151
      %v7153 = vlaneseq
      %v7154 = vshrl.u32 %v7153, 7
      %v7155 = vsub.s32 %v7152, %v7154
      %v7156 = vrot.slane %v7128, %v7155
      %v7157 = vcombine.high %v7135, %v7135
      %v7158 = vcombine.high %v7142, %v7142
      %v7159 = vcombine.high %v7149, %v7149
      %v7160 = vcombine.high %v7156, %v7156
      %v7161 = vcombine.high %v6601, %v6601
      %v7163 = vunpack.c.l.s4 1966171168
      %v7164 = vunpack.c.0.s8 %v7163
      %v7165 = vlaneseq
      %v7166 = vshrl.u32 %v7165, 7
      %v7167 = vsub.s32 %v7164, %v7166
      %v7168 = vrot.slane %v6601, %v7167
      %v7170 = vunpack.c.l.s4 1966171168
      %v7171 = vunpack.c.0.s8 %v7170
      %v7172 = vlaneseq
      %v7173 = vshrl.u32 %v7172, 7
      %v7174 = vsub.s32 %v7171, %v7173
      %v7175 = vrot.slane %v7161, %v7174
      %v7176 = vcombine.high %v7168, %v7168
      %v7177 = vcombine.high %v7175, %v7175
      %v7179 = vunpack.c.l.s4 1966171168
      %v7180 = vunpack.c.0.s8 %v7179
      %v7181 = vlaneseq
      %v7182 = vshrl.u32 %v7181, 7
      %v7183 = vsub.s32 %v7180, %v7182
      %v7184 = vrot.slane %v7168, %v7183
      %v7186 = vunpack.c.l.s4 1966171168
      %v7187 = vunpack.c.0.s8 %v7186
      %v7188 = vlaneseq
      %v7189 = vshrl.u32 %v7188, 7
      %v7190 = vsub.s32 %v7187, %v7189
      %v7191 = vrot.slane %v7175, %v7190
      %v7193 = vunpack.c.l.s4 1966171168
      %v7194 = vunpack.c.0.s8 %v7193
      %v7195 = vlaneseq
      %v7196 = vshrl.u32 %v7195, 7
      %v7197 = vsub.s32 %v7194, %v7196
      %v7198 = vrot.slane %v7176, %v7197
      %v7200 = vunpack.c.l.s4 1966171168
      %v7201 = vunpack.c.0.s8 %v7200
      %v7202 = vlaneseq
      %v7203 = vshrl.u32 %v7202, 7
      %v7204 = vsub.s32 %v7201, %v7203
      %v7205 = vrot.slane %v7177, %v7204
      %v7206 = vcombine.high %v7184, %v7184
      %v7207 = vcombine.high %v7191, %v7191
      %v7208 = vcombine.high %v7198, %v7198
      %v7209 = vcombine.high %v7205, %v7205
      %v7210 = vcombine.high %v6602, %v6602
      %v7212 = vunpack.c.l.s4 1966171168
      %v7213 = vunpack.c.0.s8 %v7212
      %v7214 = vlaneseq
      %v7215 = vshrl.u32 %v7214, 7
      %v7216 = vsub.s32 %v7213, %v7215
      %v7217 = vrot.slane %v6602, %v7216
      %v7219 = vunpack.c.l.s4 1966171168
      %v7220 = vunpack.c.0.s8 %v7219
      %v7221 = vlaneseq
      %v7222 = vshrl.u32 %v7221, 7
      %v7223 = vsub.s32 %v7220, %v7222
      %v7224 = vrot.slane %v7210, %v7223
      %v7225 = vcombine.high %v7217, %v7217
      %v7226 = vcombine.high %v7224, %v7224
      %v7228 = vunpack.c.l.s4 1966171168
      %v7229 = vunpack.c.0.s8 %v7228
      %v7230 = vlaneseq
      %v7231 = vshrl.u32 %v7230, 7
      %v7232 = vsub.s32 %v7229, %v7231
      %v7233 = vrot.slane %v7217, %v7232
      %v7235 = vunpack.c.l.s4 1966171168
      %v7236 = vunpack.c.0.s8 %v7235
      %v7237 = vlaneseq
      %v7238 = vshrl.u32 %v7237, 7
      %v7239 = vsub.s32 %v7236, %v7238
      %v7240 = vrot.slane %v7224, %v7239
      %v7242 = vunpack.c.l.s4 1966171168
      %v7243 = vunpack.c.0.s8 %v7242
      %v7244 = vlaneseq
      %v7245 = vshrl.u32 %v7244, 7
      %v7246 = vsub.s32 %v7243, %v7245
      %v7247 = vrot.slane %v7225, %v7246
      %v7249 = vunpack.c.l.s4 1966171168
      %v7250 = vunpack.c.0.s8 %v7249
      %v7251 = vlaneseq
      %v7252 = vshrl.u32 %v7251, 7
      %v7253 = vsub.s32 %v7250, %v7252
      %v7254 = vrot.slane %v7226, %v7253
      %v7255 = vcombine.high %v7240, %v7240
      %v7256 = vcombine.high %v7247, %v7247
      %v7257 = vcombine.high %v7254, %v7254
      %v7258 = vcombine.high %v6603, %v6603
      %v7260 = vunpack.c.l.s4 1966171168
      %v7261 = vunpack.c.0.s8 %v7260
      %v7262 = vlaneseq
      %v7263 = vshrl.u32 %v7262, 7
      %v7264 = vsub.s32 %v7261, %v7263
      %v7265 = vrot.slane %v6603, %v7264
      %v7267 = vunpack.c.l.s4 1966171168
      %v7268 = vunpack.c.0.s8 %v7267
      %v7269 = vlaneseq
      %v7270 = vshrl.u32 %v7269, 7
      %v7271 = vsub.s32 %v7268, %v7270
      %v7272 = vrot.slane %v7258, %v7271
      %v7273 = vcombine.high %v7265, %v7265
      %v7274 = vcombine.high %v7272, %v7272
      %v7276 = vunpack.c.l.s4 1966171168
      %v7277 = vunpack.c.0.s8 %v7276
      %v7278 = vlaneseq
      %v7279 = vshrl.u32 %v7278, 7
      %v7280 = vsub.s32 %v7277, %v7279
      %v7281 = vrot.slane %v7265, %v7280
      %v7283 = vunpack.c.l.s4 1966171168
      %v7284 = vunpack.c.0.s8 %v7283
      %v7285 = vlaneseq
      %v7286 = vshrl.u32 %v7285, 7
      %v7287 = vsub.s32 %v7284, %v7286
      %v7288 = vrot.slane %v7272, %v7287
      %v7290 = vunpack.c.l.s4 1966171168
      %v7291 = vunpack.c.0.s8 %v7290
      %v7292 = vlaneseq
      %v7293 = vshrl.u32 %v7292, 7
      %v7294 = vsub.s32 %v7291, %v7293
      %v7295 = vrot.slane %v7273, %v7294
      %v7297 = vunpack.c.l.s4 1966171168
      %v7298 = vunpack.c.0.s8 %v7297
      %v7299 = vlaneseq
      %v7300 = vshrl.u32 %v7299, 7
      %v7301 = vsub.s32 %v7298, %v7300
      %v7302 = vrot.slane %v7274, %v7301
      %v7303 = vcombine.high %v7281, %v7281
      %v7304 = vcombine.high %v7288, %v7288
      %v7305 = vcombine.high %v7302, %v7302
      %v7306 = vcombine.high %v6604, %v6604
      %v7308 = vunpack.c.l.s4 1966171168
      %v7309 = vunpack.c.0.s8 %v7308
      %v7310 = vlaneseq
      %v7311 = vshrl.u32 %v7310, 7
      %v7312 = vsub.s32 %v7309, %v7311
      %v7313 = vrot.slane %v6604, %v7312
      %v7315 = vunpack.c.l.s4 1966171168
      %v7316 = vunpack.c.0.s8 %v7315
      %v7317 = vlaneseq
      %v7318 = vshrl.u32 %v7317, 7
      %v7319 = vsub.s32 %v7316, %v7318
      %v7320 = vrot.slane %v7306, %v7319
      %v7321 = vcombine.high %v7313, %v7313
      %v7322 = vcombine.high %v7320, %v7320
      %v7324 = vunpack.c.l.s4 1966171168
      %v7325 = vunpack.c.0.s8 %v7324
      %v7326 = vlaneseq
      %v7327 = vshrl.u32 %v7326, 7
      %v7328 = vsub.s32 %v7325, %v7327
      %v7329 = vrot.slane %v7313, %v7328
      %v7331 = vunpack.c.l.s4 1966171168
      %v7332 = vunpack.c.0.s8 %v7331
      %v7333 = vlaneseq
      %v7334 = vshrl.u32 %v7333, 7
      %v7335 = vsub.s32 %v7332, %v7334
      %v7336 = vrot.slane %v7320, %v7335
      %v7338 = vunpack.c.l.s4 1966171168
      %v7339 = vunpack.c.0.s8 %v7338
      %v7340 = vlaneseq
      %v7341 = vshrl.u32 %v7340, 7
      %v7342 = vsub.s32 %v7339, %v7341
      %v7343 = vrot.slane %v7321, %v7342
      %v7345 = vunpack.c.l.s4 1966171168
      %v7346 = vunpack.c.0.s8 %v7345
      %v7347 = vlaneseq
      %v7348 = vshrl.u32 %v7347, 7
      %v7349 = vsub.s32 %v7346, %v7348
      %v7350 = vrot.slane %v7322, %v7349
      %v7351 = vcombine.high %v7329, %v7329
      %v7352 = vcombine.high %v7336, %v7336
      %v7353 = vcombine.high %v7343, %v7343
      %v7354 = vcombine.high %v7350, %v7350
      %v7355 = vcombine.high %v6605, %v6605
      %v7357 = vunpack.c.l.s4 1966171168
      %v7358 = vunpack.c.0.s8 %v7357
      %v7359 = vlaneseq
      %v7360 = vshrl.u32 %v7359, 7
      %v7361 = vsub.s32 %v7358, %v7360
      %v7362 = vrot.slane %v6605, %v7361
      %v7364 = vunpack.c.l.s4 1966171168
      %v7365 = vunpack.c.0.s8 %v7364
      %v7366 = vlaneseq
      %v7367 = vshrl.u32 %v7366, 7
      %v7368 = vsub.s32 %v7365, %v7367
      %v7369 = vrot.slane %v7355, %v7368
      %v7370 = vcombine.high %v7362, %v7362
      %v7371 = vcombine.high %v7369, %v7369
      %v7373 = vunpack.c.l.s4 1966171168
      %v7374 = vunpack.c.0.s8 %v7373
      %v7375 = vlaneseq
      %v7376 = vshrl.u32 %v7375, 7
      %v7377 = vsub.s32 %v7374, %v7376
      %v7378 = vrot.slane %v7362, %v7377
      %v7380 = vunpack.c.l.s4 1966171168
      %v7381 = vunpack.c.0.s8 %v7380
      %v7382 = vlaneseq
      %v7383 = vshrl.u32 %v7382, 7
      %v7384 = vsub.s32 %v7381, %v7383
      %v7385 = vrot.slane %v7369, %v7384
      %v7387 = vunpack.c.l.s4 1966171168
      %v7388 = vunpack.c.0.s8 %v7387
      %v7389 = vlaneseq
      %v7390 = vshrl.u32 %v7389, 7
      %v7391 = vsub.s32 %v7388, %v7390
      %v7392 = vrot.slane %v7370, %v7391
      %v7394 = vunpack.c.l.s4 1966171168
      %v7395 = vunpack.c.0.s8 %v7394
      %v7396 = vlaneseq
      %v7397 = vshrl.u32 %v7396, 7
      %v7398 = vsub.s32 %v7395, %v7397
      %v7399 = vrot.slane %v7371, %v7398
      %v7400 = vcombine.high %v7378, %v7378
      %v7401 = vcombine.high %v7385, %v7385
      %v7402 = vcombine.high %v7392, %v7392
      %v7403 = vcombine.high %v7399, %v7399
      %v7404 = vcombine.high %v6606, %v6606
      %v7406 = vunpack.c.l.s4 1966171168
      %v7407 = vunpack.c.0.s8 %v7406
      %v7408 = vlaneseq
      %v7409 = vshrl.u32 %v7408, 7
      %v7410 = vsub.s32 %v7407, %v7409
      %v7411 = vrot.slane %v6606, %v7410
      %v7413 = vunpack.c.l.s4 1966171168
      %v7414 = vunpack.c.0.s8 %v7413
      %v7415 = vlaneseq
      %v7416 = vshrl.u32 %v7415, 7
      %v7417 = vsub.s32 %v7414, %v7416
      %v7418 = vrot.slane %v7404, %v7417
      %v7419 = vcombine.high %v7411, %v7411
      %v7420 = vcombine.high %v7418, %v7418
      %v7422 = vunpack.c.l.s4 1966171168
      %v7423 = vunpack.c.0.s8 %v7422
      %v7424 = vlaneseq
      %v7425 = vshrl.u32 %v7424, 7
      %v7426 = vsub.s32 %v7423, %v7425
      %v7427 = vrot.slane %v7411, %v7426
      %v7429 = vunpack.c.l.s4 1966171168
      %v7430 = vunpack.c.0.s8 %v7429
      %v7431 = vlaneseq
      %v7432 = vshrl.u32 %v7431, 7
      %v7433 = vsub.s32 %v7430, %v7432
      %v7434 = vrot.slane %v7418, %v7433
      %v7436 = vunpack.c.l.s4 1966171168
      %v7437 = vunpack.c.0.s8 %v7436
      %v7438 = vlaneseq
      %v7439 = vshrl.u32 %v7438, 7
      %v7440 = vsub.s32 %v7437, %v7439
      %v7441 = vrot.slane %v7419, %v7440
      %v7443 = vunpack.c.l.s4 1966171168
      %v7444 = vunpack.c.0.s8 %v7443
      %v7445 = vlaneseq
      %v7446 = vshrl.u32 %v7445, 7
      %v7447 = vsub.s32 %v7444, %v7446
      %v7448 = vrot.slane %v7420, %v7447
      %v7449 = vcombine.high %v7427, %v7427
      %v7450 = vcombine.high %v7441, %v7441
      %v7451 = vcombine.high %v7448, %v7448
      %v7452 = vcombine.high %v6607, %v6607
      %v7454 = vunpack.c.l.s4 1966171168
      %v7455 = vunpack.c.0.s8 %v7454
      %v7456 = vlaneseq
      %v7457 = vshrl.u32 %v7456, 7
      %v7458 = vsub.s32 %v7455, %v7457
      %v7459 = vrot.slane %v6607, %v7458
      %v7461 = vunpack.c.l.s4 1966171168
      %v7462 = vunpack.c.0.s8 %v7461
      %v7463 = vlaneseq
      %v7464 = vshrl.u32 %v7463, 7
      %v7465 = vsub.s32 %v7462, %v7464
      %v7466 = vrot.slane %v7452, %v7465
      %v7467 = vcombine.high %v7459, %v7459
      %v7468 = vcombine.high %v7466, %v7466
      %v7470 = vunpack.c.l.s4 1966171168
      %v7471 = vunpack.c.0.s8 %v7470
      %v7472 = vlaneseq
      %v7473 = vshrl.u32 %v7472, 7
      %v7474 = vsub.s32 %v7471, %v7473
      %v7475 = vrot.slane %v7459, %v7474
      %v7477 = vunpack.c.l.s4 1966171168
      %v7478 = vunpack.c.0.s8 %v7477
      %v7479 = vlaneseq
      %v7480 = vshrl.u32 %v7479, 7
      %v7481 = vsub.s32 %v7478, %v7480
      %v7482 = vrot.slane %v7466, %v7481
      %v7484 = vunpack.c.l.s4 1966171168
      %v7485 = vunpack.c.0.s8 %v7484
      %v7486 = vlaneseq
      %v7487 = vshrl.u32 %v7486, 7
      %v7488 = vsub.s32 %v7485, %v7487
      %v7489 = vrot.slane %v7467, %v7488
      %v7491 = vunpack.c.l.s4 1966171168
      %v7492 = vunpack.c.0.s8 %v7491
      %v7493 = vlaneseq
      %v7494 = vshrl.u32 %v7493, 7
      %v7495 = vsub.s32 %v7492, %v7494
      %v7496 = vrot.slane %v7468, %v7495
      %v7497 = vcombine.high %v7475, %v7475
      %v7498 = vcombine.high %v7482, %v7482
      %v7499 = vcombine.high %v7489, %v7489
      %v7500 = vld [vmem:[%s5] sm:$0xf]
      %v7501 = vld [vmem:[%s5 + $0x4] sm:$0xf]
      %v7502 = vld [vmem:[%s5 + $0x8] sm:$0xf]
      %v7503 = vld [vmem:[%s5 + $0xc] sm:$0xf]
      %v7504 = vld [vmem:[%s5 + $0x10] sm:$0xf]
      %v7505 = vld [vmem:[%s5 + $0x14] sm:$0xf]
      %v7506 = vld [vmem:[%s5 + $0x18] sm:$0xf]
      %v7507 = vld [vmem:[%s5 + $0x1c] sm:$0xf]
      %v7508 = vld [vmem:[%s5 + $0x20] sm:$0xf]
      %v7509 = vld [vmem:[%s5 + $0x24] sm:$0xf]
      %v7510 = vld [vmem:[%s5 + $0x28] sm:$0xf]
      %v7511 = vld [vmem:[%s5 + $0x2c] sm:$0xf]
      %v7512 = vld [vmem:[%s5 + $0x30] sm:$0xf]
      %v7513 = vld [vmem:[%s5 + $0x34] sm:$0xf]
      %v7514 = vld [vmem:[%s5 + $0x38] sm:$0xf]
      %v7515 = vld [vmem:[%s5 + $0x3c] sm:$0xf]
      %v7516 = vld [vmem:[%s6] sm:$0x1]
      %v7518 = vlaneseq
      %v7519 = vshrl.u32 %v7518, 7
      %v7520 = vsub.s32 0, %v7519
      %v7521 = vrot.slane %v7516, %v7520
      %v7523 = vcombine.low %v6649, %v6663
      %v7524 = vcombine.low %v6671, %v6673
      %v7525 = vcombine.low %v6656, %v6670
      %v7526 = vcombine.low %v6672, %v6674
      %v7528 = vunpack.c.l.s4 1966171168
      %v7529 = vunpack.c.0.s8 %v7528
      %v7530 = vlaneseq
      %v7531 = vshrl.u32 %v7530, 7
      %v7532 = vsub.s32 %v7529, %v7531
      %v7533 = vrot.slane %v7523, %v7532
      %v7535 = vunpack.c.l.s4 1966171168
      %v7536 = vunpack.c.0.s8 %v7535
      %v7537 = vlaneseq
      %v7538 = vshrl.u32 %v7537, 7
      %v7539 = vsub.s32 %v7536, %v7538
      %v7540 = vrot.slane %v7524, %v7539
      %v7542 = vunpack.c.l.s4 1966171168
      %v7543 = vunpack.c.0.s8 %v7542
      %v7544 = vlaneseq
      %v7545 = vshrl.u32 %v7544, 7
      %v7546 = vsub.s32 %v7543, %v7545
      %v7547 = vrot.slane %v7525, %v7546
      %v7549 = vunpack.c.l.s4 1966171168
      %v7550 = vunpack.c.0.s8 %v7549
      %v7551 = vlaneseq
      %v7552 = vshrl.u32 %v7551, 7
      %v7553 = vsub.s32 %v7550, %v7552
      %v7554 = vrot.slane %v7526, %v7553
      %v7555 = vcombine.low %v7533, %v7540
      %v7556 = vcombine.low %v7547, %v7554
      %v7558 = vunpack.c.l.s4 1966171168
      %v7559 = vunpack.c.0.s8 %v7558
      %v7560 = vlaneseq
      %v7561 = vshrl.u32 %v7560, 7
      %v7562 = vsub.s32 %v7559, %v7561
      %v7563 = vrot.slane %v7555, %v7562
      %v7565 = vunpack.c.l.s4 1966171168
      %v7566 = vunpack.c.0.s8 %v7565
      %v7567 = vlaneseq
      %v7568 = vshrl.u32 %v7567, 7
      %v7569 = vsub.s32 %v7566, %v7568
      %v7570 = vrot.slane %v7556, %v7569
      %v7571 = vcombine.low %v7563, %v7570
      %v7572 = vcombine.low %v6712, %v6720
      %v7573 = vcombine.low %v6722, %v6705
      %v7574 = vcombine.low %v6719, %v6721
      %v7575 = vcombine.low %v6723, %v6747
      %v7577 = vunpack.c.l.s4 1966171168
      %v7578 = vunpack.c.0.s8 %v7577
      %v7579 = vlaneseq
      %v7580 = vshrl.u32 %v7579, 7
      %v7581 = vsub.s32 %v7578, %v7580
      %v7582 = vrot.slane %v7572, %v7581
      %v7584 = vunpack.c.l.s4 1966171168
      %v7585 = vunpack.c.0.s8 %v7584
      %v7586 = vlaneseq
      %v7587 = vshrl.u32 %v7586, 7
      %v7588 = vsub.s32 %v7585, %v7587
      %v7589 = vrot.slane %v7573, %v7588
      %v7591 = vunpack.c.l.s4 1966171168
      %v7592 = vunpack.c.0.s8 %v7591
      %v7593 = vlaneseq
      %v7594 = vshrl.u32 %v7593, 7
      %v7595 = vsub.s32 %v7592, %v7594
      %v7596 = vrot.slane %v7574, %v7595
      %v7598 = vunpack.c.l.s4 1966171168
      %v7599 = vunpack.c.0.s8 %v7598
      %v7600 = vlaneseq
      %v7601 = vshrl.u32 %v7600, 7
      %v7602 = vsub.s32 %v7599, %v7601
      %v7603 = vrot.slane %v7575, %v7602
      %v7604 = vcombine.low %v7582, %v7589
      %v7605 = vcombine.low %v7596, %v7603
      %v7607 = vunpack.c.l.s4 1966171168
      %v7608 = vunpack.c.0.s8 %v7607
      %v7609 = vlaneseq
      %v7610 = vshrl.u32 %v7609, 7
      %v7611 = vsub.s32 %v7608, %v7610
      %v7612 = vrot.slane %v7604, %v7611
      %v7614 = vunpack.c.l.s4 1966171168
      %v7615 = vunpack.c.0.s8 %v7614
      %v7616 = vlaneseq
      %v7617 = vshrl.u32 %v7616, 7
      %v7618 = vsub.s32 %v7615, %v7617
      %v7619 = vrot.slane %v7605, %v7618
      %v7620 = vcombine.low %v7612, %v7619
      %v7621 = vcombine.low %v6769, %v6771
      %v7622 = vcombine.low %v6754, %v6768
      %v7623 = vcombine.low %v6770, %v6772
      %v7624 = vcombine.low %v6796, %v6810
      %v7626 = vunpack.c.l.s4 1966171168
      %v7627 = vunpack.c.0.s8 %v7626
      %v7628 = vlaneseq
      %v7629 = vshrl.u32 %v7628, 7
      %v7630 = vsub.s32 %v7627, %v7629
      %v7631 = vrot.slane %v7621, %v7630
      %v7633 = vunpack.c.l.s4 1966171168
      %v7634 = vunpack.c.0.s8 %v7633
      %v7635 = vlaneseq
      %v7636 = vshrl.u32 %v7635, 7
      %v7637 = vsub.s32 %v7634, %v7636
      %v7638 = vrot.slane %v7622, %v7637
      %v7640 = vunpack.c.l.s4 1966171168
      %v7641 = vunpack.c.0.s8 %v7640
      %v7642 = vlaneseq
      %v7643 = vshrl.u32 %v7642, 7
      %v7644 = vsub.s32 %v7641, %v7643
      %v7645 = vrot.slane %v7623, %v7644
      %v7647 = vunpack.c.l.s4 1966171168
      %v7648 = vunpack.c.0.s8 %v7647
      %v7649 = vlaneseq
      %v7650 = vshrl.u32 %v7649, 7
      %v7651 = vsub.s32 %v7648, %v7650
      %v7652 = vrot.slane %v7624, %v7651
      %v7653 = vcombine.low %v7631, %v7638
      %v7654 = vcombine.low %v7645, %v7652
      %v7656 = vunpack.c.l.s4 1966171168
      %v7657 = vunpack.c.0.s8 %v7656
      %v7658 = vlaneseq
      %v7659 = vshrl.u32 %v7658, 7
      %v7660 = vsub.s32 %v7657, %v7659
      %v7661 = vrot.slane %v7653, %v7660
      %v7663 = vunpack.c.l.s4 1966171168
      %v7664 = vunpack.c.0.s8 %v7663
      %v7665 = vlaneseq
      %v7666 = vshrl.u32 %v7665, 7
      %v7667 = vsub.s32 %v7664, %v7666
      %v7668 = vrot.slane %v7654, %v7667
      %v7669 = vcombine.low %v7661, %v7668
      %v7670 = vcombine.low %v6819, %v6803
      %v7671 = vcombine.low %v6817, %v6818
      %v7672 = vcombine.low %v6820, %v6844
      %v7673 = vcombine.low %v6858, %v6866
      %v7675 = vunpack.c.l.s4 1966171168
      %v7676 = vunpack.c.0.s8 %v7675
      %v7677 = vlaneseq
      %v7678 = vshrl.u32 %v7677, 7
      %v7679 = vsub.s32 %v7676, %v7678
      %v7680 = vrot.slane %v7670, %v7679
      %v7682 = vunpack.c.l.s4 1966171168
      %v7683 = vunpack.c.0.s8 %v7682
      %v7684 = vlaneseq
      %v7685 = vshrl.u32 %v7684, 7
      %v7686 = vsub.s32 %v7683, %v7685
      %v7687 = vrot.slane %v7671, %v7686
      %v7689 = vunpack.c.l.s4 1966171168
      %v7690 = vunpack.c.0.s8 %v7689
      %v7691 = vlaneseq
      %v7692 = vshrl.u32 %v7691, 7
      %v7693 = vsub.s32 %v7690, %v7692
      %v7694 = vrot.slane %v7672, %v7693
      %v7696 = vunpack.c.l.s4 1966171168
      %v7697 = vunpack.c.0.s8 %v7696
      %v7698 = vlaneseq
      %v7699 = vshrl.u32 %v7698, 7
      %v7700 = vsub.s32 %v7697, %v7699
      %v7701 = vrot.slane %v7673, %v7700
      %v7702 = vcombine.low %v7680, %v7687
      %v7703 = vcombine.low %v7694, %v7701
      %v7705 = vunpack.c.l.s4 1966171168
      %v7706 = vunpack.c.0.s8 %v7705
      %v7707 = vlaneseq
      %v7708 = vshrl.u32 %v7707, 7
      %v7709 = vsub.s32 %v7706, %v7708
      %v7710 = vrot.slane %v7702, %v7709
      %v7712 = vunpack.c.l.s4 1966171168
      %v7713 = vunpack.c.0.s8 %v7712
      %v7714 = vlaneseq
      %v7715 = vshrl.u32 %v7714, 7
      %v7716 = vsub.s32 %v7713, %v7715
      %v7717 = vrot.slane %v7703, %v7716
      %v7718 = vcombine.low %v7710, %v7717
      %v7719 = vcombine.low %v6851, %v6865
      %v7720 = vcombine.low %v6867, %v6868
      %v7721 = vcombine.low %v6892, %v6906
      %v7722 = vcombine.low %v6914, %v6916
      %v7724 = vunpack.c.l.s4 1966171168
      %v7725 = vunpack.c.0.s8 %v7724
      %v7726 = vlaneseq
      %v7727 = vshrl.u32 %v7726, 7
      %v7728 = vsub.s32 %v7725, %v7727
      %v7729 = vrot.slane %v7719, %v7728
      %v7731 = vunpack.c.l.s4 1966171168
      %v7732 = vunpack.c.0.s8 %v7731
      %v7733 = vlaneseq
      %v7734 = vshrl.u32 %v7733, 7
      %v7735 = vsub.s32 %v7732, %v7734
      %v7736 = vrot.slane %v7720, %v7735
      %v7738 = vunpack.c.l.s4 1966171168
      %v7739 = vunpack.c.0.s8 %v7738
      %v7740 = vlaneseq
      %v7741 = vshrl.u32 %v7740, 7
      %v7742 = vsub.s32 %v7739, %v7741
      %v7743 = vrot.slane %v7721, %v7742
      %v7745 = vunpack.c.l.s4 1966171168
      %v7746 = vunpack.c.0.s8 %v7745
      %v7747 = vlaneseq
      %v7748 = vshrl.u32 %v7747, 7
      %v7749 = vsub.s32 %v7746, %v7748
      %v7750 = vrot.slane %v7722, %v7749
      %v7751 = vcombine.low %v7729, %v7736
      %v7752 = vcombine.low %v7743, %v7750
      %v7754 = vunpack.c.l.s4 1966171168
      %v7755 = vunpack.c.0.s8 %v7754
      %v7756 = vlaneseq
      %v7757 = vshrl.u32 %v7756, 7
      %v7758 = vsub.s32 %v7755, %v7757
      %v7759 = vrot.slane %v7751, %v7758
      %v7761 = vunpack.c.l.s4 1966171168
      %v7762 = vunpack.c.0.s8 %v7761
      %v7763 = vlaneseq
      %v7764 = vshrl.u32 %v7763, 7
      %v7765 = vsub.s32 %v7762, %v7764
      %v7766 = vrot.slane %v7752, %v7765
      %v7767 = vcombine.low %v7759, %v7766
      %v7768 = vcombine.low %v6913, %v6915
      %v7769 = vcombine.low %v6917, %v6941
      %v7770 = vcombine.low %v6955, %v6963
      %v7771 = vcombine.low %v6965, %v6948
      %v7773 = vunpack.c.l.s4 1966171168
      %v7774 = vunpack.c.0.s8 %v7773
      %v7775 = vlaneseq
      %v7776 = vshrl.u32 %v7775, 7
      %v7777 = vsub.s32 %v7774, %v7776
      %v7778 = vrot.slane %v7768, %v7777
      %v7780 = vunpack.c.l.s4 1966171168
      %v7781 = vunpack.c.0.s8 %v7780
      %v7782 = vlaneseq
      %v7783 = vshrl.u32 %v7782, 7
      %v7784 = vsub.s32 %v7781, %v7783
      %v7785 = vrot.slane %v7769, %v7784
      %v7787 = vunpack.c.l.s4 1966171168
      %v7788 = vunpack.c.0.s8 %v7787
      %v7789 = vlaneseq
      %v7790 = vshrl.u32 %v7789, 7
      %v7791 = vsub.s32 %v7788, %v7790
      %v7792 = vrot.slane %v7770, %v7791
      %v7794 = vunpack.c.l.s4 1966171168
      %v7795 = vunpack.c.0.s8 %v7794
      %v7796 = vlaneseq
      %v7797 = vshrl.u32 %v7796, 7
      %v7798 = vsub.s32 %v7795, %v7797
      %v7799 = vrot.slane %v7771, %v7798
      %v7800 = vcombine.low %v7778, %v7785
      %v7801 = vcombine.low %v7792, %v7799
      %v7803 = vunpack.c.l.s4 1966171168
      %v7804 = vunpack.c.0.s8 %v7803
      %v7805 = vlaneseq
      %v7806 = vshrl.u32 %v7805, 7
      %v7807 = vsub.s32 %v7804, %v7806
      %v7808 = vrot.slane %v7800, %v7807
      %v7810 = vunpack.c.l.s4 1966171168
      %v7811 = vunpack.c.0.s8 %v7810
      %v7812 = vlaneseq
      %v7813 = vshrl.u32 %v7812, 7
      %v7814 = vsub.s32 %v7811, %v7813
      %v7815 = vrot.slane %v7801, %v7814
      %v7816 = vcombine.low %v7808, %v7815
      %v7817 = vcombine.low %v6964, %v6966
      %v7818 = vcombine.low %v6990, %v7004
      %v7819 = vcombine.low %v7012, %v7013
      %v7820 = vcombine.low %v6997, %v7011
      %v7822 = vunpack.c.l.s4 1966171168
      %v7823 = vunpack.c.0.s8 %v7822
      %v7824 = vlaneseq
      %v7825 = vshrl.u32 %v7824, 7
      %v7826 = vsub.s32 %v7823, %v7825
      %v7827 = vrot.slane %v7817, %v7826
      %v7829 = vunpack.c.l.s4 1966171168
      %v7830 = vunpack.c.0.s8 %v7829
      %v7831 = vlaneseq
      %v7832 = vshrl.u32 %v7831, 7
      %v7833 = vsub.s32 %v7830, %v7832
      %v7834 = vrot.slane %v7818, %v7833
      %v7836 = vunpack.c.l.s4 1966171168
      %v7837 = vunpack.c.0.s8 %v7836
      %v7838 = vlaneseq
      %v7839 = vshrl.u32 %v7838, 7
      %v7840 = vsub.s32 %v7837, %v7839
      %v7841 = vrot.slane %v7819, %v7840
      %v7843 = vunpack.c.l.s4 1966171168
      %v7844 = vunpack.c.0.s8 %v7843
      %v7845 = vlaneseq
      %v7846 = vshrl.u32 %v7845, 7
      %v7847 = vsub.s32 %v7844, %v7846
      %v7848 = vrot.slane %v7820, %v7847
      %v7849 = vcombine.low %v7827, %v7834
      %v7850 = vcombine.low %v7841, %v7848
      %v7852 = vunpack.c.l.s4 1966171168
      %v7853 = vunpack.c.0.s8 %v7852
      %v7854 = vlaneseq
      %v7855 = vshrl.u32 %v7854, 7
      %v7856 = vsub.s32 %v7853, %v7855
      %v7857 = vrot.slane %v7849, %v7856
      %v7859 = vunpack.c.l.s4 1966171168
      %v7860 = vunpack.c.0.s8 %v7859
      %v7861 = vlaneseq
      %v7862 = vshrl.u32 %v7861, 7
      %v7863 = vsub.s32 %v7860, %v7862
      %v7864 = vrot.slane %v7850, %v7863
      %v7865 = vcombine.low %v7857, %v7864
      %v7866 = vcombine.low %v7014, %v7038
      %v7867 = vcombine.low %v7052, %v7060
      %v7868 = vcombine.low %v7062, %v7045
      %v7869 = vcombine.low %v7059, %v7061
      %v7871 = vunpack.c.l.s4 1966171168
      %v7872 = vunpack.c.0.s8 %v7871
      %v7873 = vlaneseq
      %v7874 = vshrl.u32 %v7873, 7
      %v7875 = vsub.s32 %v7872, %v7874
      %v7876 = vrot.slane %v7866, %v7875
      %v7878 = vunpack.c.l.s4 1966171168
      %v7879 = vunpack.c.0.s8 %v7878
      %v7880 = vlaneseq
      %v7881 = vshrl.u32 %v7880, 7
      %v7882 = vsub.s32 %v7879, %v7881
      %v7883 = vrot.slane %v7867, %v7882
      %v7885 = vunpack.c.l.s4 1966171168
      %v7886 = vunpack.c.0.s8 %v7885
      %v7887 = vlaneseq
      %v7888 = vshrl.u32 %v7887, 7
      %v7889 = vsub.s32 %v7886, %v7888
      %v7890 = vrot.slane %v7868, %v7889
      %v7892 = vunpack.c.l.s4 1966171168
      %v7893 = vunpack.c.0.s8 %v7892
      %v7894 = vlaneseq
      %v7895 = vshrl.u32 %v7894, 7
      %v7896 = vsub.s32 %v7893, %v7895
      %v7897 = vrot.slane %v7869, %v7896
      %v7898 = vcombine.low %v7876, %v7883
      %v7899 = vcombine.low %v7890, %v7897
      %v7901 = vunpack.c.l.s4 1966171168
      %v7902 = vunpack.c.0.s8 %v7901
      %v7903 = vlaneseq
      %v7904 = vshrl.u32 %v7903, 7
      %v7905 = vsub.s32 %v7902, %v7904
      %v7906 = vrot.slane %v7898, %v7905
      %v7908 = vunpack.c.l.s4 1966171168
      %v7909 = vunpack.c.0.s8 %v7908
      %v7910 = vlaneseq
      %v7911 = vshrl.u32 %v7910, 7
      %v7912 = vsub.s32 %v7909, %v7911
      %v7913 = vrot.slane %v7899, %v7912
      %v7914 = vcombine.low %v7906, %v7913
      %v7915 = vcombine.low %v7086, %v7100
      %v7916 = vcombine.low %v7108, %v7110
      %v7917 = vcombine.low %v7093, %v7107
      %v7918 = vcombine.low %v7109, %v7111
      %v7920 = vunpack.c.l.s4 1966171168
      %v7921 = vunpack.c.0.s8 %v7920
      %v7922 = vlaneseq
      %v7923 = vshrl.u32 %v7922, 7
      %v7924 = vsub.s32 %v7921, %v7923
      %v7925 = vrot.slane %v7915, %v7924
      %v7927 = vunpack.c.l.s4 1966171168
      %v7928 = vunpack.c.0.s8 %v7927
      %v7929 = vlaneseq
      %v7930 = vshrl.u32 %v7929, 7
      %v7931 = vsub.s32 %v7928, %v7930
      %v7932 = vrot.slane %v7916, %v7931
      %v7934 = vunpack.c.l.s4 1966171168
      %v7935 = vunpack.c.0.s8 %v7934
      %v7936 = vlaneseq
      %v7937 = vshrl.u32 %v7936, 7
      %v7938 = vsub.s32 %v7935, %v7937
      %v7939 = vrot.slane %v7917, %v7938
      %v7941 = vunpack.c.l.s4 1966171168
      %v7942 = vunpack.c.0.s8 %v7941
      %v7943 = vlaneseq
      %v7944 = vshrl.u32 %v7943, 7
      %v7945 = vsub.s32 %v7942, %v7944
      %v7946 = vrot.slane %v7918, %v7945
      %v7947 = vcombine.low %v7925, %v7932
      %v7948 = vcombine.low %v7939, %v7946
      %v7950 = vunpack.c.l.s4 1966171168
      %v7951 = vunpack.c.0.s8 %v7950
      %v7952 = vlaneseq
      %v7953 = vshrl.u32 %v7952, 7
      %v7954 = vsub.s32 %v7951, %v7953
      %v7955 = vrot.slane %v7947, %v7954
      %v7957 = vunpack.c.l.s4 1966171168
      %v7958 = vunpack.c.0.s8 %v7957
      %v7959 = vlaneseq
      %v7960 = vshrl.u32 %v7959, 7
      %v7961 = vsub.s32 %v7958, %v7960
      %v7962 = vrot.slane %v7948, %v7961
      %v7963 = vcombine.low %v7955, %v7962
      %v7964 = vcombine.low %v7149, %v7157
      %v7965 = vcombine.low %v7159, %v7142
      %v7966 = vcombine.low %v7156, %v7158
      %v7967 = vcombine.low %v7160, %v7184
      %v7969 = vunpack.c.l.s4 1966171168
      %v7970 = vunpack.c.0.s8 %v7969
      %v7971 = vlaneseq
      %v7972 = vshrl.u32 %v7971, 7
      %v7973 = vsub.s32 %v7970, %v7972
      %v7974 = vrot.slane %v7964, %v7973
      %v7976 = vunpack.c.l.s4 1966171168
      %v7977 = vunpack.c.0.s8 %v7976
      %v7978 = vlaneseq
      %v7979 = vshrl.u32 %v7978, 7
      %v7980 = vsub.s32 %v7977, %v7979
      %v7981 = vrot.slane %v7965, %v7980
      %v7983 = vunpack.c.l.s4 1966171168
      %v7984 = vunpack.c.0.s8 %v7983
      %v7985 = vlaneseq
      %v7986 = vshrl.u32 %v7985, 7
      %v7987 = vsub.s32 %v7984, %v7986
      %v7988 = vrot.slane %v7966, %v7987
      %v7990 = vunpack.c.l.s4 1966171168
      %v7991 = vunpack.c.0.s8 %v7990
      %v7992 = vlaneseq
      %v7993 = vshrl.u32 %v7992, 7
      %v7994 = vsub.s32 %v7991, %v7993
      %v7995 = vrot.slane %v7967, %v7994
      %v7996 = vcombine.low %v7974, %v7981
      %v7997 = vcombine.low %v7988, %v7995
      %v7999 = vunpack.c.l.s4 1966171168
      %v8000 = vunpack.c.0.s8 %v7999
      %v8001 = vlaneseq
      %v8002 = vshrl.u32 %v8001, 7
      %v8003 = vsub.s32 %v8000, %v8002
      %v8004 = vrot.slane %v7996, %v8003
      %v8006 = vunpack.c.l.s4 1966171168
      %v8007 = vunpack.c.0.s8 %v8006
      %v8008 = vlaneseq
      %v8009 = vshrl.u32 %v8008, 7
      %v8010 = vsub.s32 %v8007, %v8009
      %v8011 = vrot.slane %v7997, %v8010
      %v8012 = vcombine.low %v8004, %v8011
      %v8013 = vcombine.low %v7206, %v7208
      %v8014 = vcombine.low %v7191, %v7205
      %v8015 = vcombine.low %v7207, %v7209
      %v8016 = vcombine.low %v7233, %v7247
      %v8018 = vunpack.c.l.s4 1966171168
      %v8019 = vunpack.c.0.s8 %v8018
      %v8020 = vlaneseq
      %v8021 = vshrl.u32 %v8020, 7
      %v8022 = vsub.s32 %v8019, %v8021
      %v8023 = vrot.slane %v8013, %v8022
      %v8025 = vunpack.c.l.s4 1966171168
      %v8026 = vunpack.c.0.s8 %v8025
      %v8027 = vlaneseq
      %v8028 = vshrl.u32 %v8027, 7
      %v8029 = vsub.s32 %v8026, %v8028
      %v8030 = vrot.slane %v8014, %v8029
      %v8032 = vunpack.c.l.s4 1966171168
      %v8033 = vunpack.c.0.s8 %v8032
      %v8034 = vlaneseq
      %v8035 = vshrl.u32 %v8034, 7
      %v8036 = vsub.s32 %v8033, %v8035
      %v8037 = vrot.slane %v8015, %v8036
      %v8039 = vunpack.c.l.s4 1966171168
      %v8040 = vunpack.c.0.s8 %v8039
      %v8041 = vlaneseq
      %v8042 = vshrl.u32 %v8041, 7
      %v8043 = vsub.s32 %v8040, %v8042
      %v8044 = vrot.slane %v8016, %v8043
      %v8045 = vcombine.low %v8023, %v8030
      %v8046 = vcombine.low %v8037, %v8044
      %v8048 = vunpack.c.l.s4 1966171168
      %v8049 = vunpack.c.0.s8 %v8048
      %v8050 = vlaneseq
      %v8051 = vshrl.u32 %v8050, 7
      %v8052 = vsub.s32 %v8049, %v8051
      %v8053 = vrot.slane %v8045, %v8052
      %v8055 = vunpack.c.l.s4 1966171168
      %v8056 = vunpack.c.0.s8 %v8055
      %v8057 = vlaneseq
      %v8058 = vshrl.u32 %v8057, 7
      %v8059 = vsub.s32 %v8056, %v8058
      %v8060 = vrot.slane %v8046, %v8059
      %v8061 = vcombine.low %v8053, %v8060
      %v8062 = vcombine.low %v7256, %v7240
      %v8063 = vcombine.low %v7254, %v7255
      %v8064 = vcombine.low %v7257, %v7281
      %v8065 = vcombine.low %v7295, %v7303
      %v8067 = vunpack.c.l.s4 1966171168
      %v8068 = vunpack.c.0.s8 %v8067
      %v8069 = vlaneseq
      %v8070 = vshrl.u32 %v8069, 7
      %v8071 = vsub.s32 %v8068, %v8070
      %v8072 = vrot.slane %v8062, %v8071
      %v8074 = vunpack.c.l.s4 1966171168
      %v8075 = vunpack.c.0.s8 %v8074
      %v8076 = vlaneseq
      %v8077 = vshrl.u32 %v8076, 7
      %v8078 = vsub.s32 %v8075, %v8077
      %v8079 = vrot.slane %v8063, %v8078
      %v8081 = vunpack.c.l.s4 1966171168
      %v8082 = vunpack.c.0.s8 %v8081
      %v8083 = vlaneseq
      %v8084 = vshrl.u32 %v8083, 7
      %v8085 = vsub.s32 %v8082, %v8084
      %v8086 = vrot.slane %v8064, %v8085
      %v8088 = vunpack.c.l.s4 1966171168
      %v8089 = vunpack.c.0.s8 %v8088
      %v8090 = vlaneseq
      %v8091 = vshrl.u32 %v8090, 7
      %v8092 = vsub.s32 %v8089, %v8091
      %v8093 = vrot.slane %v8065, %v8092
      %v8094 = vcombine.low %v8072, %v8079
      %v8095 = vcombine.low %v8086, %v8093
      %v8097 = vunpack.c.l.s4 1966171168
      %v8098 = vunpack.c.0.s8 %v8097
      %v8099 = vlaneseq
      %v8100 = vshrl.u32 %v8099, 7
      %v8101 = vsub.s32 %v8098, %v8100
      %v8102 = vrot.slane %v8094, %v8101
      %v8104 = vunpack.c.l.s4 1966171168
      %v8105 = vunpack.c.0.s8 %v8104
      %v8106 = vlaneseq
      %v8107 = vshrl.u32 %v8106, 7
      %v8108 = vsub.s32 %v8105, %v8107
      %v8109 = vrot.slane %v8095, %v8108
      %v8110 = vcombine.low %v8102, %v8109
      %v8111 = vcombine.low %v7288, %v7302
      %v8112 = vcombine.low %v7304, %v7305
      %v8113 = vcombine.low %v7329, %v7343
      %v8114 = vcombine.low %v7351, %v7353
      %v8116 = vunpack.c.l.s4 1966171168
      %v8117 = vunpack.c.0.s8 %v8116
      %v8118 = vlaneseq
      %v8119 = vshrl.u32 %v8118, 7
      %v8120 = vsub.s32 %v8117, %v8119
      %v8121 = vrot.slane %v8111, %v8120
      %v8123 = vunpack.c.l.s4 1966171168
      %v8124 = vunpack.c.0.s8 %v8123
      %v8125 = vlaneseq
      %v8126 = vshrl.u32 %v8125, 7
      %v8127 = vsub.s32 %v8124, %v8126
      %v8128 = vrot.slane %v8112, %v8127
      %v8130 = vunpack.c.l.s4 1966171168
      %v8131 = vunpack.c.0.s8 %v8130
      %v8132 = vlaneseq
      %v8133 = vshrl.u32 %v8132, 7
      %v8134 = vsub.s32 %v8131, %v8133
      %v8135 = vrot.slane %v8113, %v8134
      %v8137 = vunpack.c.l.s4 1966171168
      %v8138 = vunpack.c.0.s8 %v8137
      %v8139 = vlaneseq
      %v8140 = vshrl.u32 %v8139, 7
      %v8141 = vsub.s32 %v8138, %v8140
      %v8142 = vrot.slane %v8114, %v8141
      %v8143 = vcombine.low %v8121, %v8128
      %v8144 = vcombine.low %v8135, %v8142
      %v8146 = vunpack.c.l.s4 1966171168
      %v8147 = vunpack.c.0.s8 %v8146
      %v8148 = vlaneseq
      %v8149 = vshrl.u32 %v8148, 7
      %v8150 = vsub.s32 %v8147, %v8149
      %v8151 = vrot.slane %v8143, %v8150
      %v8153 = vunpack.c.l.s4 1966171168
      %v8154 = vunpack.c.0.s8 %v8153
      %v8155 = vlaneseq
      %v8156 = vshrl.u32 %v8155, 7
      %v8157 = vsub.s32 %v8154, %v8156
      %v8158 = vrot.slane %v8144, %v8157
      %v8159 = vcombine.low %v8151, %v8158
      %v8160 = vcombine.low %v7350, %v7352
      %v8161 = vcombine.low %v7354, %v7378
      %v8162 = vcombine.low %v7392, %v7400
      %v8163 = vcombine.low %v7402, %v7385
      %v8165 = vunpack.c.l.s4 1966171168
      %v8166 = vunpack.c.0.s8 %v8165
      %v8167 = vlaneseq
      %v8168 = vshrl.u32 %v8167, 7
      %v8169 = vsub.s32 %v8166, %v8168
      %v8170 = vrot.slane %v8160, %v8169
      %v8172 = vunpack.c.l.s4 1966171168
      %v8173 = vunpack.c.0.s8 %v8172
      %v8174 = vlaneseq
      %v8175 = vshrl.u32 %v8174, 7
      %v8176 = vsub.s32 %v8173, %v8175
      %v8177 = vrot.slane %v8161, %v8176
      %v8179 = vunpack.c.l.s4 1966171168
      %v8180 = vunpack.c.0.s8 %v8179
      %v8181 = vlaneseq
      %v8182 = vshrl.u32 %v8181, 7
      %v8183 = vsub.s32 %v8180, %v8182
      %v8184 = vrot.slane %v8162, %v8183
      %v8186 = vunpack.c.l.s4 1966171168
      %v8187 = vunpack.c.0.s8 %v8186
      %v8188 = vlaneseq
      %v8189 = vshrl.u32 %v8188, 7
      %v8190 = vsub.s32 %v8187, %v8189
      %v8191 = vrot.slane %v8163, %v8190
      %v8192 = vcombine.low %v8170, %v8177
      %v8193 = vcombine.low %v8184, %v8191
      %v8195 = vunpack.c.l.s4 1966171168
      %v8196 = vunpack.c.0.s8 %v8195
      %v8197 = vlaneseq
      %v8198 = vshrl.u32 %v8197, 7
      %v8199 = vsub.s32 %v8196, %v8198
      %v8200 = vrot.slane %v8192, %v8199
      %v8202 = vunpack.c.l.s4 1966171168
      %v8203 = vunpack.c.0.s8 %v8202
      %v8204 = vlaneseq
      %v8205 = vshrl.u32 %v8204, 7
      %v8206 = vsub.s32 %v8203, %v8205
      %v8207 = vrot.slane %v8193, %v8206
      %v8208 = vcombine.low %v8200, %v8207
      %v8209 = vcombine.low %v7401, %v7403
      %v8210 = vcombine.low %v7427, %v7441
      %v8211 = vcombine.low %v7449, %v7450
      %v8212 = vcombine.low %v7434, %v7448
      %v8214 = vunpack.c.l.s4 1966171168
      %v8215 = vunpack.c.0.s8 %v8214
      %v8216 = vlaneseq
      %v8217 = vshrl.u32 %v8216, 7
      %v8218 = vsub.s32 %v8215, %v8217
      %v8219 = vrot.slane %v8209, %v8218
      %v8221 = vunpack.c.l.s4 1966171168
      %v8222 = vunpack.c.0.s8 %v8221
      %v8223 = vlaneseq
      %v8224 = vshrl.u32 %v8223, 7
      %v8225 = vsub.s32 %v8222, %v8224
      %v8226 = vrot.slane %v8210, %v8225
      %v8228 = vunpack.c.l.s4 1966171168
      %v8229 = vunpack.c.0.s8 %v8228
      %v8230 = vlaneseq
      %v8231 = vshrl.u32 %v8230, 7
      %v8232 = vsub.s32 %v8229, %v8231
      %v8233 = vrot.slane %v8211, %v8232
      %v8235 = vunpack.c.l.s4 1966171168
      %v8236 = vunpack.c.0.s8 %v8235
      %v8237 = vlaneseq
      %v8238 = vshrl.u32 %v8237, 7
      %v8239 = vsub.s32 %v8236, %v8238
      %v8240 = vrot.slane %v8212, %v8239
      %v8241 = vcombine.low %v8219, %v8226
      %v8242 = vcombine.low %v8233, %v8240
      %v8244 = vunpack.c.l.s4 1966171168
      %v8245 = vunpack.c.0.s8 %v8244
      %v8246 = vlaneseq
      %v8247 = vshrl.u32 %v8246, 7
      %v8248 = vsub.s32 %v8245, %v8247
      %v8249 = vrot.slane %v8241, %v8248
      %v8251 = vunpack.c.l.s4 1966171168
      %v8252 = vunpack.c.0.s8 %v8251
      %v8253 = vlaneseq
      %v8254 = vshrl.u32 %v8253, 7
      %v8255 = vsub.s32 %v8252, %v8254
      %v8256 = vrot.slane %v8242, %v8255
      %v8257 = vcombine.low %v8249, %v8256
      %v8258 = vcombine.low %v7451, %v7475
      %v8259 = vcombine.low %v7489, %v7497
      %v8260 = vcombine.low %v7499, %v7482
      %v8261 = vcombine.low %v7496, %v7498
      %v8263 = vunpack.c.l.s4 1966171168
      %v8264 = vunpack.c.0.s8 %v8263
      %v8265 = vlaneseq
      %v8266 = vshrl.u32 %v8265, 7
      %v8267 = vsub.s32 %v8264, %v8266
      %v8268 = vrot.slane %v8258, %v8267
      %v8270 = vunpack.c.l.s4 1966171168
      %v8271 = vunpack.c.0.s8 %v8270
      %v8272 = vlaneseq
      %v8273 = vshrl.u32 %v8272, 7
      %v8274 = vsub.s32 %v8271, %v8273
      %v8275 = vrot.slane %v8259, %v8274
      %v8277 = vunpack.c.l.s4 1966171168
      %v8278 = vunpack.c.0.s8 %v8277
      %v8279 = vlaneseq
      %v8280 = vshrl.u32 %v8279, 7
      %v8281 = vsub.s32 %v8278, %v8280
      %v8282 = vrot.slane %v8260, %v8281
      %v8284 = vunpack.c.l.s4 1966171168
      %v8285 = vunpack.c.0.s8 %v8284
      %v8286 = vlaneseq
      %v8287 = vshrl.u32 %v8286, 7
      %v8288 = vsub.s32 %v8285, %v8287
      %v8289 = vrot.slane %v8261, %v8288
      %v8290 = vcombine.low %v8268, %v8275
      %v8291 = vcombine.low %v8282, %v8289
      %v8293 = vunpack.c.l.s4 1966171168
      %v8294 = vunpack.c.0.s8 %v8293
      %v8295 = vlaneseq
      %v8296 = vshrl.u32 %v8295, 7
      %v8297 = vsub.s32 %v8294, %v8296
      %v8298 = vrot.slane %v8290, %v8297
      %v8300 = vunpack.c.l.s4 1966171168
      %v8301 = vunpack.c.0.s8 %v8300
      %v8302 = vlaneseq
      %v8303 = vshrl.u32 %v8302, 7
      %v8304 = vsub.s32 %v8301, %v8303
      %v8305 = vrot.slane %v8291, %v8304
      %v8306 = vcombine.low %v8298, %v8305
      %v8339 = vunpack.c.l.b16 %v7500
      %v8340 = vunpack.c.l.b16 %v7501
      %v8341 = vunpack.c.l.b16 %v7502
      %v8342 = vunpack.c.l.b16 %v7503
      %v8343 = vunpack.c.l.b16 %v7504
      %v8344 = vunpack.c.l.b16 %v7505
      %v8345 = vunpack.c.l.b16 %v7506
      %v8346 = vunpack.c.l.b16 %v7507
      %v8347 = vunpack.c.l.b16 %v7508
      %v8348 = vunpack.c.l.b16 %v7509
      %v8349 = vunpack.c.l.b16 %v7510
      %v8350 = vunpack.c.l.b16 %v7511
      %v8351 = vunpack.c.l.b16 %v7512
      %v8352 = vunpack.c.l.b16 %v7513
      %v8353 = vunpack.c.l.b16 %v7514
      %v8354 = vunpack.c.l.b16 %v7515
      %v8355 = vpack.c.b16 %v8340, %v8339
      %v8356 = vpack.c.b16 %v8342, %v8341
      %v8357 = vpack.c.b16 %v8344, %v8343
      %v8358 = vpack.c.b16 %v8346, %v8345
      %v8359 = vpack.c.b16 %v8348, %v8347
      %v8360 = vpack.c.b16 %v8350, %v8349
      %v8361 = vpack.c.b16 %v8352, %v8351
      %v8362 = vpack.c.b16 %v8354, %v8353
      %8371 = vmatprep.subr.bf16.mxu0 0
      %8372 = vmatpush1.bf16.msra.mxu0 %v8362
      %8373 = vmatprep.subr.bf16.mxu0 0
      %8374 = vmatpush1.bf16.msra.mxu0 %v8361
      %8375 = vmatprep.subr.bf16.mxu0 0
      %8376 = vmatpush1.bf16.msra.mxu0 %v8360
      %8377 = vmatprep.subr.bf16.mxu0 0
      %8378 = vmatpush1.bf16.msra.mxu0 %v8359
      %8379 = vmatprep.subr.bf16.mxu0 0
      %8380 = vmatpush1.bf16.msra.mxu0 %v8358
      %8381 = vmatprep.subr.bf16.mxu0 0
      %8382 = vmatpush1.bf16.msra.mxu0 %v8357
      %8383 = vmatprep.subr.bf16.mxu0 0
      %8384 = vmatpush1.bf16.msra.mxu0 %v8356
      %8385 = vmatprep.subr.bf16.mxu0 0
      %8386 = vmatpush1.bf16.msra.mxu0 %v8355
      %8387 = vmatprep.subr.bf16.mxu0 0
      %8388 = vmatpush2.bf16.msra.mxu0 0
      %8389 = vmatprep.subr.bf16.mxu0 0
      %8390 = vmatpush2.bf16.msra.mxu0 0
      %8391 = vmatprep.subr.bf16.mxu0 0
      %8392 = vmatpush2.bf16.msra.mxu0 0
      %8393 = vmatprep.subr.bf16.mxu0 0
      %8394 = vmatpush2.bf16.msra.mxu0 0
      %8395 = vmatprep.subr.bf16.mxu0 0
      %8396 = vmatpush2.bf16.msra.mxu0 0
      %8397 = vmatprep.subr.bf16.mxu0 0
      %8398 = vmatpush2.bf16.msra.mxu0 0
      %8399 = vmatprep.subr.bf16.mxu0 0
      %8400 = vmatpush2.bf16.msra.mxu0 0
      %8401 = vmatprep.subr.bf16.mxu0 0
      %8402 = vmatpush2.bf16.msra.mxu0 0
      %8403 = vmatprep.mubr.bf16.mxu0 0
      %8404 = vmatmul.mubr.bf16.gmra.mxu0 %v7571
      %v8405 = vpop.f32.mrf.mxu0
      %v8406 = vadd.f32 %v7521, %v8405
      %v8407 = vpop.f32.mrf.mxu0
      %v8408 = vpop.f32.mrf.mxu0
      %v8409 = vadd.f32 %v7521, %v8408
      %v8410 = vpop.f32.mrf.mxu0
      %8411 = vmatprep.mubr.bf16.mxu0 0
      %8412 = vmatmul.mubr.bf16.gmra.mxu0 %v7620
      %v8413 = vpop.f32.mrf.mxu0
      %v8414 = vadd.f32 %v7521, %v8413
      %v8415 = vpop.f32.mrf.mxu0
      %v8416 = vpop.f32.mrf.mxu0
      %v8417 = vadd.f32 %v7521, %v8416
      %v8418 = vpop.f32.mrf.mxu0
      %8419 = vmatprep.mubr.bf16.mxu0 0
      %8420 = vmatmul.mubr.bf16.gmra.mxu0 %v7669
      %v8421 = vpop.f32.mrf.mxu0
      %v8422 = vadd.f32 %v7521, %v8421
      %v8423 = vpop.f32.mrf.mxu0
      %v8424 = vpop.f32.mrf.mxu0
      %v8425 = vadd.f32 %v7521, %v8424
      %v8426 = vpop.f32.mrf.mxu0
      %8427 = vmatprep.mubr.bf16.mxu0 0
      %8428 = vmatmul.mubr.bf16.gmra.mxu0 %v7718
      %v8429 = vpop.f32.mrf.mxu0
      %v8430 = vadd.f32 %v7521, %v8429
      %v8431 = vpop.f32.mrf.mxu0
      %v8432 = vpop.f32.mrf.mxu0
      %v8433 = vadd.f32 %v7521, %v8432
      %v8434 = vpop.f32.mrf.mxu0
      %8435 = vmatprep.mubr.bf16.mxu0 0
      %8436 = vmatmul.mubr.bf16.gmra.mxu0 %v7767
      %v8437 = vpop.f32.mrf.mxu0
      %v8438 = vadd.f32 %v7521, %v8437
      %v8439 = vpop.f32.mrf.mxu0
      %v8440 = vpop.f32.mrf.mxu0
      %v8441 = vadd.f32 %v7521, %v8440
      %v8442 = vpop.f32.mrf.mxu0
      %8443 = vmatprep.mubr.bf16.mxu0 0
      %8444 = vmatmul.mubr.bf16.gmra.mxu0 %v7816
      %v8445 = vpop.f32.mrf.mxu0
      %v8446 = vadd.f32 %v7521, %v8445
      %v8447 = vpop.f32.mrf.mxu0
      %v8448 = vpop.f32.mrf.mxu0
      %v8449 = vadd.f32 %v7521, %v8448
      %v8450 = vpop.f32.mrf.mxu0
      %8451 = vmatprep.mubr.bf16.mxu0 0
      %8452 = vmatmul.mubr.bf16.gmra.mxu0 %v7865
      %v8453 = vpop.f32.mrf.mxu0
      %v8454 = vadd.f32 %v7521, %v8453
      %v8455 = vpop.f32.mrf.mxu0
      %v8456 = vpop.f32.mrf.mxu0
      %v8457 = vadd.f32 %v7521, %v8456
      %v8458 = vpop.f32.mrf.mxu0
      %8459 = vmatprep.mubr.bf16.mxu0 0
      %8460 = vmatmul.mubr.bf16.gmra.mxu0 %v7914
      %v8461 = vpop.f32.mrf.mxu0
      %v8462 = vadd.f32 %v7521, %v8461
      %v8463 = vpop.f32.mrf.mxu0
      %v8464 = vpop.f32.mrf.mxu0
      %v8465 = vadd.f32 %v7521, %v8464
      %v8466 = vpop.f32.mrf.mxu0
      %8467 = vmatprep.mubr.bf16.mxu0 0
      %8468 = vmatmul.mubr.bf16.gmra.mxu0 %v7963
      %v8469 = vpop.f32.mrf.mxu0
      %v8470 = vadd.f32 %v7521, %v8469
      %v8471 = vpop.f32.mrf.mxu0
      %v8472 = vpop.f32.mrf.mxu0
      %v8473 = vadd.f32 %v7521, %v8472
      %v8474 = vpop.f32.mrf.mxu0
      %8475 = vmatprep.mubr.bf16.mxu0 0
      %8476 = vmatmul.mubr.bf16.gmra.mxu0 %v8012
      %v8477 = vpop.f32.mrf.mxu0
      %v8478 = vadd.f32 %v7521, %v8477
      %v8479 = vpop.f32.mrf.mxu0
      %v8480 = vpop.f32.mrf.mxu0
      %v8481 = vadd.f32 %v7521, %v8480
      %v8482 = vpop.f32.mrf.mxu0
      %8483 = vmatprep.mubr.bf16.mxu0 0
      %8484 = vmatmul.mubr.bf16.gmra.mxu0 %v8061
      %v8485 = vpop.f32.mrf.mxu0
      %v8486 = vadd.f32 %v7521, %v8485
      %v8487 = vpop.f32.mrf.mxu0
      %v8488 = vpop.f32.mrf.mxu0
      %v8489 = vadd.f32 %v7521, %v8488
      %v8490 = vpop.f32.mrf.mxu0
      %8491 = vmatprep.mubr.bf16.mxu0 0
      %8492 = vmatmul.mubr.bf16.gmra.mxu0 %v8110
      %v8493 = vpop.f32.mrf.mxu0
      %v8494 = vadd.f32 %v7521, %v8493
      %v8495 = vpop.f32.mrf.mxu0
      %v8496 = vpop.f32.mrf.mxu0
      %v8497 = vadd.f32 %v7521, %v8496
      %v8498 = vpop.f32.mrf.mxu0
      %8499 = vmatprep.mubr.bf16.mxu0 0
      %8500 = vmatmul.mubr.bf16.gmra.mxu0 %v8159
      %v8501 = vpop.f32.mrf.mxu0
      %v8502 = vadd.f32 %v7521, %v8501
      %v8503 = vpop.f32.mrf.mxu0
      %v8504 = vpop.f32.mrf.mxu0
      %v8505 = vadd.f32 %v7521, %v8504
      %v8506 = vpop.f32.mrf.mxu0
      %8507 = vmatprep.mubr.bf16.mxu0 0
      %8508 = vmatmul.mubr.bf16.gmra.mxu0 %v8208
      %v8509 = vpop.f32.mrf.mxu0
      %v8510 = vadd.f32 %v7521, %v8509
      %v8511 = vpop.f32.mrf.mxu0
      %v8512 = vpop.f32.mrf.mxu0
      %v8513 = vadd.f32 %v7521, %v8512
      %v8514 = vpop.f32.mrf.mxu0
      %8515 = vmatprep.mubr.bf16.mxu0 0
      %8516 = vmatmul.mubr.bf16.gmra.mxu0 %v8257
      %v8517 = vpop.f32.mrf.mxu0
      %v8518 = vadd.f32 %v7521, %v8517
      %v8519 = vpop.f32.mrf.mxu0
      %v8520 = vpop.f32.mrf.mxu0
      %v8521 = vadd.f32 %v7521, %v8520
      %v8522 = vpop.f32.mrf.mxu0
      %8523 = vmatprep.mubr.bf16.mxu0 0
      %8524 = vmatmul.mubr.bf16.gmra.mxu0 %v8306
      %v8525 = vpop.f32.mrf.mxu0
      %v8526 = vadd.f32 %v7521, %v8525
      %v8527 = vpop.f32.mrf.mxu0
      %v8528 = vpop.f32.mrf.mxu0
      %v8529 = vadd.f32 %v7521, %v8528
      %v8530 = vpop.f32.mrf.mxu0
      %8531 = vdwg.mxu0
      %v8532 = vunpack.c.l.bf16 %v323
      %v8533 = vunpack.c.l.bf16 %v324
      %v8534 = vunpack.c.l.bf16 %v325
      %v8535 = vunpack.c.l.bf16 %v326
      %v8536 = vunpack.c.l.bf16 %v327
      %v8537 = vunpack.c.l.bf16 %v328
      %v8538 = vunpack.c.l.bf16 %v329
      %v8539 = vunpack.c.l.bf16 %v330
      %v8540 = vunpack.c.l.bf16 %v331
      %v8541 = vunpack.c.l.bf16 %v332
      %v8542 = vunpack.c.l.bf16 %v333
      %v8543 = vunpack.c.l.bf16 %v334
      %v8544 = vunpack.c.l.bf16 %v335
      %v8545 = vunpack.c.l.bf16 %v336
      %v8546 = vunpack.c.l.bf16 %v337
      %v8547 = vunpack.c.l.bf16 %v338
      %v8548 = vunpack.c.l.bf16 %v339
      %v8549 = vunpack.c.l.bf16 %v340
      %v8550 = vunpack.c.l.bf16 %v341
      %v8551 = vunpack.c.l.bf16 %v342
      %v8552 = vunpack.c.l.bf16 %v343
      %v8553 = vunpack.c.l.bf16 %v344
      %v8554 = vunpack.c.l.bf16 %v345
      %v8555 = vunpack.c.l.bf16 %v346
      %v8556 = vunpack.c.l.bf16 %v347
      %v8557 = vunpack.c.l.bf16 %v348
      %v8558 = vunpack.c.l.bf16 %v349
      %v8559 = vunpack.c.l.bf16 %v350
      %v8560 = vunpack.c.l.bf16 %v351
      %v8561 = vunpack.c.l.bf16 %v352
      %v8562 = vunpack.c.l.bf16 %v353
      %v8563 = vunpack.c.l.bf16 %v354
      %v8564 = vadd.f32 %v8406, %v8532
      %v8565 = vadd.f32 %v8409, %v8533
      %v8566 = vadd.f32 %v8414, %v8534
      %v8567 = vadd.f32 %v8417, %v8535
      %v8568 = vadd.f32 %v8422, %v8536
      %v8569 = vadd.f32 %v8425, %v8537
      %v8570 = vadd.f32 %v8430, %v8538
      %v8571 = vadd.f32 %v8433, %v8539
      %v8572 = vadd.f32 %v8438, %v8540
      %v8573 = vadd.f32 %v8441, %v8541
      %v8574 = vadd.f32 %v8446, %v8542
      %v8575 = vadd.f32 %v8449, %v8543
      %v8576 = vadd.f32 %v8454, %v8544
      %v8577 = vadd.f32 %v8457, %v8545
      %v8578 = vadd.f32 %v8462, %v8546
      %v8579 = vadd.f32 %v8465, %v8547
      %v8580 = vadd.f32 %v8470, %v8548
      %v8581 = vadd.f32 %v8473, %v8549
      %v8582 = vadd.f32 %v8478, %v8550
      %v8583 = vadd.f32 %v8481, %v8551
      %v8584 = vadd.f32 %v8486, %v8552
      %v8585 = vadd.f32 %v8489, %v8553
      %v8586 = vadd.f32 %v8494, %v8554
      %v8587 = vadd.f32 %v8497, %v8555
      %v8588 = vadd.f32 %v8502, %v8556
      %v8589 = vadd.f32 %v8505, %v8557
      %v8590 = vadd.f32 %v8510, %v8558
      %v8591 = vadd.f32 %v8513, %v8559
      %v8592 = vadd.f32 %v8518, %v8560
      %v8593 = vadd.f32 %v8521, %v8561
      %v8594 = vadd.f32 %v8526, %v8562
      %v8595 = vadd.f32 %v8529, %v8563
      %v8596 = vmax.f32 %v8564, 0.0
      %v8597 = vmax.f32 %v8565, 0.0
      %v8598 = vmax.f32 %v8566, 0.0
      %v8599 = vmax.f32 %v8567, 0.0
      %v8600 = vmax.f32 %v8568, 0.0
      %v8601 = vmax.f32 %v8569, 0.0
      %v8602 = vmax.f32 %v8570, 0.0
      %v8603 = vmax.f32 %v8571, 0.0
      %v8604 = vmax.f32 %v8572, 0.0
      %v8605 = vmax.f32 %v8573, 0.0
      %v8606 = vmax.f32 %v8574, 0.0
      %v8607 = vmax.f32 %v8575, 0.0
      %v8608 = vmax.f32 %v8576, 0.0
      %v8609 = vmax.f32 %v8577, 0.0
      %v8610 = vmax.f32 %v8578, 0.0
      %v8611 = vmax.f32 %v8579, 0.0
      %v8612 = vmax.f32 %v8580, 0.0
      %v8613 = vmax.f32 %v8581, 0.0
      %v8614 = vmax.f32 %v8582, 0.0
      %v8615 = vmax.f32 %v8583, 0.0
      %v8616 = vmax.f32 %v8584, 0.0
      %v8617 = vmax.f32 %v8585, 0.0
      %v8618 = vmax.f32 %v8586, 0.0
      %v8619 = vmax.f32 %v8587, 0.0
      %v8620 = vmax.f32 %v8588, 0.0
      %v8621 = vmax.f32 %v8589, 0.0
      %v8622 = vmax.f32 %v8590, 0.0
      %v8623 = vmax.f32 %v8591, 0.0
      %v8624 = vmax.f32 %v8592, 0.0
      %v8625 = vmax.f32 %v8593, 0.0
      %v8626 = vmax.f32 %v8594, 0.0
      %v8627 = vmax.f32 %v8595, 0.0
      %v8628 = vpack.c.bf16 %v8597, %v8596
      %v8629 = vpack.c.bf16 %v8599, %v8598
      %v8630 = vpack.c.bf16 %v8601, %v8600
      %v8631 = vpack.c.bf16 %v8603, %v8602
      %v8632 = vpack.c.bf16 %v8605, %v8604
      %v8633 = vpack.c.bf16 %v8607, %v8606
      %v8634 = vpack.c.bf16 %v8609, %v8608
      %v8635 = vpack.c.bf16 %v8611, %v8610
      %v8636 = vpack.c.bf16 %v8613, %v8612
      %v8637 = vpack.c.bf16 %v8615, %v8614
      %v8638 = vpack.c.bf16 %v8617, %v8616
      %v8639 = vpack.c.bf16 %v8619, %v8618
      %v8640 = vpack.c.bf16 %v8621, %v8620
      %v8641 = vpack.c.bf16 %v8623, %v8622
      %v8642 = vpack.c.bf16 %v8625, %v8624
      %v8643 = vpack.c.bf16 %v8627, %v8626
      %v8660 = vunpack.c.l.b16 %v8628
      %v8661 = vunpack.c.h.b16 %v8628
      %v8662 = vunpack.c.l.b16 %v8629
      %v8663 = vunpack.c.h.b16 %v8629
      %v8664 = vunpack.c.l.b16 %v8630
      %v8665 = vunpack.c.h.b16 %v8630
      %v8666 = vunpack.c.l.b16 %v8631
      %v8667 = vunpack.c.h.b16 %v8631
      %v8668 = vunpack.c.l.b16 %v8632
      %v8669 = vunpack.c.h.b16 %v8632
      %v8670 = vunpack.c.l.b16 %v8633
      %v8671 = vunpack.c.h.b16 %v8633
      %v8672 = vunpack.c.l.b16 %v8634
      %v8673 = vunpack.c.h.b16 %v8634
      %v8674 = vunpack.c.l.b16 %v8635
      %v8675 = vunpack.c.h.b16 %v8635
      %v8676 = vunpack.c.l.b16 %v8636
      %v8677 = vunpack.c.h.b16 %v8636
      %v8678 = vunpack.c.l.b16 %v8637
      %v8679 = vunpack.c.h.b16 %v8637
      %v8680 = vunpack.c.l.b16 %v8638
      %v8681 = vunpack.c.h.b16 %v8638
      %v8682 = vunpack.c.l.b16 %v8639
      %v8683 = vunpack.c.h.b16 %v8639
      %v8684 = vunpack.c.l.b16 %v8640
      %v8685 = vunpack.c.h.b16 %v8640
      %v8686 = vunpack.c.l.b16 %v8641
      %v8687 = vunpack.c.h.b16 %v8641
      %v8688 = vunpack.c.l.b16 %v8642
      %v8689 = vunpack.c.h.b16 %v8642
      %v8690 = vunpack.c.l.b16 %v8643
      %v8691 = vunpack.c.h.b16 %v8643
      %v8692 = vpack.c.b16 %v8660, %v8660
      %v8693 = vpack.c.b16 %v8661, %v8661
      %v8694 = vpack.c.b16 %v8662, %v8662
      %v8695 = vpack.c.b16 %v8663, %v8663
      %v8696 = vpack.c.b16 %v8664, %v8664
      %v8697 = vpack.c.b16 %v8665, %v8665
      %v8698 = vpack.c.b16 %v8666, %v8666
      %v8699 = vpack.c.b16 %v8667, %v8667
      %v8700 = vpack.c.b16 %v8668, %v8668
      %v8701 = vpack.c.b16 %v8669, %v8669
      %v8702 = vpack.c.b16 %v8670, %v8670
      %v8703 = vpack.c.b16 %v8671, %v8671
      %v8704 = vpack.c.b16 %v8672, %v8672
      %v8705 = vpack.c.b16 %v8673, %v8673
      %v8706 = vpack.c.b16 %v8674, %v8674
      %v8707 = vpack.c.b16 %v8675, %v8675
      %v8708 = vpack.c.b16 %v8676, %v8676
      %v8709 = vpack.c.b16 %v8677, %v8677
      %v8710 = vpack.c.b16 %v8678, %v8678
      %v8711 = vpack.c.b16 %v8679, %v8679
      %v8712 = vpack.c.b16 %v8680, %v8680
      %v8713 = vpack.c.b16 %v8681, %v8681
      %v8714 = vpack.c.b16 %v8682, %v8682
      %v8715 = vpack.c.b16 %v8683, %v8683
      %v8716 = vpack.c.b16 %v8684, %v8684
      %v8717 = vpack.c.b16 %v8685, %v8685
      %v8718 = vpack.c.b16 %v8686, %v8686
      %v8719 = vpack.c.b16 %v8687, %v8687
      %v8720 = vpack.c.b16 %v8688, %v8688
      %v8721 = vpack.c.b16 %v8689, %v8689
      %v8722 = vpack.c.b16 %v8690, %v8690
      %v8723 = vpack.c.b16 %v8691, %v8691
      %8756 = vst [vmem:[%s278] sm:$0xf] %v8692
      %8757 = vst [vmem:[%s278 + $0x4] sm:$0xf] %v8693
      %8758 = vst [vmem:[%s278 + $0x8] sm:$0xf] %v8694
      %8759 = vst [vmem:[%s278 + $0xc] sm:$0xf] %v8695
      %8760 = vst [vmem:[%s278 + $0x10] sm:$0xf] %v8696
      %8761 = vst [vmem:[%s278 + $0x14] sm:$0xf] %v8697
      %8762 = vst [vmem:[%s278 + $0x18] sm:$0xf] %v8698
      %8763 = vst [vmem:[%s278 + $0x1c] sm:$0xf] %v8699
      %8764 = vst [vmem:[%s278 + $0x20] sm:$0xf] %v8700
      %8765 = vst [vmem:[%s278 + $0x24] sm:$0xf] %v8701
      %8766 = vst [vmem:[%s278 + $0x28] sm:$0xf] %v8702
      %8767 = vst [vmem:[%s278 + $0x2c] sm:$0xf] %v8703
      %8768 = vst [vmem:[%s278 + $0x30] sm:$0xf] %v8704
      %8769 = vst [vmem:[%s278 + $0x34] sm:$0xf] %v8705
      %8770 = vst [vmem:[%s278 + $0x38] sm:$0xf] %v8706
      %8771 = vst [vmem:[%s278 + $0x3c] sm:$0xf] %v8707
      %8772 = vst [vmem:[%s278 + $0x40] sm:$0xf] %v8708
      %8773 = vst [vmem:[%s278 + $0x44] sm:$0xf] %v8709
      %8774 = vst [vmem:[%s278 + $0x48] sm:$0xf] %v8710
      %8775 = vst [vmem:[%s278 + $0x4c] sm:$0xf] %v8711
      %8776 = vst [vmem:[%s278 + $0x50] sm:$0xf] %v8712
      %8777 = vst [vmem:[%s278 + $0x54] sm:$0xf] %v8713
      %8778 = vst [vmem:[%s278 + $0x58] sm:$0xf] %v8714
      %8779 = vst [vmem:[%s278 + $0x5c] sm:$0xf] %v8715
      %8780 = vst [vmem:[%s278 + $0x60] sm:$0xf] %v8716
      %8781 = vst [vmem:[%s278 + $0x64] sm:$0xf] %v8717
      %8782 = vst [vmem:[%s278 + $0x68] sm:$0xf] %v8718
      %8783 = vst [vmem:[%s278 + $0x6c] sm:$0xf] %v8719
      %8784 = vst [vmem:[%s278 + $0x70] sm:$0xf] %v8720
      %8785 = vst [vmem:[%s278 + $0x74] sm:$0xf] %v8721
      %8786 = vst [vmem:[%s278 + $0x78] sm:$0xf] %v8722
      %8787 = vst [vmem:[%s278 + $0x7c] sm:$0xf] %v8723
      %p8788 = scmp.lt.s32.totalorder %s18, 1
      %s8789 = scalar_select %p8788, %s18, 1
      %s8790 = smul.addr %s8789, 32
      %s8791 = smul.addr %s8790, 4
      %s8792 = scalar_lea.vmem %s7, %s8791
      // Predicated region
      $region49: #{bottleneck_forward.1} parent=47 // pred_check
        %p8793 = pneg %p188
      $region50: #{bottleneck_forward.1} parent=47 // pred_check_branch
        %8795 = sbr.rel (%p8793) target = $region52
      $region51: #{bottleneck_forward.1} parent=47 // pred_region
        _
      $region52: #{bottleneck_forward.1} parent=47 // pred_fallthru
        _
    $region48: #{bottleneck_forward.1} parent=5 // pred_fallthru
      _
    %p8796 = scmp.le.s32.totalorder 2, %s13
    // Predicated region
    $region53: #{bottleneck_forward.1} parent=5 // pred_check
      %p8797 = pneg %p8796
    $region54: #{bottleneck_forward.1} parent=5 // pred_check_branch
      %8799 = sbr.rel (%p8797) target = $region56
    $region55: #{bottleneck_forward.1} parent=5 // pred_region
      %s8800 = ssub.s32 %s13, 2
      // Predicated region
      $region57: #{bottleneck_forward.1} parent=55 // pred_check
        %p8801 = pneg %p194
      $region58: #{bottleneck_forward.1} parent=55 // pred_check_branch
        %8803 = sbr.rel (%p8801) target = $region60
      $region59: #{bottleneck_forward.1} parent=55 // pred_region
        %p8804 = scmp.lt.s32.totalorder %s19, 1
        %s8805 = scalar_select %p8804, %s19, 1
        %s8806 = smul.addr %s8805, 32
        %s8807 = smul.addr %s8806, 4
        %s8808 = scalar_lea.vmem %s7, %s8807
      $region60: #{bottleneck_forward.1} parent=55 // pred_fallthru
        _
    $region56: #{bottleneck_forward.1} parent=5 // pred_fallthru
      _
  $region6: #{bottleneck_forward.1} parent=0 // loop_footer
    %s17 = sadd.s32 1, %s13
  $region7: #{bottleneck_forward.1} parent=0 // loop_footer_branch
    %12 = sbr.rel target = $region3
  $region8: #{bottleneck_forward.1} parent=0 // loop_exit
    _

</llo_original>
